<compile_context>
chip_gen: v6e
topology: v6e:2x2x1
jax: 0.10.0
libtpu: 0.0.40
codegen_flags: <defaults>
</compile_context>

<pallas_src>
import jax
import jax.numpy as jnp
from jax import lax
from jax.experimental import pallas as pl
from jax.experimental.pallas import tpu as pltpu

EPS = 1e-5

# fixed module geometry (resnet50 block: [1,256,14,14] -> [1,1024,14,14])
N, CIN, H, W = 1, 256, 14, 14
CMID, COUT = 256, 1024
HP, WP = H + 2, W + 2            # padded spatial grid: 16 x 16
MP = HP * WP                     # 256 rows on the padded grid (sublane aligned)
N_VALID = N * H * W              # 196 real pixels -> BN divisor
INV_N = 1.0 / N_VALID
PAD_TOP = 24                     # extra zero rows so every shifted view is in-bounds
ROWS = PAD_TOP + MP + 24         # 304 rows total (multiple of 8)
# flattened-row shift for each 3x3 tap, kh-major / kw-minor (matches weight repack)
SHIFTS = tuple((kh - 1) * WP + (kw - 1) for kh in range(3) for kw in range(3))


def fused_kernel(x_ref, w1_ref, g1_ref, b1_ref, w2_ref, g2_ref, b2_ref, out_ref):
    # mask of the 196 valid pixels inside the 16x16 padded grid (WP == 16)
    row = lax.broadcasted_iota(jnp.int32, (MP, 1), 0)
    hp = lax.shift_right_logical(row, 4)          # row // 16
    wp = jnp.bitwise_and(row, WP - 1)             # row % 16
    valid = (hp >= 1) & (hp <= H) & (wp >= 1) & (wp <= W)
    mask = valid.astype(jnp.float32)              # [MP, 1]

    # --- conv3x3: 9 shifted bf16 matmuls, f32 accumulation (in-kernel im2col)
    acc = jnp.zeros((MP, CMID), jnp.float32)
    for t, d in enumerate(SHIFTS):
        xs = x_ref[pl.ds(PAD_TOP + d, MP), :]     # [MP, CIN]   bf16
        ws = w1_ref[pl.ds(t * CIN, CIN), :]       # [CIN, CMID] bf16
        acc += jnp.dot(xs, ws, preferred_element_type=jnp.float32)

    # --- BatchNorm2d #1 (training mode; stats over the 196 valid rows, f32,
    #     centered two-pass variance; folded to one scale/shift FMA)
    m1 = jnp.sum(acc * mask, axis=0, keepdims=True) * INV_N
    c1 = (acc - m1) * mask
    v1 = jnp.sum(c1 * c1, axis=0, keepdims=True) * INV_N
    scale1 = g1_ref[...] * lax.rsqrt(v1 + EPS)
    shift1 = b1_ref[...] - m1 * scale1
    # ReLU, re-zero halo rows, cast to bf16 for the next MXU matmul
    y1 = (jnp.maximum(acc * scale1 + shift1, 0.0) * mask).astype(jnp.bfloat16)

    # --- conv1x1
    y2 = jnp.dot(y1, w2_ref[...], preferred_element_type=jnp.float32)   # [MP, COUT]

    # --- BatchNorm2d #2 (halo rows of y2 are exactly zero)
    m2 = jnp.sum(y2, axis=0, keepdims=True) * INV_N
    c2 = (y2 - m2) * mask
    v2 = jnp.sum(c2 * c2, axis=0, keepdims=True) * INV_N
    scale2 = g2_ref[...] * lax.rsqrt(v2 + EPS)
    shift2 = b2_ref[...] - m2 * scale2
    out_ref[...] = y2 * scale2 + shift2


def pack_params(w1, g1, b1, w2, g2, b2):
    """One-time weight repack, hoisted out of the per-call path.
    w1: [Cmid, Cin, 3, 3] -> [9*Cin, Cmid] (kh, kw, cin row order), bf16.
    w2: [Cout, Cmid, 1, 1] -> [Cmid, Cout], bf16.  gamma/beta -> [1, C] f32."""
    w1m = jnp.transpose(w1, (2, 3, 1, 0)).reshape(9 * CIN, CMID).astype(jnp.bfloat16)
    w2m = jnp.transpose(w2, (2, 3, 1, 0)).reshape(CMID, COUT).astype(jnp.bfloat16)
    g1r = g1.reshape(1, CMID).astype(jnp.float32)
    b1r = b1.reshape(1, CMID).astype(jnp.float32)
    g2r = g2.reshape(1, COUT).astype(jnp.float32)
    b2r = b2.reshape(1, COUT).astype(jnp.float32)
    return jax.device_put((w1m, g1r, b1r, w2m, g2r, b2r))


@jax.jit
def fused_forward(x_nchw, w1m, g1r, b1r, w2m, g2r, b2r):
    """x_nchw: [1, Cin, 14, 14]  ->  [1, Cout, 14, 14]."""
    # NCHW -> NHWC, zero-pad spatially to 16x16, flatten the padded grid to rows,
    # add halo rows so every shifted view in the kernel is a static in-bounds slice.
    x = jnp.transpose(x_nchw, (0, 2, 3, 1))                    # [1, H, W, CIN]
    xp = jnp.pad(x, ((0, 0), (1, 1), (1, 1), (0, 0)))          # [1, 16, 16, CIN]
    xflat = xp.reshape(MP, CIN)
    xflat = jnp.pad(xflat, ((PAD_TOP, ROWS - PAD_TOP - MP), (0, 0)))
    xflat = xflat.astype(jnp.bfloat16)                         # [ROWS, CIN]

    out_flat = pl.pallas_call(
        fused_kernel,
        out_shape=jax.ShapeDtypeStruct((MP, COUT), jnp.float32),
        grid=(1,),
        in_specs=[
            pl.BlockSpec((ROWS, CIN), lambda i: (0, 0)),
            pl.BlockSpec((9 * CIN, CMID), lambda i: (0, 0)),
            pl.BlockSpec((1, CMID), lambda i: (0, 0)),
            pl.BlockSpec((1, CMID), lambda i: (0, 0)),
            pl.BlockSpec((CMID, COUT), lambda i: (0, 0)),
            pl.BlockSpec((1, COUT), lambda i: (0, 0)),
            pl.BlockSpec((1, COUT), lambda i: (0, 0)),
        ],
        out_specs=pl.BlockSpec((MP, COUT), lambda i: (0, 0)),
        compiler_params=pltpu.CompilerParams(
            dimension_semantics=("arbitrary",),
            vmem_limit_bytes=32 << 20,   # well below v7x's 64 MiB physical VMEM
        ),
    )(xflat, w1m, g1r, b1r, w2m, g2r, b2r)

    # drop halo rows of the 16x16 grid, back to NCHW
    out = out_flat.reshape(HP, WP, COUT)[1:1 + H, 1:1 + W, :]
    return jnp.transpose(out.reshape(N, H, W, COUT), (0, 3, 1, 2))


def reference_forward(x, w1, g1, b1, w2, g2, b2, matmul_dtype=jnp.float32):
    """Pure-JAX reference (training-mode BN).  matmul_dtype=bfloat16 mirrors the
    kernel's MXU numerics (bf16 operands, f32 accumulation); f32 is the exact ref."""
    dn1 = lax.conv_dimension_numbers(x.shape, w1.shape, ("NCHW", "OIHW", "NCHW"))
    y1 = lax.conv_general_dilated(
        x.astype(matmul_dtype), w1.astype(matmul_dtype), (1, 1), ((1, 1), (1, 1)),
        dimension_numbers=dn1, preferred_element_type=jnp.float32)
    m1 = jnp.mean(y1, axis=(0, 2, 3), keepdims=True)
    v1 = jnp.mean((y1 - m1) ** 2, axis=(0, 2, 3), keepdims=True)
    y1 = (y1 - m1) * lax.rsqrt(v1 + EPS) * g1[None, :, None, None] + b1[None, :, None, None]
    y1 = jnp.maximum(y1, 0.0)
    dn2 = lax.conv_dimension_numbers(y1.shape, w2.shape, ("NCHW", "OIHW", "NCHW"))
    y2 = lax.conv_general_dilated(
        y1.astype(matmul_dtype), w2.astype(matmul_dtype), (1, 1), ((0, 0), (0, 0)),
        dimension_numbers=dn2, preferred_element_type=jnp.float32)
    m2 = jnp.mean(y2, axis=(0, 2, 3), keepdims=True)
    v2 = jnp.mean((y2 - m2) ** 2, axis=(0, 2, 3), keepdims=True)
    return (y2 - m2) * lax.rsqrt(v2 + EPS) * g2[None, :, None, None] + b2[None, :, None, None]


if __name__ == "__main__":
    key = jax.random.PRNGKey(0)
    kx, kw1, kg1, kb1, kw2, kg2, kb2 = jax.random.split(key, 7)

    x = jax.random.normal(kx, (N, CIN, H, W), dtype=jnp.float32)
    # deterministic synthetic parameters (matching the nn module's shapes)
    w1 = jax.random.normal(kw1, (CMID, CIN, 3, 3), dtype=jnp.float32) * 0.05
    g1 = 1.0 + 0.1 * jax.random.normal(kg1, (CMID,), dtype=jnp.float32)
    b1 = 0.1 * jax.random.normal(kb1, (CMID,), dtype=jnp.float32)
    w2 = jax.random.normal(kw2, (COUT, CMID, 1, 1), dtype=jnp.float32) * 0.05
    g2 = 1.0 + 0.1 * jax.random.normal(kg2, (COUT,), dtype=jnp.float32)
    b2 = 0.1 * jax.random.normal(kb2, (COUT,), dtype=jnp.float32)

    packed = pack_params(w1, g1, b1, w2, g2, b2)
    out = jax.block_until_ready(fused_forward(x, *packed))
    assert out.shape == (N, COUT, H, W), out.shape

    # structural check vs a reference using the same bf16-operand / f32-accumulate numerics
    ref_bf16 = jax.block_until_ready(
        reference_forward(x, w1, g1, b1, w2, g2, b2, matmul_dtype=jnp.bfloat16))
    assert jnp.allclose(out, ref_bf16, atol=5e-3, rtol=5e-3), \
        float(jnp.max(jnp.abs(out - ref_bf16)))

    # loose sanity bound vs the full-f32 reference (bounds bf16 MXU quantization)
    ref_f32 = jax.block_until_ready(reference_forward(x, w1, g1, b1, w2, g2, b2))
    assert jnp.allclose(out, ref_f32, atol=1e-1, rtol=1e-1), \
        float(jnp.max(jnp.abs(out - ref_f32)))

    print("KERNEL_OK")
</pallas_src>

<mosaic_0001>
module attributes {stable_mosaic.version = 11 : i64} {
  func.func @fused_kernel(%arg0: i32, %arg1: memref<304x256xbf16, #tpu.memory_space<vmem>>, %arg2: memref<2304x256xbf16, #tpu.memory_space<vmem>>, %arg3: memref<1x256xf32, #tpu.memory_space<vmem>>, %arg4: memref<1x256xf32, #tpu.memory_space<vmem>>, %arg5: memref<256x1024xbf16, #tpu.memory_space<vmem>>, %arg6: memref<1x1024xf32, #tpu.memory_space<vmem>>, %arg7: memref<1x1024xf32, #tpu.memory_space<vmem>>, %arg8: memref<256x1024xf32, #tpu.memory_space<vmem>>) attributes {dimension_semantics = [#tpu.dimension_semantics<arbitrary>], iteration_bounds = array<i64: 1>, scalar_prefetch = 0 : i64, scratch_operands = 0 : i64, tpu.core_type = #tpu.core_type<tc>, window_params = [{pipeline_mode = #tpu.pipeline_mode<synchronous>, transform_indices = @transform_0, window_bounds = array<i64: 304, 256>}, {pipeline_mode = #tpu.pipeline_mode<synchronous>, transform_indices = @transform_1, window_bounds = array<i64: 2304, 256>}, {pipeline_mode = #tpu.pipeline_mode<synchronous>, transform_indices = @transform_2, window_bounds = array<i64: 1, 256>}, {pipeline_mode = #tpu.pipeline_mode<synchronous>, transform_indices = @transform_3, window_bounds = array<i64: 1, 256>}, {pipeline_mode = #tpu.pipeline_mode<synchronous>, transform_indices = @transform_4, window_bounds = array<i64: 256, 1024>}, {pipeline_mode = #tpu.pipeline_mode<synchronous>, transform_indices = @transform_5, window_bounds = array<i64: 1, 1024>}, {pipeline_mode = #tpu.pipeline_mode<synchronous>, transform_indices = @transform_6, window_bounds = array<i64: 1, 1024>}, {pipeline_mode = #tpu.pipeline_mode<synchronous>, transform_indices = @transform_7, window_bounds = array<i64: 256, 1024>}]} {
    %0 = tpu.iota {dimensions = array<i32: 0>} : vector<256x1xi32>
    %c4_i32 = arith.constant 4 : i32
    %1 = vector.broadcast %c4_i32 : i32 to vector<256x1xi32>
    %2 = arith.shrui %0, %1 : vector<256x1xi32>
    %c15_i32 = arith.constant 15 : i32
    %3 = vector.broadcast %c15_i32 : i32 to vector<256x1xi32>
    %4 = arith.andi %0, %3 : vector<256x1xi32>
    %c1_i32 = arith.constant 1 : i32
    %5 = vector.broadcast %c1_i32 : i32 to vector<256x1xi32>
    %6 = arith.cmpi sge, %2, %5 : vector<256x1xi32>
    %c14_i32 = arith.constant 14 : i32
    %7 = vector.broadcast %c14_i32 : i32 to vector<256x1xi32>
    %8 = arith.cmpi sle, %2, %7 : vector<256x1xi32>
    %9 = arith.andi %6, %8 : vector<256x1xi1>
    %c1_i32_0 = arith.constant 1 : i32
    %10 = vector.broadcast %c1_i32_0 : i32 to vector<256x1xi32>
    %11 = arith.cmpi sge, %4, %10 : vector<256x1xi32>
    %12 = arith.andi %9, %11 : vector<256x1xi1>
    %c14_i32_1 = arith.constant 14 : i32
    %13 = vector.broadcast %c14_i32_1 : i32 to vector<256x1xi32>
    %14 = arith.cmpi sle, %4, %13 : vector<256x1xi32>
    %15 = arith.andi %12, %14 : vector<256x1xi1>
    %16 = arith.extui %15 : vector<256x1xi1> to vector<256x1xi32>
    %17 = arith.sitofp %16 : vector<256x1xi32> to vector<256x1xf32>
    %cst = arith.constant 0.000000e+00 : f32
    %18 = vector.broadcast %cst : f32 to vector<256x256xf32>
    %c7 = arith.constant 7 : index
    %c0 = arith.constant 0 : index
    %19 = vector.load %arg1[%c7, %c0] : memref<304x256xbf16, #tpu.memory_space<vmem>>, vector<256x256xbf16>
    %c0_2 = arith.constant 0 : index
    %c0_3 = arith.constant 0 : index
    %20 = vector.load %arg2[%c0_2, %c0_3] : memref<2304x256xbf16, #tpu.memory_space<vmem>>, vector<256x256xbf16>
    %cst_4 = arith.constant dense<0.000000e+00> : vector<256x256xf32>
    %21 = tpu.matmul %19, %20, %cst_4 {dimension_numbers = #tpu.dot_dimension_numbers<[1], [0], [0], [1], [0, 0, 1, 1], [], []>} : vector<256x256xbf16>, vector<256x256xbf16>, vector<256x256xf32> -> vector<256x256xf32>
    %22 = arith.addf %18, %21 : vector<256x256xf32>
    %c8 = arith.constant 8 : index
    %c0_5 = arith.constant 0 : index
    %23 = vector.load %arg1[%c8, %c0_5] : memref<304x256xbf16, #tpu.memory_space<vmem>>, vector<256x256xbf16>
    %c256 = arith.constant 256 : index
    %c0_6 = arith.constant 0 : index
    %24 = vector.load %arg2[%c256, %c0_6] : memref<2304x256xbf16, #tpu.memory_space<vmem>>, vector<256x256xbf16>
    %cst_7 = arith.constant dense<0.000000e+00> : vector<256x256xf32>
    %25 = tpu.matmul %23, %24, %cst_7 {dimension_numbers = #tpu.dot_dimension_numbers<[1], [0], [0], [1], [0, 0, 1, 1], [], []>} : vector<256x256xbf16>, vector<256x256xbf16>, vector<256x256xf32> -> vector<256x256xf32>
    %26 = arith.addf %22, %25 : vector<256x256xf32>
    %c9 = arith.constant 9 : index
    %c0_8 = arith.constant 0 : index
    %27 = vector.load %arg1[%c9, %c0_8] : memref<304x256xbf16, #tpu.memory_space<vmem>>, vector<256x256xbf16>
    %c512 = arith.constant 512 : index
    %c0_9 = arith.constant 0 : index
    %28 = vector.load %arg2[%c512, %c0_9] : memref<2304x256xbf16, #tpu.memory_space<vmem>>, vector<256x256xbf16>
    %cst_10 = arith.constant dense<0.000000e+00> : vector<256x256xf32>
    %29 = tpu.matmul %27, %28, %cst_10 {dimension_numbers = #tpu.dot_dimension_numbers<[1], [0], [0], [1], [0, 0, 1, 1], [], []>} : vector<256x256xbf16>, vector<256x256xbf16>, vector<256x256xf32> -> vector<256x256xf32>
    %30 = arith.addf %26, %29 : vector<256x256xf32>
    %c23 = arith.constant 23 : index
    %c0_11 = arith.constant 0 : index
    %31 = vector.load %arg1[%c23, %c0_11] : memref<304x256xbf16, #tpu.memory_space<vmem>>, vector<256x256xbf16>
    %c768 = arith.constant 768 : index
    %c0_12 = arith.constant 0 : index
    %32 = vector.load %arg2[%c768, %c0_12] : memref<2304x256xbf16, #tpu.memory_space<vmem>>, vector<256x256xbf16>
    %cst_13 = arith.constant dense<0.000000e+00> : vector<256x256xf32>
    %33 = tpu.matmul %31, %32, %cst_13 {dimension_numbers = #tpu.dot_dimension_numbers<[1], [0], [0], [1], [0, 0, 1, 1], [], []>} : vector<256x256xbf16>, vector<256x256xbf16>, vector<256x256xf32> -> vector<256x256xf32>
    %34 = arith.addf %30, %33 : vector<256x256xf32>
    %c24 = arith.constant 24 : index
    %c0_14 = arith.constant 0 : index
    %35 = vector.load %arg1[%c24, %c0_14] : memref<304x256xbf16, #tpu.memory_space<vmem>>, vector<256x256xbf16>
    %c1024 = arith.constant 1024 : index
    %c0_15 = arith.constant 0 : index
    %36 = vector.load %arg2[%c1024, %c0_15] : memref<2304x256xbf16, #tpu.memory_space<vmem>>, vector<256x256xbf16>
    %cst_16 = arith.constant dense<0.000000e+00> : vector<256x256xf32>
    %37 = tpu.matmul %35, %36, %cst_16 {dimension_numbers = #tpu.dot_dimension_numbers<[1], [0], [0], [1], [0, 0, 1, 1], [], []>} : vector<256x256xbf16>, vector<256x256xbf16>, vector<256x256xf32> -> vector<256x256xf32>
    %38 = arith.addf %34, %37 : vector<256x256xf32>
    %c25 = arith.constant 25 : index
    %c0_17 = arith.constant 0 : index
    %39 = vector.load %arg1[%c25, %c0_17] : memref<304x256xbf16, #tpu.memory_space<vmem>>, vector<256x256xbf16>
    %c1280 = arith.constant 1280 : index
    %c0_18 = arith.constant 0 : index
    %40 = vector.load %arg2[%c1280, %c0_18] : memref<2304x256xbf16, #tpu.memory_space<vmem>>, vector<256x256xbf16>
    %cst_19 = arith.constant dense<0.000000e+00> : vector<256x256xf32>
    %41 = tpu.matmul %39, %40, %cst_19 {dimension_numbers = #tpu.dot_dimension_numbers<[1], [0], [0], [1], [0, 0, 1, 1], [], []>} : vector<256x256xbf16>, vector<256x256xbf16>, vector<256x256xf32> -> vector<256x256xf32>
    %42 = arith.addf %38, %41 : vector<256x256xf32>
    %c39 = arith.constant 39 : index
    %c0_20 = arith.constant 0 : index
    %43 = vector.load %arg1[%c39, %c0_20] : memref<304x256xbf16, #tpu.memory_space<vmem>>, vector<256x256xbf16>
    %c1536 = arith.constant 1536 : index
    %c0_21 = arith.constant 0 : index
    %44 = vector.load %arg2[%c1536, %c0_21] : memref<2304x256xbf16, #tpu.memory_space<vmem>>, vector<256x256xbf16>
    %cst_22 = arith.constant dense<0.000000e+00> : vector<256x256xf32>
    %45 = tpu.matmul %43, %44, %cst_22 {dimension_numbers = #tpu.dot_dimension_numbers<[1], [0], [0], [1], [0, 0, 1, 1], [], []>} : vector<256x256xbf16>, vector<256x256xbf16>, vector<256x256xf32> -> vector<256x256xf32>
    %46 = arith.addf %42, %45 : vector<256x256xf32>
    %c40 = arith.constant 40 : index
    %c0_23 = arith.constant 0 : index
    %47 = vector.load %arg1[%c40, %c0_23] : memref<304x256xbf16, #tpu.memory_space<vmem>>, vector<256x256xbf16>
    %c1792 = arith.constant 1792 : index
    %c0_24 = arith.constant 0 : index
    %48 = vector.load %arg2[%c1792, %c0_24] : memref<2304x256xbf16, #tpu.memory_space<vmem>>, vector<256x256xbf16>
    %cst_25 = arith.constant dense<0.000000e+00> : vector<256x256xf32>
    %49 = tpu.matmul %47, %48, %cst_25 {dimension_numbers = #tpu.dot_dimension_numbers<[1], [0], [0], [1], [0, 0, 1, 1], [], []>} : vector<256x256xbf16>, vector<256x256xbf16>, vector<256x256xf32> -> vector<256x256xf32>
    %50 = arith.addf %46, %49 : vector<256x256xf32>
    %c41 = arith.constant 41 : index
    %c0_26 = arith.constant 0 : index
    %51 = vector.load %arg1[%c41, %c0_26] : memref<304x256xbf16, #tpu.memory_space<vmem>>, vector<256x256xbf16>
    %c2048 = arith.constant 2048 : index
    %c0_27 = arith.constant 0 : index
    %52 = vector.load %arg2[%c2048, %c0_27] : memref<2304x256xbf16, #tpu.memory_space<vmem>>, vector<256x256xbf16>
    %cst_28 = arith.constant dense<0.000000e+00> : vector<256x256xf32>
    %53 = tpu.matmul %51, %52, %cst_28 {dimension_numbers = #tpu.dot_dimension_numbers<[1], [0], [0], [1], [0, 0, 1, 1], [], []>} : vector<256x256xbf16>, vector<256x256xbf16>, vector<256x256xf32> -> vector<256x256xf32>
    %54 = arith.addf %50, %53 : vector<256x256xf32>
    %55 = vector.broadcast %17 : vector<256x1xf32> to vector<256x256xf32>
    %56 = arith.mulf %54, %55 : vector<256x256xf32>
    %cst_29 = arith.constant dense<0.000000e+00> : vector<256xf32>
    %57 = vector.multi_reduction <add>, %56, %cst_29 [0] : vector<256x256xf32> to vector<256xf32>
    %58 = vector.shape_cast %57 : vector<256xf32> to vector<1x256xf32>
    %cst_30 = arith.constant 0.00510204071 : f32
    %59 = vector.broadcast %cst_30 : f32 to vector<1x256xf32>
    %60 = arith.mulf %58, %59 : vector<1x256xf32>
    %61 = vector.broadcast %60 : vector<1x256xf32> to vector<256x256xf32>
    %62 = arith.subf %54, %61 : vector<256x256xf32>
    %63 = vector.broadcast %17 : vector<256x1xf32> to vector<256x256xf32>
    %64 = arith.mulf %62, %63 : vector<256x256xf32>
    %65 = arith.mulf %64, %64 : vector<256x256xf32>
    %cst_31 = arith.constant dense<0.000000e+00> : vector<256xf32>
    %66 = vector.multi_reduction <add>, %65, %cst_31 [0] : vector<256x256xf32> to vector<256xf32>
    %67 = vector.shape_cast %66 : vector<256xf32> to vector<1x256xf32>
    %cst_32 = arith.constant 0.00510204071 : f32
    %68 = vector.broadcast %cst_32 : f32 to vector<1x256xf32>
    %69 = arith.mulf %67, %68 : vector<1x256xf32>
    %c0_33 = arith.constant 0 : index
    %c0_34 = arith.constant 0 : index
    %70 = vector.load %arg3[%c0_33, %c0_34] : memref<1x256xf32, #tpu.memory_space<vmem>>, vector<1x256xf32>
    %cst_35 = arith.constant 9.99999974E-6 : f32
    %71 = vector.broadcast %cst_35 : f32 to vector<1x256xf32>
    %72 = arith.addf %69, %71 : vector<1x256xf32>
    %73 = math.rsqrt %72 : vector<1x256xf32>
    %74 = arith.mulf %70, %73 : vector<1x256xf32>
    %c0_36 = arith.constant 0 : index
    %c0_37 = arith.constant 0 : index
    %75 = vector.load %arg4[%c0_36, %c0_37] : memref<1x256xf32, #tpu.memory_space<vmem>>, vector<1x256xf32>
    %76 = arith.mulf %60, %74 : vector<1x256xf32>
    %77 = arith.subf %75, %76 : vector<1x256xf32>
    %78 = vector.broadcast %74 : vector<1x256xf32> to vector<256x256xf32>
    %79 = arith.mulf %54, %78 : vector<256x256xf32>
    %80 = vector.broadcast %77 : vector<1x256xf32> to vector<256x256xf32>
    %81 = arith.addf %79, %80 : vector<256x256xf32>
    %cst_38 = arith.constant 0.000000e+00 : f32
    %82 = vector.broadcast %cst_38 : f32 to vector<256x256xf32>
    %83 = arith.maximumf %81, %82 : vector<256x256xf32>
    %84 = vector.broadcast %17 : vector<256x1xf32> to vector<256x256xf32>
    %85 = arith.mulf %83, %84 : vector<256x256xf32>
    %86 = arith.truncf %85 : vector<256x256xf32> to vector<256x256xbf16>
    %c0_39 = arith.constant 0 : index
    %c0_40 = arith.constant 0 : index
    %87 = vector.load %arg5[%c0_39, %c0_40] : memref<256x1024xbf16, #tpu.memory_space<vmem>>, vector<256x1024xbf16>
    %cst_41 = arith.constant dense<0.000000e+00> : vector<256x1024xf32>
    %88 = tpu.matmul %86, %87, %cst_41 {dimension_numbers = #tpu.dot_dimension_numbers<[1], [0], [0], [1], [0, 0, 1, 1], [], []>} : vector<256x256xbf16>, vector<256x1024xbf16>, vector<256x1024xf32> -> vector<256x1024xf32>
    %cst_42 = arith.constant dense<0.000000e+00> : vector<1024xf32>
    %89 = vector.multi_reduction <add>, %88, %cst_42 [0] : vector<256x1024xf32> to vector<1024xf32>
    %90 = vector.shape_cast %89 : vector<1024xf32> to vector<1x1024xf32>
    %cst_43 = arith.constant 0.00510204071 : f32
    %91 = vector.broadcast %cst_43 : f32 to vector<1x1024xf32>
    %92 = arith.mulf %90, %91 : vector<1x1024xf32>
    %93 = vector.broadcast %92 : vector<1x1024xf32> to vector<256x1024xf32>
    %94 = arith.subf %88, %93 : vector<256x1024xf32>
    %95 = vector.broadcast %17 : vector<256x1xf32> to vector<256x1024xf32>
    %96 = arith.mulf %94, %95 : vector<256x1024xf32>
    %97 = arith.mulf %96, %96 : vector<256x1024xf32>
    %cst_44 = arith.constant dense<0.000000e+00> : vector<1024xf32>
    %98 = vector.multi_reduction <add>, %97, %cst_44 [0] : vector<256x1024xf32> to vector<1024xf32>
    %99 = vector.shape_cast %98 : vector<1024xf32> to vector<1x1024xf32>
    %cst_45 = arith.constant 0.00510204071 : f32
    %100 = vector.broadcast %cst_45 : f32 to vector<1x1024xf32>
    %101 = arith.mulf %99, %100 : vector<1x1024xf32>
    %c0_46 = arith.constant 0 : index
    %c0_47 = arith.constant 0 : index
    %102 = vector.load %arg6[%c0_46, %c0_47] : memref<1x1024xf32, #tpu.memory_space<vmem>>, vector<1x1024xf32>
    %cst_48 = arith.constant 9.99999974E-6 : f32
    %103 = vector.broadcast %cst_48 : f32 to vector<1x1024xf32>
    %104 = arith.addf %101, %103 : vector<1x1024xf32>
    %105 = math.rsqrt %104 : vector<1x1024xf32>
    %106 = arith.mulf %102, %105 : vector<1x1024xf32>
    %c0_49 = arith.constant 0 : index
    %c0_50 = arith.constant 0 : index
    %107 = vector.load %arg7[%c0_49, %c0_50] : memref<1x1024xf32, #tpu.memory_space<vmem>>, vector<1x1024xf32>
    %108 = arith.mulf %92, %106 : vector<1x1024xf32>
    %109 = arith.subf %107, %108 : vector<1x1024xf32>
    %110 = vector.broadcast %106 : vector<1x1024xf32> to vector<256x1024xf32>
    %111 = arith.mulf %88, %110 : vector<256x1024xf32>
    %112 = vector.broadcast %109 : vector<1x1024xf32> to vector<256x1024xf32>
    %113 = arith.addf %111, %112 : vector<256x1024xf32>
    %c0_51 = arith.constant 0 : index
    %c0_52 = arith.constant 0 : index
    %114 = vector.load %arg8[%c0_51, %c0_52] : memref<256x1024xf32, #tpu.memory_space<vmem>>, vector<256x1024xf32>
    tpu.vector_store %arg8[%c0_51, %c0_52], %113 {strides = array<i32>} : memref<256x1024xf32, #tpu.memory_space<vmem>>, vector<256x1024xf32>,
    return
  }
  func.func @transform_0(%arg0: i32) -> (i32, i32) {
    %c0_i32 = arith.constant 0 : i32
    %c0_i32_0 = arith.constant 0 : i32
    %c0_i32_1 = arith.constant 0 : i32
    return %c0_i32, %c0_i32_0 : i32, i32
  }
  func.func @transform_1(%arg0: i32) -> (i32, i32) {
    %c0_i32 = arith.constant 0 : i32
    %c0_i32_0 = arith.constant 0 : i32
    %c0_i32_1 = arith.constant 0 : i32
    return %c0_i32, %c0_i32_0 : i32, i32
  }
  func.func @transform_2(%arg0: i32) -> (i32, i32) {
    %c0_i32 = arith.constant 0 : i32
    %c0_i32_0 = arith.constant 0 : i32
    %c0_i32_1 = arith.constant 0 : i32
    return %c0_i32, %c0_i32_0 : i32, i32
  }
  func.func @transform_3(%arg0: i32) -> (i32, i32) {
    %c0_i32 = arith.constant 0 : i32
    %c0_i32_0 = arith.constant 0 : i32
    %c0_i32_1 = arith.constant 0 : i32
    return %c0_i32, %c0_i32_0 : i32, i32
  }
  func.func @transform_4(%arg0: i32) -> (i32, i32) {
    %c0_i32 = arith.constant 0 : i32
    %c0_i32_0 = arith.constant 0 : i32
    %c0_i32_1 = arith.constant 0 : i32
    return %c0_i32, %c0_i32_0 : i32, i32
  }
  func.func @transform_5(%arg0: i32) -> (i32, i32) {
    %c0_i32 = arith.constant 0 : i32
    %c0_i32_0 = arith.constant 0 : i32
    %c0_i32_1 = arith.constant 0 : i32
    return %c0_i32, %c0_i32_0 : i32, i32
  }
  func.func @transform_6(%arg0: i32) -> (i32, i32) {
    %c0_i32 = arith.constant 0 : i32
    %c0_i32_0 = arith.constant 0 : i32
    %c0_i32_1 = arith.constant 0 : i32
    return %c0_i32, %c0_i32_0 : i32, i32
  }
  func.func @transform_7(%arg0: i32) -> (i32, i32) {
    %c0_i32 = arith.constant 0 : i32
    %c0_i32_0 = arith.constant 0 : i32
    %c0_i32_1 = arith.constant 0 : i32
    return %c0_i32, %c0_i32_0 : i32, i32
  }
}

</mosaic_0001>

<llo_original>
// kernel: fused_forward.1
$region0: #{fused_forward.1}
  #allocation0 [shape = 'u32[]', space=smem, size = 0x4, offset = 0x4, fixed_abs, tag = 'smem constant byte address 0x4 - core index']
  #allocation1 [shape = 'u32[144,128]{1,0:T(1,128)}', space=vmem, size = 0x12000, scoped, tag = 'internal scratch']
  %s0 = inlined_call_operand.vmem [shape: bf16[304,256], index: 0, kind: input, shape index: {}]
  %s1 = inlined_call_operand.hbm [shape: bf16[2304,256], index: 1, kind: input, shape index: {}]
  %s2 = inlined_call_operand.hbm [shape: f32[1,256], index: 2, kind: input, shape index: {}]
  %s3 = inlined_call_operand.hbm [shape: f32[1,256], index: 3, kind: input, shape index: {}]
  %s4 = inlined_call_operand.vmem [shape: bf16[256,1024], index: 4, kind: input, shape index: {}]
  %s5 = inlined_call_operand.hbm [shape: f32[1,1024], index: 5, kind: input, shape index: {}]
  %s6 = inlined_call_operand.hbm [shape: f32[1,1024], index: 6, kind: input, shape index: {}]
  %s7 = inlined_call_operand.vmem [shape: f32[256,1024], index: 7, kind: output, shape index: {}]
  %s8 = sld [smem:[#allocation0]]
  $region58: #{fused_forward.1} parent=0
    _
  %s10 = ssub.s32 1, %s8
  %s11 = scalar_select 0, %s10, %s8
  $region1: #{fused_forward.1} parent=0
    #allocation2 [shape = 'u8[1179648]{0}', space=vmem, size = 0x120000, scoped, tag = 'input window, operand 1, single buffered']
    #allocation3 [shape = 's32[1]{0}', space=sflag, size = 0x4, scoped, tag = 'scoped memory for fused_forward.1']
    #allocation4 [shape = 'u8[1024]{0}', space=vmem, size = 0x400, scoped, tag = 'input window, operand 2, single buffered']
    #allocation5 [shape = 's32[1]{0}', space=sflag, size = 0x4, scoped, tag = 'scoped memory for fused_forward.1']
    #allocation6 [shape = 'u8[1024]{0}', space=vmem, size = 0x400, scoped, tag = 'input window, operand 3, single buffered']
    #allocation7 [shape = 'u8[4096]{0}', space=vmem, size = 0x1000, scoped, tag = 'input window, operand 5, single buffered']
    #allocation8 [shape = 's32[1]{0}', space=sflag, size = 0x4, scoped, tag = 'scoped memory for fused_forward.1']
    #allocation9 [shape = 'u8[4096]{0}', space=vmem, size = 0x1000, scoped, tag = 'input window, operand 6, single buffered']
    %12 = vsyncpa [#allocation3], 0
    %13 = vsyncpa [#allocation5], 0
    %14 = vsyncpa [#allocation8], 0
    // Predicated region
    $region2: #{fused_forward.1} parent=1 // pred_check
      _
    $region3: #{fused_forward.1} parent=1 // pred_check_branch
      %16 = sbr.rel (0) target = $region5
    $region4: #{fused_forward.1} parent=1 // pred_region
      _
    $region5: #{fused_forward.1} parent=1 // pred_fallthru
      _
    // Predicated region
    $region6: #{fused_forward.1} parent=1 // pred_check
      _
    $region7: #{fused_forward.1} parent=1 // pred_check_branch
      %18 = sbr.rel (0) target = $region9
    $region8: #{fused_forward.1} parent=1 // pred_region
      %s20 = ssub.s32 36864, 36864
      %21 = vsyncadd [#allocation3], %s20
      %s22 = sshll.u32 [#allocation2], 4
      %s23 = int_to_ptr.vmem [resolvable:$true] %s22
      %28 = dma.hbm_to_vmem [thread:$0]  %s1, 36864, %s23, [#allocation3], 128, 128, 8
    $region9: #{fused_forward.1} parent=1 // pred_fallthru
      _
    // Predicated region
    $region10: #{fused_forward.1} parent=1 // pred_check
      _
    $region11: #{fused_forward.1} parent=1 // pred_check_branch
      %30 = sbr.rel (0) target = $region13
    $region12: #{fused_forward.1} parent=1 // pred_region
      %s32 = ssub.s32 32, 32
      %33 = vsyncadd [#allocation5], %s32
      %s35 = sshll.u32 [#allocation4], 4
      %s36 = int_to_ptr.vmem [resolvable:$true] %s35
      %38 = dma.hbm_to_vmem [thread:$0]  %s2, 32, %s36, [#allocation5]
    $region13: #{fused_forward.1} parent=1 // pred_fallthru
      _
    // Predicated region
    $region14: #{fused_forward.1} parent=1 // pred_check
      _
    $region15: #{fused_forward.1} parent=1 // pred_check_branch
      %40 = sbr.rel (0) target = $region17
    $region16: #{fused_forward.1} parent=1 // pred_region
      %s42 = ssub.s32 32, 32
      %43 = vsyncadd [#allocation5], %s42
      %s45 = sshll.u32 [#allocation6], 4
      %s46 = int_to_ptr.vmem [resolvable:$true] %s45
      %48 = dma.hbm_to_vmem [thread:$0]  %s3, 32, %s46, [#allocation5]
    $region17: #{fused_forward.1} parent=1 // pred_fallthru
      _
    // Predicated region
    $region18: #{fused_forward.1} parent=1 // pred_check
      _
    $region19: #{fused_forward.1} parent=1 // pred_check_branch
      %50 = sbr.rel (0) target = $region21
    $region20: #{fused_forward.1} parent=1 // pred_region
      _
    $region21: #{fused_forward.1} parent=1 // pred_fallthru
      _
    // Predicated region
    $region22: #{fused_forward.1} parent=1 // pred_check
      _
    $region23: #{fused_forward.1} parent=1 // pred_check_branch
      %52 = sbr.rel (0) target = $region25
    $region24: #{fused_forward.1} parent=1 // pred_region
      %s54 = ssub.s32 128, 128
      %55 = vsyncadd [#allocation8], %s54
      %s57 = sshll.u32 [#allocation7], 4
      %s58 = int_to_ptr.vmem [resolvable:$true] %s57
      %60 = dma.hbm_to_vmem [thread:$0]  %s5, 128, %s58, [#allocation8]
    $region25: #{fused_forward.1} parent=1 // pred_fallthru
      _
    // Predicated region
    $region26: #{fused_forward.1} parent=1 // pred_check
      _
    $region27: #{fused_forward.1} parent=1 // pred_check_branch
      %62 = sbr.rel (0) target = $region29
    $region28: #{fused_forward.1} parent=1 // pred_region
      %s64 = ssub.s32 128, 128
      %65 = vsyncadd [#allocation8], %s64
      %s67 = sshll.u32 [#allocation9], 4
      %s68 = int_to_ptr.vmem [resolvable:$true] %s67
      %70 = dma.hbm_to_vmem [thread:$0]  %s6, 128, %s68, [#allocation8]
    $region29: #{fused_forward.1} parent=1 // pred_fallthru
      _
    // Predicated region
    $region30: #{fused_forward.1} parent=1 // pred_check
      _
    $region31: #{fused_forward.1} parent=1 // pred_check_branch
      %72 = sbr.rel (0) target = $region33
    $region32: #{fused_forward.1} parent=1 // pred_region
      %73 = dma.done [#allocation3], 36864
    $region33: #{fused_forward.1} parent=1 // pred_fallthru
      _
    // Predicated region
    $region34: #{fused_forward.1} parent=1 // pred_check
      _
    $region35: #{fused_forward.1} parent=1 // pred_check_branch
      %75 = sbr.rel (0) target = $region37
    $region36: #{fused_forward.1} parent=1 // pred_region
      %76 = dma.done [#allocation5], 32
    $region37: #{fused_forward.1} parent=1 // pred_fallthru
      _
    // Predicated region
    $region38: #{fused_forward.1} parent=1 // pred_check
      _
    $region39: #{fused_forward.1} parent=1 // pred_check_branch
      %78 = sbr.rel (0) target = $region41
    $region40: #{fused_forward.1} parent=1 // pred_region
      %79 = dma.done [#allocation5], 32
    $region41: #{fused_forward.1} parent=1 // pred_fallthru
      _
    // Predicated region
    $region42: #{fused_forward.1} parent=1 // pred_check
      _
    $region43: #{fused_forward.1} parent=1 // pred_check_branch
      %81 = sbr.rel (0) target = $region45
    $region44: #{fused_forward.1} parent=1 // pred_region
      %82 = dma.done [#allocation8], 128
    $region45: #{fused_forward.1} parent=1 // pred_fallthru
      _
    // Predicated region
    $region46: #{fused_forward.1} parent=1 // pred_check
      _
    $region47: #{fused_forward.1} parent=1 // pred_check_branch
      %84 = sbr.rel (0) target = $region49
    $region48: #{fused_forward.1} parent=1 // pred_region
      %85 = dma.done [#allocation8], 128
    $region49: #{fused_forward.1} parent=1 // pred_fallthru
      _
    %v86 = vlaneseq
    %v87 = vshrl.u32 %v86, 7
    %v88 = vadd.s32 %v87, 8
    %v89 = vadd.s32 %v87, 16
    %v90 = vadd.s32 %v87, 24
    %v91 = vadd.s32 %v87, 32
    %v92 = vadd.s32 %v87, 40
    %v93 = vadd.s32 %v87, 48
    %v94 = vadd.s32 %v87, 56
    %v95 = vadd.s32 %v87, 64
    %v96 = vadd.s32 %v87, 72
    %v97 = vadd.s32 %v87, 80
    %v98 = vadd.s32 %v87, 88
    %v99 = vadd.s32 %v87, 96
    %v100 = vadd.s32 %v87, 104
    %v101 = vadd.s32 %v87, 112
    %v102 = vadd.s32 %v87, 120
    %v103 = vadd.s32 %v87, 128
    %v104 = vadd.s32 %v87, 136
    %v105 = vadd.s32 %v87, 144
    %v106 = vadd.s32 %v87, 152
    %v107 = vadd.s32 %v87, 160
    %v108 = vadd.s32 %v87, 168
    %v109 = vadd.s32 %v87, 176
    %v110 = vadd.s32 %v87, 184
    %v111 = vadd.s32 %v87, 192
    %v112 = vadd.s32 %v87, 200
    %v113 = vadd.s32 %v87, 208
    %v114 = vadd.s32 %v87, 216
    %v115 = vadd.s32 %v87, 224
    %v116 = vadd.s32 %v87, 232
    %v117 = vadd.s32 %v87, 240
    %v118 = vadd.s32 %v87, 248
    %v119 = vshrl.u32 %v87, 4
    %v120 = vshrl.u32 %v88, 4
    %v121 = vshrl.u32 %v89, 4
    %v122 = vshrl.u32 %v90, 4
    %v123 = vshrl.u32 %v91, 4
    %v124 = vshrl.u32 %v92, 4
    %v125 = vshrl.u32 %v93, 4
    %v126 = vshrl.u32 %v94, 4
    %v127 = vshrl.u32 %v95, 4
    %v128 = vshrl.u32 %v96, 4
    %v129 = vshrl.u32 %v97, 4
    %v130 = vshrl.u32 %v98, 4
    %v131 = vshrl.u32 %v99, 4
    %v132 = vshrl.u32 %v100, 4
    %v133 = vshrl.u32 %v101, 4
    %v134 = vshrl.u32 %v102, 4
    %v135 = vshrl.u32 %v103, 4
    %v136 = vshrl.u32 %v104, 4
    %v137 = vshrl.u32 %v105, 4
    %v138 = vshrl.u32 %v106, 4
    %v139 = vshrl.u32 %v107, 4
    %v140 = vshrl.u32 %v108, 4
    %v141 = vshrl.u32 %v109, 4
    %v142 = vshrl.u32 %v110, 4
    %v143 = vshrl.u32 %v111, 4
    %v144 = vshrl.u32 %v112, 4
    %v145 = vshrl.u32 %v113, 4
    %v146 = vshrl.u32 %v114, 4
    %v147 = vshrl.u32 %v115, 4
    %v148 = vshrl.u32 %v116, 4
    %v149 = vshrl.u32 %v117, 4
    %v150 = vshrl.u32 %v118, 4
    %v151 = vand.u32 %v87, 15
    %v152 = vand.u32 %v88, 15
    %v153 = vand.u32 %v89, 15
    %v154 = vand.u32 %v90, 15
    %v155 = vand.u32 %v91, 15
    %v156 = vand.u32 %v92, 15
    %v157 = vand.u32 %v93, 15
    %v158 = vand.u32 %v94, 15
    %v159 = vand.u32 %v95, 15
    %v160 = vand.u32 %v96, 15
    %v161 = vand.u32 %v97, 15
    %v162 = vand.u32 %v98, 15
    %v163 = vand.u32 %v99, 15
    %v164 = vand.u32 %v100, 15
    %v165 = vand.u32 %v101, 15
    %v166 = vand.u32 %v102, 15
    %v167 = vand.u32 %v103, 15
    %v168 = vand.u32 %v104, 15
    %v169 = vand.u32 %v105, 15
    %v170 = vand.u32 %v106, 15
    %v171 = vand.u32 %v107, 15
    %v172 = vand.u32 %v108, 15
    %v173 = vand.u32 %v109, 15
    %v174 = vand.u32 %v110, 15
    %v175 = vand.u32 %v111, 15
    %v176 = vand.u32 %v112, 15
    %v177 = vand.u32 %v113, 15
    %v178 = vand.u32 %v114, 15
    %v179 = vand.u32 %v115, 15
    %v180 = vand.u32 %v116, 15
    %v181 = vand.u32 %v117, 15
    %v182 = vand.u32 %v118, 15
    %vm183 = vcmp.ge.s32.totalorder %v119, 1
    %vm184 = vcmp.ge.s32.totalorder %v120, 1
    %vm185 = vcmp.ge.s32.totalorder %v121, 1
    %vm186 = vcmp.ge.s32.totalorder %v122, 1
    %vm187 = vcmp.ge.s32.totalorder %v123, 1
    %vm188 = vcmp.ge.s32.totalorder %v124, 1
    %vm189 = vcmp.ge.s32.totalorder %v125, 1
    %vm190 = vcmp.ge.s32.totalorder %v126, 1
    %vm191 = vcmp.ge.s32.totalorder %v127, 1
    %vm192 = vcmp.ge.s32.totalorder %v128, 1
    %vm193 = vcmp.ge.s32.totalorder %v129, 1
    %vm194 = vcmp.ge.s32.totalorder %v130, 1
    %vm195 = vcmp.ge.s32.totalorder %v131, 1
    %vm196 = vcmp.ge.s32.totalorder %v132, 1
    %vm197 = vcmp.ge.s32.totalorder %v133, 1
    %vm198 = vcmp.ge.s32.totalorder %v134, 1
    %vm199 = vcmp.ge.s32.totalorder %v135, 1
    %vm200 = vcmp.ge.s32.totalorder %v136, 1
    %vm201 = vcmp.ge.s32.totalorder %v137, 1
    %vm202 = vcmp.ge.s32.totalorder %v138, 1
    %vm203 = vcmp.ge.s32.totalorder %v139, 1
    %vm204 = vcmp.ge.s32.totalorder %v140, 1
    %vm205 = vcmp.ge.s32.totalorder %v141, 1
    %vm206 = vcmp.ge.s32.totalorder %v142, 1
    %vm207 = vcmp.ge.s32.totalorder %v143, 1
    %vm208 = vcmp.ge.s32.totalorder %v144, 1
    %vm209 = vcmp.ge.s32.totalorder %v145, 1
    %vm210 = vcmp.ge.s32.totalorder %v146, 1
    %vm211 = vcmp.ge.s32.totalorder %v147, 1
    %vm212 = vcmp.ge.s32.totalorder %v148, 1
    %vm213 = vcmp.ge.s32.totalorder %v149, 1
    %vm214 = vcmp.ge.s32.totalorder %v150, 1
    %vm215 = vcmp.le.s32.totalorder %v119, 14
    %vm216 = vcmp.le.s32.totalorder %v120, 14
    %vm217 = vcmp.le.s32.totalorder %v121, 14
    %vm218 = vcmp.le.s32.totalorder %v122, 14
    %vm219 = vcmp.le.s32.totalorder %v123, 14
    %vm220 = vcmp.le.s32.totalorder %v124, 14
    %vm221 = vcmp.le.s32.totalorder %v125, 14
    %vm222 = vcmp.le.s32.totalorder %v126, 14
    %vm223 = vcmp.le.s32.totalorder %v127, 14
    %vm224 = vcmp.le.s32.totalorder %v128, 14
    %vm225 = vcmp.le.s32.totalorder %v129, 14
    %vm226 = vcmp.le.s32.totalorder %v130, 14
    %vm227 = vcmp.le.s32.totalorder %v131, 14
    %vm228 = vcmp.le.s32.totalorder %v132, 14
    %vm229 = vcmp.le.s32.totalorder %v133, 14
    %vm230 = vcmp.le.s32.totalorder %v134, 14
    %vm231 = vcmp.le.s32.totalorder %v135, 14
    %vm232 = vcmp.le.s32.totalorder %v136, 14
    %vm233 = vcmp.le.s32.totalorder %v137, 14
    %vm234 = vcmp.le.s32.totalorder %v138, 14
    %vm235 = vcmp.le.s32.totalorder %v139, 14
    %vm236 = vcmp.le.s32.totalorder %v140, 14
    %vm237 = vcmp.le.s32.totalorder %v141, 14
    %vm238 = vcmp.le.s32.totalorder %v142, 14
    %vm239 = vcmp.le.s32.totalorder %v143, 14
    %vm240 = vcmp.le.s32.totalorder %v144, 14
    %vm241 = vcmp.le.s32.totalorder %v145, 14
    %vm242 = vcmp.le.s32.totalorder %v146, 14
    %vm243 = vcmp.le.s32.totalorder %v147, 14
    %vm244 = vcmp.le.s32.totalorder %v148, 14
    %vm245 = vcmp.le.s32.totalorder %v149, 14
    %vm246 = vcmp.le.s32.totalorder %v150, 14
    %vm247 = vmand %vm183, %vm215
    %vm248 = vmand %vm184, %vm216
    %vm249 = vmand %vm185, %vm217
    %vm250 = vmand %vm186, %vm218
    %vm251 = vmand %vm187, %vm219
    %vm252 = vmand %vm188, %vm220
    %vm253 = vmand %vm189, %vm221
    %vm254 = vmand %vm190, %vm222
    %vm255 = vmand %vm191, %vm223
    %vm256 = vmand %vm192, %vm224
    %vm257 = vmand %vm193, %vm225
    %vm258 = vmand %vm194, %vm226
    %vm259 = vmand %vm195, %vm227
    %vm260 = vmand %vm196, %vm228
    %vm261 = vmand %vm197, %vm229
    %vm262 = vmand %vm198, %vm230
    %vm263 = vmand %vm199, %vm231
    %vm264 = vmand %vm200, %vm232
    %vm265 = vmand %vm201, %vm233
    %vm266 = vmand %vm202, %vm234
    %vm267 = vmand %vm203, %vm235
    %vm268 = vmand %vm204, %vm236
    %vm269 = vmand %vm205, %vm237
    %vm270 = vmand %vm206, %vm238
    %vm271 = vmand %vm207, %vm239
    %vm272 = vmand %vm208, %vm240
    %vm273 = vmand %vm209, %vm241
    %vm274 = vmand %vm210, %vm242
    %vm275 = vmand %vm211, %vm243
    %vm276 = vmand %vm212, %vm244
    %vm277 = vmand %vm213, %vm245
    %vm278 = vmand %vm214, %vm246
    %vm279 = vcmp.ge.s32.totalorder %v151, 1
    %vm280 = vcmp.ge.s32.totalorder %v152, 1
    %vm281 = vcmp.ge.s32.totalorder %v153, 1
    %vm282 = vcmp.ge.s32.totalorder %v154, 1
    %vm283 = vcmp.ge.s32.totalorder %v155, 1
    %vm284 = vcmp.ge.s32.totalorder %v156, 1
    %vm285 = vcmp.ge.s32.totalorder %v157, 1
    %vm286 = vcmp.ge.s32.totalorder %v158, 1
    %vm287 = vcmp.ge.s32.totalorder %v159, 1
    %vm288 = vcmp.ge.s32.totalorder %v160, 1
    %vm289 = vcmp.ge.s32.totalorder %v161, 1
    %vm290 = vcmp.ge.s32.totalorder %v162, 1
    %vm291 = vcmp.ge.s32.totalorder %v163, 1
    %vm292 = vcmp.ge.s32.totalorder %v164, 1
    %vm293 = vcmp.ge.s32.totalorder %v165, 1
    %vm294 = vcmp.ge.s32.totalorder %v166, 1
    %vm295 = vcmp.ge.s32.totalorder %v167, 1
    %vm296 = vcmp.ge.s32.totalorder %v168, 1
    %vm297 = vcmp.ge.s32.totalorder %v169, 1
    %vm298 = vcmp.ge.s32.totalorder %v170, 1
    %vm299 = vcmp.ge.s32.totalorder %v171, 1
    %vm300 = vcmp.ge.s32.totalorder %v172, 1
    %vm301 = vcmp.ge.s32.totalorder %v173, 1
    %vm302 = vcmp.ge.s32.totalorder %v174, 1
    %vm303 = vcmp.ge.s32.totalorder %v175, 1
    %vm304 = vcmp.ge.s32.totalorder %v176, 1
    %vm305 = vcmp.ge.s32.totalorder %v177, 1
    %vm306 = vcmp.ge.s32.totalorder %v178, 1
    %vm307 = vcmp.ge.s32.totalorder %v179, 1
    %vm308 = vcmp.ge.s32.totalorder %v180, 1
    %vm309 = vcmp.ge.s32.totalorder %v181, 1
    %vm310 = vcmp.ge.s32.totalorder %v182, 1
    %vm311 = vmand %vm247, %vm279
    %vm312 = vmand %vm248, %vm280
    %vm313 = vmand %vm249, %vm281
    %vm314 = vmand %vm250, %vm282
    %vm315 = vmand %vm251, %vm283
    %vm316 = vmand %vm252, %vm284
    %vm317 = vmand %vm253, %vm285
    %vm318 = vmand %vm254, %vm286
    %vm319 = vmand %vm255, %vm287
    %vm320 = vmand %vm256, %vm288
    %vm321 = vmand %vm257, %vm289
    %vm322 = vmand %vm258, %vm290
    %vm323 = vmand %vm259, %vm291
    %vm324 = vmand %vm260, %vm292
    %vm325 = vmand %vm261, %vm293
    %vm326 = vmand %vm262, %vm294
    %vm327 = vmand %vm263, %vm295
    %vm328 = vmand %vm264, %vm296
    %vm329 = vmand %vm265, %vm297
    %vm330 = vmand %vm266, %vm298
    %vm331 = vmand %vm267, %vm299
    %vm332 = vmand %vm268, %vm300
    %vm333 = vmand %vm269, %vm301
    %vm334 = vmand %vm270, %vm302
    %vm335 = vmand %vm271, %vm303
    %vm336 = vmand %vm272, %vm304
    %vm337 = vmand %vm273, %vm305
    %vm338 = vmand %vm274, %vm306
    %vm339 = vmand %vm275, %vm307
    %vm340 = vmand %vm276, %vm308
    %vm341 = vmand %vm277, %vm309
    %vm342 = vmand %vm278, %vm310
    %vm343 = vcmp.le.s32.totalorder %v151, 14
    %vm344 = vcmp.le.s32.totalorder %v152, 14
    %vm345 = vcmp.le.s32.totalorder %v153, 14
    %vm346 = vcmp.le.s32.totalorder %v154, 14
    %vm347 = vcmp.le.s32.totalorder %v155, 14
    %vm348 = vcmp.le.s32.totalorder %v156, 14
    %vm349 = vcmp.le.s32.totalorder %v157, 14
    %vm350 = vcmp.le.s32.totalorder %v158, 14
    %vm351 = vcmp.le.s32.totalorder %v159, 14
    %vm352 = vcmp.le.s32.totalorder %v160, 14
    %vm353 = vcmp.le.s32.totalorder %v161, 14
    %vm354 = vcmp.le.s32.totalorder %v162, 14
    %vm355 = vcmp.le.s32.totalorder %v163, 14
    %vm356 = vcmp.le.s32.totalorder %v164, 14
    %vm357 = vcmp.le.s32.totalorder %v165, 14
    %vm358 = vcmp.le.s32.totalorder %v166, 14
    %vm359 = vcmp.le.s32.totalorder %v167, 14
    %vm360 = vcmp.le.s32.totalorder %v168, 14
    %vm361 = vcmp.le.s32.totalorder %v169, 14
    %vm362 = vcmp.le.s32.totalorder %v170, 14
    %vm363 = vcmp.le.s32.totalorder %v171, 14
    %vm364 = vcmp.le.s32.totalorder %v172, 14
    %vm365 = vcmp.le.s32.totalorder %v173, 14
    %vm366 = vcmp.le.s32.totalorder %v174, 14
    %vm367 = vcmp.le.s32.totalorder %v175, 14
    %vm368 = vcmp.le.s32.totalorder %v176, 14
    %vm369 = vcmp.le.s32.totalorder %v177, 14
    %vm370 = vcmp.le.s32.totalorder %v178, 14
    %vm371 = vcmp.le.s32.totalorder %v179, 14
    %vm372 = vcmp.le.s32.totalorder %v180, 14
    %vm373 = vcmp.le.s32.totalorder %v181, 14
    %vm374 = vcmp.le.s32.totalorder %v182, 14
    %vm375 = vmand %vm311, %vm343
    %vm376 = vmand %vm312, %vm344
    %vm377 = vmand %vm313, %vm345
    %vm378 = vmand %vm314, %vm346
    %vm379 = vmand %vm315, %vm347
    %vm380 = vmand %vm316, %vm348
    %vm381 = vmand %vm317, %vm349
    %vm382 = vmand %vm318, %vm350
    %vm383 = vmand %vm319, %vm351
    %vm384 = vmand %vm320, %vm352
    %vm385 = vmand %vm321, %vm353
    %vm386 = vmand %vm322, %vm354
    %vm387 = vmand %vm323, %vm355
    %vm388 = vmand %vm324, %vm356
    %vm389 = vmand %vm325, %vm357
    %vm390 = vmand %vm326, %vm358
    %vm391 = vmand %vm327, %vm359
    %vm392 = vmand %vm328, %vm360
    %vm393 = vmand %vm329, %vm361
    %vm394 = vmand %vm330, %vm362
    %vm395 = vmand %vm331, %vm363
    %vm396 = vmand %vm332, %vm364
    %vm397 = vmand %vm333, %vm365
    %vm398 = vmand %vm334, %vm366
    %vm399 = vmand %vm335, %vm367
    %vm400 = vmand %vm336, %vm368
    %vm401 = vmand %vm337, %vm369
    %vm402 = vmand %vm338, %vm370
    %vm403 = vmand %vm339, %vm371
    %vm404 = vmand %vm340, %vm372
    %vm405 = vmand %vm341, %vm373
    %vm406 = vmand %vm342, %vm374
    %v407 = vsel %vm375, 1, 0
    %v408 = vsel %vm376, 1, 0
    %v409 = vsel %vm377, 1, 0
    %v410 = vsel %vm378, 1, 0
    %v411 = vsel %vm379, 1, 0
    %v412 = vsel %vm380, 1, 0
    %v413 = vsel %vm381, 1, 0
    %v414 = vsel %vm382, 1, 0
    %v415 = vsel %vm383, 1, 0
    %v416 = vsel %vm384, 1, 0
    %v417 = vsel %vm385, 1, 0
    %v418 = vsel %vm386, 1, 0
    %v419 = vsel %vm387, 1, 0
    %v420 = vsel %vm388, 1, 0
    %v421 = vsel %vm389, 1, 0
    %v422 = vsel %vm390, 1, 0
    %v423 = vsel %vm391, 1, 0
    %v424 = vsel %vm392, 1, 0
    %v425 = vsel %vm393, 1, 0
    %v426 = vsel %vm394, 1, 0
    %v427 = vsel %vm395, 1, 0
    %v428 = vsel %vm396, 1, 0
    %v429 = vsel %vm397, 1, 0
    %v430 = vsel %vm398, 1, 0
    %v431 = vsel %vm399, 1, 0
    %v432 = vsel %vm400, 1, 0
    %v433 = vsel %vm401, 1, 0
    %v434 = vsel %vm402, 1, 0
    %v435 = vsel %vm403, 1, 0
    %v436 = vsel %vm404, 1, 0
    %v437 = vsel %vm405, 1, 0
    %v438 = vsel %vm406, 1, 0
    %v439 = vcvt.s32.f32 %v407
    %v440 = vcvt.s32.f32 %v408
    %v441 = vcvt.s32.f32 %v409
    %v442 = vcvt.s32.f32 %v410
    %v443 = vcvt.s32.f32 %v411
    %v444 = vcvt.s32.f32 %v412
    %v445 = vcvt.s32.f32 %v413
    %v446 = vcvt.s32.f32 %v414
    %v447 = vcvt.s32.f32 %v415
    %v448 = vcvt.s32.f32 %v416
    %v449 = vcvt.s32.f32 %v417
    %v450 = vcvt.s32.f32 %v418
    %v451 = vcvt.s32.f32 %v419
    %v452 = vcvt.s32.f32 %v420
    %v453 = vcvt.s32.f32 %v421
    %v454 = vcvt.s32.f32 %v422
    %v455 = vcvt.s32.f32 %v423
    %v456 = vcvt.s32.f32 %v424
    %v457 = vcvt.s32.f32 %v425
    %v458 = vcvt.s32.f32 %v426
    %v459 = vcvt.s32.f32 %v427
    %v460 = vcvt.s32.f32 %v428
    %v461 = vcvt.s32.f32 %v429
    %v462 = vcvt.s32.f32 %v430
    %v463 = vcvt.s32.f32 %v431
    %v464 = vcvt.s32.f32 %v432
    %v465 = vcvt.s32.f32 %v433
    %v466 = vcvt.s32.f32 %v434
    %v467 = vcvt.s32.f32 %v435
    %v468 = vcvt.s32.f32 %v436
    %v469 = vcvt.s32.f32 %v437
    %v470 = vcvt.s32.f32 %v438
    %v471 = vld [vmem:[%s0] sm:$0x88]
    %v472 = vld [vmem:[%s0 + $0x8] sm:$0xff]
    %v473 = vld [vmem:[%s0 + $0x10] sm:$0xff]
    %v474 = vld [vmem:[%s0 + $0x18] sm:$0xff]
    %v475 = vld [vmem:[%s0 + $0x20] sm:$0xff]
    %v476 = vld [vmem:[%s0 + $0x28] sm:$0xff]
    %v477 = vld [vmem:[%s0 + $0x30] sm:$0xff]
    %v478 = vld [vmem:[%s0 + $0x38] sm:$0xff]
    %v479 = vld [vmem:[%s0 + $0x40] sm:$0xff]
    %v480 = vld [vmem:[%s0 + $0x48] sm:$0xff]
    %v481 = vld [vmem:[%s0 + $0x50] sm:$0xff]
    %v482 = vld [vmem:[%s0 + $0x58] sm:$0xff]
    %v483 = vld [vmem:[%s0 + $0x60] sm:$0xff]
    %v484 = vld [vmem:[%s0 + $0x68] sm:$0xff]
    %v485 = vld [vmem:[%s0 + $0x70] sm:$0xff]
    %v486 = vld [vmem:[%s0 + $0x78] sm:$0xff]
    %v487 = vld [vmem:[%s0 + $0x80] sm:$0xff]
    %v488 = vld [vmem:[%s0 + $0x88] sm:$0xff]
    %v489 = vld [vmem:[%s0 + $0x90] sm:$0xff]
    %v490 = vld [vmem:[%s0 + $0x98] sm:$0xff]
    %v491 = vld [vmem:[%s0 + $0xa0] sm:$0xff]
    %v492 = vld [vmem:[%s0 + $0xa8] sm:$0xff]
    %v493 = vld [vmem:[%s0 + $0xb0] sm:$0xff]
    %v494 = vld [vmem:[%s0 + $0xb8] sm:$0xff]
    %v495 = vld [vmem:[%s0 + $0xc0] sm:$0xff]
    %v496 = vld [vmem:[%s0 + $0xc8] sm:$0xff]
    %v497 = vld [vmem:[%s0 + $0xd0] sm:$0xff]
    %v498 = vld [vmem:[%s0 + $0xd8] sm:$0xff]
    %v499 = vld [vmem:[%s0 + $0xe0] sm:$0xff]
    %v500 = vld [vmem:[%s0 + $0xe8] sm:$0xff]
    %v501 = vld [vmem:[%s0 + $0xf0] sm:$0xff]
    %v502 = vld [vmem:[%s0 + $0xf8] sm:$0xff]
    %v503 = vld [vmem:[%s0 + $0x100] sm:$0xff]
    %v504 = vld [vmem:[#allocation2] sm:$0xff]
    %v505 = vld [vmem:[#allocation2 + $0x8] sm:$0xff]
    %v506 = vld [vmem:[#allocation2 + $0x10] sm:$0xff]
    %v507 = vld [vmem:[#allocation2 + $0x18] sm:$0xff]
    %v508 = vld [vmem:[#allocation2 + $0x20] sm:$0xff]
    %v509 = vld [vmem:[#allocation2 + $0x28] sm:$0xff]
    %v510 = vld [vmem:[#allocation2 + $0x30] sm:$0xff]
    %v511 = vld [vmem:[#allocation2 + $0x38] sm:$0xff]
    %v512 = vld [vmem:[#allocation2 + $0x40] sm:$0xff]
    %v513 = vld [vmem:[#allocation2 + $0x48] sm:$0xff]
    %v514 = vld [vmem:[#allocation2 + $0x50] sm:$0xff]
    %v515 = vld [vmem:[#allocation2 + $0x58] sm:$0xff]
    %v516 = vld [vmem:[#allocation2 + $0x60] sm:$0xff]
    %v517 = vld [vmem:[#allocation2 + $0x68] sm:$0xff]
    %v518 = vld [vmem:[#allocation2 + $0x70] sm:$0xff]
    %v519 = vld [vmem:[#allocation2 + $0x78] sm:$0xff]
    %v520 = vld [vmem:[#allocation2 + $0x80] sm:$0xff]
    %v521 = vld [vmem:[#allocation2 + $0x88] sm:$0xff]
    %v522 = vld [vmem:[#allocation2 + $0x90] sm:$0xff]
    %v523 = vld [vmem:[#allocation2 + $0x98] sm:$0xff]
    %v524 = vld [vmem:[#allocation2 + $0xa0] sm:$0xff]
    %v525 = vld [vmem:[#allocation2 + $0xa8] sm:$0xff]
    %v526 = vld [vmem:[#allocation2 + $0xb0] sm:$0xff]
    %v527 = vld [vmem:[#allocation2 + $0xb8] sm:$0xff]
    %v528 = vld [vmem:[#allocation2 + $0xc0] sm:$0xff]
    %v529 = vld [vmem:[#allocation2 + $0xc8] sm:$0xff]
    %v530 = vld [vmem:[#allocation2 + $0xd0] sm:$0xff]
    %v531 = vld [vmem:[#allocation2 + $0xd8] sm:$0xff]
    %v532 = vld [vmem:[#allocation2 + $0xe0] sm:$0xff]
    %v533 = vld [vmem:[#allocation2 + $0xe8] sm:$0xff]
    %v534 = vld [vmem:[#allocation2 + $0xf0] sm:$0xff]
    %v535 = vld [vmem:[#allocation2 + $0xf8] sm:$0xff]
    %v536 = vld [vmem:[#allocation2 + $0x100] sm:$0xff]
    %v537 = vld [vmem:[#allocation2 + $0x108] sm:$0xff]
    %v538 = vld [vmem:[#allocation2 + $0x110] sm:$0xff]
    %v539 = vld [vmem:[#allocation2 + $0x118] sm:$0xff]
    %v540 = vld [vmem:[#allocation2 + $0x120] sm:$0xff]
    %v541 = vld [vmem:[#allocation2 + $0x128] sm:$0xff]
    %v542 = vld [vmem:[#allocation2 + $0x130] sm:$0xff]
    %v543 = vld [vmem:[#allocation2 + $0x138] sm:$0xff]
    %v544 = vld [vmem:[#allocation2 + $0x140] sm:$0xff]
    %v545 = vld [vmem:[#allocation2 + $0x148] sm:$0xff]
    %v546 = vld [vmem:[#allocation2 + $0x150] sm:$0xff]
    %v547 = vld [vmem:[#allocation2 + $0x158] sm:$0xff]
    %v548 = vld [vmem:[#allocation2 + $0x160] sm:$0xff]
    %v549 = vld [vmem:[#allocation2 + $0x168] sm:$0xff]
    %v550 = vld [vmem:[#allocation2 + $0x170] sm:$0xff]
    %v551 = vld [vmem:[#allocation2 + $0x178] sm:$0xff]
    %v552 = vld [vmem:[#allocation2 + $0x180] sm:$0xff]
    %v553 = vld [vmem:[#allocation2 + $0x188] sm:$0xff]
    %v554 = vld [vmem:[#allocation2 + $0x190] sm:$0xff]
    %v555 = vld [vmem:[#allocation2 + $0x198] sm:$0xff]
    %v556 = vld [vmem:[#allocation2 + $0x1a0] sm:$0xff]
    %v557 = vld [vmem:[#allocation2 + $0x1a8] sm:$0xff]
    %v558 = vld [vmem:[#allocation2 + $0x1b0] sm:$0xff]
    %v559 = vld [vmem:[#allocation2 + $0x1b8] sm:$0xff]
    %v560 = vld [vmem:[#allocation2 + $0x1c0] sm:$0xff]
    %v561 = vld [vmem:[#allocation2 + $0x1c8] sm:$0xff]
    %v562 = vld [vmem:[#allocation2 + $0x1d0] sm:$0xff]
    %v563 = vld [vmem:[#allocation2 + $0x1d8] sm:$0xff]
    %v564 = vld [vmem:[#allocation2 + $0x1e0] sm:$0xff]
    %v565 = vld [vmem:[#allocation2 + $0x1e8] sm:$0xff]
    %v566 = vld [vmem:[#allocation2 + $0x1f0] sm:$0xff]
    %v567 = vld [vmem:[#allocation2 + $0x1f8] sm:$0xff]
    %v600 = vunpack.c.l.b16 %v472
    %v601 = vunpack.c.h.b16 %v472
    %v602 = vunpack.c.l.b16 %v473
    %v603 = vunpack.c.h.b16 %v473
    %v604 = vunpack.c.l.b16 %v474
    %v605 = vunpack.c.h.b16 %v474
    %v606 = vunpack.c.l.b16 %v475
    %v607 = vunpack.c.h.b16 %v475
    %v608 = vunpack.c.l.b16 %v476
    %v609 = vunpack.c.h.b16 %v476
    %v610 = vunpack.c.l.b16 %v477
    %v611 = vunpack.c.h.b16 %v477
    %v612 = vunpack.c.l.b16 %v478
    %v613 = vunpack.c.h.b16 %v478
    %v614 = vunpack.c.l.b16 %v479
    %v615 = vunpack.c.h.b16 %v479
    %v616 = vunpack.c.l.b16 %v480
    %v617 = vunpack.c.h.b16 %v480
    %v618 = vunpack.c.l.b16 %v481
    %v619 = vunpack.c.h.b16 %v481
    %v620 = vunpack.c.l.b16 %v482
    %v621 = vunpack.c.h.b16 %v482
    %v622 = vunpack.c.l.b16 %v483
    %v623 = vunpack.c.h.b16 %v483
    %v624 = vunpack.c.l.b16 %v484
    %v625 = vunpack.c.h.b16 %v484
    %v626 = vunpack.c.l.b16 %v485
    %v627 = vunpack.c.h.b16 %v485
    %v628 = vunpack.c.l.b16 %v486
    %v629 = vunpack.c.h.b16 %v486
    %v630 = vunpack.c.l.b16 %v487
    %v631 = vunpack.c.h.b16 %v487
    %v632 = vunpack.c.l.b16 %v488
    %v633 = vunpack.c.h.b16 %v488
    %v634 = vunpack.c.l.b16 %v489
    %v635 = vunpack.c.h.b16 %v489
    %v636 = vunpack.c.l.b16 %v490
    %v637 = vunpack.c.h.b16 %v490
    %v638 = vunpack.c.l.b16 %v491
    %v639 = vunpack.c.h.b16 %v491
    %v640 = vunpack.c.l.b16 %v492
    %v641 = vunpack.c.h.b16 %v492
    %v642 = vunpack.c.l.b16 %v493
    %v643 = vunpack.c.h.b16 %v493
    %v644 = vunpack.c.l.b16 %v494
    %v645 = vunpack.c.h.b16 %v494
    %v646 = vunpack.c.l.b16 %v495
    %v647 = vunpack.c.h.b16 %v495
    %v648 = vunpack.c.l.b16 %v496
    %v649 = vunpack.c.h.b16 %v496
    %v650 = vunpack.c.l.b16 %v497
    %v651 = vunpack.c.h.b16 %v497
    %v652 = vunpack.c.l.b16 %v498
    %v653 = vunpack.c.h.b16 %v498
    %v654 = vunpack.c.l.b16 %v499
    %v655 = vunpack.c.h.b16 %v499
    %v656 = vunpack.c.l.b16 %v500
    %v657 = vunpack.c.h.b16 %v500
    %v658 = vunpack.c.l.b16 %v501
    %v659 = vunpack.c.h.b16 %v501
    %v660 = vunpack.c.l.b16 %v502
    %v661 = vunpack.c.h.b16 %v502
    %v662 = vunpack.c.l.b16 %v503
    %v663 = vunpack.c.h.b16 %v503
    %v664 = vpack.c.b16 %v602, %v600
    %v665 = vpack.c.b16 %v603, %v601
    %v666 = vpack.c.b16 %v606, %v604
    %v667 = vpack.c.b16 %v607, %v605
    %v668 = vpack.c.b16 %v610, %v608
    %v669 = vpack.c.b16 %v611, %v609
    %v670 = vpack.c.b16 %v614, %v612
    %v671 = vpack.c.b16 %v615, %v613
    %v672 = vpack.c.b16 %v618, %v616
    %v673 = vpack.c.b16 %v619, %v617
    %v674 = vpack.c.b16 %v622, %v620
    %v675 = vpack.c.b16 %v623, %v621
    %v676 = vpack.c.b16 %v626, %v624
    %v677 = vpack.c.b16 %v627, %v625
    %v678 = vpack.c.b16 %v630, %v628
    %v679 = vpack.c.b16 %v631, %v629
    %v680 = vpack.c.b16 %v634, %v632
    %v681 = vpack.c.b16 %v635, %v633
    %v682 = vpack.c.b16 %v638, %v636
    %v683 = vpack.c.b16 %v639, %v637
    %v684 = vpack.c.b16 %v642, %v640
    %v685 = vpack.c.b16 %v643, %v641
    %v686 = vpack.c.b16 %v646, %v644
    %v687 = vpack.c.b16 %v647, %v645
    %v688 = vpack.c.b16 %v650, %v648
    %v689 = vpack.c.b16 %v651, %v649
    %v690 = vpack.c.b16 %v654, %v652
    %v691 = vpack.c.b16 %v655, %v653
    %v692 = vpack.c.b16 %v658, %v656
    %v693 = vpack.c.b16 %v659, %v657
    %v694 = vpack.c.b16 %v662, %v660
    %v695 = vpack.c.b16 %v663, %v661
    %v760 = vunpack.c.l.b16 %v536
    %v761 = vunpack.c.h.b16 %v536
    %v762 = vunpack.c.l.b16 %v537
    %v763 = vunpack.c.h.b16 %v537
    %v764 = vunpack.c.l.b16 %v538
    %v765 = vunpack.c.h.b16 %v538
    %v766 = vunpack.c.l.b16 %v539
    %v767 = vunpack.c.h.b16 %v539
    %v768 = vunpack.c.l.b16 %v540
    %v769 = vunpack.c.h.b16 %v540
    %v770 = vunpack.c.l.b16 %v541
    %v771 = vunpack.c.h.b16 %v541
    %v772 = vunpack.c.l.b16 %v542
    %v773 = vunpack.c.h.b16 %v542
    %v774 = vunpack.c.l.b16 %v543
    %v775 = vunpack.c.h.b16 %v543
    %v776 = vunpack.c.l.b16 %v544
    %v777 = vunpack.c.h.b16 %v544
    %v778 = vunpack.c.l.b16 %v545
    %v779 = vunpack.c.h.b16 %v545
    %v780 = vunpack.c.l.b16 %v546
    %v781 = vunpack.c.h.b16 %v546
    %v782 = vunpack.c.l.b16 %v547
    %v783 = vunpack.c.h.b16 %v547
    %v784 = vunpack.c.l.b16 %v548
    %v785 = vunpack.c.h.b16 %v548
    %v786 = vunpack.c.l.b16 %v549
    %v787 = vunpack.c.h.b16 %v549
    %v788 = vunpack.c.l.b16 %v550
    %v789 = vunpack.c.h.b16 %v550
    %v790 = vunpack.c.l.b16 %v551
    %v791 = vunpack.c.h.b16 %v551
    %v792 = vunpack.c.l.b16 %v552
    %v793 = vunpack.c.h.b16 %v552
    %v794 = vunpack.c.l.b16 %v553
    %v795 = vunpack.c.h.b16 %v553
    %v796 = vunpack.c.l.b16 %v554
    %v797 = vunpack.c.h.b16 %v554
    %v798 = vunpack.c.l.b16 %v555
    %v799 = vunpack.c.h.b16 %v555
    %v800 = vunpack.c.l.b16 %v556
    %v801 = vunpack.c.h.b16 %v556
    %v802 = vunpack.c.l.b16 %v557
    %v803 = vunpack.c.h.b16 %v557
    %v804 = vunpack.c.l.b16 %v558
    %v805 = vunpack.c.h.b16 %v558
    %v806 = vunpack.c.l.b16 %v559
    %v807 = vunpack.c.h.b16 %v559
    %v808 = vunpack.c.l.b16 %v560
    %v809 = vunpack.c.h.b16 %v560
    %v810 = vunpack.c.l.b16 %v561
    %v811 = vunpack.c.h.b16 %v561
    %v812 = vunpack.c.l.b16 %v562
    %v813 = vunpack.c.h.b16 %v562
    %v814 = vunpack.c.l.b16 %v563
    %v815 = vunpack.c.h.b16 %v563
    %v816 = vunpack.c.l.b16 %v564
    %v817 = vunpack.c.h.b16 %v564
    %v818 = vunpack.c.l.b16 %v565
    %v819 = vunpack.c.h.b16 %v565
    %v820 = vunpack.c.l.b16 %v566
    %v821 = vunpack.c.h.b16 %v566
    %v822 = vunpack.c.l.b16 %v567
    %v823 = vunpack.c.h.b16 %v567
    %v824 = vpack.c.b16 %v762, %v760
    %v825 = vpack.c.b16 %v763, %v761
    %v826 = vpack.c.b16 %v766, %v764
    %v827 = vpack.c.b16 %v767, %v765
    %v828 = vpack.c.b16 %v770, %v768
    %v829 = vpack.c.b16 %v771, %v769
    %v830 = vpack.c.b16 %v774, %v772
    %v831 = vpack.c.b16 %v775, %v773
    %v832 = vpack.c.b16 %v778, %v776
    %v833 = vpack.c.b16 %v779, %v777
    %v834 = vpack.c.b16 %v782, %v780
    %v835 = vpack.c.b16 %v783, %v781
    %v836 = vpack.c.b16 %v786, %v784
    %v837 = vpack.c.b16 %v787, %v785
    %v838 = vpack.c.b16 %v790, %v788
    %v839 = vpack.c.b16 %v791, %v789
    %v840 = vpack.c.b16 %v794, %v792
    %v841 = vpack.c.b16 %v795, %v793
    %v842 = vpack.c.b16 %v798, %v796
    %v843 = vpack.c.b16 %v799, %v797
    %v844 = vpack.c.b16 %v802, %v800
    %v845 = vpack.c.b16 %v803, %v801
    %v846 = vpack.c.b16 %v806, %v804
    %v847 = vpack.c.b16 %v807, %v805
    %v848 = vpack.c.b16 %v810, %v808
    %v849 = vpack.c.b16 %v811, %v809
    %v850 = vpack.c.b16 %v814, %v812
    %v851 = vpack.c.b16 %v815, %v813
    %v852 = vpack.c.b16 %v818, %v816
    %v853 = vpack.c.b16 %v819, %v817
    %v854 = vpack.c.b16 %v822, %v820
    %v855 = vpack.c.b16 %v823, %v821
    %888 = vmatprep.subr.bf16.mxu0 %v839
    %889 = vmatpush1.bf16.msra.mxu0 %v838
    %890 = vmatprep.subr.bf16.mxu0 %v837
    %891 = vmatpush1.bf16.msra.mxu0 %v836
    %892 = vmatprep.subr.bf16.mxu0 %v835
    %893 = vmatpush1.bf16.msra.mxu0 %v834
    %894 = vmatprep.subr.bf16.mxu0 %v833
    %895 = vmatpush1.bf16.msra.mxu0 %v832
    %896 = vmatprep.subr.bf16.mxu0 %v831
    %897 = vmatpush1.bf16.msra.mxu0 %v830
    %898 = vmatprep.subr.bf16.mxu0 %v829
    %899 = vmatpush1.bf16.msra.mxu0 %v828
    %900 = vmatprep.subr.bf16.mxu0 %v827
    %901 = vmatpush1.bf16.msra.mxu0 %v826
    %902 = vmatprep.subr.bf16.mxu0 %v825
    %903 = vmatpush1.bf16.msra.mxu0 %v824
    %904 = vmatprep.subr.bf16.mxu0 %v855
    %905 = vmatpush2.bf16.msra.mxu0 %v854
    %906 = vmatprep.subr.bf16.mxu0 %v853
    %907 = vmatpush2.bf16.msra.mxu0 %v852
    %908 = vmatprep.subr.bf16.mxu0 %v851
    %909 = vmatpush2.bf16.msra.mxu0 %v850
    %910 = vmatprep.subr.bf16.mxu0 %v849
    %911 = vmatpush2.bf16.msra.mxu0 %v848
    %912 = vmatprep.subr.bf16.mxu0 %v847
    %913 = vmatpush2.bf16.msra.mxu0 %v846
    %914 = vmatprep.subr.bf16.mxu0 %v845
    %915 = vmatpush2.bf16.msra.mxu0 %v844
    %916 = vmatprep.subr.bf16.mxu0 %v843
    %917 = vmatpush2.bf16.msra.mxu0 %v842
    %918 = vmatprep.subr.bf16.mxu0 %v841
    %919 = vmatpush2.bf16.msra.mxu0 %v840
    %920 = vmatprep.mubr.bf16.mxu0 %v665
    %921 = vmatmul.mubr.bf16.gmra.mxu0 %v664
    %v922 = vpop.f32.mrf.mxu0
    %v923 = vadd.f32 0.0, %v922
    %v924 = vpop.f32.mrf.mxu0
    %v925 = vadd.f32 0.0, %v924
    %v926 = vpop.f32.mrf.mxu0
    %v927 = vadd.f32 0.0, %v926
    %v928 = vpop.f32.mrf.mxu0
    %v929 = vadd.f32 0.0, %v928
    %930 = vmatprep.mubr.bf16.mxu0 %v667
    %931 = vmatmul.mubr.bf16.gmra.mxu0 %v666
    %v932 = vpop.f32.mrf.mxu0
    %v933 = vadd.f32 0.0, %v932
    %v934 = vpop.f32.mrf.mxu0
    %v935 = vadd.f32 0.0, %v934
    %v936 = vpop.f32.mrf.mxu0
    %v937 = vadd.f32 0.0, %v936
    %v938 = vpop.f32.mrf.mxu0
    %v939 = vadd.f32 0.0, %v938
    %940 = vmatprep.mubr.bf16.mxu0 %v669
    %941 = vmatmul.mubr.bf16.gmra.mxu0 %v668
    %v942 = vpop.f32.mrf.mxu0
    %v943 = vadd.f32 0.0, %v942
    %v944 = vpop.f32.mrf.mxu0
    %v945 = vadd.f32 0.0, %v944
    %v946 = vpop.f32.mrf.mxu0
    %v947 = vadd.f32 0.0, %v946
    %v948 = vpop.f32.mrf.mxu0
    %v949 = vadd.f32 0.0, %v948
    %950 = vmatprep.mubr.bf16.mxu0 %v671
    %951 = vmatmul.mubr.bf16.gmra.mxu0 %v670
    %v952 = vpop.f32.mrf.mxu0
    %v953 = vadd.f32 0.0, %v952
    %v954 = vpop.f32.mrf.mxu0
    %v955 = vadd.f32 0.0, %v954
    %v956 = vpop.f32.mrf.mxu0
    %v957 = vadd.f32 0.0, %v956
    %v958 = vpop.f32.mrf.mxu0
    %v959 = vadd.f32 0.0, %v958
    %960 = vmatprep.mubr.bf16.mxu0 %v673
    %961 = vmatmul.mubr.bf16.gmra.mxu0 %v672
    %v962 = vpop.f32.mrf.mxu0
    %v963 = vadd.f32 0.0, %v962
    %v964 = vpop.f32.mrf.mxu0
    %v965 = vadd.f32 0.0, %v964
    %v966 = vpop.f32.mrf.mxu0
    %v967 = vadd.f32 0.0, %v966
    %v968 = vpop.f32.mrf.mxu0
    %v969 = vadd.f32 0.0, %v968
    %970 = vmatprep.mubr.bf16.mxu0 %v675
    %971 = vmatmul.mubr.bf16.gmra.mxu0 %v674
    %v972 = vpop.f32.mrf.mxu0
    %v973 = vadd.f32 0.0, %v972
    %v974 = vpop.f32.mrf.mxu0
    %v975 = vadd.f32 0.0, %v974
    %v976 = vpop.f32.mrf.mxu0
    %v977 = vadd.f32 0.0, %v976
    %v978 = vpop.f32.mrf.mxu0
    %v979 = vadd.f32 0.0, %v978
    %980 = vmatprep.mubr.bf16.mxu0 %v677
    %981 = vmatmul.mubr.bf16.gmra.mxu0 %v676
    %v982 = vpop.f32.mrf.mxu0
    %v983 = vadd.f32 0.0, %v982
    %v984 = vpop.f32.mrf.mxu0
    %v985 = vadd.f32 0.0, %v984
    %v986 = vpop.f32.mrf.mxu0
    %v987 = vadd.f32 0.0, %v986
    %v988 = vpop.f32.mrf.mxu0
    %v989 = vadd.f32 0.0, %v988
    %990 = vmatprep.mubr.bf16.mxu0 %v679
    %991 = vmatmul.mubr.bf16.gmra.mxu0 %v678
    %v992 = vpop.f32.mrf.mxu0
    %v993 = vadd.f32 0.0, %v992
    %v994 = vpop.f32.mrf.mxu0
    %v995 = vadd.f32 0.0, %v994
    %v996 = vpop.f32.mrf.mxu0
    %v997 = vadd.f32 0.0, %v996
    %v998 = vpop.f32.mrf.mxu0
    %v999 = vadd.f32 0.0, %v998
    %1000 = vmatprep.mubr.bf16.mxu0 %v681
    %1001 = vmatmul.mubr.bf16.gmra.mxu0 %v680
    %v1002 = vpop.f32.mrf.mxu0
    %v1003 = vadd.f32 0.0, %v1002
    %v1004 = vpop.f32.mrf.mxu0
    %v1005 = vadd.f32 0.0, %v1004
    %v1006 = vpop.f32.mrf.mxu0
    %v1007 = vadd.f32 0.0, %v1006
    %v1008 = vpop.f32.mrf.mxu0
    %v1009 = vadd.f32 0.0, %v1008
    %1010 = vmatprep.mubr.bf16.mxu0 %v683
    %1011 = vmatmul.mubr.bf16.gmra.mxu0 %v682
    %v1012 = vpop.f32.mrf.mxu0
    %v1013 = vadd.f32 0.0, %v1012
    %v1014 = vpop.f32.mrf.mxu0
    %v1015 = vadd.f32 0.0, %v1014
    %v1016 = vpop.f32.mrf.mxu0
    %v1017 = vadd.f32 0.0, %v1016
    %v1018 = vpop.f32.mrf.mxu0
    %v1019 = vadd.f32 0.0, %v1018
    %1020 = vmatprep.mubr.bf16.mxu0 %v685
    %1021 = vmatmul.mubr.bf16.gmra.mxu0 %v684
    %v1022 = vpop.f32.mrf.mxu0
    %v1023 = vadd.f32 0.0, %v1022
    %v1024 = vpop.f32.mrf.mxu0
    %v1025 = vadd.f32 0.0, %v1024
    %v1026 = vpop.f32.mrf.mxu0
    %v1027 = vadd.f32 0.0, %v1026
    %v1028 = vpop.f32.mrf.mxu0
    %v1029 = vadd.f32 0.0, %v1028
    %1030 = vmatprep.mubr.bf16.mxu0 %v687
    %1031 = vmatmul.mubr.bf16.gmra.mxu0 %v686
    %v1032 = vpop.f32.mrf.mxu0
    %v1033 = vadd.f32 0.0, %v1032
    %v1034 = vpop.f32.mrf.mxu0
    %v1035 = vadd.f32 0.0, %v1034
    %v1036 = vpop.f32.mrf.mxu0
    %v1037 = vadd.f32 0.0, %v1036
    %v1038 = vpop.f32.mrf.mxu0
    %v1039 = vadd.f32 0.0, %v1038
    %1040 = vmatprep.mubr.bf16.mxu0 %v689
    %1041 = vmatmul.mubr.bf16.gmra.mxu0 %v688
    %v1042 = vpop.f32.mrf.mxu0
    %v1043 = vadd.f32 0.0, %v1042
    %v1044 = vpop.f32.mrf.mxu0
    %v1045 = vadd.f32 0.0, %v1044
    %v1046 = vpop.f32.mrf.mxu0
    %v1047 = vadd.f32 0.0, %v1046
    %v1048 = vpop.f32.mrf.mxu0
    %v1049 = vadd.f32 0.0, %v1048
    %1050 = vmatprep.mubr.bf16.mxu0 %v691
    %1051 = vmatmul.mubr.bf16.gmra.mxu0 %v690
    %v1052 = vpop.f32.mrf.mxu0
    %v1053 = vadd.f32 0.0, %v1052
    %v1054 = vpop.f32.mrf.mxu0
    %v1055 = vadd.f32 0.0, %v1054
    %v1056 = vpop.f32.mrf.mxu0
    %v1057 = vadd.f32 0.0, %v1056
    %v1058 = vpop.f32.mrf.mxu0
    %v1059 = vadd.f32 0.0, %v1058
    %1060 = vmatprep.mubr.bf16.mxu0 %v693
    %1061 = vmatmul.mubr.bf16.gmra.mxu0 %v692
    %v1062 = vpop.f32.mrf.mxu0
    %v1063 = vadd.f32 0.0, %v1062
    %v1064 = vpop.f32.mrf.mxu0
    %v1065 = vadd.f32 0.0, %v1064
    %v1066 = vpop.f32.mrf.mxu0
    %v1067 = vadd.f32 0.0, %v1066
    %v1068 = vpop.f32.mrf.mxu0
    %v1069 = vadd.f32 0.0, %v1068
    %1070 = vmatprep.mubr.bf16.mxu0 %v695
    %1071 = vmatmul.mubr.bf16.gmra.mxu0 %v694
    %v1072 = vpop.f32.mrf.mxu0
    %v1073 = vadd.f32 0.0, %v1072
    %v1074 = vpop.f32.mrf.mxu0
    %v1075 = vadd.f32 0.0, %v1074
    %v1076 = vpop.f32.mrf.mxu0
    %v1077 = vadd.f32 0.0, %v1076
    %v1078 = vpop.f32.mrf.mxu0
    %v1079 = vadd.f32 0.0, %v1078
    %1080 = vdwg.mxu0
    %v1082 = vunpack.c.l.b16 %v471
    %v1083 = vunpack.c.h.b16 %v471
    %v1084 = vpack.c.b16 %v600, %v1082
    %v1085 = vpack.c.b16 %v601, %v1083
    %v1086 = vpack.c.b16 %v604, %v602
    %v1087 = vpack.c.b16 %v605, %v603
    %v1088 = vpack.c.b16 %v608, %v606
    %v1089 = vpack.c.b16 %v609, %v607
    %v1090 = vpack.c.b16 %v612, %v610
    %v1091 = vpack.c.b16 %v613, %v611
    %v1092 = vpack.c.b16 %v616, %v614
    %v1093 = vpack.c.b16 %v617, %v615
    %v1094 = vpack.c.b16 %v620, %v618
    %v1095 = vpack.c.b16 %v621, %v619
    %v1096 = vpack.c.b16 %v624, %v622
    %v1097 = vpack.c.b16 %v625, %v623
    %v1098 = vpack.c.b16 %v628, %v626
    %v1099 = vpack.c.b16 %v629, %v627
    %v1100 = vpack.c.b16 %v632, %v630
    %v1101 = vpack.c.b16 %v633, %v631
    %v1102 = vpack.c.b16 %v636, %v634
    %v1103 = vpack.c.b16 %v637, %v635
    %v1104 = vpack.c.b16 %v640, %v638
    %v1105 = vpack.c.b16 %v641, %v639
    %v1106 = vpack.c.b16 %v644, %v642
    %v1107 = vpack.c.b16 %v645, %v643
    %v1108 = vpack.c.b16 %v648, %v646
    %v1109 = vpack.c.b16 %v649, %v647
    %v1110 = vpack.c.b16 %v652, %v650
    %v1111 = vpack.c.b16 %v653, %v651
    %v1112 = vpack.c.b16 %v656, %v654
    %v1113 = vpack.c.b16 %v657, %v655
    %v1114 = vpack.c.b16 %v660, %v658
    %v1115 = vpack.c.b16 %v661, %v659
    %v1116 = vpack.c.b16 %v662, %v662
    %v1117 = vpack.c.b16 %v663, %v663
    %vm1118 = vsmask.f32 4352
    %v1120 = vshrl.u32 %v1084, 16
    %v1122 = vrot.slane %v1120, 3
    %v1123 = vshll.u32 %v1084, 16
    %v1125 = vrot.slane %v1123, 4
    %v1126 = vor.u32 %v1122, %v1125
    %v1128 = vshrl.u32 %v1086, 16
    %v1130 = vrot.slane %v1128, 3
    %v1131 = vshll.u32 %v1086, 16
    %v1133 = vrot.slane %v1131, 4
    %v1134 = vor.u32 %v1130, %v1133
    %v1135 = vsel %vm1118, %v1126, %v1134
    %v1137 = vshrl.u32 %v1085, 16
    %v1139 = vrot.slane %v1137, 3
    %v1140 = vshll.u32 %v1085, 16
    %v1142 = vrot.slane %v1140, 4
    %v1143 = vor.u32 %v1139, %v1142
    %v1145 = vshrl.u32 %v1087, 16
    %v1147 = vrot.slane %v1145, 3
    %v1148 = vshll.u32 %v1087, 16
    %v1150 = vrot.slane %v1148, 4
    %v1151 = vor.u32 %v1147, %v1150
    %v1152 = vsel %vm1118, %v1143, %v1151
    %v1154 = vshrl.u32 %v1088, 16
    %v1156 = vrot.slane %v1154, 3
    %v1157 = vshll.u32 %v1088, 16
    %v1159 = vrot.slane %v1157, 4
    %v1160 = vor.u32 %v1156, %v1159
    %v1161 = vsel %vm1118, %v1134, %v1160
    %v1163 = vshrl.u32 %v1089, 16
    %v1165 = vrot.slane %v1163, 3
    %v1166 = vshll.u32 %v1089, 16
    %v1168 = vrot.slane %v1166, 4
    %v1169 = vor.u32 %v1165, %v1168
    %v1170 = vsel %vm1118, %v1151, %v1169
    %v1172 = vshrl.u32 %v1090, 16
    %v1174 = vrot.slane %v1172, 3
    %v1175 = vshll.u32 %v1090, 16
    %v1177 = vrot.slane %v1175, 4
    %v1178 = vor.u32 %v1174, %v1177
    %v1179 = vsel %vm1118, %v1160, %v1178
    %v1181 = vshrl.u32 %v1091, 16
    %v1183 = vrot.slane %v1181, 3
    %v1184 = vshll.u32 %v1091, 16
    %v1186 = vrot.slane %v1184, 4
    %v1187 = vor.u32 %v1183, %v1186
    %v1188 = vsel %vm1118, %v1169, %v1187
    %v1190 = vshrl.u32 %v1092, 16
    %v1192 = vrot.slane %v1190, 3
    %v1193 = vshll.u32 %v1092, 16
    %v1195 = vrot.slane %v1193, 4
    %v1196 = vor.u32 %v1192, %v1195
    %v1197 = vsel %vm1118, %v1178, %v1196
    %v1199 = vshrl.u32 %v1093, 16
    %v1201 = vrot.slane %v1199, 3
    %v1202 = vshll.u32 %v1093, 16
    %v1204 = vrot.slane %v1202, 4
    %v1205 = vor.u32 %v1201, %v1204
    %v1206 = vsel %vm1118, %v1187, %v1205
    %v1208 = vshrl.u32 %v1094, 16
    %v1210 = vrot.slane %v1208, 3
    %v1211 = vshll.u32 %v1094, 16
    %v1213 = vrot.slane %v1211, 4
    %v1214 = vor.u32 %v1210, %v1213
    %v1215 = vsel %vm1118, %v1196, %v1214
    %v1217 = vshrl.u32 %v1095, 16
    %v1219 = vrot.slane %v1217, 3
    %v1220 = vshll.u32 %v1095, 16
    %v1222 = vrot.slane %v1220, 4
    %v1223 = vor.u32 %v1219, %v1222
    %v1224 = vsel %vm1118, %v1205, %v1223
    %v1226 = vshrl.u32 %v1096, 16
    %v1228 = vrot.slane %v1226, 3
    %v1229 = vshll.u32 %v1096, 16
    %v1231 = vrot.slane %v1229, 4
    %v1232 = vor.u32 %v1228, %v1231
    %v1233 = vsel %vm1118, %v1214, %v1232
    %v1235 = vshrl.u32 %v1097, 16
    %v1237 = vrot.slane %v1235, 3
    %v1238 = vshll.u32 %v1097, 16
    %v1240 = vrot.slane %v1238, 4
    %v1241 = vor.u32 %v1237, %v1240
    %v1242 = vsel %vm1118, %v1223, %v1241
    %v1244 = vshrl.u32 %v1098, 16
    %v1246 = vrot.slane %v1244, 3
    %v1247 = vshll.u32 %v1098, 16
    %v1249 = vrot.slane %v1247, 4
    %v1250 = vor.u32 %v1246, %v1249
    %v1251 = vsel %vm1118, %v1232, %v1250
    %v1253 = vshrl.u32 %v1099, 16
    %v1255 = vrot.slane %v1253, 3
    %v1256 = vshll.u32 %v1099, 16
    %v1258 = vrot.slane %v1256, 4
    %v1259 = vor.u32 %v1255, %v1258
    %v1260 = vsel %vm1118, %v1241, %v1259
    %v1262 = vshrl.u32 %v1100, 16
    %v1264 = vrot.slane %v1262, 3
    %v1265 = vshll.u32 %v1100, 16
    %v1267 = vrot.slane %v1265, 4
    %v1268 = vor.u32 %v1264, %v1267
    %v1269 = vsel %vm1118, %v1250, %v1268
    %v1271 = vshrl.u32 %v1101, 16
    %v1273 = vrot.slane %v1271, 3
    %v1274 = vshll.u32 %v1101, 16
    %v1276 = vrot.slane %v1274, 4
    %v1277 = vor.u32 %v1273, %v1276
    %v1278 = vsel %vm1118, %v1259, %v1277
    %v1280 = vshrl.u32 %v1102, 16
    %v1282 = vrot.slane %v1280, 3
    %v1283 = vshll.u32 %v1102, 16
    %v1285 = vrot.slane %v1283, 4
    %v1286 = vor.u32 %v1282, %v1285
    %v1287 = vsel %vm1118, %v1268, %v1286
    %v1289 = vshrl.u32 %v1103, 16
    %v1291 = vrot.slane %v1289, 3
    %v1292 = vshll.u32 %v1103, 16
    %v1294 = vrot.slane %v1292, 4
    %v1295 = vor.u32 %v1291, %v1294
    %v1296 = vsel %vm1118, %v1277, %v1295
    %v1298 = vshrl.u32 %v1104, 16
    %v1300 = vrot.slane %v1298, 3
    %v1301 = vshll.u32 %v1104, 16
    %v1303 = vrot.slane %v1301, 4
    %v1304 = vor.u32 %v1300, %v1303
    %v1305 = vsel %vm1118, %v1286, %v1304
    %v1307 = vshrl.u32 %v1105, 16
    %v1309 = vrot.slane %v1307, 3
    %v1310 = vshll.u32 %v1105, 16
    %v1312 = vrot.slane %v1310, 4
    %v1313 = vor.u32 %v1309, %v1312
    %v1314 = vsel %vm1118, %v1295, %v1313
    %v1316 = vshrl.u32 %v1106, 16
    %v1318 = vrot.slane %v1316, 3
    %v1319 = vshll.u32 %v1106, 16
    %v1321 = vrot.slane %v1319, 4
    %v1322 = vor.u32 %v1318, %v1321
    %v1323 = vsel %vm1118, %v1304, %v1322
    %v1325 = vshrl.u32 %v1107, 16
    %v1327 = vrot.slane %v1325, 3
    %v1328 = vshll.u32 %v1107, 16
    %v1330 = vrot.slane %v1328, 4
    %v1331 = vor.u32 %v1327, %v1330
    %v1332 = vsel %vm1118, %v1313, %v1331
    %v1334 = vshrl.u32 %v1108, 16
    %v1336 = vrot.slane %v1334, 3
    %v1337 = vshll.u32 %v1108, 16
    %v1339 = vrot.slane %v1337, 4
    %v1340 = vor.u32 %v1336, %v1339
    %v1341 = vsel %vm1118, %v1322, %v1340
    %v1343 = vshrl.u32 %v1109, 16
    %v1345 = vrot.slane %v1343, 3
    %v1346 = vshll.u32 %v1109, 16
    %v1348 = vrot.slane %v1346, 4
    %v1349 = vor.u32 %v1345, %v1348
    %v1350 = vsel %vm1118, %v1331, %v1349
    %v1352 = vshrl.u32 %v1110, 16
    %v1354 = vrot.slane %v1352, 3
    %v1355 = vshll.u32 %v1110, 16
    %v1357 = vrot.slane %v1355, 4
    %v1358 = vor.u32 %v1354, %v1357
    %v1359 = vsel %vm1118, %v1340, %v1358
    %v1361 = vshrl.u32 %v1111, 16
    %v1363 = vrot.slane %v1361, 3
    %v1364 = vshll.u32 %v1111, 16
    %v1366 = vrot.slane %v1364, 4
    %v1367 = vor.u32 %v1363, %v1366
    %v1368 = vsel %vm1118, %v1349, %v1367
    %v1370 = vshrl.u32 %v1112, 16
    %v1372 = vrot.slane %v1370, 3
    %v1373 = vshll.u32 %v1112, 16
    %v1375 = vrot.slane %v1373, 4
    %v1376 = vor.u32 %v1372, %v1375
    %v1377 = vsel %vm1118, %v1358, %v1376
    %v1379 = vshrl.u32 %v1113, 16
    %v1381 = vrot.slane %v1379, 3
    %v1382 = vshll.u32 %v1113, 16
    %v1384 = vrot.slane %v1382, 4
    %v1385 = vor.u32 %v1381, %v1384
    %v1386 = vsel %vm1118, %v1367, %v1385
    %v1388 = vshrl.u32 %v1114, 16
    %v1390 = vrot.slane %v1388, 3
    %v1391 = vshll.u32 %v1114, 16
    %v1393 = vrot.slane %v1391, 4
    %v1394 = vor.u32 %v1390, %v1393
    %v1395 = vsel %vm1118, %v1376, %v1394
    %v1397 = vshrl.u32 %v1115, 16
    %v1399 = vrot.slane %v1397, 3
    %v1400 = vshll.u32 %v1115, 16
    %v1402 = vrot.slane %v1400, 4
    %v1403 = vor.u32 %v1399, %v1402
    %v1404 = vsel %vm1118, %v1385, %v1403
    %v1406 = vshrl.u32 %v1116, 16
    %v1408 = vrot.slane %v1406, 3
    %v1409 = vshll.u32 %v1116, 16
    %v1411 = vrot.slane %v1409, 4
    %v1412 = vor.u32 %v1408, %v1411
    %v1413 = vsel %vm1118, %v1394, %v1412
    %v1415 = vshrl.u32 %v1117, 16
    %v1417 = vrot.slane %v1415, 3
    %v1418 = vshll.u32 %v1117, 16
    %v1420 = vrot.slane %v1418, 4
    %v1421 = vor.u32 %v1417, %v1420
    %v1422 = vsel %vm1118, %v1403, %v1421
    %v1487 = vunpack.c.l.b16 %v504
    %v1488 = vunpack.c.h.b16 %v504
    %v1489 = vunpack.c.l.b16 %v505
    %v1490 = vunpack.c.h.b16 %v505
    %v1491 = vunpack.c.l.b16 %v506
    %v1492 = vunpack.c.h.b16 %v506
    %v1493 = vunpack.c.l.b16 %v507
    %v1494 = vunpack.c.h.b16 %v507
    %v1495 = vunpack.c.l.b16 %v508
    %v1496 = vunpack.c.h.b16 %v508
    %v1497 = vunpack.c.l.b16 %v509
    %v1498 = vunpack.c.h.b16 %v509
    %v1499 = vunpack.c.l.b16 %v510
    %v1500 = vunpack.c.h.b16 %v510
    %v1501 = vunpack.c.l.b16 %v511
    %v1502 = vunpack.c.h.b16 %v511
    %v1503 = vunpack.c.l.b16 %v512
    %v1504 = vunpack.c.h.b16 %v512
    %v1505 = vunpack.c.l.b16 %v513
    %v1506 = vunpack.c.h.b16 %v513
    %v1507 = vunpack.c.l.b16 %v514
    %v1508 = vunpack.c.h.b16 %v514
    %v1509 = vunpack.c.l.b16 %v515
    %v1510 = vunpack.c.h.b16 %v515
    %v1511 = vunpack.c.l.b16 %v516
    %v1512 = vunpack.c.h.b16 %v516
    %v1513 = vunpack.c.l.b16 %v517
    %v1514 = vunpack.c.h.b16 %v517
    %v1515 = vunpack.c.l.b16 %v518
    %v1516 = vunpack.c.h.b16 %v518
    %v1517 = vunpack.c.l.b16 %v519
    %v1518 = vunpack.c.h.b16 %v519
    %v1519 = vunpack.c.l.b16 %v520
    %v1520 = vunpack.c.h.b16 %v520
    %v1521 = vunpack.c.l.b16 %v521
    %v1522 = vunpack.c.h.b16 %v521
    %v1523 = vunpack.c.l.b16 %v522
    %v1524 = vunpack.c.h.b16 %v522
    %v1525 = vunpack.c.l.b16 %v523
    %v1526 = vunpack.c.h.b16 %v523
    %v1527 = vunpack.c.l.b16 %v524
    %v1528 = vunpack.c.h.b16 %v524
    %v1529 = vunpack.c.l.b16 %v525
    %v1530 = vunpack.c.h.b16 %v525
    %v1531 = vunpack.c.l.b16 %v526
    %v1532 = vunpack.c.h.b16 %v526
    %v1533 = vunpack.c.l.b16 %v527
    %v1534 = vunpack.c.h.b16 %v527
    %v1535 = vunpack.c.l.b16 %v528
    %v1536 = vunpack.c.h.b16 %v528
    %v1537 = vunpack.c.l.b16 %v529
    %v1538 = vunpack.c.h.b16 %v529
    %v1539 = vunpack.c.l.b16 %v530
    %v1540 = vunpack.c.h.b16 %v530
    %v1541 = vunpack.c.l.b16 %v531
    %v1542 = vunpack.c.h.b16 %v531
    %v1543 = vunpack.c.l.b16 %v532
    %v1544 = vunpack.c.h.b16 %v532
    %v1545 = vunpack.c.l.b16 %v533
    %v1546 = vunpack.c.h.b16 %v533
    %v1547 = vunpack.c.l.b16 %v534
    %v1548 = vunpack.c.h.b16 %v534
    %v1549 = vunpack.c.l.b16 %v535
    %v1550 = vunpack.c.h.b16 %v535
    %v1551 = vpack.c.b16 %v1489, %v1487
    %v1552 = vpack.c.b16 %v1490, %v1488
    %v1553 = vpack.c.b16 %v1493, %v1491
    %v1554 = vpack.c.b16 %v1494, %v1492
    %v1555 = vpack.c.b16 %v1497, %v1495
    %v1556 = vpack.c.b16 %v1498, %v1496
    %v1557 = vpack.c.b16 %v1501, %v1499
    %v1558 = vpack.c.b16 %v1502, %v1500
    %v1559 = vpack.c.b16 %v1505, %v1503
    %v1560 = vpack.c.b16 %v1506, %v1504
    %v1561 = vpack.c.b16 %v1509, %v1507
    %v1562 = vpack.c.b16 %v1510, %v1508
    %v1563 = vpack.c.b16 %v1513, %v1511
    %v1564 = vpack.c.b16 %v1514, %v1512
    %v1565 = vpack.c.b16 %v1517, %v1515
    %v1566 = vpack.c.b16 %v1518, %v1516
    %v1567 = vpack.c.b16 %v1521, %v1519
    %v1568 = vpack.c.b16 %v1522, %v1520
    %v1569 = vpack.c.b16 %v1525, %v1523
    %v1570 = vpack.c.b16 %v1526, %v1524
    %v1571 = vpack.c.b16 %v1529, %v1527
    %v1572 = vpack.c.b16 %v1530, %v1528
    %v1573 = vpack.c.b16 %v1533, %v1531
    %v1574 = vpack.c.b16 %v1534, %v1532
    %v1575 = vpack.c.b16 %v1537, %v1535
    %v1576 = vpack.c.b16 %v1538, %v1536
    %v1577 = vpack.c.b16 %v1541, %v1539
    %v1578 = vpack.c.b16 %v1542, %v1540
    %v1579 = vpack.c.b16 %v1545, %v1543
    %v1580 = vpack.c.b16 %v1546, %v1544
    %v1581 = vpack.c.b16 %v1549, %v1547
    %v1582 = vpack.c.b16 %v1550, %v1548
    %1615 = vmatprep.subr.bf16.mxu0 %v1566
    %1616 = vmatpush1.bf16.msra.mxu0 %v1565
    %1617 = vmatprep.subr.bf16.mxu0 %v1564
    %1618 = vmatpush1.bf16.msra.mxu0 %v1563
    %1619 = vmatprep.subr.bf16.mxu0 %v1562
    %1620 = vmatpush1.bf16.msra.mxu0 %v1561
    %1621 = vmatprep.subr.bf16.mxu0 %v1560
    %1622 = vmatpush1.bf16.msra.mxu0 %v1559
    %1623 = vmatprep.subr.bf16.mxu0 %v1558
    %1624 = vmatpush1.bf16.msra.mxu0 %v1557
    %1625 = vmatprep.subr.bf16.mxu0 %v1556
    %1626 = vmatpush1.bf16.msra.mxu0 %v1555
    %1627 = vmatprep.subr.bf16.mxu0 %v1554
    %1628 = vmatpush1.bf16.msra.mxu0 %v1553
    %1629 = vmatprep.subr.bf16.mxu0 %v1552
    %1630 = vmatpush1.bf16.msra.mxu0 %v1551
    %1631 = vmatprep.subr.bf16.mxu0 %v1582
    %1632 = vmatpush2.bf16.msra.mxu0 %v1581
    %1633 = vmatprep.subr.bf16.mxu0 %v1580
    %1634 = vmatpush2.bf16.msra.mxu0 %v1579
    %1635 = vmatprep.subr.bf16.mxu0 %v1578
    %1636 = vmatpush2.bf16.msra.mxu0 %v1577
    %1637 = vmatprep.subr.bf16.mxu0 %v1576
    %1638 = vmatpush2.bf16.msra.mxu0 %v1575
    %1639 = vmatprep.subr.bf16.mxu0 %v1574
    %1640 = vmatpush2.bf16.msra.mxu0 %v1573
    %1641 = vmatprep.subr.bf16.mxu0 %v1572
    %1642 = vmatpush2.bf16.msra.mxu0 %v1571
    %1643 = vmatprep.subr.bf16.mxu0 %v1570
    %1644 = vmatpush2.bf16.msra.mxu0 %v1569
    %1645 = vmatprep.subr.bf16.mxu0 %v1568
    %1646 = vmatpush2.bf16.msra.mxu0 %v1567
    %1647 = vmatprep.mubr.bf16.mxu0 %v1152
    %1648 = vmatmul.mubr.bf16.gmra.mxu0 %v1135
    %v1649 = vpop.f32.mrf.mxu0
    %v1650 = vadd.f32 %v923, %v1649
    %v1651 = vpop.f32.mrf.mxu0
    %v1652 = vadd.f32 %v925, %v1651
    %v1653 = vpop.f32.mrf.mxu0
    %v1654 = vadd.f32 %v927, %v1653
    %v1655 = vpop.f32.mrf.mxu0
    %v1656 = vadd.f32 %v929, %v1655
    %1657 = vmatprep.mubr.bf16.mxu0 %v1170
    %1658 = vmatmul.mubr.bf16.gmra.mxu0 %v1161
    %v1659 = vpop.f32.mrf.mxu0
    %v1660 = vadd.f32 %v933, %v1659
    %v1661 = vpop.f32.mrf.mxu0
    %v1662 = vadd.f32 %v935, %v1661
    %v1663 = vpop.f32.mrf.mxu0
    %v1664 = vadd.f32 %v937, %v1663
    %v1665 = vpop.f32.mrf.mxu0
    %v1666 = vadd.f32 %v939, %v1665
    %1667 = vmatprep.mubr.bf16.mxu0 %v1188
    %1668 = vmatmul.mubr.bf16.gmra.mxu0 %v1179
    %v1669 = vpop.f32.mrf.mxu0
    %v1670 = vadd.f32 %v943, %v1669
    %v1671 = vpop.f32.mrf.mxu0
    %v1672 = vadd.f32 %v945, %v1671
    %v1673 = vpop.f32.mrf.mxu0
    %v1674 = vadd.f32 %v947, %v1673
    %v1675 = vpop.f32.mrf.mxu0
    %v1676 = vadd.f32 %v949, %v1675
    %1677 = vmatprep.mubr.bf16.mxu0 %v1206
    %1678 = vmatmul.mubr.bf16.gmra.mxu0 %v1197
    %v1679 = vpop.f32.mrf.mxu0
    %v1680 = vadd.f32 %v953, %v1679
    %v1681 = vpop.f32.mrf.mxu0
    %v1682 = vadd.f32 %v955, %v1681
    %v1683 = vpop.f32.mrf.mxu0
    %v1684 = vadd.f32 %v957, %v1683
    %v1685 = vpop.f32.mrf.mxu0
    %v1686 = vadd.f32 %v959, %v1685
    %1687 = vmatprep.mubr.bf16.mxu0 %v1224
    %1688 = vmatmul.mubr.bf16.gmra.mxu0 %v1215
    %v1689 = vpop.f32.mrf.mxu0
    %v1690 = vadd.f32 %v963, %v1689
    %v1691 = vpop.f32.mrf.mxu0
    %v1692 = vadd.f32 %v965, %v1691
    %v1693 = vpop.f32.mrf.mxu0
    %v1694 = vadd.f32 %v967, %v1693
    %v1695 = vpop.f32.mrf.mxu0
    %v1696 = vadd.f32 %v969, %v1695
    %1697 = vmatprep.mubr.bf16.mxu0 %v1242
    %1698 = vmatmul.mubr.bf16.gmra.mxu0 %v1233
    %v1699 = vpop.f32.mrf.mxu0
    %v1700 = vadd.f32 %v973, %v1699
    %v1701 = vpop.f32.mrf.mxu0
    %v1702 = vadd.f32 %v975, %v1701
    %v1703 = vpop.f32.mrf.mxu0
    %v1704 = vadd.f32 %v977, %v1703
    %v1705 = vpop.f32.mrf.mxu0
    %v1706 = vadd.f32 %v979, %v1705
    %1707 = vmatprep.mubr.bf16.mxu0 %v1260
    %1708 = vmatmul.mubr.bf16.gmra.mxu0 %v1251
    %v1709 = vpop.f32.mrf.mxu0
    %v1710 = vadd.f32 %v983, %v1709
    %v1711 = vpop.f32.mrf.mxu0
    %v1712 = vadd.f32 %v985, %v1711
    %v1713 = vpop.f32.mrf.mxu0
    %v1714 = vadd.f32 %v987, %v1713
    %v1715 = vpop.f32.mrf.mxu0
    %v1716 = vadd.f32 %v989, %v1715
    %1717 = vmatprep.mubr.bf16.mxu0 %v1278
    %1718 = vmatmul.mubr.bf16.gmra.mxu0 %v1269
    %v1719 = vpop.f32.mrf.mxu0
    %v1720 = vadd.f32 %v993, %v1719
    %v1721 = vpop.f32.mrf.mxu0
    %v1722 = vadd.f32 %v995, %v1721
    %v1723 = vpop.f32.mrf.mxu0
    %v1724 = vadd.f32 %v997, %v1723
    %v1725 = vpop.f32.mrf.mxu0
    %v1726 = vadd.f32 %v999, %v1725
    %1727 = vmatprep.mubr.bf16.mxu0 %v1296
    %1728 = vmatmul.mubr.bf16.gmra.mxu0 %v1287
    %v1729 = vpop.f32.mrf.mxu0
    %v1730 = vadd.f32 %v1003, %v1729
    %v1731 = vpop.f32.mrf.mxu0
    %v1732 = vadd.f32 %v1005, %v1731
    %v1733 = vpop.f32.mrf.mxu0
    %v1734 = vadd.f32 %v1007, %v1733
    %v1735 = vpop.f32.mrf.mxu0
    %v1736 = vadd.f32 %v1009, %v1735
    %1737 = vmatprep.mubr.bf16.mxu0 %v1314
    %1738 = vmatmul.mubr.bf16.gmra.mxu0 %v1305
    %v1739 = vpop.f32.mrf.mxu0
    %v1740 = vadd.f32 %v1013, %v1739
    %v1741 = vpop.f32.mrf.mxu0
    %v1742 = vadd.f32 %v1015, %v1741
    %v1743 = vpop.f32.mrf.mxu0
    %v1744 = vadd.f32 %v1017, %v1743
    %v1745 = vpop.f32.mrf.mxu0
    %v1746 = vadd.f32 %v1019, %v1745
    %1747 = vmatprep.mubr.bf16.mxu0 %v1332
    %1748 = vmatmul.mubr.bf16.gmra.mxu0 %v1323
    %v1749 = vpop.f32.mrf.mxu0
    %v1750 = vadd.f32 %v1023, %v1749
    %v1751 = vpop.f32.mrf.mxu0
    %v1752 = vadd.f32 %v1025, %v1751
    %v1753 = vpop.f32.mrf.mxu0
    %v1754 = vadd.f32 %v1027, %v1753
    %v1755 = vpop.f32.mrf.mxu0
    %v1756 = vadd.f32 %v1029, %v1755
    %1757 = vmatprep.mubr.bf16.mxu0 %v1350
    %1758 = vmatmul.mubr.bf16.gmra.mxu0 %v1341
    %v1759 = vpop.f32.mrf.mxu0
    %v1760 = vadd.f32 %v1033, %v1759
    %v1761 = vpop.f32.mrf.mxu0
    %v1762 = vadd.f32 %v1035, %v1761
    %v1763 = vpop.f32.mrf.mxu0
    %v1764 = vadd.f32 %v1037, %v1763
    %v1765 = vpop.f32.mrf.mxu0
    %v1766 = vadd.f32 %v1039, %v1765
    %1767 = vmatprep.mubr.bf16.mxu0 %v1368
    %1768 = vmatmul.mubr.bf16.gmra.mxu0 %v1359
    %v1769 = vpop.f32.mrf.mxu0
    %v1770 = vadd.f32 %v1043, %v1769
    %v1771 = vpop.f32.mrf.mxu0
    %v1772 = vadd.f32 %v1045, %v1771
    %v1773 = vpop.f32.mrf.mxu0
    %v1774 = vadd.f32 %v1047, %v1773
    %v1775 = vpop.f32.mrf.mxu0
    %v1776 = vadd.f32 %v1049, %v1775
    %1777 = vmatprep.mubr.bf16.mxu0 %v1386
    %1778 = vmatmul.mubr.bf16.gmra.mxu0 %v1377
    %v1779 = vpop.f32.mrf.mxu0
    %v1780 = vadd.f32 %v1053, %v1779
    %v1781 = vpop.f32.mrf.mxu0
    %v1782 = vadd.f32 %v1055, %v1781
    %v1783 = vpop.f32.mrf.mxu0
    %v1784 = vadd.f32 %v1057, %v1783
    %v1785 = vpop.f32.mrf.mxu0
    %v1786 = vadd.f32 %v1059, %v1785
    %1787 = vmatprep.mubr.bf16.mxu0 %v1404
    %1788 = vmatmul.mubr.bf16.gmra.mxu0 %v1395
    %v1789 = vpop.f32.mrf.mxu0
    %v1790 = vadd.f32 %v1063, %v1789
    %v1791 = vpop.f32.mrf.mxu0
    %v1792 = vadd.f32 %v1065, %v1791
    %v1793 = vpop.f32.mrf.mxu0
    %v1794 = vadd.f32 %v1067, %v1793
    %v1795 = vpop.f32.mrf.mxu0
    %v1796 = vadd.f32 %v1069, %v1795
    %1797 = vmatprep.mubr.bf16.mxu0 %v1422
    %1798 = vmatmul.mubr.bf16.gmra.mxu0 %v1413
    %v1799 = vpop.f32.mrf.mxu0
    %v1800 = vadd.f32 %v1073, %v1799
    %v1801 = vpop.f32.mrf.mxu0
    %v1802 = vadd.f32 %v1075, %v1801
    %v1803 = vpop.f32.mrf.mxu0
    %v1804 = vadd.f32 %v1077, %v1803
    %v1805 = vpop.f32.mrf.mxu0
    %v1806 = vadd.f32 %v1079, %v1805
    %1807 = vdwg.mxu0
    %v1808 = vld [vmem:[%s0 + $0x8] sm:$0xff]
    %v1809 = vld [vmem:[%s0 + $0x10] sm:$0xff]
    %v1810 = vld [vmem:[%s0 + $0x18] sm:$0xff]
    %v1811 = vld [vmem:[%s0 + $0x20] sm:$0xff]
    %v1812 = vld [vmem:[%s0 + $0x28] sm:$0xff]
    %v1813 = vld [vmem:[%s0 + $0x30] sm:$0xff]
    %v1814 = vld [vmem:[%s0 + $0x38] sm:$0xff]
    %v1815 = vld [vmem:[%s0 + $0x40] sm:$0xff]
    %v1816 = vld [vmem:[%s0 + $0x48] sm:$0xff]
    %v1817 = vld [vmem:[%s0 + $0x50] sm:$0xff]
    %v1818 = vld [vmem:[%s0 + $0x58] sm:$0xff]
    %v1819 = vld [vmem:[%s0 + $0x60] sm:$0xff]
    %v1820 = vld [vmem:[%s0 + $0x68] sm:$0xff]
    %v1821 = vld [vmem:[%s0 + $0x70] sm:$0xff]
    %v1822 = vld [vmem:[%s0 + $0x78] sm:$0xff]
    %v1823 = vld [vmem:[%s0 + $0x80] sm:$0xff]
    %v1824 = vld [vmem:[%s0 + $0x88] sm:$0xff]
    %v1825 = vld [vmem:[%s0 + $0x90] sm:$0xff]
    %v1826 = vld [vmem:[%s0 + $0x98] sm:$0xff]
    %v1827 = vld [vmem:[%s0 + $0xa0] sm:$0xff]
    %v1828 = vld [vmem:[%s0 + $0xa8] sm:$0xff]
    %v1829 = vld [vmem:[%s0 + $0xb0] sm:$0xff]
    %v1830 = vld [vmem:[%s0 + $0xb8] sm:$0xff]
    %v1831 = vld [vmem:[%s0 + $0xc0] sm:$0xff]
    %v1832 = vld [vmem:[%s0 + $0xc8] sm:$0xff]
    %v1833 = vld [vmem:[%s0 + $0xd0] sm:$0xff]
    %v1834 = vld [vmem:[%s0 + $0xd8] sm:$0xff]
    %v1835 = vld [vmem:[%s0 + $0xe0] sm:$0xff]
    %v1836 = vld [vmem:[%s0 + $0xe8] sm:$0xff]
    %v1837 = vld [vmem:[%s0 + $0xf0] sm:$0xff]
    %v1838 = vld [vmem:[%s0 + $0xf8] sm:$0xff]
    %v1839 = vld [vmem:[%s0 + $0x100] sm:$0xff]
    %v1840 = vld [vmem:[%s0 + $0x108] sm:$0x11]
    %v1841 = vld [vmem:[#allocation2 + $0x200] sm:$0xff]
    %v1842 = vld [vmem:[#allocation2 + $0x208] sm:$0xff]
    %v1843 = vld [vmem:[#allocation2 + $0x210] sm:$0xff]
    %v1844 = vld [vmem:[#allocation2 + $0x218] sm:$0xff]
    %v1845 = vld [vmem:[#allocation2 + $0x220] sm:$0xff]
    %v1846 = vld [vmem:[#allocation2 + $0x228] sm:$0xff]
    %v1847 = vld [vmem:[#allocation2 + $0x230] sm:$0xff]
    %v1848 = vld [vmem:[#allocation2 + $0x238] sm:$0xff]
    %v1849 = vld [vmem:[#allocation2 + $0x240] sm:$0xff]
    %v1850 = vld [vmem:[#allocation2 + $0x248] sm:$0xff]
    %v1851 = vld [vmem:[#allocation2 + $0x250] sm:$0xff]
    %v1852 = vld [vmem:[#allocation2 + $0x258] sm:$0xff]
    %v1853 = vld [vmem:[#allocation2 + $0x260] sm:$0xff]
    %v1854 = vld [vmem:[#allocation2 + $0x268] sm:$0xff]
    %v1855 = vld [vmem:[#allocation2 + $0x270] sm:$0xff]
    %v1856 = vld [vmem:[#allocation2 + $0x278] sm:$0xff]
    %v1857 = vld [vmem:[#allocation2 + $0x280] sm:$0xff]
    %v1858 = vld [vmem:[#allocation2 + $0x288] sm:$0xff]
    %v1859 = vld [vmem:[#allocation2 + $0x290] sm:$0xff]
    %v1860 = vld [vmem:[#allocation2 + $0x298] sm:$0xff]
    %v1861 = vld [vmem:[#allocation2 + $0x2a0] sm:$0xff]
    %v1862 = vld [vmem:[#allocation2 + $0x2a8] sm:$0xff]
    %v1863 = vld [vmem:[#allocation2 + $0x2b0] sm:$0xff]
    %v1864 = vld [vmem:[#allocation2 + $0x2b8] sm:$0xff]
    %v1865 = vld [vmem:[#allocation2 + $0x2c0] sm:$0xff]
    %v1866 = vld [vmem:[#allocation2 + $0x2c8] sm:$0xff]
    %v1867 = vld [vmem:[#allocation2 + $0x2d0] sm:$0xff]
    %v1868 = vld [vmem:[#allocation2 + $0x2d8] sm:$0xff]
    %v1869 = vld [vmem:[#allocation2 + $0x2e0] sm:$0xff]
    %v1870 = vld [vmem:[#allocation2 + $0x2e8] sm:$0xff]
    %v1871 = vld [vmem:[#allocation2 + $0x2f0] sm:$0xff]
    %v1872 = vld [vmem:[#allocation2 + $0x2f8] sm:$0xff]
    %v1906 = vunpack.c.l.b16 %v1808
    %v1907 = vunpack.c.h.b16 %v1808
    %v1908 = vunpack.c.l.b16 %v1809
    %v1909 = vunpack.c.h.b16 %v1809
    %v1910 = vunpack.c.l.b16 %v1810
    %v1911 = vunpack.c.h.b16 %v1810
    %v1912 = vunpack.c.l.b16 %v1811
    %v1913 = vunpack.c.h.b16 %v1811
    %v1914 = vunpack.c.l.b16 %v1812
    %v1915 = vunpack.c.h.b16 %v1812
    %v1916 = vunpack.c.l.b16 %v1813
    %v1917 = vunpack.c.h.b16 %v1813
    %v1918 = vunpack.c.l.b16 %v1814
    %v1919 = vunpack.c.h.b16 %v1814
    %v1920 = vunpack.c.l.b16 %v1815
    %v1921 = vunpack.c.h.b16 %v1815
    %v1922 = vunpack.c.l.b16 %v1816
    %v1923 = vunpack.c.h.b16 %v1816
    %v1924 = vunpack.c.l.b16 %v1817
    %v1925 = vunpack.c.h.b16 %v1817
    %v1926 = vunpack.c.l.b16 %v1818
    %v1927 = vunpack.c.h.b16 %v1818
    %v1928 = vunpack.c.l.b16 %v1819
    %v1929 = vunpack.c.h.b16 %v1819
    %v1930 = vunpack.c.l.b16 %v1820
    %v1931 = vunpack.c.h.b16 %v1820
    %v1932 = vunpack.c.l.b16 %v1821
    %v1933 = vunpack.c.h.b16 %v1821
    %v1934 = vunpack.c.l.b16 %v1822
    %v1935 = vunpack.c.h.b16 %v1822
    %v1936 = vunpack.c.l.b16 %v1823
    %v1937 = vunpack.c.h.b16 %v1823
    %v1938 = vunpack.c.l.b16 %v1824
    %v1939 = vunpack.c.h.b16 %v1824
    %v1940 = vunpack.c.l.b16 %v1825
    %v1941 = vunpack.c.h.b16 %v1825
    %v1942 = vunpack.c.l.b16 %v1826
    %v1943 = vunpack.c.h.b16 %v1826
    %v1944 = vunpack.c.l.b16 %v1827
    %v1945 = vunpack.c.h.b16 %v1827
    %v1946 = vunpack.c.l.b16 %v1828
    %v1947 = vunpack.c.h.b16 %v1828
    %v1948 = vunpack.c.l.b16 %v1829
    %v1949 = vunpack.c.h.b16 %v1829
    %v1950 = vunpack.c.l.b16 %v1830
    %v1951 = vunpack.c.h.b16 %v1830
    %v1952 = vunpack.c.l.b16 %v1831
    %v1953 = vunpack.c.h.b16 %v1831
    %v1954 = vunpack.c.l.b16 %v1832
    %v1955 = vunpack.c.h.b16 %v1832
    %v1956 = vunpack.c.l.b16 %v1833
    %v1957 = vunpack.c.h.b16 %v1833
    %v1958 = vunpack.c.l.b16 %v1834
    %v1959 = vunpack.c.h.b16 %v1834
    %v1960 = vunpack.c.l.b16 %v1835
    %v1961 = vunpack.c.h.b16 %v1835
    %v1962 = vunpack.c.l.b16 %v1836
    %v1963 = vunpack.c.h.b16 %v1836
    %v1964 = vunpack.c.l.b16 %v1837
    %v1965 = vunpack.c.h.b16 %v1837
    %v1966 = vunpack.c.l.b16 %v1838
    %v1967 = vunpack.c.h.b16 %v1838
    %v1968 = vunpack.c.l.b16 %v1839
    %v1969 = vunpack.c.h.b16 %v1839
    %v1970 = vunpack.c.l.b16 %v1840
    %v1971 = vunpack.c.h.b16 %v1840
    %v1972 = vpack.c.b16 %v1908, %v1906
    %v1973 = vpack.c.b16 %v1909, %v1907
    %v1974 = vpack.c.b16 %v1912, %v1910
    %v1975 = vpack.c.b16 %v1913, %v1911
    %v1976 = vpack.c.b16 %v1916, %v1914
    %v1977 = vpack.c.b16 %v1917, %v1915
    %v1978 = vpack.c.b16 %v1920, %v1918
    %v1979 = vpack.c.b16 %v1921, %v1919
    %v1980 = vpack.c.b16 %v1924, %v1922
    %v1981 = vpack.c.b16 %v1925, %v1923
    %v1982 = vpack.c.b16 %v1928, %v1926
    %v1983 = vpack.c.b16 %v1929, %v1927
    %v1984 = vpack.c.b16 %v1932, %v1930
    %v1985 = vpack.c.b16 %v1933, %v1931
    %v1986 = vpack.c.b16 %v1936, %v1934
    %v1987 = vpack.c.b16 %v1937, %v1935
    %v1988 = vpack.c.b16 %v1940, %v1938
    %v1989 = vpack.c.b16 %v1941, %v1939
    %v1990 = vpack.c.b16 %v1944, %v1942
    %v1991 = vpack.c.b16 %v1945, %v1943
    %v1992 = vpack.c.b16 %v1948, %v1946
    %v1993 = vpack.c.b16 %v1949, %v1947
    %v1994 = vpack.c.b16 %v1952, %v1950
    %v1995 = vpack.c.b16 %v1953, %v1951
    %v1996 = vpack.c.b16 %v1956, %v1954
    %v1997 = vpack.c.b16 %v1957, %v1955
    %v1998 = vpack.c.b16 %v1960, %v1958
    %v1999 = vpack.c.b16 %v1961, %v1959
    %v2000 = vpack.c.b16 %v1964, %v1962
    %v2001 = vpack.c.b16 %v1965, %v1963
    %v2002 = vpack.c.b16 %v1968, %v1966
    %v2003 = vpack.c.b16 %v1969, %v1967
    %v2004 = vpack.c.b16 %v1970, %v1970
    %v2005 = vpack.c.b16 %v1971, %v1971
    %vm2006 = vsmask.f32 7424
    %v2008 = vshrl.u32 %v1972, 16
    %v2010 = vshll.u32 %v1972, 16
    %v2012 = vrot.slane %v2010, 1
    %v2013 = vor.u32 %v2008, %v2012
    %v2015 = vshll.u32 %v1974, 16
    %v2017 = vrot.slane %v2015, 1
    %v2018 = vsel %vm2006, %v2013, %v2017
    %v2020 = vshrl.u32 %v1973, 16
    %v2022 = vshll.u32 %v1973, 16
    %v2024 = vrot.slane %v2022, 1
    %v2025 = vor.u32 %v2020, %v2024
    %v2027 = vshll.u32 %v1975, 16
    %v2029 = vrot.slane %v2027, 1
    %v2030 = vsel %vm2006, %v2025, %v2029
    %v2031 = vshrl.u32 %v1974, 16
    %v2033 = vor.u32 %v2031, %v2017
    %v2035 = vshll.u32 %v1976, 16
    %v2037 = vrot.slane %v2035, 1
    %v2038 = vsel %vm2006, %v2033, %v2037
    %v2039 = vshrl.u32 %v1975, 16
    %v2041 = vor.u32 %v2039, %v2029
    %v2043 = vshll.u32 %v1977, 16
    %v2045 = vrot.slane %v2043, 1
    %v2046 = vsel %vm2006, %v2041, %v2045
    %v2047 = vshrl.u32 %v1976, 16
    %v2049 = vor.u32 %v2047, %v2037
    %v2051 = vshll.u32 %v1978, 16
    %v2053 = vrot.slane %v2051, 1
    %v2054 = vsel %vm2006, %v2049, %v2053
    %v2055 = vshrl.u32 %v1977, 16
    %v2057 = vor.u32 %v2055, %v2045
    %v2059 = vshll.u32 %v1979, 16
    %v2061 = vrot.slane %v2059, 1
    %v2062 = vsel %vm2006, %v2057, %v2061
    %v2063 = vshrl.u32 %v1978, 16
    %v2065 = vor.u32 %v2063, %v2053
    %v2067 = vshll.u32 %v1980, 16
    %v2069 = vrot.slane %v2067, 1
    %v2070 = vsel %vm2006, %v2065, %v2069
    %v2071 = vshrl.u32 %v1979, 16
    %v2073 = vor.u32 %v2071, %v2061
    %v2075 = vshll.u32 %v1981, 16
    %v2077 = vrot.slane %v2075, 1
    %v2078 = vsel %vm2006, %v2073, %v2077
    %v2079 = vshrl.u32 %v1980, 16
    %v2081 = vor.u32 %v2079, %v2069
    %v2083 = vshll.u32 %v1982, 16
    %v2085 = vrot.slane %v2083, 1
    %v2086 = vsel %vm2006, %v2081, %v2085
    %v2087 = vshrl.u32 %v1981, 16
    %v2089 = vor.u32 %v2087, %v2077
    %v2091 = vshll.u32 %v1983, 16
    %v2093 = vrot.slane %v2091, 1
    %v2094 = vsel %vm2006, %v2089, %v2093
    %v2095 = vshrl.u32 %v1982, 16
    %v2097 = vor.u32 %v2095, %v2085
    %v2099 = vshll.u32 %v1984, 16
    %v2101 = vrot.slane %v2099, 1
    %v2102 = vsel %vm2006, %v2097, %v2101
    %v2103 = vshrl.u32 %v1983, 16
    %v2105 = vor.u32 %v2103, %v2093
    %v2107 = vshll.u32 %v1985, 16
    %v2109 = vrot.slane %v2107, 1
    %v2110 = vsel %vm2006, %v2105, %v2109
    %v2111 = vshrl.u32 %v1984, 16
    %v2113 = vor.u32 %v2111, %v2101
    %v2115 = vshll.u32 %v1986, 16
    %v2117 = vrot.slane %v2115, 1
    %v2118 = vsel %vm2006, %v2113, %v2117
    %v2119 = vshrl.u32 %v1985, 16
    %v2121 = vor.u32 %v2119, %v2109
    %v2123 = vshll.u32 %v1987, 16
    %v2125 = vrot.slane %v2123, 1
    %v2126 = vsel %vm2006, %v2121, %v2125
    %v2127 = vshrl.u32 %v1986, 16
    %v2129 = vor.u32 %v2127, %v2117
    %v2131 = vshll.u32 %v1988, 16
    %v2133 = vrot.slane %v2131, 1
    %v2134 = vsel %vm2006, %v2129, %v2133
    %v2135 = vshrl.u32 %v1987, 16
    %v2137 = vor.u32 %v2135, %v2125
    %v2139 = vshll.u32 %v1989, 16
    %v2141 = vrot.slane %v2139, 1
    %v2142 = vsel %vm2006, %v2137, %v2141
    %v2143 = vshrl.u32 %v1988, 16
    %v2145 = vor.u32 %v2143, %v2133
    %v2147 = vshll.u32 %v1990, 16
    %v2149 = vrot.slane %v2147, 1
    %v2150 = vsel %vm2006, %v2145, %v2149
    %v2151 = vshrl.u32 %v1989, 16
    %v2153 = vor.u32 %v2151, %v2141
    %v2155 = vshll.u32 %v1991, 16
    %v2157 = vrot.slane %v2155, 1
    %v2158 = vsel %vm2006, %v2153, %v2157
    %v2159 = vshrl.u32 %v1990, 16
    %v2161 = vor.u32 %v2159, %v2149
    %v2163 = vshll.u32 %v1992, 16
    %v2165 = vrot.slane %v2163, 1
    %v2166 = vsel %vm2006, %v2161, %v2165
    %v2167 = vshrl.u32 %v1991, 16
    %v2169 = vor.u32 %v2167, %v2157
    %v2171 = vshll.u32 %v1993, 16
    %v2173 = vrot.slane %v2171, 1
    %v2174 = vsel %vm2006, %v2169, %v2173
    %v2175 = vshrl.u32 %v1992, 16
    %v2177 = vor.u32 %v2175, %v2165
    %v2179 = vshll.u32 %v1994, 16
    %v2181 = vrot.slane %v2179, 1
    %v2182 = vsel %vm2006, %v2177, %v2181
    %v2183 = vshrl.u32 %v1993, 16
    %v2185 = vor.u32 %v2183, %v2173
    %v2187 = vshll.u32 %v1995, 16
    %v2189 = vrot.slane %v2187, 1
    %v2190 = vsel %vm2006, %v2185, %v2189
    %v2191 = vshrl.u32 %v1994, 16
    %v2193 = vor.u32 %v2191, %v2181
    %v2195 = vshll.u32 %v1996, 16
    %v2197 = vrot.slane %v2195, 1
    %v2198 = vsel %vm2006, %v2193, %v2197
    %v2199 = vshrl.u32 %v1995, 16
    %v2201 = vor.u32 %v2199, %v2189
    %v2203 = vshll.u32 %v1997, 16
    %v2205 = vrot.slane %v2203, 1
    %v2206 = vsel %vm2006, %v2201, %v2205
    %v2207 = vshrl.u32 %v1996, 16
    %v2209 = vor.u32 %v2207, %v2197
    %v2211 = vshll.u32 %v1998, 16
    %v2213 = vrot.slane %v2211, 1
    %v2214 = vsel %vm2006, %v2209, %v2213
    %v2215 = vshrl.u32 %v1997, 16
    %v2217 = vor.u32 %v2215, %v2205
    %v2219 = vshll.u32 %v1999, 16
    %v2221 = vrot.slane %v2219, 1
    %v2222 = vsel %vm2006, %v2217, %v2221
    %v2223 = vshrl.u32 %v1998, 16
    %v2225 = vor.u32 %v2223, %v2213
    %v2227 = vshll.u32 %v2000, 16
    %v2229 = vrot.slane %v2227, 1
    %v2230 = vsel %vm2006, %v2225, %v2229
    %v2231 = vshrl.u32 %v1999, 16
    %v2233 = vor.u32 %v2231, %v2221
    %v2235 = vshll.u32 %v2001, 16
    %v2237 = vrot.slane %v2235, 1
    %v2238 = vsel %vm2006, %v2233, %v2237
    %v2239 = vshrl.u32 %v2000, 16
    %v2241 = vor.u32 %v2239, %v2229
    %v2243 = vshll.u32 %v2002, 16
    %v2245 = vrot.slane %v2243, 1
    %v2246 = vsel %vm2006, %v2241, %v2245
    %v2247 = vshrl.u32 %v2001, 16
    %v2249 = vor.u32 %v2247, %v2237
    %v2251 = vshll.u32 %v2003, 16
    %v2253 = vrot.slane %v2251, 1
    %v2254 = vsel %vm2006, %v2249, %v2253
    %v2255 = vshrl.u32 %v2002, 16
    %v2257 = vor.u32 %v2255, %v2245
    %v2259 = vshll.u32 %v2004, 16
    %v2261 = vrot.slane %v2259, 1
    %v2262 = vsel %vm2006, %v2257, %v2261
    %v2263 = vshrl.u32 %v2003, 16
    %v2265 = vor.u32 %v2263, %v2253
    %v2267 = vshll.u32 %v2005, 16
    %v2269 = vrot.slane %v2267, 1
    %v2270 = vsel %vm2006, %v2265, %v2269
    %v2335 = vunpack.c.l.b16 %v1841
    %v2336 = vunpack.c.h.b16 %v1841
    %v2337 = vunpack.c.l.b16 %v1842
    %v2338 = vunpack.c.h.b16 %v1842
    %v2339 = vunpack.c.l.b16 %v1843
    %v2340 = vunpack.c.h.b16 %v1843
    %v2341 = vunpack.c.l.b16 %v1844
    %v2342 = vunpack.c.h.b16 %v1844
    %v2343 = vunpack.c.l.b16 %v1845
    %v2344 = vunpack.c.h.b16 %v1845
    %v2345 = vunpack.c.l.b16 %v1846
    %v2346 = vunpack.c.h.b16 %v1846
    %v2347 = vunpack.c.l.b16 %v1847
    %v2348 = vunpack.c.h.b16 %v1847
    %v2349 = vunpack.c.l.b16 %v1848
    %v2350 = vunpack.c.h.b16 %v1848
    %v2351 = vunpack.c.l.b16 %v1849
    %v2352 = vunpack.c.h.b16 %v1849
    %v2353 = vunpack.c.l.b16 %v1850
    %v2354 = vunpack.c.h.b16 %v1850
    %v2355 = vunpack.c.l.b16 %v1851
    %v2356 = vunpack.c.h.b16 %v1851
    %v2357 = vunpack.c.l.b16 %v1852
    %v2358 = vunpack.c.h.b16 %v1852
    %v2359 = vunpack.c.l.b16 %v1853
    %v2360 = vunpack.c.h.b16 %v1853
    %v2361 = vunpack.c.l.b16 %v1854
    %v2362 = vunpack.c.h.b16 %v1854
    %v2363 = vunpack.c.l.b16 %v1855
    %v2364 = vunpack.c.h.b16 %v1855
    %v2365 = vunpack.c.l.b16 %v1856
    %v2366 = vunpack.c.h.b16 %v1856
    %v2367 = vunpack.c.l.b16 %v1857
    %v2368 = vunpack.c.h.b16 %v1857
    %v2369 = vunpack.c.l.b16 %v1858
    %v2370 = vunpack.c.h.b16 %v1858
    %v2371 = vunpack.c.l.b16 %v1859
    %v2372 = vunpack.c.h.b16 %v1859
    %v2373 = vunpack.c.l.b16 %v1860
    %v2374 = vunpack.c.h.b16 %v1860
    %v2375 = vunpack.c.l.b16 %v1861
    %v2376 = vunpack.c.h.b16 %v1861
    %v2377 = vunpack.c.l.b16 %v1862
    %v2378 = vunpack.c.h.b16 %v1862
    %v2379 = vunpack.c.l.b16 %v1863
    %v2380 = vunpack.c.h.b16 %v1863
    %v2381 = vunpack.c.l.b16 %v1864
    %v2382 = vunpack.c.h.b16 %v1864
    %v2383 = vunpack.c.l.b16 %v1865
    %v2384 = vunpack.c.h.b16 %v1865
    %v2385 = vunpack.c.l.b16 %v1866
    %v2386 = vunpack.c.h.b16 %v1866
    %v2387 = vunpack.c.l.b16 %v1867
    %v2388 = vunpack.c.h.b16 %v1867
    %v2389 = vunpack.c.l.b16 %v1868
    %v2390 = vunpack.c.h.b16 %v1868
    %v2391 = vunpack.c.l.b16 %v1869
    %v2392 = vunpack.c.h.b16 %v1869
    %v2393 = vunpack.c.l.b16 %v1870
    %v2394 = vunpack.c.h.b16 %v1870
    %v2395 = vunpack.c.l.b16 %v1871
    %v2396 = vunpack.c.h.b16 %v1871
    %v2397 = vunpack.c.l.b16 %v1872
    %v2398 = vunpack.c.h.b16 %v1872
    %v2399 = vpack.c.b16 %v2337, %v2335
    %v2400 = vpack.c.b16 %v2338, %v2336
    %v2401 = vpack.c.b16 %v2341, %v2339
    %v2402 = vpack.c.b16 %v2342, %v2340
    %v2403 = vpack.c.b16 %v2345, %v2343
    %v2404 = vpack.c.b16 %v2346, %v2344
    %v2405 = vpack.c.b16 %v2349, %v2347
    %v2406 = vpack.c.b16 %v2350, %v2348
    %v2407 = vpack.c.b16 %v2353, %v2351
    %v2408 = vpack.c.b16 %v2354, %v2352
    %v2409 = vpack.c.b16 %v2357, %v2355
    %v2410 = vpack.c.b16 %v2358, %v2356
    %v2411 = vpack.c.b16 %v2361, %v2359
    %v2412 = vpack.c.b16 %v2362, %v2360
    %v2413 = vpack.c.b16 %v2365, %v2363
    %v2414 = vpack.c.b16 %v2366, %v2364
    %v2415 = vpack.c.b16 %v2369, %v2367
    %v2416 = vpack.c.b16 %v2370, %v2368
    %v2417 = vpack.c.b16 %v2373, %v2371
    %v2418 = vpack.c.b16 %v2374, %v2372
    %v2419 = vpack.c.b16 %v2377, %v2375
    %v2420 = vpack.c.b16 %v2378, %v2376
    %v2421 = vpack.c.b16 %v2381, %v2379
    %v2422 = vpack.c.b16 %v2382, %v2380
    %v2423 = vpack.c.b16 %v2385, %v2383
    %v2424 = vpack.c.b16 %v2386, %v2384
    %v2425 = vpack.c.b16 %v2389, %v2387
    %v2426 = vpack.c.b16 %v2390, %v2388
    %v2427 = vpack.c.b16 %v2393, %v2391
    %v2428 = vpack.c.b16 %v2394, %v2392
    %v2429 = vpack.c.b16 %v2397, %v2395
    %v2430 = vpack.c.b16 %v2398, %v2396
    %2463 = vmatprep.subr.bf16.mxu0 %v2414
    %2464 = vmatpush1.bf16.msra.mxu0 %v2413
    %2465 = vmatprep.subr.bf16.mxu0 %v2412
    %2466 = vmatpush1.bf16.msra.mxu0 %v2411
    %2467 = vmatprep.subr.bf16.mxu0 %v2410
    %2468 = vmatpush1.bf16.msra.mxu0 %v2409
    %2469 = vmatprep.subr.bf16.mxu0 %v2408
    %2470 = vmatpush1.bf16.msra.mxu0 %v2407
    %2471 = vmatprep.subr.bf16.mxu0 %v2406
    %2472 = vmatpush1.bf16.msra.mxu0 %v2405
    %2473 = vmatprep.subr.bf16.mxu0 %v2404
    %2474 = vmatpush1.bf16.msra.mxu0 %v2403
    %2475 = vmatprep.subr.bf16.mxu0 %v2402
    %2476 = vmatpush1.bf16.msra.mxu0 %v2401
    %2477 = vmatprep.subr.bf16.mxu0 %v2400
    %2478 = vmatpush1.bf16.msra.mxu0 %v2399
    %2479 = vmatprep.subr.bf16.mxu0 %v2430
    %2480 = vmatpush2.bf16.msra.mxu0 %v2429
    %2481 = vmatprep.subr.bf16.mxu0 %v2428
    %2482 = vmatpush2.bf16.msra.mxu0 %v2427
    %2483 = vmatprep.subr.bf16.mxu0 %v2426
    %2484 = vmatpush2.bf16.msra.mxu0 %v2425
    %2485 = vmatprep.subr.bf16.mxu0 %v2424
    %2486 = vmatpush2.bf16.msra.mxu0 %v2423
    %2487 = vmatprep.subr.bf16.mxu0 %v2422
    %2488 = vmatpush2.bf16.msra.mxu0 %v2421
    %2489 = vmatprep.subr.bf16.mxu0 %v2420
    %2490 = vmatpush2.bf16.msra.mxu0 %v2419
    %2491 = vmatprep.subr.bf16.mxu0 %v2418
    %2492 = vmatpush2.bf16.msra.mxu0 %v2417
    %2493 = vmatprep.subr.bf16.mxu0 %v2416
    %2494 = vmatpush2.bf16.msra.mxu0 %v2415
    %2495 = vmatprep.mubr.bf16.mxu0 %v2030
    %2496 = vmatmul.mubr.bf16.gmra.mxu0 %v2018
    %v2497 = vpop.f32.mrf.mxu0
    %v2498 = vadd.f32 0.0, %v2497
    %v2499 = vpop.f32.mrf.mxu0
    %v2500 = vadd.f32 0.0, %v2499
    %v2501 = vpop.f32.mrf.mxu0
    %v2502 = vadd.f32 0.0, %v2501
    %v2503 = vpop.f32.mrf.mxu0
    %v2504 = vadd.f32 0.0, %v2503
    %2505 = vmatprep.mubr.bf16.mxu0 %v2046
    %2506 = vmatmul.mubr.bf16.gmra.mxu0 %v2038
    %v2507 = vpop.f32.mrf.mxu0
    %v2508 = vadd.f32 0.0, %v2507
    %v2509 = vpop.f32.mrf.mxu0
    %v2510 = vadd.f32 0.0, %v2509
    %v2511 = vpop.f32.mrf.mxu0
    %v2512 = vadd.f32 0.0, %v2511
    %v2513 = vpop.f32.mrf.mxu0
    %v2514 = vadd.f32 0.0, %v2513
    %2515 = vmatprep.mubr.bf16.mxu0 %v2062
    %2516 = vmatmul.mubr.bf16.gmra.mxu0 %v2054
    %v2517 = vpop.f32.mrf.mxu0
    %v2518 = vadd.f32 0.0, %v2517
    %v2519 = vpop.f32.mrf.mxu0
    %v2520 = vadd.f32 0.0, %v2519
    %v2521 = vpop.f32.mrf.mxu0
    %v2522 = vadd.f32 0.0, %v2521
    %v2523 = vpop.f32.mrf.mxu0
    %v2524 = vadd.f32 0.0, %v2523
    %2525 = vmatprep.mubr.bf16.mxu0 %v2078
    %2526 = vmatmul.mubr.bf16.gmra.mxu0 %v2070
    %v2527 = vpop.f32.mrf.mxu0
    %v2528 = vadd.f32 0.0, %v2527
    %v2529 = vpop.f32.mrf.mxu0
    %v2530 = vadd.f32 0.0, %v2529
    %v2531 = vpop.f32.mrf.mxu0
    %v2532 = vadd.f32 0.0, %v2531
    %v2533 = vpop.f32.mrf.mxu0
    %v2534 = vadd.f32 0.0, %v2533
    %2535 = vmatprep.mubr.bf16.mxu0 %v2094
    %2536 = vmatmul.mubr.bf16.gmra.mxu0 %v2086
    %v2537 = vpop.f32.mrf.mxu0
    %v2538 = vadd.f32 0.0, %v2537
    %v2539 = vpop.f32.mrf.mxu0
    %v2540 = vadd.f32 0.0, %v2539
    %v2541 = vpop.f32.mrf.mxu0
    %v2542 = vadd.f32 0.0, %v2541
    %v2543 = vpop.f32.mrf.mxu0
    %v2544 = vadd.f32 0.0, %v2543
    %2545 = vmatprep.mubr.bf16.mxu0 %v2110
    %2546 = vmatmul.mubr.bf16.gmra.mxu0 %v2102
    %v2547 = vpop.f32.mrf.mxu0
    %v2548 = vadd.f32 0.0, %v2547
    %v2549 = vpop.f32.mrf.mxu0
    %v2550 = vadd.f32 0.0, %v2549
    %v2551 = vpop.f32.mrf.mxu0
    %v2552 = vadd.f32 0.0, %v2551
    %v2553 = vpop.f32.mrf.mxu0
    %v2554 = vadd.f32 0.0, %v2553
    %2555 = vmatprep.mubr.bf16.mxu0 %v2126
    %2556 = vmatmul.mubr.bf16.gmra.mxu0 %v2118
    %v2557 = vpop.f32.mrf.mxu0
    %v2558 = vadd.f32 0.0, %v2557
    %v2559 = vpop.f32.mrf.mxu0
    %v2560 = vadd.f32 0.0, %v2559
    %v2561 = vpop.f32.mrf.mxu0
    %v2562 = vadd.f32 0.0, %v2561
    %v2563 = vpop.f32.mrf.mxu0
    %v2564 = vadd.f32 0.0, %v2563
    %2565 = vmatprep.mubr.bf16.mxu0 %v2142
    %2566 = vmatmul.mubr.bf16.gmra.mxu0 %v2134
    %v2567 = vpop.f32.mrf.mxu0
    %v2568 = vadd.f32 0.0, %v2567
    %v2569 = vpop.f32.mrf.mxu0
    %v2570 = vadd.f32 0.0, %v2569
    %v2571 = vpop.f32.mrf.mxu0
    %v2572 = vadd.f32 0.0, %v2571
    %v2573 = vpop.f32.mrf.mxu0
    %v2574 = vadd.f32 0.0, %v2573
    %2575 = vmatprep.mubr.bf16.mxu0 %v2158
    %2576 = vmatmul.mubr.bf16.gmra.mxu0 %v2150
    %v2577 = vpop.f32.mrf.mxu0
    %v2578 = vadd.f32 0.0, %v2577
    %v2579 = vpop.f32.mrf.mxu0
    %v2580 = vadd.f32 0.0, %v2579
    %v2581 = vpop.f32.mrf.mxu0
    %v2582 = vadd.f32 0.0, %v2581
    %v2583 = vpop.f32.mrf.mxu0
    %v2584 = vadd.f32 0.0, %v2583
    %2585 = vmatprep.mubr.bf16.mxu0 %v2174
    %2586 = vmatmul.mubr.bf16.gmra.mxu0 %v2166
    %v2587 = vpop.f32.mrf.mxu0
    %v2588 = vadd.f32 0.0, %v2587
    %v2589 = vpop.f32.mrf.mxu0
    %v2590 = vadd.f32 0.0, %v2589
    %v2591 = vpop.f32.mrf.mxu0
    %v2592 = vadd.f32 0.0, %v2591
    %v2593 = vpop.f32.mrf.mxu0
    %v2594 = vadd.f32 0.0, %v2593
    %2595 = vmatprep.mubr.bf16.mxu0 %v2190
    %2596 = vmatmul.mubr.bf16.gmra.mxu0 %v2182
    %v2597 = vpop.f32.mrf.mxu0
    %v2598 = vadd.f32 0.0, %v2597
    %v2599 = vpop.f32.mrf.mxu0
    %v2600 = vadd.f32 0.0, %v2599
    %v2601 = vpop.f32.mrf.mxu0
    %v2602 = vadd.f32 0.0, %v2601
    %v2603 = vpop.f32.mrf.mxu0
    %v2604 = vadd.f32 0.0, %v2603
    %2605 = vmatprep.mubr.bf16.mxu0 %v2206
    %2606 = vmatmul.mubr.bf16.gmra.mxu0 %v2198
    %v2607 = vpop.f32.mrf.mxu0
    %v2608 = vadd.f32 0.0, %v2607
    %v2609 = vpop.f32.mrf.mxu0
    %v2610 = vadd.f32 0.0, %v2609
    %v2611 = vpop.f32.mrf.mxu0
    %v2612 = vadd.f32 0.0, %v2611
    %v2613 = vpop.f32.mrf.mxu0
    %v2614 = vadd.f32 0.0, %v2613
    %2615 = vmatprep.mubr.bf16.mxu0 %v2222
    %2616 = vmatmul.mubr.bf16.gmra.mxu0 %v2214
    %v2617 = vpop.f32.mrf.mxu0
    %v2618 = vadd.f32 0.0, %v2617
    %v2619 = vpop.f32.mrf.mxu0
    %v2620 = vadd.f32 0.0, %v2619
    %v2621 = vpop.f32.mrf.mxu0
    %v2622 = vadd.f32 0.0, %v2621
    %v2623 = vpop.f32.mrf.mxu0
    %v2624 = vadd.f32 0.0, %v2623
    %2625 = vmatprep.mubr.bf16.mxu0 %v2238
    %2626 = vmatmul.mubr.bf16.gmra.mxu0 %v2230
    %v2627 = vpop.f32.mrf.mxu0
    %v2628 = vadd.f32 0.0, %v2627
    %v2629 = vpop.f32.mrf.mxu0
    %v2630 = vadd.f32 0.0, %v2629
    %v2631 = vpop.f32.mrf.mxu0
    %v2632 = vadd.f32 0.0, %v2631
    %v2633 = vpop.f32.mrf.mxu0
    %v2634 = vadd.f32 0.0, %v2633
    %2635 = vmatprep.mubr.bf16.mxu0 %v2254
    %2636 = vmatmul.mubr.bf16.gmra.mxu0 %v2246
    %v2637 = vpop.f32.mrf.mxu0
    %v2638 = vadd.f32 0.0, %v2637
    %v2639 = vpop.f32.mrf.mxu0
    %v2640 = vadd.f32 0.0, %v2639
    %v2641 = vpop.f32.mrf.mxu0
    %v2642 = vadd.f32 0.0, %v2641
    %v2643 = vpop.f32.mrf.mxu0
    %v2644 = vadd.f32 0.0, %v2643
    %2645 = vmatprep.mubr.bf16.mxu0 %v2270
    %2646 = vmatmul.mubr.bf16.gmra.mxu0 %v2262
    %v2647 = vpop.f32.mrf.mxu0
    %v2648 = vadd.f32 0.0, %v2647
    %v2649 = vpop.f32.mrf.mxu0
    %v2650 = vadd.f32 0.0, %v2649
    %v2651 = vpop.f32.mrf.mxu0
    %v2652 = vadd.f32 0.0, %v2651
    %v2653 = vpop.f32.mrf.mxu0
    %v2654 = vadd.f32 0.0, %v2653
    %2655 = vdwg.mxu0
    %v2656 = vadd.f32 %v1650, %v2498
    %v2657 = vadd.f32 %v1652, %v2500
    %v2658 = vadd.f32 %v1654, %v2502
    %v2659 = vadd.f32 %v1656, %v2504
    %v2660 = vadd.f32 %v1660, %v2508
    %v2661 = vadd.f32 %v1662, %v2510
    %v2662 = vadd.f32 %v1664, %v2512
    %v2663 = vadd.f32 %v1666, %v2514
    %v2664 = vadd.f32 %v1670, %v2518
    %v2665 = vadd.f32 %v1672, %v2520
    %v2666 = vadd.f32 %v1674, %v2522
    %v2667 = vadd.f32 %v1676, %v2524
    %v2668 = vadd.f32 %v1680, %v2528
    %v2669 = vadd.f32 %v1682, %v2530
    %v2670 = vadd.f32 %v1684, %v2532
    %v2671 = vadd.f32 %v1686, %v2534
    %v2672 = vadd.f32 %v1690, %v2538
    %v2673 = vadd.f32 %v1692, %v2540
    %v2674 = vadd.f32 %v1694, %v2542
    %v2675 = vadd.f32 %v1696, %v2544
    %v2676 = vadd.f32 %v1700, %v2548
    %v2677 = vadd.f32 %v1702, %v2550
    %v2678 = vadd.f32 %v1704, %v2552
    %v2679 = vadd.f32 %v1706, %v2554
    %v2680 = vadd.f32 %v1710, %v2558
    %v2681 = vadd.f32 %v1712, %v2560
    %v2682 = vadd.f32 %v1714, %v2562
    %v2683 = vadd.f32 %v1716, %v2564
    %v2684 = vadd.f32 %v1720, %v2568
    %v2685 = vadd.f32 %v1722, %v2570
    %v2686 = vadd.f32 %v1724, %v2572
    %v2687 = vadd.f32 %v1726, %v2574
    %v2688 = vadd.f32 %v1730, %v2578
    %v2689 = vadd.f32 %v1732, %v2580
    %v2690 = vadd.f32 %v1734, %v2582
    %v2691 = vadd.f32 %v1736, %v2584
    %v2692 = vadd.f32 %v1740, %v2588
    %v2693 = vadd.f32 %v1742, %v2590
    %v2694 = vadd.f32 %v1744, %v2592
    %v2695 = vadd.f32 %v1746, %v2594
    %v2696 = vadd.f32 %v1750, %v2598
    %v2697 = vadd.f32 %v1752, %v2600
    %v2698 = vadd.f32 %v1754, %v2602
    %v2699 = vadd.f32 %v1756, %v2604
    %v2700 = vadd.f32 %v1760, %v2608
    %v2701 = vadd.f32 %v1762, %v2610
    %v2702 = vadd.f32 %v1764, %v2612
    %v2703 = vadd.f32 %v1766, %v2614
    %v2704 = vadd.f32 %v1770, %v2618
    %v2705 = vadd.f32 %v1772, %v2620
    %v2706 = vadd.f32 %v1774, %v2622
    %v2707 = vadd.f32 %v1776, %v2624
    %v2708 = vadd.f32 %v1780, %v2628
    %v2709 = vadd.f32 %v1782, %v2630
    %v2710 = vadd.f32 %v1784, %v2632
    %v2711 = vadd.f32 %v1786, %v2634
    %v2712 = vadd.f32 %v1790, %v2638
    %v2713 = vadd.f32 %v1792, %v2640
    %v2714 = vadd.f32 %v1794, %v2642
    %v2715 = vadd.f32 %v1796, %v2644
    %v2716 = vadd.f32 %v1800, %v2648
    %v2717 = vadd.f32 %v1802, %v2650
    %v2718 = vadd.f32 %v1804, %v2652
    %v2719 = vadd.f32 %v1806, %v2654
    %v2720 = vld [vmem:[%s0 + $0x10] sm:$0x88]
    %v2721 = vld [vmem:[%s0 + $0x18] sm:$0xff]
    %v2722 = vld [vmem:[%s0 + $0x20] sm:$0xff]
    %v2723 = vld [vmem:[%s0 + $0x28] sm:$0xff]
    %v2724 = vld [vmem:[%s0 + $0x30] sm:$0xff]
    %v2725 = vld [vmem:[%s0 + $0x38] sm:$0xff]
    %v2726 = vld [vmem:[%s0 + $0x40] sm:$0xff]
    %v2727 = vld [vmem:[%s0 + $0x48] sm:$0xff]
    %v2728 = vld [vmem:[%s0 + $0x50] sm:$0xff]
    %v2729 = vld [vmem:[%s0 + $0x58] sm:$0xff]
    %v2730 = vld [vmem:[%s0 + $0x60] sm:$0xff]
    %v2731 = vld [vmem:[%s0 + $0x68] sm:$0xff]
    %v2732 = vld [vmem:[%s0 + $0x70] sm:$0xff]
    %v2733 = vld [vmem:[%s0 + $0x78] sm:$0xff]
    %v2734 = vld [vmem:[%s0 + $0x80] sm:$0xff]
    %v2735 = vld [vmem:[%s0 + $0x88] sm:$0xff]
    %v2736 = vld [vmem:[%s0 + $0x90] sm:$0xff]
    %v2737 = vld [vmem:[%s0 + $0x98] sm:$0xff]
    %v2738 = vld [vmem:[%s0 + $0xa0] sm:$0xff]
    %v2739 = vld [vmem:[%s0 + $0xa8] sm:$0xff]
    %v2740 = vld [vmem:[%s0 + $0xb0] sm:$0xff]
    %v2741 = vld [vmem:[%s0 + $0xb8] sm:$0xff]
    %v2742 = vld [vmem:[%s0 + $0xc0] sm:$0xff]
    %v2743 = vld [vmem:[%s0 + $0xc8] sm:$0xff]
    %v2744 = vld [vmem:[%s0 + $0xd0] sm:$0xff]
    %v2745 = vld [vmem:[%s0 + $0xd8] sm:$0xff]
    %v2746 = vld [vmem:[%s0 + $0xe0] sm:$0xff]
    %v2747 = vld [vmem:[%s0 + $0xe8] sm:$0xff]
    %v2748 = vld [vmem:[%s0 + $0xf0] sm:$0xff]
    %v2749 = vld [vmem:[%s0 + $0xf8] sm:$0xff]
    %v2750 = vld [vmem:[%s0 + $0x100] sm:$0xff]
    %v2751 = vld [vmem:[%s0 + $0x108] sm:$0xff]
    %v2752 = vld [vmem:[%s0 + $0x110] sm:$0xff]
    %v2753 = vld [vmem:[#allocation2 + $0x300] sm:$0xff]
    %v2754 = vld [vmem:[#allocation2 + $0x308] sm:$0xff]
    %v2755 = vld [vmem:[#allocation2 + $0x310] sm:$0xff]
    %v2756 = vld [vmem:[#allocation2 + $0x318] sm:$0xff]
    %v2757 = vld [vmem:[#allocation2 + $0x320] sm:$0xff]
    %v2758 = vld [vmem:[#allocation2 + $0x328] sm:$0xff]
    %v2759 = vld [vmem:[#allocation2 + $0x330] sm:$0xff]
    %v2760 = vld [vmem:[#allocation2 + $0x338] sm:$0xff]
    %v2761 = vld [vmem:[#allocation2 + $0x340] sm:$0xff]
    %v2762 = vld [vmem:[#allocation2 + $0x348] sm:$0xff]
    %v2763 = vld [vmem:[#allocation2 + $0x350] sm:$0xff]
    %v2764 = vld [vmem:[#allocation2 + $0x358] sm:$0xff]
    %v2765 = vld [vmem:[#allocation2 + $0x360] sm:$0xff]
    %v2766 = vld [vmem:[#allocation2 + $0x368] sm:$0xff]
    %v2767 = vld [vmem:[#allocation2 + $0x370] sm:$0xff]
    %v2768 = vld [vmem:[#allocation2 + $0x378] sm:$0xff]
    %v2769 = vld [vmem:[#allocation2 + $0x380] sm:$0xff]
    %v2770 = vld [vmem:[#allocation2 + $0x388] sm:$0xff]
    %v2771 = vld [vmem:[#allocation2 + $0x390] sm:$0xff]
    %v2772 = vld [vmem:[#allocation2 + $0x398] sm:$0xff]
    %v2773 = vld [vmem:[#allocation2 + $0x3a0] sm:$0xff]
    %v2774 = vld [vmem:[#allocation2 + $0x3a8] sm:$0xff]
    %v2775 = vld [vmem:[#allocation2 + $0x3b0] sm:$0xff]
    %v2776 = vld [vmem:[#allocation2 + $0x3b8] sm:$0xff]
    %v2777 = vld [vmem:[#allocation2 + $0x3c0] sm:$0xff]
    %v2778 = vld [vmem:[#allocation2 + $0x3c8] sm:$0xff]
    %v2779 = vld [vmem:[#allocation2 + $0x3d0] sm:$0xff]
    %v2780 = vld [vmem:[#allocation2 + $0x3d8] sm:$0xff]
    %v2781 = vld [vmem:[#allocation2 + $0x3e0] sm:$0xff]
    %v2782 = vld [vmem:[#allocation2 + $0x3e8] sm:$0xff]
    %v2783 = vld [vmem:[#allocation2 + $0x3f0] sm:$0xff]
    %v2784 = vld [vmem:[#allocation2 + $0x3f8] sm:$0xff]
    %v2818 = vunpack.c.l.b16 %v2720
    %v2819 = vunpack.c.h.b16 %v2720
    %v2820 = vunpack.c.l.b16 %v2721
    %v2821 = vunpack.c.h.b16 %v2721
    %v2822 = vunpack.c.l.b16 %v2722
    %v2823 = vunpack.c.h.b16 %v2722
    %v2824 = vunpack.c.l.b16 %v2723
    %v2825 = vunpack.c.h.b16 %v2723
    %v2826 = vunpack.c.l.b16 %v2724
    %v2827 = vunpack.c.h.b16 %v2724
    %v2828 = vunpack.c.l.b16 %v2725
    %v2829 = vunpack.c.h.b16 %v2725
    %v2830 = vunpack.c.l.b16 %v2726
    %v2831 = vunpack.c.h.b16 %v2726
    %v2832 = vunpack.c.l.b16 %v2727
    %v2833 = vunpack.c.h.b16 %v2727
    %v2834 = vunpack.c.l.b16 %v2728
    %v2835 = vunpack.c.h.b16 %v2728
    %v2836 = vunpack.c.l.b16 %v2729
    %v2837 = vunpack.c.h.b16 %v2729
    %v2838 = vunpack.c.l.b16 %v2730
    %v2839 = vunpack.c.h.b16 %v2730
    %v2840 = vunpack.c.l.b16 %v2731
    %v2841 = vunpack.c.h.b16 %v2731
    %v2842 = vunpack.c.l.b16 %v2732
    %v2843 = vunpack.c.h.b16 %v2732
    %v2844 = vunpack.c.l.b16 %v2733
    %v2845 = vunpack.c.h.b16 %v2733
    %v2846 = vunpack.c.l.b16 %v2734
    %v2847 = vunpack.c.h.b16 %v2734
    %v2848 = vunpack.c.l.b16 %v2735
    %v2849 = vunpack.c.h.b16 %v2735
    %v2850 = vunpack.c.l.b16 %v2736
    %v2851 = vunpack.c.h.b16 %v2736
    %v2852 = vunpack.c.l.b16 %v2737
    %v2853 = vunpack.c.h.b16 %v2737
    %v2854 = vunpack.c.l.b16 %v2738
    %v2855 = vunpack.c.h.b16 %v2738
    %v2856 = vunpack.c.l.b16 %v2739
    %v2857 = vunpack.c.h.b16 %v2739
    %v2858 = vunpack.c.l.b16 %v2740
    %v2859 = vunpack.c.h.b16 %v2740
    %v2860 = vunpack.c.l.b16 %v2741
    %v2861 = vunpack.c.h.b16 %v2741
    %v2862 = vunpack.c.l.b16 %v2742
    %v2863 = vunpack.c.h.b16 %v2742
    %v2864 = vunpack.c.l.b16 %v2743
    %v2865 = vunpack.c.h.b16 %v2743
    %v2866 = vunpack.c.l.b16 %v2744
    %v2867 = vunpack.c.h.b16 %v2744
    %v2868 = vunpack.c.l.b16 %v2745
    %v2869 = vunpack.c.h.b16 %v2745
    %v2870 = vunpack.c.l.b16 %v2746
    %v2871 = vunpack.c.h.b16 %v2746
    %v2872 = vunpack.c.l.b16 %v2747
    %v2873 = vunpack.c.h.b16 %v2747
    %v2874 = vunpack.c.l.b16 %v2748
    %v2875 = vunpack.c.h.b16 %v2748
    %v2876 = vunpack.c.l.b16 %v2749
    %v2877 = vunpack.c.h.b16 %v2749
    %v2878 = vunpack.c.l.b16 %v2750
    %v2879 = vunpack.c.h.b16 %v2750
    %v2880 = vunpack.c.l.b16 %v2751
    %v2881 = vunpack.c.h.b16 %v2751
    %v2882 = vunpack.c.l.b16 %v2752
    %v2883 = vunpack.c.h.b16 %v2752
    %v2884 = vpack.c.b16 %v2820, %v2818
    %v2885 = vpack.c.b16 %v2821, %v2819
    %v2886 = vpack.c.b16 %v2824, %v2822
    %v2887 = vpack.c.b16 %v2825, %v2823
    %v2888 = vpack.c.b16 %v2828, %v2826
    %v2889 = vpack.c.b16 %v2829, %v2827
    %v2890 = vpack.c.b16 %v2832, %v2830
    %v2891 = vpack.c.b16 %v2833, %v2831
    %v2892 = vpack.c.b16 %v2836, %v2834
    %v2893 = vpack.c.b16 %v2837, %v2835
    %v2894 = vpack.c.b16 %v2840, %v2838
    %v2895 = vpack.c.b16 %v2841, %v2839
    %v2896 = vpack.c.b16 %v2844, %v2842
    %v2897 = vpack.c.b16 %v2845, %v2843
    %v2898 = vpack.c.b16 %v2848, %v2846
    %v2899 = vpack.c.b16 %v2849, %v2847
    %v2900 = vpack.c.b16 %v2852, %v2850
    %v2901 = vpack.c.b16 %v2853, %v2851
    %v2902 = vpack.c.b16 %v2856, %v2854
    %v2903 = vpack.c.b16 %v2857, %v2855
    %v2904 = vpack.c.b16 %v2860, %v2858
    %v2905 = vpack.c.b16 %v2861, %v2859
    %v2906 = vpack.c.b16 %v2864, %v2862
    %v2907 = vpack.c.b16 %v2865, %v2863
    %v2908 = vpack.c.b16 %v2868, %v2866
    %v2909 = vpack.c.b16 %v2869, %v2867
    %v2910 = vpack.c.b16 %v2872, %v2870
    %v2911 = vpack.c.b16 %v2873, %v2871
    %v2912 = vpack.c.b16 %v2876, %v2874
    %v2913 = vpack.c.b16 %v2877, %v2875
    %v2914 = vpack.c.b16 %v2880, %v2878
    %v2915 = vpack.c.b16 %v2881, %v2879
    %v2916 = vpack.c.b16 %v2882, %v2882
    %v2917 = vpack.c.b16 %v2883, %v2883
    %v2919 = vshrl.u32 %v2884, 16
    %v2921 = vrot.slane %v2919, 3
    %v2922 = vshll.u32 %v2884, 16
    %v2924 = vrot.slane %v2922, 4
    %v2925 = vor.u32 %v2921, %v2924
    %v2927 = vshrl.u32 %v2886, 16
    %v2929 = vrot.slane %v2927, 3
    %v2930 = vshll.u32 %v2886, 16
    %v2932 = vrot.slane %v2930, 4
    %v2933 = vor.u32 %v2929, %v2932
    %v2934 = vsel %vm1118, %v2925, %v2933
    %v2936 = vshrl.u32 %v2885, 16
    %v2938 = vrot.slane %v2936, 3
    %v2939 = vshll.u32 %v2885, 16
    %v2941 = vrot.slane %v2939, 4
    %v2942 = vor.u32 %v2938, %v2941
    %v2944 = vshrl.u32 %v2887, 16
    %v2946 = vrot.slane %v2944, 3
    %v2947 = vshll.u32 %v2887, 16
    %v2949 = vrot.slane %v2947, 4
    %v2950 = vor.u32 %v2946, %v2949
    %v2951 = vsel %vm1118, %v2942, %v2950
    %v2953 = vshrl.u32 %v2888, 16
    %v2955 = vrot.slane %v2953, 3
    %v2956 = vshll.u32 %v2888, 16
    %v2958 = vrot.slane %v2956, 4
    %v2959 = vor.u32 %v2955, %v2958
    %v2960 = vsel %vm1118, %v2933, %v2959
    %v2962 = vshrl.u32 %v2889, 16
    %v2964 = vrot.slane %v2962, 3
    %v2965 = vshll.u32 %v2889, 16
    %v2967 = vrot.slane %v2965, 4
    %v2968 = vor.u32 %v2964, %v2967
    %v2969 = vsel %vm1118, %v2950, %v2968
    %v2971 = vshrl.u32 %v2890, 16
    %v2973 = vrot.slane %v2971, 3
    %v2974 = vshll.u32 %v2890, 16
    %v2976 = vrot.slane %v2974, 4
    %v2977 = vor.u32 %v2973, %v2976
    %v2978 = vsel %vm1118, %v2959, %v2977
    %v2980 = vshrl.u32 %v2891, 16
    %v2982 = vrot.slane %v2980, 3
    %v2983 = vshll.u32 %v2891, 16
    %v2985 = vrot.slane %v2983, 4
    %v2986 = vor.u32 %v2982, %v2985
    %v2987 = vsel %vm1118, %v2968, %v2986
    %v2989 = vshrl.u32 %v2892, 16
    %v2991 = vrot.slane %v2989, 3
    %v2992 = vshll.u32 %v2892, 16
    %v2994 = vrot.slane %v2992, 4
    %v2995 = vor.u32 %v2991, %v2994
    %v2996 = vsel %vm1118, %v2977, %v2995
    %v2998 = vshrl.u32 %v2893, 16
    %v3000 = vrot.slane %v2998, 3
    %v3001 = vshll.u32 %v2893, 16
    %v3003 = vrot.slane %v3001, 4
    %v3004 = vor.u32 %v3000, %v3003
    %v3005 = vsel %vm1118, %v2986, %v3004
    %v3007 = vshrl.u32 %v2894, 16
    %v3009 = vrot.slane %v3007, 3
    %v3010 = vshll.u32 %v2894, 16
    %v3012 = vrot.slane %v3010, 4
    %v3013 = vor.u32 %v3009, %v3012
    %v3014 = vsel %vm1118, %v2995, %v3013
    %v3016 = vshrl.u32 %v2895, 16
    %v3018 = vrot.slane %v3016, 3
    %v3019 = vshll.u32 %v2895, 16
    %v3021 = vrot.slane %v3019, 4
    %v3022 = vor.u32 %v3018, %v3021
    %v3023 = vsel %vm1118, %v3004, %v3022
    %v3025 = vshrl.u32 %v2896, 16
    %v3027 = vrot.slane %v3025, 3
    %v3028 = vshll.u32 %v2896, 16
    %v3030 = vrot.slane %v3028, 4
    %v3031 = vor.u32 %v3027, %v3030
    %v3032 = vsel %vm1118, %v3013, %v3031
    %v3034 = vshrl.u32 %v2897, 16
    %v3036 = vrot.slane %v3034, 3
    %v3037 = vshll.u32 %v2897, 16
    %v3039 = vrot.slane %v3037, 4
    %v3040 = vor.u32 %v3036, %v3039
    %v3041 = vsel %vm1118, %v3022, %v3040
    %v3043 = vshrl.u32 %v2898, 16
    %v3045 = vrot.slane %v3043, 3
    %v3046 = vshll.u32 %v2898, 16
    %v3048 = vrot.slane %v3046, 4
    %v3049 = vor.u32 %v3045, %v3048
    %v3050 = vsel %vm1118, %v3031, %v3049
    %v3052 = vshrl.u32 %v2899, 16
    %v3054 = vrot.slane %v3052, 3
    %v3055 = vshll.u32 %v2899, 16
    %v3057 = vrot.slane %v3055, 4
    %v3058 = vor.u32 %v3054, %v3057
    %v3059 = vsel %vm1118, %v3040, %v3058
    %v3061 = vshrl.u32 %v2900, 16
    %v3063 = vrot.slane %v3061, 3
    %v3064 = vshll.u32 %v2900, 16
    %v3066 = vrot.slane %v3064, 4
    %v3067 = vor.u32 %v3063, %v3066
    %v3068 = vsel %vm1118, %v3049, %v3067
    %v3070 = vshrl.u32 %v2901, 16
    %v3072 = vrot.slane %v3070, 3
    %v3073 = vshll.u32 %v2901, 16
    %v3075 = vrot.slane %v3073, 4
    %v3076 = vor.u32 %v3072, %v3075
    %v3077 = vsel %vm1118, %v3058, %v3076
    %v3079 = vshrl.u32 %v2902, 16
    %v3081 = vrot.slane %v3079, 3
    %v3082 = vshll.u32 %v2902, 16
    %v3084 = vrot.slane %v3082, 4
    %v3085 = vor.u32 %v3081, %v3084
    %v3086 = vsel %vm1118, %v3067, %v3085
    %v3088 = vshrl.u32 %v2903, 16
    %v3090 = vrot.slane %v3088, 3
    %v3091 = vshll.u32 %v2903, 16
    %v3093 = vrot.slane %v3091, 4
    %v3094 = vor.u32 %v3090, %v3093
    %v3095 = vsel %vm1118, %v3076, %v3094
    %v3097 = vshrl.u32 %v2904, 16
    %v3099 = vrot.slane %v3097, 3
    %v3100 = vshll.u32 %v2904, 16
    %v3102 = vrot.slane %v3100, 4
    %v3103 = vor.u32 %v3099, %v3102
    %v3104 = vsel %vm1118, %v3085, %v3103
    %v3106 = vshrl.u32 %v2905, 16
    %v3108 = vrot.slane %v3106, 3
    %v3109 = vshll.u32 %v2905, 16
    %v3111 = vrot.slane %v3109, 4
    %v3112 = vor.u32 %v3108, %v3111
    %v3113 = vsel %vm1118, %v3094, %v3112
    %v3115 = vshrl.u32 %v2906, 16
    %v3117 = vrot.slane %v3115, 3
    %v3118 = vshll.u32 %v2906, 16
    %v3120 = vrot.slane %v3118, 4
    %v3121 = vor.u32 %v3117, %v3120
    %v3122 = vsel %vm1118, %v3103, %v3121
    %v3124 = vshrl.u32 %v2907, 16
    %v3126 = vrot.slane %v3124, 3
    %v3127 = vshll.u32 %v2907, 16
    %v3129 = vrot.slane %v3127, 4
    %v3130 = vor.u32 %v3126, %v3129
    %v3131 = vsel %vm1118, %v3112, %v3130
    %v3133 = vshrl.u32 %v2908, 16
    %v3135 = vrot.slane %v3133, 3
    %v3136 = vshll.u32 %v2908, 16
    %v3138 = vrot.slane %v3136, 4
    %v3139 = vor.u32 %v3135, %v3138
    %v3140 = vsel %vm1118, %v3121, %v3139
    %v3142 = vshrl.u32 %v2909, 16
    %v3144 = vrot.slane %v3142, 3
    %v3145 = vshll.u32 %v2909, 16
    %v3147 = vrot.slane %v3145, 4
    %v3148 = vor.u32 %v3144, %v3147
    %v3149 = vsel %vm1118, %v3130, %v3148
    %v3151 = vshrl.u32 %v2910, 16
    %v3153 = vrot.slane %v3151, 3
    %v3154 = vshll.u32 %v2910, 16
    %v3156 = vrot.slane %v3154, 4
    %v3157 = vor.u32 %v3153, %v3156
    %v3158 = vsel %vm1118, %v3139, %v3157
    %v3160 = vshrl.u32 %v2911, 16
    %v3162 = vrot.slane %v3160, 3
    %v3163 = vshll.u32 %v2911, 16
    %v3165 = vrot.slane %v3163, 4
    %v3166 = vor.u32 %v3162, %v3165
    %v3167 = vsel %vm1118, %v3148, %v3166
    %v3169 = vshrl.u32 %v2912, 16
    %v3171 = vrot.slane %v3169, 3
    %v3172 = vshll.u32 %v2912, 16
    %v3174 = vrot.slane %v3172, 4
    %v3175 = vor.u32 %v3171, %v3174
    %v3176 = vsel %vm1118, %v3157, %v3175
    %v3178 = vshrl.u32 %v2913, 16
    %v3180 = vrot.slane %v3178, 3
    %v3181 = vshll.u32 %v2913, 16
    %v3183 = vrot.slane %v3181, 4
    %v3184 = vor.u32 %v3180, %v3183
    %v3185 = vsel %vm1118, %v3166, %v3184
    %v3187 = vshrl.u32 %v2914, 16
    %v3189 = vrot.slane %v3187, 3
    %v3190 = vshll.u32 %v2914, 16
    %v3192 = vrot.slane %v3190, 4
    %v3193 = vor.u32 %v3189, %v3192
    %v3194 = vsel %vm1118, %v3175, %v3193
    %v3196 = vshrl.u32 %v2915, 16
    %v3198 = vrot.slane %v3196, 3
    %v3199 = vshll.u32 %v2915, 16
    %v3201 = vrot.slane %v3199, 4
    %v3202 = vor.u32 %v3198, %v3201
    %v3203 = vsel %vm1118, %v3184, %v3202
    %v3205 = vshrl.u32 %v2916, 16
    %v3207 = vrot.slane %v3205, 3
    %v3208 = vshll.u32 %v2916, 16
    %v3210 = vrot.slane %v3208, 4
    %v3211 = vor.u32 %v3207, %v3210
    %v3212 = vsel %vm1118, %v3193, %v3211
    %v3214 = vshrl.u32 %v2917, 16
    %v3216 = vrot.slane %v3214, 3
    %v3217 = vshll.u32 %v2917, 16
    %v3219 = vrot.slane %v3217, 4
    %v3220 = vor.u32 %v3216, %v3219
    %v3221 = vsel %vm1118, %v3202, %v3220
    %v3286 = vunpack.c.l.b16 %v2753
    %v3287 = vunpack.c.h.b16 %v2753
    %v3288 = vunpack.c.l.b16 %v2754
    %v3289 = vunpack.c.h.b16 %v2754
    %v3290 = vunpack.c.l.b16 %v2755
    %v3291 = vunpack.c.h.b16 %v2755
    %v3292 = vunpack.c.l.b16 %v2756
    %v3293 = vunpack.c.h.b16 %v2756
    %v3294 = vunpack.c.l.b16 %v2757
    %v3295 = vunpack.c.h.b16 %v2757
    %v3296 = vunpack.c.l.b16 %v2758
    %v3297 = vunpack.c.h.b16 %v2758
    %v3298 = vunpack.c.l.b16 %v2759
    %v3299 = vunpack.c.h.b16 %v2759
    %v3300 = vunpack.c.l.b16 %v2760
    %v3301 = vunpack.c.h.b16 %v2760
    %v3302 = vunpack.c.l.b16 %v2761
    %v3303 = vunpack.c.h.b16 %v2761
    %v3304 = vunpack.c.l.b16 %v2762
    %v3305 = vunpack.c.h.b16 %v2762
    %v3306 = vunpack.c.l.b16 %v2763
    %v3307 = vunpack.c.h.b16 %v2763
    %v3308 = vunpack.c.l.b16 %v2764
    %v3309 = vunpack.c.h.b16 %v2764
    %v3310 = vunpack.c.l.b16 %v2765
    %v3311 = vunpack.c.h.b16 %v2765
    %v3312 = vunpack.c.l.b16 %v2766
    %v3313 = vunpack.c.h.b16 %v2766
    %v3314 = vunpack.c.l.b16 %v2767
    %v3315 = vunpack.c.h.b16 %v2767
    %v3316 = vunpack.c.l.b16 %v2768
    %v3317 = vunpack.c.h.b16 %v2768
    %v3318 = vunpack.c.l.b16 %v2769
    %v3319 = vunpack.c.h.b16 %v2769
    %v3320 = vunpack.c.l.b16 %v2770
    %v3321 = vunpack.c.h.b16 %v2770
    %v3322 = vunpack.c.l.b16 %v2771
    %v3323 = vunpack.c.h.b16 %v2771
    %v3324 = vunpack.c.l.b16 %v2772
    %v3325 = vunpack.c.h.b16 %v2772
    %v3326 = vunpack.c.l.b16 %v2773
    %v3327 = vunpack.c.h.b16 %v2773
    %v3328 = vunpack.c.l.b16 %v2774
    %v3329 = vunpack.c.h.b16 %v2774
    %v3330 = vunpack.c.l.b16 %v2775
    %v3331 = vunpack.c.h.b16 %v2775
    %v3332 = vunpack.c.l.b16 %v2776
    %v3333 = vunpack.c.h.b16 %v2776
    %v3334 = vunpack.c.l.b16 %v2777
    %v3335 = vunpack.c.h.b16 %v2777
    %v3336 = vunpack.c.l.b16 %v2778
    %v3337 = vunpack.c.h.b16 %v2778
    %v3338 = vunpack.c.l.b16 %v2779
    %v3339 = vunpack.c.h.b16 %v2779
    %v3340 = vunpack.c.l.b16 %v2780
    %v3341 = vunpack.c.h.b16 %v2780
    %v3342 = vunpack.c.l.b16 %v2781
    %v3343 = vunpack.c.h.b16 %v2781
    %v3344 = vunpack.c.l.b16 %v2782
    %v3345 = vunpack.c.h.b16 %v2782
    %v3346 = vunpack.c.l.b16 %v2783
    %v3347 = vunpack.c.h.b16 %v2783
    %v3348 = vunpack.c.l.b16 %v2784
    %v3349 = vunpack.c.h.b16 %v2784
    %v3350 = vpack.c.b16 %v3288, %v3286
    %v3351 = vpack.c.b16 %v3289, %v3287
    %v3352 = vpack.c.b16 %v3292, %v3290
    %v3353 = vpack.c.b16 %v3293, %v3291
    %v3354 = vpack.c.b16 %v3296, %v3294
    %v3355 = vpack.c.b16 %v3297, %v3295
    %v3356 = vpack.c.b16 %v3300, %v3298
    %v3357 = vpack.c.b16 %v3301, %v3299
    %v3358 = vpack.c.b16 %v3304, %v3302
    %v3359 = vpack.c.b16 %v3305, %v3303
    %v3360 = vpack.c.b16 %v3308, %v3306
    %v3361 = vpack.c.b16 %v3309, %v3307
    %v3362 = vpack.c.b16 %v3312, %v3310
    %v3363 = vpack.c.b16 %v3313, %v3311
    %v3364 = vpack.c.b16 %v3316, %v3314
    %v3365 = vpack.c.b16 %v3317, %v3315
    %v3366 = vpack.c.b16 %v3320, %v3318
    %v3367 = vpack.c.b16 %v3321, %v3319
    %v3368 = vpack.c.b16 %v3324, %v3322
    %v3369 = vpack.c.b16 %v3325, %v3323
    %v3370 = vpack.c.b16 %v3328, %v3326
    %v3371 = vpack.c.b16 %v3329, %v3327
    %v3372 = vpack.c.b16 %v3332, %v3330
    %v3373 = vpack.c.b16 %v3333, %v3331
    %v3374 = vpack.c.b16 %v3336, %v3334
    %v3375 = vpack.c.b16 %v3337, %v3335
    %v3376 = vpack.c.b16 %v3340, %v3338
    %v3377 = vpack.c.b16 %v3341, %v3339
    %v3378 = vpack.c.b16 %v3344, %v3342
    %v3379 = vpack.c.b16 %v3345, %v3343
    %v3380 = vpack.c.b16 %v3348, %v3346
    %v3381 = vpack.c.b16 %v3349, %v3347
    %3414 = vmatprep.subr.bf16.mxu0 %v3365
    %3415 = vmatpush1.bf16.msra.mxu0 %v3364
    %3416 = vmatprep.subr.bf16.mxu0 %v3363
    %3417 = vmatpush1.bf16.msra.mxu0 %v3362
    %3418 = vmatprep.subr.bf16.mxu0 %v3361
    %3419 = vmatpush1.bf16.msra.mxu0 %v3360
    %3420 = vmatprep.subr.bf16.mxu0 %v3359
    %3421 = vmatpush1.bf16.msra.mxu0 %v3358
    %3422 = vmatprep.subr.bf16.mxu0 %v3357
    %3423 = vmatpush1.bf16.msra.mxu0 %v3356
    %3424 = vmatprep.subr.bf16.mxu0 %v3355
    %3425 = vmatpush1.bf16.msra.mxu0 %v3354
    %3426 = vmatprep.subr.bf16.mxu0 %v3353
    %3427 = vmatpush1.bf16.msra.mxu0 %v3352
    %3428 = vmatprep.subr.bf16.mxu0 %v3351
    %3429 = vmatpush1.bf16.msra.mxu0 %v3350
    %3430 = vmatprep.subr.bf16.mxu0 %v3381
    %3431 = vmatpush2.bf16.msra.mxu0 %v3380
    %3432 = vmatprep.subr.bf16.mxu0 %v3379
    %3433 = vmatpush2.bf16.msra.mxu0 %v3378
    %3434 = vmatprep.subr.bf16.mxu0 %v3377
    %3435 = vmatpush2.bf16.msra.mxu0 %v3376
    %3436 = vmatprep.subr.bf16.mxu0 %v3375
    %3437 = vmatpush2.bf16.msra.mxu0 %v3374
    %3438 = vmatprep.subr.bf16.mxu0 %v3373
    %3439 = vmatpush2.bf16.msra.mxu0 %v3372
    %3440 = vmatprep.subr.bf16.mxu0 %v3371
    %3441 = vmatpush2.bf16.msra.mxu0 %v3370
    %3442 = vmatprep.subr.bf16.mxu0 %v3369
    %3443 = vmatpush2.bf16.msra.mxu0 %v3368
    %3444 = vmatprep.subr.bf16.mxu0 %v3367
    %3445 = vmatpush2.bf16.msra.mxu0 %v3366
    %3446 = vmatprep.mubr.bf16.mxu0 %v2951
    %3447 = vmatmul.mubr.bf16.gmra.mxu0 %v2934
    %v3448 = vpop.f32.mrf.mxu0
    %v3449 = vadd.f32 0.0, %v3448
    %v3450 = vpop.f32.mrf.mxu0
    %v3451 = vadd.f32 0.0, %v3450
    %v3452 = vpop.f32.mrf.mxu0
    %v3453 = vadd.f32 0.0, %v3452
    %v3454 = vpop.f32.mrf.mxu0
    %v3455 = vadd.f32 0.0, %v3454
    %3456 = vmatprep.mubr.bf16.mxu0 %v2969
    %3457 = vmatmul.mubr.bf16.gmra.mxu0 %v2960
    %v3458 = vpop.f32.mrf.mxu0
    %v3459 = vadd.f32 0.0, %v3458
    %v3460 = vpop.f32.mrf.mxu0
    %v3461 = vadd.f32 0.0, %v3460
    %v3462 = vpop.f32.mrf.mxu0
    %v3463 = vadd.f32 0.0, %v3462
    %v3464 = vpop.f32.mrf.mxu0
    %v3465 = vadd.f32 0.0, %v3464
    %3466 = vmatprep.mubr.bf16.mxu0 %v2987
    %3467 = vmatmul.mubr.bf16.gmra.mxu0 %v2978
    %v3468 = vpop.f32.mrf.mxu0
    %v3469 = vadd.f32 0.0, %v3468
    %v3470 = vpop.f32.mrf.mxu0
    %v3471 = vadd.f32 0.0, %v3470
    %v3472 = vpop.f32.mrf.mxu0
    %v3473 = vadd.f32 0.0, %v3472
    %v3474 = vpop.f32.mrf.mxu0
    %v3475 = vadd.f32 0.0, %v3474
    %3476 = vmatprep.mubr.bf16.mxu0 %v3005
    %3477 = vmatmul.mubr.bf16.gmra.mxu0 %v2996
    %v3478 = vpop.f32.mrf.mxu0
    %v3479 = vadd.f32 0.0, %v3478
    %v3480 = vpop.f32.mrf.mxu0
    %v3481 = vadd.f32 0.0, %v3480
    %v3482 = vpop.f32.mrf.mxu0
    %v3483 = vadd.f32 0.0, %v3482
    %v3484 = vpop.f32.mrf.mxu0
    %v3485 = vadd.f32 0.0, %v3484
    %3486 = vmatprep.mubr.bf16.mxu0 %v3023
    %3487 = vmatmul.mubr.bf16.gmra.mxu0 %v3014
    %v3488 = vpop.f32.mrf.mxu0
    %v3489 = vadd.f32 0.0, %v3488
    %v3490 = vpop.f32.mrf.mxu0
    %v3491 = vadd.f32 0.0, %v3490
    %v3492 = vpop.f32.mrf.mxu0
    %v3493 = vadd.f32 0.0, %v3492
    %v3494 = vpop.f32.mrf.mxu0
    %v3495 = vadd.f32 0.0, %v3494
    %3496 = vmatprep.mubr.bf16.mxu0 %v3041
    %3497 = vmatmul.mubr.bf16.gmra.mxu0 %v3032
    %v3498 = vpop.f32.mrf.mxu0
    %v3499 = vadd.f32 0.0, %v3498
    %v3500 = vpop.f32.mrf.mxu0
    %v3501 = vadd.f32 0.0, %v3500
    %v3502 = vpop.f32.mrf.mxu0
    %v3503 = vadd.f32 0.0, %v3502
    %v3504 = vpop.f32.mrf.mxu0
    %v3505 = vadd.f32 0.0, %v3504
    %3506 = vmatprep.mubr.bf16.mxu0 %v3059
    %3507 = vmatmul.mubr.bf16.gmra.mxu0 %v3050
    %v3508 = vpop.f32.mrf.mxu0
    %v3509 = vadd.f32 0.0, %v3508
    %v3510 = vpop.f32.mrf.mxu0
    %v3511 = vadd.f32 0.0, %v3510
    %v3512 = vpop.f32.mrf.mxu0
    %v3513 = vadd.f32 0.0, %v3512
    %v3514 = vpop.f32.mrf.mxu0
    %v3515 = vadd.f32 0.0, %v3514
    %3516 = vmatprep.mubr.bf16.mxu0 %v3077
    %3517 = vmatmul.mubr.bf16.gmra.mxu0 %v3068
    %v3518 = vpop.f32.mrf.mxu0
    %v3519 = vadd.f32 0.0, %v3518
    %v3520 = vpop.f32.mrf.mxu0
    %v3521 = vadd.f32 0.0, %v3520
    %v3522 = vpop.f32.mrf.mxu0
    %v3523 = vadd.f32 0.0, %v3522
    %v3524 = vpop.f32.mrf.mxu0
    %v3525 = vadd.f32 0.0, %v3524
    %3526 = vmatprep.mubr.bf16.mxu0 %v3095
    %3527 = vmatmul.mubr.bf16.gmra.mxu0 %v3086
    %v3528 = vpop.f32.mrf.mxu0
    %v3529 = vadd.f32 0.0, %v3528
    %v3530 = vpop.f32.mrf.mxu0
    %v3531 = vadd.f32 0.0, %v3530
    %v3532 = vpop.f32.mrf.mxu0
    %v3533 = vadd.f32 0.0, %v3532
    %v3534 = vpop.f32.mrf.mxu0
    %v3535 = vadd.f32 0.0, %v3534
    %3536 = vmatprep.mubr.bf16.mxu0 %v3113
    %3537 = vmatmul.mubr.bf16.gmra.mxu0 %v3104
    %v3538 = vpop.f32.mrf.mxu0
    %v3539 = vadd.f32 0.0, %v3538
    %v3540 = vpop.f32.mrf.mxu0
    %v3541 = vadd.f32 0.0, %v3540
    %v3542 = vpop.f32.mrf.mxu0
    %v3543 = vadd.f32 0.0, %v3542
    %v3544 = vpop.f32.mrf.mxu0
    %v3545 = vadd.f32 0.0, %v3544
    %3546 = vmatprep.mubr.bf16.mxu0 %v3131
    %3547 = vmatmul.mubr.bf16.gmra.mxu0 %v3122
    %v3548 = vpop.f32.mrf.mxu0
    %v3549 = vadd.f32 0.0, %v3548
    %v3550 = vpop.f32.mrf.mxu0
    %v3551 = vadd.f32 0.0, %v3550
    %v3552 = vpop.f32.mrf.mxu0
    %v3553 = vadd.f32 0.0, %v3552
    %v3554 = vpop.f32.mrf.mxu0
    %v3555 = vadd.f32 0.0, %v3554
    %3556 = vmatprep.mubr.bf16.mxu0 %v3149
    %3557 = vmatmul.mubr.bf16.gmra.mxu0 %v3140
    %v3558 = vpop.f32.mrf.mxu0
    %v3559 = vadd.f32 0.0, %v3558
    %v3560 = vpop.f32.mrf.mxu0
    %v3561 = vadd.f32 0.0, %v3560
    %v3562 = vpop.f32.mrf.mxu0
    %v3563 = vadd.f32 0.0, %v3562
    %v3564 = vpop.f32.mrf.mxu0
    %v3565 = vadd.f32 0.0, %v3564
    %3566 = vmatprep.mubr.bf16.mxu0 %v3167
    %3567 = vmatmul.mubr.bf16.gmra.mxu0 %v3158
    %v3568 = vpop.f32.mrf.mxu0
    %v3569 = vadd.f32 0.0, %v3568
    %v3570 = vpop.f32.mrf.mxu0
    %v3571 = vadd.f32 0.0, %v3570
    %v3572 = vpop.f32.mrf.mxu0
    %v3573 = vadd.f32 0.0, %v3572
    %v3574 = vpop.f32.mrf.mxu0
    %v3575 = vadd.f32 0.0, %v3574
    %3576 = vmatprep.mubr.bf16.mxu0 %v3185
    %3577 = vmatmul.mubr.bf16.gmra.mxu0 %v3176
    %v3578 = vpop.f32.mrf.mxu0
    %v3579 = vadd.f32 0.0, %v3578
    %v3580 = vpop.f32.mrf.mxu0
    %v3581 = vadd.f32 0.0, %v3580
    %v3582 = vpop.f32.mrf.mxu0
    %v3583 = vadd.f32 0.0, %v3582
    %v3584 = vpop.f32.mrf.mxu0
    %v3585 = vadd.f32 0.0, %v3584
    %3586 = vmatprep.mubr.bf16.mxu0 %v3203
    %3587 = vmatmul.mubr.bf16.gmra.mxu0 %v3194
    %v3588 = vpop.f32.mrf.mxu0
    %v3589 = vadd.f32 0.0, %v3588
    %v3590 = vpop.f32.mrf.mxu0
    %v3591 = vadd.f32 0.0, %v3590
    %v3592 = vpop.f32.mrf.mxu0
    %v3593 = vadd.f32 0.0, %v3592
    %v3594 = vpop.f32.mrf.mxu0
    %v3595 = vadd.f32 0.0, %v3594
    %3596 = vmatprep.mubr.bf16.mxu0 %v3221
    %3597 = vmatmul.mubr.bf16.gmra.mxu0 %v3212
    %v3598 = vpop.f32.mrf.mxu0
    %v3599 = vadd.f32 0.0, %v3598
    %v3600 = vpop.f32.mrf.mxu0
    %v3601 = vadd.f32 0.0, %v3600
    %v3602 = vpop.f32.mrf.mxu0
    %v3603 = vadd.f32 0.0, %v3602
    %v3604 = vpop.f32.mrf.mxu0
    %v3605 = vadd.f32 0.0, %v3604
    %3606 = vdwg.mxu0
    %v3607 = vadd.f32 %v2656, %v3449
    %v3608 = vadd.f32 %v2657, %v3451
    %v3609 = vadd.f32 %v2658, %v3453
    %v3610 = vadd.f32 %v2659, %v3455
    %v3611 = vadd.f32 %v2660, %v3459
    %v3612 = vadd.f32 %v2661, %v3461
    %v3613 = vadd.f32 %v2662, %v3463
    %v3614 = vadd.f32 %v2663, %v3465
    %v3615 = vadd.f32 %v2664, %v3469
    %v3616 = vadd.f32 %v2665, %v3471
    %v3617 = vadd.f32 %v2666, %v3473
    %v3618 = vadd.f32 %v2667, %v3475
    %v3619 = vadd.f32 %v2668, %v3479
    %v3620 = vadd.f32 %v2669, %v3481
    %v3621 = vadd.f32 %v2670, %v3483
    %v3622 = vadd.f32 %v2671, %v3485
    %v3623 = vadd.f32 %v2672, %v3489
    %v3624 = vadd.f32 %v2673, %v3491
    %v3625 = vadd.f32 %v2674, %v3493
    %v3626 = vadd.f32 %v2675, %v3495
    %v3627 = vadd.f32 %v2676, %v3499
    %v3628 = vadd.f32 %v2677, %v3501
    %v3629 = vadd.f32 %v2678, %v3503
    %v3630 = vadd.f32 %v2679, %v3505
    %v3631 = vadd.f32 %v2680, %v3509
    %v3632 = vadd.f32 %v2681, %v3511
    %v3633 = vadd.f32 %v2682, %v3513
    %v3634 = vadd.f32 %v2683, %v3515
    %v3635 = vadd.f32 %v2684, %v3519
    %v3636 = vadd.f32 %v2685, %v3521
    %v3637 = vadd.f32 %v2686, %v3523
    %v3638 = vadd.f32 %v2687, %v3525
    %v3639 = vadd.f32 %v2688, %v3529
    %v3640 = vadd.f32 %v2689, %v3531
    %v3641 = vadd.f32 %v2690, %v3533
    %v3642 = vadd.f32 %v2691, %v3535
    %v3643 = vadd.f32 %v2692, %v3539
    %v3644 = vadd.f32 %v2693, %v3541
    %v3645 = vadd.f32 %v2694, %v3543
    %v3646 = vadd.f32 %v2695, %v3545
    %v3647 = vadd.f32 %v2696, %v3549
    %v3648 = vadd.f32 %v2697, %v3551
    %v3649 = vadd.f32 %v2698, %v3553
    %v3650 = vadd.f32 %v2699, %v3555
    %v3651 = vadd.f32 %v2700, %v3559
    %v3652 = vadd.f32 %v2701, %v3561
    %v3653 = vadd.f32 %v2702, %v3563
    %v3654 = vadd.f32 %v2703, %v3565
    %v3655 = vadd.f32 %v2704, %v3569
    %v3656 = vadd.f32 %v2705, %v3571
    %v3657 = vadd.f32 %v2706, %v3573
    %v3658 = vadd.f32 %v2707, %v3575
    %v3659 = vadd.f32 %v2708, %v3579
    %v3660 = vadd.f32 %v2709, %v3581
    %v3661 = vadd.f32 %v2710, %v3583
    %v3662 = vadd.f32 %v2711, %v3585
    %v3663 = vadd.f32 %v2712, %v3589
    %v3664 = vadd.f32 %v2713, %v3591
    %v3665 = vadd.f32 %v2714, %v3593
    %v3666 = vadd.f32 %v2715, %v3595
    %v3667 = vadd.f32 %v2716, %v3599
    %v3668 = vadd.f32 %v2717, %v3601
    %v3669 = vadd.f32 %v2718, %v3603
    %v3670 = vadd.f32 %v2719, %v3605
    %v3671 = vld [vmem:[#allocation2 + $0x400] sm:$0xff]
    %v3672 = vld [vmem:[#allocation2 + $0x408] sm:$0xff]
    %v3673 = vld [vmem:[#allocation2 + $0x410] sm:$0xff]
    %v3674 = vld [vmem:[#allocation2 + $0x418] sm:$0xff]
    %v3675 = vld [vmem:[#allocation2 + $0x420] sm:$0xff]
    %v3676 = vld [vmem:[#allocation2 + $0x428] sm:$0xff]
    %v3677 = vld [vmem:[#allocation2 + $0x430] sm:$0xff]
    %v3678 = vld [vmem:[#allocation2 + $0x438] sm:$0xff]
    %v3679 = vld [vmem:[#allocation2 + $0x440] sm:$0xff]
    %v3680 = vld [vmem:[#allocation2 + $0x448] sm:$0xff]
    %v3681 = vld [vmem:[#allocation2 + $0x450] sm:$0xff]
    %v3682 = vld [vmem:[#allocation2 + $0x458] sm:$0xff]
    %v3683 = vld [vmem:[#allocation2 + $0x460] sm:$0xff]
    %v3684 = vld [vmem:[#allocation2 + $0x468] sm:$0xff]
    %v3685 = vld [vmem:[#allocation2 + $0x470] sm:$0xff]
    %v3686 = vld [vmem:[#allocation2 + $0x478] sm:$0xff]
    %v3687 = vld [vmem:[#allocation2 + $0x480] sm:$0xff]
    %v3688 = vld [vmem:[#allocation2 + $0x488] sm:$0xff]
    %v3689 = vld [vmem:[#allocation2 + $0x490] sm:$0xff]
    %v3690 = vld [vmem:[#allocation2 + $0x498] sm:$0xff]
    %v3691 = vld [vmem:[#allocation2 + $0x4a0] sm:$0xff]
    %v3692 = vld [vmem:[#allocation2 + $0x4a8] sm:$0xff]
    %v3693 = vld [vmem:[#allocation2 + $0x4b0] sm:$0xff]
    %v3694 = vld [vmem:[#allocation2 + $0x4b8] sm:$0xff]
    %v3695 = vld [vmem:[#allocation2 + $0x4c0] sm:$0xff]
    %v3696 = vld [vmem:[#allocation2 + $0x4c8] sm:$0xff]
    %v3697 = vld [vmem:[#allocation2 + $0x4d0] sm:$0xff]
    %v3698 = vld [vmem:[#allocation2 + $0x4d8] sm:$0xff]
    %v3699 = vld [vmem:[#allocation2 + $0x4e0] sm:$0xff]
    %v3700 = vld [vmem:[#allocation2 + $0x4e8] sm:$0xff]
    %v3701 = vld [vmem:[#allocation2 + $0x4f0] sm:$0xff]
    %v3702 = vld [vmem:[#allocation2 + $0x4f8] sm:$0xff]
    %v3703 = vpack.c.b16 %v2822, %v2820
    %v3704 = vpack.c.b16 %v2823, %v2821
    %v3705 = vpack.c.b16 %v2826, %v2824
    %v3706 = vpack.c.b16 %v2827, %v2825
    %v3707 = vpack.c.b16 %v2830, %v2828
    %v3708 = vpack.c.b16 %v2831, %v2829
    %v3709 = vpack.c.b16 %v2834, %v2832
    %v3710 = vpack.c.b16 %v2835, %v2833
    %v3711 = vpack.c.b16 %v2838, %v2836
    %v3712 = vpack.c.b16 %v2839, %v2837
    %v3713 = vpack.c.b16 %v2842, %v2840
    %v3714 = vpack.c.b16 %v2843, %v2841
    %v3715 = vpack.c.b16 %v2846, %v2844
    %v3716 = vpack.c.b16 %v2847, %v2845
    %v3717 = vpack.c.b16 %v2850, %v2848
    %v3718 = vpack.c.b16 %v2851, %v2849
    %v3719 = vpack.c.b16 %v2854, %v2852
    %v3720 = vpack.c.b16 %v2855, %v2853
    %v3721 = vpack.c.b16 %v2858, %v2856
    %v3722 = vpack.c.b16 %v2859, %v2857
    %v3723 = vpack.c.b16 %v2862, %v2860
    %v3724 = vpack.c.b16 %v2863, %v2861
    %v3725 = vpack.c.b16 %v2866, %v2864
    %v3726 = vpack.c.b16 %v2867, %v2865
    %v3727 = vpack.c.b16 %v2870, %v2868
    %v3728 = vpack.c.b16 %v2871, %v2869
    %v3729 = vpack.c.b16 %v2874, %v2872
    %v3730 = vpack.c.b16 %v2875, %v2873
    %v3731 = vpack.c.b16 %v2878, %v2876
    %v3732 = vpack.c.b16 %v2879, %v2877
    %v3733 = vpack.c.b16 %v2882, %v2880
    %v3734 = vpack.c.b16 %v2883, %v2881
    %v3799 = vunpack.c.l.b16 %v3671
    %v3800 = vunpack.c.h.b16 %v3671
    %v3801 = vunpack.c.l.b16 %v3672
    %v3802 = vunpack.c.h.b16 %v3672
    %v3803 = vunpack.c.l.b16 %v3673
    %v3804 = vunpack.c.h.b16 %v3673
    %v3805 = vunpack.c.l.b16 %v3674
    %v3806 = vunpack.c.h.b16 %v3674
    %v3807 = vunpack.c.l.b16 %v3675
    %v3808 = vunpack.c.h.b16 %v3675
    %v3809 = vunpack.c.l.b16 %v3676
    %v3810 = vunpack.c.h.b16 %v3676
    %v3811 = vunpack.c.l.b16 %v3677
    %v3812 = vunpack.c.h.b16 %v3677
    %v3813 = vunpack.c.l.b16 %v3678
    %v3814 = vunpack.c.h.b16 %v3678
    %v3815 = vunpack.c.l.b16 %v3679
    %v3816 = vunpack.c.h.b16 %v3679
    %v3817 = vunpack.c.l.b16 %v3680
    %v3818 = vunpack.c.h.b16 %v3680
    %v3819 = vunpack.c.l.b16 %v3681
    %v3820 = vunpack.c.h.b16 %v3681
    %v3821 = vunpack.c.l.b16 %v3682
    %v3822 = vunpack.c.h.b16 %v3682
    %v3823 = vunpack.c.l.b16 %v3683
    %v3824 = vunpack.c.h.b16 %v3683
    %v3825 = vunpack.c.l.b16 %v3684
    %v3826 = vunpack.c.h.b16 %v3684
    %v3827 = vunpack.c.l.b16 %v3685
    %v3828 = vunpack.c.h.b16 %v3685
    %v3829 = vunpack.c.l.b16 %v3686
    %v3830 = vunpack.c.h.b16 %v3686
    %v3831 = vunpack.c.l.b16 %v3687
    %v3832 = vunpack.c.h.b16 %v3687
    %v3833 = vunpack.c.l.b16 %v3688
    %v3834 = vunpack.c.h.b16 %v3688
    %v3835 = vunpack.c.l.b16 %v3689
    %v3836 = vunpack.c.h.b16 %v3689
    %v3837 = vunpack.c.l.b16 %v3690
    %v3838 = vunpack.c.h.b16 %v3690
    %v3839 = vunpack.c.l.b16 %v3691
    %v3840 = vunpack.c.h.b16 %v3691
    %v3841 = vunpack.c.l.b16 %v3692
    %v3842 = vunpack.c.h.b16 %v3692
    %v3843 = vunpack.c.l.b16 %v3693
    %v3844 = vunpack.c.h.b16 %v3693
    %v3845 = vunpack.c.l.b16 %v3694
    %v3846 = vunpack.c.h.b16 %v3694
    %v3847 = vunpack.c.l.b16 %v3695
    %v3848 = vunpack.c.h.b16 %v3695
    %v3849 = vunpack.c.l.b16 %v3696
    %v3850 = vunpack.c.h.b16 %v3696
    %v3851 = vunpack.c.l.b16 %v3697
    %v3852 = vunpack.c.h.b16 %v3697
    %v3853 = vunpack.c.l.b16 %v3698
    %v3854 = vunpack.c.h.b16 %v3698
    %v3855 = vunpack.c.l.b16 %v3699
    %v3856 = vunpack.c.h.b16 %v3699
    %v3857 = vunpack.c.l.b16 %v3700
    %v3858 = vunpack.c.h.b16 %v3700
    %v3859 = vunpack.c.l.b16 %v3701
    %v3860 = vunpack.c.h.b16 %v3701
    %v3861 = vunpack.c.l.b16 %v3702
    %v3862 = vunpack.c.h.b16 %v3702
    %v3863 = vpack.c.b16 %v3801, %v3799
    %v3864 = vpack.c.b16 %v3802, %v3800
    %v3865 = vpack.c.b16 %v3805, %v3803
    %v3866 = vpack.c.b16 %v3806, %v3804
    %v3867 = vpack.c.b16 %v3809, %v3807
    %v3868 = vpack.c.b16 %v3810, %v3808
    %v3869 = vpack.c.b16 %v3813, %v3811
    %v3870 = vpack.c.b16 %v3814, %v3812
    %v3871 = vpack.c.b16 %v3817, %v3815
    %v3872 = vpack.c.b16 %v3818, %v3816
    %v3873 = vpack.c.b16 %v3821, %v3819
    %v3874 = vpack.c.b16 %v3822, %v3820
    %v3875 = vpack.c.b16 %v3825, %v3823
    %v3876 = vpack.c.b16 %v3826, %v3824
    %v3877 = vpack.c.b16 %v3829, %v3827
    %v3878 = vpack.c.b16 %v3830, %v3828
    %v3879 = vpack.c.b16 %v3833, %v3831
    %v3880 = vpack.c.b16 %v3834, %v3832
    %v3881 = vpack.c.b16 %v3837, %v3835
    %v3882 = vpack.c.b16 %v3838, %v3836
    %v3883 = vpack.c.b16 %v3841, %v3839
    %v3884 = vpack.c.b16 %v3842, %v3840
    %v3885 = vpack.c.b16 %v3845, %v3843
    %v3886 = vpack.c.b16 %v3846, %v3844
    %v3887 = vpack.c.b16 %v3849, %v3847
    %v3888 = vpack.c.b16 %v3850, %v3848
    %v3889 = vpack.c.b16 %v3853, %v3851
    %v3890 = vpack.c.b16 %v3854, %v3852
    %v3891 = vpack.c.b16 %v3857, %v3855
    %v3892 = vpack.c.b16 %v3858, %v3856
    %v3893 = vpack.c.b16 %v3861, %v3859
    %v3894 = vpack.c.b16 %v3862, %v3860
    %3927 = vmatprep.subr.bf16.mxu0 %v3878
    %3928 = vmatpush1.bf16.msra.mxu0 %v3877
    %3929 = vmatprep.subr.bf16.mxu0 %v3876
    %3930 = vmatpush1.bf16.msra.mxu0 %v3875
    %3931 = vmatprep.subr.bf16.mxu0 %v3874
    %3932 = vmatpush1.bf16.msra.mxu0 %v3873
    %3933 = vmatprep.subr.bf16.mxu0 %v3872
    %3934 = vmatpush1.bf16.msra.mxu0 %v3871
    %3935 = vmatprep.subr.bf16.mxu0 %v3870
    %3936 = vmatpush1.bf16.msra.mxu0 %v3869
    %3937 = vmatprep.subr.bf16.mxu0 %v3868
    %3938 = vmatpush1.bf16.msra.mxu0 %v3867
    %3939 = vmatprep.subr.bf16.mxu0 %v3866
    %3940 = vmatpush1.bf16.msra.mxu0 %v3865
    %3941 = vmatprep.subr.bf16.mxu0 %v3864
    %3942 = vmatpush1.bf16.msra.mxu0 %v3863
    %3943 = vmatprep.subr.bf16.mxu0 %v3894
    %3944 = vmatpush2.bf16.msra.mxu0 %v3893
    %3945 = vmatprep.subr.bf16.mxu0 %v3892
    %3946 = vmatpush2.bf16.msra.mxu0 %v3891
    %3947 = vmatprep.subr.bf16.mxu0 %v3890
    %3948 = vmatpush2.bf16.msra.mxu0 %v3889
    %3949 = vmatprep.subr.bf16.mxu0 %v3888
    %3950 = vmatpush2.bf16.msra.mxu0 %v3887
    %3951 = vmatprep.subr.bf16.mxu0 %v3886
    %3952 = vmatpush2.bf16.msra.mxu0 %v3885
    %3953 = vmatprep.subr.bf16.mxu0 %v3884
    %3954 = vmatpush2.bf16.msra.mxu0 %v3883
    %3955 = vmatprep.subr.bf16.mxu0 %v3882
    %3956 = vmatpush2.bf16.msra.mxu0 %v3881
    %3957 = vmatprep.subr.bf16.mxu0 %v3880
    %3958 = vmatpush2.bf16.msra.mxu0 %v3879
    %3959 = vmatprep.mubr.bf16.mxu0 %v3704
    %3960 = vmatmul.mubr.bf16.gmra.mxu0 %v3703
    %v3961 = vpop.f32.mrf.mxu0
    %v3962 = vadd.f32 0.0, %v3961
    %v3963 = vpop.f32.mrf.mxu0
    %v3964 = vadd.f32 0.0, %v3963
    %v3965 = vpop.f32.mrf.mxu0
    %v3966 = vadd.f32 0.0, %v3965
    %v3967 = vpop.f32.mrf.mxu0
    %v3968 = vadd.f32 0.0, %v3967
    %3969 = vmatprep.mubr.bf16.mxu0 %v3706
    %3970 = vmatmul.mubr.bf16.gmra.mxu0 %v3705
    %v3971 = vpop.f32.mrf.mxu0
    %v3972 = vadd.f32 0.0, %v3971
    %v3973 = vpop.f32.mrf.mxu0
    %v3974 = vadd.f32 0.0, %v3973
    %v3975 = vpop.f32.mrf.mxu0
    %v3976 = vadd.f32 0.0, %v3975
    %v3977 = vpop.f32.mrf.mxu0
    %v3978 = vadd.f32 0.0, %v3977
    %3979 = vmatprep.mubr.bf16.mxu0 %v3708
    %3980 = vmatmul.mubr.bf16.gmra.mxu0 %v3707
    %v3981 = vpop.f32.mrf.mxu0
    %v3982 = vadd.f32 0.0, %v3981
    %v3983 = vpop.f32.mrf.mxu0
    %v3984 = vadd.f32 0.0, %v3983
    %v3985 = vpop.f32.mrf.mxu0
    %v3986 = vadd.f32 0.0, %v3985
    %v3987 = vpop.f32.mrf.mxu0
    %v3988 = vadd.f32 0.0, %v3987
    %3989 = vmatprep.mubr.bf16.mxu0 %v3710
    %3990 = vmatmul.mubr.bf16.gmra.mxu0 %v3709
    %v3991 = vpop.f32.mrf.mxu0
    %v3992 = vadd.f32 0.0, %v3991
    %v3993 = vpop.f32.mrf.mxu0
    %v3994 = vadd.f32 0.0, %v3993
    %v3995 = vpop.f32.mrf.mxu0
    %v3996 = vadd.f32 0.0, %v3995
    %v3997 = vpop.f32.mrf.mxu0
    %v3998 = vadd.f32 0.0, %v3997
    %3999 = vmatprep.mubr.bf16.mxu0 %v3712
    %4000 = vmatmul.mubr.bf16.gmra.mxu0 %v3711
    %v4001 = vpop.f32.mrf.mxu0
    %v4002 = vadd.f32 0.0, %v4001
    %v4003 = vpop.f32.mrf.mxu0
    %v4004 = vadd.f32 0.0, %v4003
    %v4005 = vpop.f32.mrf.mxu0
    %v4006 = vadd.f32 0.0, %v4005
    %v4007 = vpop.f32.mrf.mxu0
    %v4008 = vadd.f32 0.0, %v4007
    %4009 = vmatprep.mubr.bf16.mxu0 %v3714
    %4010 = vmatmul.mubr.bf16.gmra.mxu0 %v3713
    %v4011 = vpop.f32.mrf.mxu0
    %v4012 = vadd.f32 0.0, %v4011
    %v4013 = vpop.f32.mrf.mxu0
    %v4014 = vadd.f32 0.0, %v4013
    %v4015 = vpop.f32.mrf.mxu0
    %v4016 = vadd.f32 0.0, %v4015
    %v4017 = vpop.f32.mrf.mxu0
    %v4018 = vadd.f32 0.0, %v4017
    %4019 = vmatprep.mubr.bf16.mxu0 %v3716
    %4020 = vmatmul.mubr.bf16.gmra.mxu0 %v3715
    %v4021 = vpop.f32.mrf.mxu0
    %v4022 = vadd.f32 0.0, %v4021
    %v4023 = vpop.f32.mrf.mxu0
    %v4024 = vadd.f32 0.0, %v4023
    %v4025 = vpop.f32.mrf.mxu0
    %v4026 = vadd.f32 0.0, %v4025
    %v4027 = vpop.f32.mrf.mxu0
    %v4028 = vadd.f32 0.0, %v4027
    %4029 = vmatprep.mubr.bf16.mxu0 %v3718
    %4030 = vmatmul.mubr.bf16.gmra.mxu0 %v3717
    %v4031 = vpop.f32.mrf.mxu0
    %v4032 = vadd.f32 0.0, %v4031
    %v4033 = vpop.f32.mrf.mxu0
    %v4034 = vadd.f32 0.0, %v4033
    %v4035 = vpop.f32.mrf.mxu0
    %v4036 = vadd.f32 0.0, %v4035
    %v4037 = vpop.f32.mrf.mxu0
    %v4038 = vadd.f32 0.0, %v4037
    %4039 = vmatprep.mubr.bf16.mxu0 %v3720
    %4040 = vmatmul.mubr.bf16.gmra.mxu0 %v3719
    %v4041 = vpop.f32.mrf.mxu0
    %v4042 = vadd.f32 0.0, %v4041
    %v4043 = vpop.f32.mrf.mxu0
    %v4044 = vadd.f32 0.0, %v4043
    %v4045 = vpop.f32.mrf.mxu0
    %v4046 = vadd.f32 0.0, %v4045
    %v4047 = vpop.f32.mrf.mxu0
    %v4048 = vadd.f32 0.0, %v4047
    %4049 = vmatprep.mubr.bf16.mxu0 %v3722
    %4050 = vmatmul.mubr.bf16.gmra.mxu0 %v3721
    %v4051 = vpop.f32.mrf.mxu0
    %v4052 = vadd.f32 0.0, %v4051
    %v4053 = vpop.f32.mrf.mxu0
    %v4054 = vadd.f32 0.0, %v4053
    %v4055 = vpop.f32.mrf.mxu0
    %v4056 = vadd.f32 0.0, %v4055
    %v4057 = vpop.f32.mrf.mxu0
    %v4058 = vadd.f32 0.0, %v4057
    %4059 = vmatprep.mubr.bf16.mxu0 %v3724
    %4060 = vmatmul.mubr.bf16.gmra.mxu0 %v3723
    %v4061 = vpop.f32.mrf.mxu0
    %v4062 = vadd.f32 0.0, %v4061
    %v4063 = vpop.f32.mrf.mxu0
    %v4064 = vadd.f32 0.0, %v4063
    %v4065 = vpop.f32.mrf.mxu0
    %v4066 = vadd.f32 0.0, %v4065
    %v4067 = vpop.f32.mrf.mxu0
    %v4068 = vadd.f32 0.0, %v4067
    %4069 = vmatprep.mubr.bf16.mxu0 %v3726
    %4070 = vmatmul.mubr.bf16.gmra.mxu0 %v3725
    %v4071 = vpop.f32.mrf.mxu0
    %v4072 = vadd.f32 0.0, %v4071
    %v4073 = vpop.f32.mrf.mxu0
    %v4074 = vadd.f32 0.0, %v4073
    %v4075 = vpop.f32.mrf.mxu0
    %v4076 = vadd.f32 0.0, %v4075
    %v4077 = vpop.f32.mrf.mxu0
    %v4078 = vadd.f32 0.0, %v4077
    %4079 = vmatprep.mubr.bf16.mxu0 %v3728
    %4080 = vmatmul.mubr.bf16.gmra.mxu0 %v3727
    %v4081 = vpop.f32.mrf.mxu0
    %v4082 = vadd.f32 0.0, %v4081
    %v4083 = vpop.f32.mrf.mxu0
    %v4084 = vadd.f32 0.0, %v4083
    %v4085 = vpop.f32.mrf.mxu0
    %v4086 = vadd.f32 0.0, %v4085
    %v4087 = vpop.f32.mrf.mxu0
    %v4088 = vadd.f32 0.0, %v4087
    %4089 = vmatprep.mubr.bf16.mxu0 %v3730
    %4090 = vmatmul.mubr.bf16.gmra.mxu0 %v3729
    %v4091 = vpop.f32.mrf.mxu0
    %v4092 = vadd.f32 0.0, %v4091
    %v4093 = vpop.f32.mrf.mxu0
    %v4094 = vadd.f32 0.0, %v4093
    %v4095 = vpop.f32.mrf.mxu0
    %v4096 = vadd.f32 0.0, %v4095
    %v4097 = vpop.f32.mrf.mxu0
    %v4098 = vadd.f32 0.0, %v4097
    %4099 = vmatprep.mubr.bf16.mxu0 %v3732
    %4100 = vmatmul.mubr.bf16.gmra.mxu0 %v3731
    %v4101 = vpop.f32.mrf.mxu0
    %v4102 = vadd.f32 0.0, %v4101
    %v4103 = vpop.f32.mrf.mxu0
    %v4104 = vadd.f32 0.0, %v4103
    %v4105 = vpop.f32.mrf.mxu0
    %v4106 = vadd.f32 0.0, %v4105
    %v4107 = vpop.f32.mrf.mxu0
    %v4108 = vadd.f32 0.0, %v4107
    %4109 = vmatprep.mubr.bf16.mxu0 %v3734
    %4110 = vmatmul.mubr.bf16.gmra.mxu0 %v3733
    %v4111 = vpop.f32.mrf.mxu0
    %v4112 = vadd.f32 0.0, %v4111
    %v4113 = vpop.f32.mrf.mxu0
    %v4114 = vadd.f32 0.0, %v4113
    %v4115 = vpop.f32.mrf.mxu0
    %v4116 = vadd.f32 0.0, %v4115
    %v4117 = vpop.f32.mrf.mxu0
    %v4118 = vadd.f32 0.0, %v4117
    %4119 = vdwg.mxu0
    %v4120 = vadd.f32 %v3607, %v3962
    %v4121 = vadd.f32 %v3608, %v3964
    %v4122 = vadd.f32 %v3609, %v3966
    %v4123 = vadd.f32 %v3610, %v3968
    %v4124 = vadd.f32 %v3611, %v3972
    %v4125 = vadd.f32 %v3612, %v3974
    %v4126 = vadd.f32 %v3613, %v3976
    %v4127 = vadd.f32 %v3614, %v3978
    %v4128 = vadd.f32 %v3615, %v3982
    %v4129 = vadd.f32 %v3616, %v3984
    %v4130 = vadd.f32 %v3617, %v3986
    %v4131 = vadd.f32 %v3618, %v3988
    %v4132 = vadd.f32 %v3619, %v3992
    %v4133 = vadd.f32 %v3620, %v3994
    %v4134 = vadd.f32 %v3621, %v3996
    %v4135 = vadd.f32 %v3622, %v3998
    %v4136 = vadd.f32 %v3623, %v4002
    %v4137 = vadd.f32 %v3624, %v4004
    %v4138 = vadd.f32 %v3625, %v4006
    %v4139 = vadd.f32 %v3626, %v4008
    %v4140 = vadd.f32 %v3627, %v4012
    %v4141 = vadd.f32 %v3628, %v4014
    %v4142 = vadd.f32 %v3629, %v4016
    %v4143 = vadd.f32 %v3630, %v4018
    %v4144 = vadd.f32 %v3631, %v4022
    %v4145 = vadd.f32 %v3632, %v4024
    %v4146 = vadd.f32 %v3633, %v4026
    %v4147 = vadd.f32 %v3634, %v4028
    %v4148 = vadd.f32 %v3635, %v4032
    %v4149 = vadd.f32 %v3636, %v4034
    %v4150 = vadd.f32 %v3637, %v4036
    %v4151 = vadd.f32 %v3638, %v4038
    %v4152 = vadd.f32 %v3639, %v4042
    %v4153 = vadd.f32 %v3640, %v4044
    %v4154 = vadd.f32 %v3641, %v4046
    %v4155 = vadd.f32 %v3642, %v4048
    %v4156 = vadd.f32 %v3643, %v4052
    %v4157 = vadd.f32 %v3644, %v4054
    %v4158 = vadd.f32 %v3645, %v4056
    %v4159 = vadd.f32 %v3646, %v4058
    %v4160 = vadd.f32 %v3647, %v4062
    %v4161 = vadd.f32 %v3648, %v4064
    %v4162 = vadd.f32 %v3649, %v4066
    %v4163 = vadd.f32 %v3650, %v4068
    %v4164 = vadd.f32 %v3651, %v4072
    %v4165 = vadd.f32 %v3652, %v4074
    %v4166 = vadd.f32 %v3653, %v4076
    %v4167 = vadd.f32 %v3654, %v4078
    %v4168 = vadd.f32 %v3655, %v4082
    %v4169 = vadd.f32 %v3656, %v4084
    %v4170 = vadd.f32 %v3657, %v4086
    %v4171 = vadd.f32 %v3658, %v4088
    %v4172 = vadd.f32 %v3659, %v4092
    %v4173 = vadd.f32 %v3660, %v4094
    %v4174 = vadd.f32 %v3661, %v4096
    %v4175 = vadd.f32 %v3662, %v4098
    %v4176 = vadd.f32 %v3663, %v4102
    %v4177 = vadd.f32 %v3664, %v4104
    %v4178 = vadd.f32 %v3665, %v4106
    %v4179 = vadd.f32 %v3666, %v4108
    %v4180 = vadd.f32 %v3667, %v4112
    %v4181 = vadd.f32 %v3668, %v4114
    %v4182 = vadd.f32 %v3669, %v4116
    %v4183 = vadd.f32 %v3670, %v4118
    %v4184 = vld [vmem:[%s0 + $0x18] sm:$0xff]
    %v4185 = vld [vmem:[%s0 + $0x20] sm:$0xff]
    %v4186 = vld [vmem:[%s0 + $0x28] sm:$0xff]
    %v4187 = vld [vmem:[%s0 + $0x30] sm:$0xff]
    %v4188 = vld [vmem:[%s0 + $0x38] sm:$0xff]
    %v4189 = vld [vmem:[%s0 + $0x40] sm:$0xff]
    %v4190 = vld [vmem:[%s0 + $0x48] sm:$0xff]
    %v4191 = vld [vmem:[%s0 + $0x50] sm:$0xff]
    %v4192 = vld [vmem:[%s0 + $0x58] sm:$0xff]
    %v4193 = vld [vmem:[%s0 + $0x60] sm:$0xff]
    %v4194 = vld [vmem:[%s0 + $0x68] sm:$0xff]
    %v4195 = vld [vmem:[%s0 + $0x70] sm:$0xff]
    %v4196 = vld [vmem:[%s0 + $0x78] sm:$0xff]
    %v4197 = vld [vmem:[%s0 + $0x80] sm:$0xff]
    %v4198 = vld [vmem:[%s0 + $0x88] sm:$0xff]
    %v4199 = vld [vmem:[%s0 + $0x90] sm:$0xff]
    %v4200 = vld [vmem:[%s0 + $0x98] sm:$0xff]
    %v4201 = vld [vmem:[%s0 + $0xa0] sm:$0xff]
    %v4202 = vld [vmem:[%s0 + $0xa8] sm:$0xff]
    %v4203 = vld [vmem:[%s0 + $0xb0] sm:$0xff]
    %v4204 = vld [vmem:[%s0 + $0xb8] sm:$0xff]
    %v4205 = vld [vmem:[%s0 + $0xc0] sm:$0xff]
    %v4206 = vld [vmem:[%s0 + $0xc8] sm:$0xff]
    %v4207 = vld [vmem:[%s0 + $0xd0] sm:$0xff]
    %v4208 = vld [vmem:[%s0 + $0xd8] sm:$0xff]
    %v4209 = vld [vmem:[%s0 + $0xe0] sm:$0xff]
    %v4210 = vld [vmem:[%s0 + $0xe8] sm:$0xff]
    %v4211 = vld [vmem:[%s0 + $0xf0] sm:$0xff]
    %v4212 = vld [vmem:[%s0 + $0xf8] sm:$0xff]
    %v4213 = vld [vmem:[%s0 + $0x100] sm:$0xff]
    %v4214 = vld [vmem:[%s0 + $0x108] sm:$0xff]
    %v4215 = vld [vmem:[%s0 + $0x110] sm:$0xff]
    %v4216 = vld [vmem:[%s0 + $0x118] sm:$0x11]
    %v4217 = vld [vmem:[#allocation2 + $0x500] sm:$0xff]
    %v4218 = vld [vmem:[#allocation2 + $0x508] sm:$0xff]
    %v4219 = vld [vmem:[#allocation2 + $0x510] sm:$0xff]
    %v4220 = vld [vmem:[#allocation2 + $0x518] sm:$0xff]
    %v4221 = vld [vmem:[#allocation2 + $0x520] sm:$0xff]
    %v4222 = vld [vmem:[#allocation2 + $0x528] sm:$0xff]
    %v4223 = vld [vmem:[#allocation2 + $0x530] sm:$0xff]
    %v4224 = vld [vmem:[#allocation2 + $0x538] sm:$0xff]
    %v4225 = vld [vmem:[#allocation2 + $0x540] sm:$0xff]
    %v4226 = vld [vmem:[#allocation2 + $0x548] sm:$0xff]
    %v4227 = vld [vmem:[#allocation2 + $0x550] sm:$0xff]
    %v4228 = vld [vmem:[#allocation2 + $0x558] sm:$0xff]
    %v4229 = vld [vmem:[#allocation2 + $0x560] sm:$0xff]
    %v4230 = vld [vmem:[#allocation2 + $0x568] sm:$0xff]
    %v4231 = vld [vmem:[#allocation2 + $0x570] sm:$0xff]
    %v4232 = vld [vmem:[#allocation2 + $0x578] sm:$0xff]
    %v4233 = vld [vmem:[#allocation2 + $0x580] sm:$0xff]
    %v4234 = vld [vmem:[#allocation2 + $0x588] sm:$0xff]
    %v4235 = vld [vmem:[#allocation2 + $0x590] sm:$0xff]
    %v4236 = vld [vmem:[#allocation2 + $0x598] sm:$0xff]
    %v4237 = vld [vmem:[#allocation2 + $0x5a0] sm:$0xff]
    %v4238 = vld [vmem:[#allocation2 + $0x5a8] sm:$0xff]
    %v4239 = vld [vmem:[#allocation2 + $0x5b0] sm:$0xff]
    %v4240 = vld [vmem:[#allocation2 + $0x5b8] sm:$0xff]
    %v4241 = vld [vmem:[#allocation2 + $0x5c0] sm:$0xff]
    %v4242 = vld [vmem:[#allocation2 + $0x5c8] sm:$0xff]
    %v4243 = vld [vmem:[#allocation2 + $0x5d0] sm:$0xff]
    %v4244 = vld [vmem:[#allocation2 + $0x5d8] sm:$0xff]
    %v4245 = vld [vmem:[#allocation2 + $0x5e0] sm:$0xff]
    %v4246 = vld [vmem:[#allocation2 + $0x5e8] sm:$0xff]
    %v4247 = vld [vmem:[#allocation2 + $0x5f0] sm:$0xff]
    %v4248 = vld [vmem:[#allocation2 + $0x5f8] sm:$0xff]
    %v4282 = vunpack.c.l.b16 %v4184
    %v4283 = vunpack.c.h.b16 %v4184
    %v4284 = vunpack.c.l.b16 %v4185
    %v4285 = vunpack.c.h.b16 %v4185
    %v4286 = vunpack.c.l.b16 %v4186
    %v4287 = vunpack.c.h.b16 %v4186
    %v4288 = vunpack.c.l.b16 %v4187
    %v4289 = vunpack.c.h.b16 %v4187
    %v4290 = vunpack.c.l.b16 %v4188
    %v4291 = vunpack.c.h.b16 %v4188
    %v4292 = vunpack.c.l.b16 %v4189
    %v4293 = vunpack.c.h.b16 %v4189
    %v4294 = vunpack.c.l.b16 %v4190
    %v4295 = vunpack.c.h.b16 %v4190
    %v4296 = vunpack.c.l.b16 %v4191
    %v4297 = vunpack.c.h.b16 %v4191
    %v4298 = vunpack.c.l.b16 %v4192
    %v4299 = vunpack.c.h.b16 %v4192
    %v4300 = vunpack.c.l.b16 %v4193
    %v4301 = vunpack.c.h.b16 %v4193
    %v4302 = vunpack.c.l.b16 %v4194
    %v4303 = vunpack.c.h.b16 %v4194
    %v4304 = vunpack.c.l.b16 %v4195
    %v4305 = vunpack.c.h.b16 %v4195
    %v4306 = vunpack.c.l.b16 %v4196
    %v4307 = vunpack.c.h.b16 %v4196
    %v4308 = vunpack.c.l.b16 %v4197
    %v4309 = vunpack.c.h.b16 %v4197
    %v4310 = vunpack.c.l.b16 %v4198
    %v4311 = vunpack.c.h.b16 %v4198
    %v4312 = vunpack.c.l.b16 %v4199
    %v4313 = vunpack.c.h.b16 %v4199
    %v4314 = vunpack.c.l.b16 %v4200
    %v4315 = vunpack.c.h.b16 %v4200
    %v4316 = vunpack.c.l.b16 %v4201
    %v4317 = vunpack.c.h.b16 %v4201
    %v4318 = vunpack.c.l.b16 %v4202
    %v4319 = vunpack.c.h.b16 %v4202
    %v4320 = vunpack.c.l.b16 %v4203
    %v4321 = vunpack.c.h.b16 %v4203
    %v4322 = vunpack.c.l.b16 %v4204
    %v4323 = vunpack.c.h.b16 %v4204
    %v4324 = vunpack.c.l.b16 %v4205
    %v4325 = vunpack.c.h.b16 %v4205
    %v4326 = vunpack.c.l.b16 %v4206
    %v4327 = vunpack.c.h.b16 %v4206
    %v4328 = vunpack.c.l.b16 %v4207
    %v4329 = vunpack.c.h.b16 %v4207
    %v4330 = vunpack.c.l.b16 %v4208
    %v4331 = vunpack.c.h.b16 %v4208
    %v4332 = vunpack.c.l.b16 %v4209
    %v4333 = vunpack.c.h.b16 %v4209
    %v4334 = vunpack.c.l.b16 %v4210
    %v4335 = vunpack.c.h.b16 %v4210
    %v4336 = vunpack.c.l.b16 %v4211
    %v4337 = vunpack.c.h.b16 %v4211
    %v4338 = vunpack.c.l.b16 %v4212
    %v4339 = vunpack.c.h.b16 %v4212
    %v4340 = vunpack.c.l.b16 %v4213
    %v4341 = vunpack.c.h.b16 %v4213
    %v4342 = vunpack.c.l.b16 %v4214
    %v4343 = vunpack.c.h.b16 %v4214
    %v4344 = vunpack.c.l.b16 %v4215
    %v4345 = vunpack.c.h.b16 %v4215
    %v4346 = vunpack.c.l.b16 %v4216
    %v4347 = vunpack.c.h.b16 %v4216
    %v4348 = vpack.c.b16 %v4284, %v4282
    %v4349 = vpack.c.b16 %v4285, %v4283
    %v4350 = vpack.c.b16 %v4288, %v4286
    %v4351 = vpack.c.b16 %v4289, %v4287
    %v4352 = vpack.c.b16 %v4292, %v4290
    %v4353 = vpack.c.b16 %v4293, %v4291
    %v4354 = vpack.c.b16 %v4296, %v4294
    %v4355 = vpack.c.b16 %v4297, %v4295
    %v4356 = vpack.c.b16 %v4300, %v4298
    %v4357 = vpack.c.b16 %v4301, %v4299
    %v4358 = vpack.c.b16 %v4304, %v4302
    %v4359 = vpack.c.b16 %v4305, %v4303
    %v4360 = vpack.c.b16 %v4308, %v4306
    %v4361 = vpack.c.b16 %v4309, %v4307
    %v4362 = vpack.c.b16 %v4312, %v4310
    %v4363 = vpack.c.b16 %v4313, %v4311
    %v4364 = vpack.c.b16 %v4316, %v4314
    %v4365 = vpack.c.b16 %v4317, %v4315
    %v4366 = vpack.c.b16 %v4320, %v4318
    %v4367 = vpack.c.b16 %v4321, %v4319
    %v4368 = vpack.c.b16 %v4324, %v4322
    %v4369 = vpack.c.b16 %v4325, %v4323
    %v4370 = vpack.c.b16 %v4328, %v4326
    %v4371 = vpack.c.b16 %v4329, %v4327
    %v4372 = vpack.c.b16 %v4332, %v4330
    %v4373 = vpack.c.b16 %v4333, %v4331
    %v4374 = vpack.c.b16 %v4336, %v4334
    %v4375 = vpack.c.b16 %v4337, %v4335
    %v4376 = vpack.c.b16 %v4340, %v4338
    %v4377 = vpack.c.b16 %v4341, %v4339
    %v4378 = vpack.c.b16 %v4344, %v4342
    %v4379 = vpack.c.b16 %v4345, %v4343
    %v4380 = vpack.c.b16 %v4346, %v4346
    %v4381 = vpack.c.b16 %v4347, %v4347
    %v4383 = vshrl.u32 %v4348, 16
    %v4385 = vshll.u32 %v4348, 16
    %v4387 = vrot.slane %v4385, 1
    %v4388 = vor.u32 %v4383, %v4387
    %v4390 = vshll.u32 %v4350, 16
    %v4392 = vrot.slane %v4390, 1
    %v4393 = vsel %vm2006, %v4388, %v4392
    %v4395 = vshrl.u32 %v4349, 16
    %v4397 = vshll.u32 %v4349, 16
    %v4399 = vrot.slane %v4397, 1
    %v4400 = vor.u32 %v4395, %v4399
    %v4402 = vshll.u32 %v4351, 16
    %v4404 = vrot.slane %v4402, 1
    %v4405 = vsel %vm2006, %v4400, %v4404
    %v4406 = vshrl.u32 %v4350, 16
    %v4408 = vor.u32 %v4406, %v4392
    %v4410 = vshll.u32 %v4352, 16
    %v4412 = vrot.slane %v4410, 1
    %v4413 = vsel %vm2006, %v4408, %v4412
    %v4414 = vshrl.u32 %v4351, 16
    %v4416 = vor.u32 %v4414, %v4404
    %v4418 = vshll.u32 %v4353, 16
    %v4420 = vrot.slane %v4418, 1
    %v4421 = vsel %vm2006, %v4416, %v4420
    %v4422 = vshrl.u32 %v4352, 16
    %v4424 = vor.u32 %v4422, %v4412
    %v4426 = vshll.u32 %v4354, 16
    %v4428 = vrot.slane %v4426, 1
    %v4429 = vsel %vm2006, %v4424, %v4428
    %v4430 = vshrl.u32 %v4353, 16
    %v4432 = vor.u32 %v4430, %v4420
    %v4434 = vshll.u32 %v4355, 16
    %v4436 = vrot.slane %v4434, 1
    %v4437 = vsel %vm2006, %v4432, %v4436
    %v4438 = vshrl.u32 %v4354, 16
    %v4440 = vor.u32 %v4438, %v4428
    %v4442 = vshll.u32 %v4356, 16
    %v4444 = vrot.slane %v4442, 1
    %v4445 = vsel %vm2006, %v4440, %v4444
    %v4446 = vshrl.u32 %v4355, 16
    %v4448 = vor.u32 %v4446, %v4436
    %v4450 = vshll.u32 %v4357, 16
    %v4452 = vrot.slane %v4450, 1
    %v4453 = vsel %vm2006, %v4448, %v4452
    %v4454 = vshrl.u32 %v4356, 16
    %v4456 = vor.u32 %v4454, %v4444
    %v4458 = vshll.u32 %v4358, 16
    %v4460 = vrot.slane %v4458, 1
    %v4461 = vsel %vm2006, %v4456, %v4460
    %v4462 = vshrl.u32 %v4357, 16
    %v4464 = vor.u32 %v4462, %v4452
    %v4466 = vshll.u32 %v4359, 16
    %v4468 = vrot.slane %v4466, 1
    %v4469 = vsel %vm2006, %v4464, %v4468
    %v4470 = vshrl.u32 %v4358, 16
    %v4472 = vor.u32 %v4470, %v4460
    %v4474 = vshll.u32 %v4360, 16
    %v4476 = vrot.slane %v4474, 1
    %v4477 = vsel %vm2006, %v4472, %v4476
    %v4478 = vshrl.u32 %v4359, 16
    %v4480 = vor.u32 %v4478, %v4468
    %v4482 = vshll.u32 %v4361, 16
    %v4484 = vrot.slane %v4482, 1
    %v4485 = vsel %vm2006, %v4480, %v4484
    %v4486 = vshrl.u32 %v4360, 16
    %v4488 = vor.u32 %v4486, %v4476
    %v4490 = vshll.u32 %v4362, 16
    %v4492 = vrot.slane %v4490, 1
    %v4493 = vsel %vm2006, %v4488, %v4492
    %v4494 = vshrl.u32 %v4361, 16
    %v4496 = vor.u32 %v4494, %v4484
    %v4498 = vshll.u32 %v4363, 16
    %v4500 = vrot.slane %v4498, 1
    %v4501 = vsel %vm2006, %v4496, %v4500
    %v4502 = vshrl.u32 %v4362, 16
    %v4504 = vor.u32 %v4502, %v4492
    %v4506 = vshll.u32 %v4364, 16
    %v4508 = vrot.slane %v4506, 1
    %v4509 = vsel %vm2006, %v4504, %v4508
    %v4510 = vshrl.u32 %v4363, 16
    %v4512 = vor.u32 %v4510, %v4500
    %v4514 = vshll.u32 %v4365, 16
    %v4516 = vrot.slane %v4514, 1
    %v4517 = vsel %vm2006, %v4512, %v4516
    %v4518 = vshrl.u32 %v4364, 16
    %v4520 = vor.u32 %v4518, %v4508
    %v4522 = vshll.u32 %v4366, 16
    %v4524 = vrot.slane %v4522, 1
    %v4525 = vsel %vm2006, %v4520, %v4524
    %v4526 = vshrl.u32 %v4365, 16
    %v4528 = vor.u32 %v4526, %v4516
    %v4530 = vshll.u32 %v4367, 16
    %v4532 = vrot.slane %v4530, 1
    %v4533 = vsel %vm2006, %v4528, %v4532
    %v4534 = vshrl.u32 %v4366, 16
    %v4536 = vor.u32 %v4534, %v4524
    %v4538 = vshll.u32 %v4368, 16
    %v4540 = vrot.slane %v4538, 1
    %v4541 = vsel %vm2006, %v4536, %v4540
    %v4542 = vshrl.u32 %v4367, 16
    %v4544 = vor.u32 %v4542, %v4532
    %v4546 = vshll.u32 %v4369, 16
    %v4548 = vrot.slane %v4546, 1
    %v4549 = vsel %vm2006, %v4544, %v4548
    %v4550 = vshrl.u32 %v4368, 16
    %v4552 = vor.u32 %v4550, %v4540
    %v4554 = vshll.u32 %v4370, 16
    %v4556 = vrot.slane %v4554, 1
    %v4557 = vsel %vm2006, %v4552, %v4556
    %v4558 = vshrl.u32 %v4369, 16
    %v4560 = vor.u32 %v4558, %v4548
    %v4562 = vshll.u32 %v4371, 16
    %v4564 = vrot.slane %v4562, 1
    %v4565 = vsel %vm2006, %v4560, %v4564
    %v4566 = vshrl.u32 %v4370, 16
    %v4568 = vor.u32 %v4566, %v4556
    %v4570 = vshll.u32 %v4372, 16
    %v4572 = vrot.slane %v4570, 1
    %v4573 = vsel %vm2006, %v4568, %v4572
    %v4574 = vshrl.u32 %v4371, 16
    %v4576 = vor.u32 %v4574, %v4564
    %v4578 = vshll.u32 %v4373, 16
    %v4580 = vrot.slane %v4578, 1
    %v4581 = vsel %vm2006, %v4576, %v4580
    %v4582 = vshrl.u32 %v4372, 16
    %v4584 = vor.u32 %v4582, %v4572
    %v4586 = vshll.u32 %v4374, 16
    %v4588 = vrot.slane %v4586, 1
    %v4589 = vsel %vm2006, %v4584, %v4588
    %v4590 = vshrl.u32 %v4373, 16
    %v4592 = vor.u32 %v4590, %v4580
    %v4594 = vshll.u32 %v4375, 16
    %v4596 = vrot.slane %v4594, 1
    %v4597 = vsel %vm2006, %v4592, %v4596
    %v4598 = vshrl.u32 %v4374, 16
    %v4600 = vor.u32 %v4598, %v4588
    %v4602 = vshll.u32 %v4376, 16
    %v4604 = vrot.slane %v4602, 1
    %v4605 = vsel %vm2006, %v4600, %v4604
    %v4606 = vshrl.u32 %v4375, 16
    %v4608 = vor.u32 %v4606, %v4596
    %v4610 = vshll.u32 %v4377, 16
    %v4612 = vrot.slane %v4610, 1
    %v4613 = vsel %vm2006, %v4608, %v4612
    %v4614 = vshrl.u32 %v4376, 16
    %v4616 = vor.u32 %v4614, %v4604
    %v4618 = vshll.u32 %v4378, 16
    %v4620 = vrot.slane %v4618, 1
    %v4621 = vsel %vm2006, %v4616, %v4620
    %v4622 = vshrl.u32 %v4377, 16
    %v4624 = vor.u32 %v4622, %v4612
    %v4626 = vshll.u32 %v4379, 16
    %v4628 = vrot.slane %v4626, 1
    %v4629 = vsel %vm2006, %v4624, %v4628
    %v4630 = vshrl.u32 %v4378, 16
    %v4632 = vor.u32 %v4630, %v4620
    %v4634 = vshll.u32 %v4380, 16
    %v4636 = vrot.slane %v4634, 1
    %v4637 = vsel %vm2006, %v4632, %v4636
    %v4638 = vshrl.u32 %v4379, 16
    %v4640 = vor.u32 %v4638, %v4628
    %v4642 = vshll.u32 %v4381, 16
    %v4644 = vrot.slane %v4642, 1
    %v4645 = vsel %vm2006, %v4640, %v4644
    %v4710 = vunpack.c.l.b16 %v4217
    %v4711 = vunpack.c.h.b16 %v4217
    %v4712 = vunpack.c.l.b16 %v4218
    %v4713 = vunpack.c.h.b16 %v4218
    %v4714 = vunpack.c.l.b16 %v4219
    %v4715 = vunpack.c.h.b16 %v4219
    %v4716 = vunpack.c.l.b16 %v4220
    %v4717 = vunpack.c.h.b16 %v4220
    %v4718 = vunpack.c.l.b16 %v4221
    %v4719 = vunpack.c.h.b16 %v4221
    %v4720 = vunpack.c.l.b16 %v4222
    %v4721 = vunpack.c.h.b16 %v4222
    %v4722 = vunpack.c.l.b16 %v4223
    %v4723 = vunpack.c.h.b16 %v4223
    %v4724 = vunpack.c.l.b16 %v4224
    %v4725 = vunpack.c.h.b16 %v4224
    %v4726 = vunpack.c.l.b16 %v4225
    %v4727 = vunpack.c.h.b16 %v4225
    %v4728 = vunpack.c.l.b16 %v4226
    %v4729 = vunpack.c.h.b16 %v4226
    %v4730 = vunpack.c.l.b16 %v4227
    %v4731 = vunpack.c.h.b16 %v4227
    %v4732 = vunpack.c.l.b16 %v4228
    %v4733 = vunpack.c.h.b16 %v4228
    %v4734 = vunpack.c.l.b16 %v4229
    %v4735 = vunpack.c.h.b16 %v4229
    %v4736 = vunpack.c.l.b16 %v4230
    %v4737 = vunpack.c.h.b16 %v4230
    %v4738 = vunpack.c.l.b16 %v4231
    %v4739 = vunpack.c.h.b16 %v4231
    %v4740 = vunpack.c.l.b16 %v4232
    %v4741 = vunpack.c.h.b16 %v4232
    %v4742 = vunpack.c.l.b16 %v4233
    %v4743 = vunpack.c.h.b16 %v4233
    %v4744 = vunpack.c.l.b16 %v4234
    %v4745 = vunpack.c.h.b16 %v4234
    %v4746 = vunpack.c.l.b16 %v4235
    %v4747 = vunpack.c.h.b16 %v4235
    %v4748 = vunpack.c.l.b16 %v4236
    %v4749 = vunpack.c.h.b16 %v4236
    %v4750 = vunpack.c.l.b16 %v4237
    %v4751 = vunpack.c.h.b16 %v4237
    %v4752 = vunpack.c.l.b16 %v4238
    %v4753 = vunpack.c.h.b16 %v4238
    %v4754 = vunpack.c.l.b16 %v4239
    %v4755 = vunpack.c.h.b16 %v4239
    %v4756 = vunpack.c.l.b16 %v4240
    %v4757 = vunpack.c.h.b16 %v4240
    %v4758 = vunpack.c.l.b16 %v4241
    %v4759 = vunpack.c.h.b16 %v4241
    %v4760 = vunpack.c.l.b16 %v4242
    %v4761 = vunpack.c.h.b16 %v4242
    %v4762 = vunpack.c.l.b16 %v4243
    %v4763 = vunpack.c.h.b16 %v4243
    %v4764 = vunpack.c.l.b16 %v4244
    %v4765 = vunpack.c.h.b16 %v4244
    %v4766 = vunpack.c.l.b16 %v4245
    %v4767 = vunpack.c.h.b16 %v4245
    %v4768 = vunpack.c.l.b16 %v4246
    %v4769 = vunpack.c.h.b16 %v4246
    %v4770 = vunpack.c.l.b16 %v4247
    %v4771 = vunpack.c.h.b16 %v4247
    %v4772 = vunpack.c.l.b16 %v4248
    %v4773 = vunpack.c.h.b16 %v4248
    %v4774 = vpack.c.b16 %v4712, %v4710
    %v4775 = vpack.c.b16 %v4713, %v4711
    %v4776 = vpack.c.b16 %v4716, %v4714
    %v4777 = vpack.c.b16 %v4717, %v4715
    %v4778 = vpack.c.b16 %v4720, %v4718
    %v4779 = vpack.c.b16 %v4721, %v4719
    %v4780 = vpack.c.b16 %v4724, %v4722
    %v4781 = vpack.c.b16 %v4725, %v4723
    %v4782 = vpack.c.b16 %v4728, %v4726
    %v4783 = vpack.c.b16 %v4729, %v4727
    %v4784 = vpack.c.b16 %v4732, %v4730
    %v4785 = vpack.c.b16 %v4733, %v4731
    %v4786 = vpack.c.b16 %v4736, %v4734
    %v4787 = vpack.c.b16 %v4737, %v4735
    %v4788 = vpack.c.b16 %v4740, %v4738
    %v4789 = vpack.c.b16 %v4741, %v4739
    %v4790 = vpack.c.b16 %v4744, %v4742
    %v4791 = vpack.c.b16 %v4745, %v4743
    %v4792 = vpack.c.b16 %v4748, %v4746
    %v4793 = vpack.c.b16 %v4749, %v4747
    %v4794 = vpack.c.b16 %v4752, %v4750
    %v4795 = vpack.c.b16 %v4753, %v4751
    %v4796 = vpack.c.b16 %v4756, %v4754
    %v4797 = vpack.c.b16 %v4757, %v4755
    %v4798 = vpack.c.b16 %v4760, %v4758
    %v4799 = vpack.c.b16 %v4761, %v4759
    %v4800 = vpack.c.b16 %v4764, %v4762
    %v4801 = vpack.c.b16 %v4765, %v4763
    %v4802 = vpack.c.b16 %v4768, %v4766
    %v4803 = vpack.c.b16 %v4769, %v4767
    %v4804 = vpack.c.b16 %v4772, %v4770
    %v4805 = vpack.c.b16 %v4773, %v4771
    %4838 = vmatprep.subr.bf16.mxu0 %v4789
    %4839 = vmatpush1.bf16.msra.mxu0 %v4788
    %4840 = vmatprep.subr.bf16.mxu0 %v4787
    %4841 = vmatpush1.bf16.msra.mxu0 %v4786
    %4842 = vmatprep.subr.bf16.mxu0 %v4785
    %4843 = vmatpush1.bf16.msra.mxu0 %v4784
    %4844 = vmatprep.subr.bf16.mxu0 %v4783
    %4845 = vmatpush1.bf16.msra.mxu0 %v4782
    %4846 = vmatprep.subr.bf16.mxu0 %v4781
    %4847 = vmatpush1.bf16.msra.mxu0 %v4780
    %4848 = vmatprep.subr.bf16.mxu0 %v4779
    %4849 = vmatpush1.bf16.msra.mxu0 %v4778
    %4850 = vmatprep.subr.bf16.mxu0 %v4777
    %4851 = vmatpush1.bf16.msra.mxu0 %v4776
    %4852 = vmatprep.subr.bf16.mxu0 %v4775
    %4853 = vmatpush1.bf16.msra.mxu0 %v4774
    %4854 = vmatprep.subr.bf16.mxu0 %v4805
    %4855 = vmatpush2.bf16.msra.mxu0 %v4804
    %4856 = vmatprep.subr.bf16.mxu0 %v4803
    %4857 = vmatpush2.bf16.msra.mxu0 %v4802
    %4858 = vmatprep.subr.bf16.mxu0 %v4801
    %4859 = vmatpush2.bf16.msra.mxu0 %v4800
    %4860 = vmatprep.subr.bf16.mxu0 %v4799
    %4861 = vmatpush2.bf16.msra.mxu0 %v4798
    %4862 = vmatprep.subr.bf16.mxu0 %v4797
    %4863 = vmatpush2.bf16.msra.mxu0 %v4796
    %4864 = vmatprep.subr.bf16.mxu0 %v4795
    %4865 = vmatpush2.bf16.msra.mxu0 %v4794
    %4866 = vmatprep.subr.bf16.mxu0 %v4793
    %4867 = vmatpush2.bf16.msra.mxu0 %v4792
    %4868 = vmatprep.subr.bf16.mxu0 %v4791
    %4869 = vmatpush2.bf16.msra.mxu0 %v4790
    %4870 = vmatprep.mubr.bf16.mxu0 %v4405
    %4871 = vmatmul.mubr.bf16.gmra.mxu0 %v4393
    %v4872 = vpop.f32.mrf.mxu0
    %v4873 = vadd.f32 0.0, %v4872
    %v4874 = vpop.f32.mrf.mxu0
    %v4875 = vadd.f32 0.0, %v4874
    %v4876 = vpop.f32.mrf.mxu0
    %v4877 = vadd.f32 0.0, %v4876
    %v4878 = vpop.f32.mrf.mxu0
    %v4879 = vadd.f32 0.0, %v4878
    %4880 = vmatprep.mubr.bf16.mxu0 %v4421
    %4881 = vmatmul.mubr.bf16.gmra.mxu0 %v4413
    %v4882 = vpop.f32.mrf.mxu0
    %v4883 = vadd.f32 0.0, %v4882
    %v4884 = vpop.f32.mrf.mxu0
    %v4885 = vadd.f32 0.0, %v4884
    %v4886 = vpop.f32.mrf.mxu0
    %v4887 = vadd.f32 0.0, %v4886
    %v4888 = vpop.f32.mrf.mxu0
    %v4889 = vadd.f32 0.0, %v4888
    %4890 = vmatprep.mubr.bf16.mxu0 %v4437
    %4891 = vmatmul.mubr.bf16.gmra.mxu0 %v4429
    %v4892 = vpop.f32.mrf.mxu0
    %v4893 = vadd.f32 0.0, %v4892
    %v4894 = vpop.f32.mrf.mxu0
    %v4895 = vadd.f32 0.0, %v4894
    %v4896 = vpop.f32.mrf.mxu0
    %v4897 = vadd.f32 0.0, %v4896
    %v4898 = vpop.f32.mrf.mxu0
    %v4899 = vadd.f32 0.0, %v4898
    %4900 = vmatprep.mubr.bf16.mxu0 %v4453
    %4901 = vmatmul.mubr.bf16.gmra.mxu0 %v4445
    %v4902 = vpop.f32.mrf.mxu0
    %v4903 = vadd.f32 0.0, %v4902
    %v4904 = vpop.f32.mrf.mxu0
    %v4905 = vadd.f32 0.0, %v4904
    %v4906 = vpop.f32.mrf.mxu0
    %v4907 = vadd.f32 0.0, %v4906
    %v4908 = vpop.f32.mrf.mxu0
    %v4909 = vadd.f32 0.0, %v4908
    %4910 = vmatprep.mubr.bf16.mxu0 %v4469
    %4911 = vmatmul.mubr.bf16.gmra.mxu0 %v4461
    %v4912 = vpop.f32.mrf.mxu0
    %v4913 = vadd.f32 0.0, %v4912
    %v4914 = vpop.f32.mrf.mxu0
    %v4915 = vadd.f32 0.0, %v4914
    %v4916 = vpop.f32.mrf.mxu0
    %v4917 = vadd.f32 0.0, %v4916
    %v4918 = vpop.f32.mrf.mxu0
    %v4919 = vadd.f32 0.0, %v4918
    %4920 = vmatprep.mubr.bf16.mxu0 %v4485
    %4921 = vmatmul.mubr.bf16.gmra.mxu0 %v4477
    %v4922 = vpop.f32.mrf.mxu0
    %v4923 = vadd.f32 0.0, %v4922
    %v4924 = vpop.f32.mrf.mxu0
    %v4925 = vadd.f32 0.0, %v4924
    %v4926 = vpop.f32.mrf.mxu0
    %v4927 = vadd.f32 0.0, %v4926
    %v4928 = vpop.f32.mrf.mxu0
    %v4929 = vadd.f32 0.0, %v4928
    %4930 = vmatprep.mubr.bf16.mxu0 %v4501
    %4931 = vmatmul.mubr.bf16.gmra.mxu0 %v4493
    %v4932 = vpop.f32.mrf.mxu0
    %v4933 = vadd.f32 0.0, %v4932
    %v4934 = vpop.f32.mrf.mxu0
    %v4935 = vadd.f32 0.0, %v4934
    %v4936 = vpop.f32.mrf.mxu0
    %v4937 = vadd.f32 0.0, %v4936
    %v4938 = vpop.f32.mrf.mxu0
    %v4939 = vadd.f32 0.0, %v4938
    %4940 = vmatprep.mubr.bf16.mxu0 %v4517
    %4941 = vmatmul.mubr.bf16.gmra.mxu0 %v4509
    %v4942 = vpop.f32.mrf.mxu0
    %v4943 = vadd.f32 0.0, %v4942
    %v4944 = vpop.f32.mrf.mxu0
    %v4945 = vadd.f32 0.0, %v4944
    %v4946 = vpop.f32.mrf.mxu0
    %v4947 = vadd.f32 0.0, %v4946
    %v4948 = vpop.f32.mrf.mxu0
    %v4949 = vadd.f32 0.0, %v4948
    %4950 = vmatprep.mubr.bf16.mxu0 %v4533
    %4951 = vmatmul.mubr.bf16.gmra.mxu0 %v4525
    %v4952 = vpop.f32.mrf.mxu0
    %v4953 = vadd.f32 0.0, %v4952
    %v4954 = vpop.f32.mrf.mxu0
    %v4955 = vadd.f32 0.0, %v4954
    %v4956 = vpop.f32.mrf.mxu0
    %v4957 = vadd.f32 0.0, %v4956
    %v4958 = vpop.f32.mrf.mxu0
    %v4959 = vadd.f32 0.0, %v4958
    %4960 = vmatprep.mubr.bf16.mxu0 %v4549
    %4961 = vmatmul.mubr.bf16.gmra.mxu0 %v4541
    %v4962 = vpop.f32.mrf.mxu0
    %v4963 = vadd.f32 0.0, %v4962
    %v4964 = vpop.f32.mrf.mxu0
    %v4965 = vadd.f32 0.0, %v4964
    %v4966 = vpop.f32.mrf.mxu0
    %v4967 = vadd.f32 0.0, %v4966
    %v4968 = vpop.f32.mrf.mxu0
    %v4969 = vadd.f32 0.0, %v4968
    %4970 = vmatprep.mubr.bf16.mxu0 %v4565
    %4971 = vmatmul.mubr.bf16.gmra.mxu0 %v4557
    %v4972 = vpop.f32.mrf.mxu0
    %v4973 = vadd.f32 0.0, %v4972
    %v4974 = vpop.f32.mrf.mxu0
    %v4975 = vadd.f32 0.0, %v4974
    %v4976 = vpop.f32.mrf.mxu0
    %v4977 = vadd.f32 0.0, %v4976
    %v4978 = vpop.f32.mrf.mxu0
    %v4979 = vadd.f32 0.0, %v4978
    %4980 = vmatprep.mubr.bf16.mxu0 %v4581
    %4981 = vmatmul.mubr.bf16.gmra.mxu0 %v4573
    %v4982 = vpop.f32.mrf.mxu0
    %v4983 = vadd.f32 0.0, %v4982
    %v4984 = vpop.f32.mrf.mxu0
    %v4985 = vadd.f32 0.0, %v4984
    %v4986 = vpop.f32.mrf.mxu0
    %v4987 = vadd.f32 0.0, %v4986
    %v4988 = vpop.f32.mrf.mxu0
    %v4989 = vadd.f32 0.0, %v4988
    %4990 = vmatprep.mubr.bf16.mxu0 %v4597
    %4991 = vmatmul.mubr.bf16.gmra.mxu0 %v4589
    %v4992 = vpop.f32.mrf.mxu0
    %v4993 = vadd.f32 0.0, %v4992
    %v4994 = vpop.f32.mrf.mxu0
    %v4995 = vadd.f32 0.0, %v4994
    %v4996 = vpop.f32.mrf.mxu0
    %v4997 = vadd.f32 0.0, %v4996
    %v4998 = vpop.f32.mrf.mxu0
    %v4999 = vadd.f32 0.0, %v4998
    %5000 = vmatprep.mubr.bf16.mxu0 %v4613
    %5001 = vmatmul.mubr.bf16.gmra.mxu0 %v4605
    %v5002 = vpop.f32.mrf.mxu0
    %v5003 = vadd.f32 0.0, %v5002
    %v5004 = vpop.f32.mrf.mxu0
    %v5005 = vadd.f32 0.0, %v5004
    %v5006 = vpop.f32.mrf.mxu0
    %v5007 = vadd.f32 0.0, %v5006
    %v5008 = vpop.f32.mrf.mxu0
    %v5009 = vadd.f32 0.0, %v5008
    %5010 = vmatprep.mubr.bf16.mxu0 %v4629
    %5011 = vmatmul.mubr.bf16.gmra.mxu0 %v4621
    %v5012 = vpop.f32.mrf.mxu0
    %v5013 = vadd.f32 0.0, %v5012
    %v5014 = vpop.f32.mrf.mxu0
    %v5015 = vadd.f32 0.0, %v5014
    %v5016 = vpop.f32.mrf.mxu0
    %v5017 = vadd.f32 0.0, %v5016
    %v5018 = vpop.f32.mrf.mxu0
    %v5019 = vadd.f32 0.0, %v5018
    %5020 = vmatprep.mubr.bf16.mxu0 %v4645
    %5021 = vmatmul.mubr.bf16.gmra.mxu0 %v4637
    %v5022 = vpop.f32.mrf.mxu0
    %v5023 = vadd.f32 0.0, %v5022
    %v5024 = vpop.f32.mrf.mxu0
    %v5025 = vadd.f32 0.0, %v5024
    %v5026 = vpop.f32.mrf.mxu0
    %v5027 = vadd.f32 0.0, %v5026
    %v5028 = vpop.f32.mrf.mxu0
    %v5029 = vadd.f32 0.0, %v5028
    %5030 = vdwg.mxu0
    %v5031 = vadd.f32 %v4120, %v4873
    %v5032 = vadd.f32 %v4121, %v4875
    %v5033 = vadd.f32 %v4122, %v4877
    %v5034 = vadd.f32 %v4123, %v4879
    %v5035 = vadd.f32 %v4124, %v4883
    %v5036 = vadd.f32 %v4125, %v4885
    %v5037 = vadd.f32 %v4126, %v4887
    %v5038 = vadd.f32 %v4127, %v4889
    %v5039 = vadd.f32 %v4128, %v4893
    %v5040 = vadd.f32 %v4129, %v4895
    %v5041 = vadd.f32 %v4130, %v4897
    %v5042 = vadd.f32 %v4131, %v4899
    %v5043 = vadd.f32 %v4132, %v4903
    %v5044 = vadd.f32 %v4133, %v4905
    %v5045 = vadd.f32 %v4134, %v4907
    %v5046 = vadd.f32 %v4135, %v4909
    %v5047 = vadd.f32 %v4136, %v4913
    %v5048 = vadd.f32 %v4137, %v4915
    %v5049 = vadd.f32 %v4138, %v4917
    %v5050 = vadd.f32 %v4139, %v4919
    %v5051 = vadd.f32 %v4140, %v4923
    %v5052 = vadd.f32 %v4141, %v4925
    %v5053 = vadd.f32 %v4142, %v4927
    %v5054 = vadd.f32 %v4143, %v4929
    %v5055 = vadd.f32 %v4144, %v4933
    %v5056 = vadd.f32 %v4145, %v4935
    %v5057 = vadd.f32 %v4146, %v4937
    %v5058 = vadd.f32 %v4147, %v4939
    %v5059 = vadd.f32 %v4148, %v4943
    %v5060 = vadd.f32 %v4149, %v4945
    %v5061 = vadd.f32 %v4150, %v4947
    %v5062 = vadd.f32 %v4151, %v4949
    %v5063 = vadd.f32 %v4152, %v4953
    %v5064 = vadd.f32 %v4153, %v4955
    %v5065 = vadd.f32 %v4154, %v4957
    %v5066 = vadd.f32 %v4155, %v4959
    %v5067 = vadd.f32 %v4156, %v4963
    %v5068 = vadd.f32 %v4157, %v4965
    %v5069 = vadd.f32 %v4158, %v4967
    %v5070 = vadd.f32 %v4159, %v4969
    %v5071 = vadd.f32 %v4160, %v4973
    %v5072 = vadd.f32 %v4161, %v4975
    %v5073 = vadd.f32 %v4162, %v4977
    %v5074 = vadd.f32 %v4163, %v4979
    %v5075 = vadd.f32 %v4164, %v4983
    %v5076 = vadd.f32 %v4165, %v4985
    %v5077 = vadd.f32 %v4166, %v4987
    %v5078 = vadd.f32 %v4167, %v4989
    %v5079 = vadd.f32 %v4168, %v4993
    %v5080 = vadd.f32 %v4169, %v4995
    %v5081 = vadd.f32 %v4170, %v4997
    %v5082 = vadd.f32 %v4171, %v4999
    %v5083 = vadd.f32 %v4172, %v5003
    %v5084 = vadd.f32 %v4173, %v5005
    %v5085 = vadd.f32 %v4174, %v5007
    %v5086 = vadd.f32 %v4175, %v5009
    %v5087 = vadd.f32 %v4176, %v5013
    %v5088 = vadd.f32 %v4177, %v5015
    %v5089 = vadd.f32 %v4178, %v5017
    %v5090 = vadd.f32 %v4179, %v5019
    %v5091 = vadd.f32 %v4180, %v5023
    %v5092 = vadd.f32 %v4181, %v5025
    %v5093 = vadd.f32 %v4182, %v5027
    %v5094 = vadd.f32 %v4183, %v5029
    %v5095 = vld [vmem:[%s0 + $0x20] sm:$0x88]
    %v5096 = vld [vmem:[%s0 + $0x28] sm:$0xff]
    %v5097 = vld [vmem:[%s0 + $0x30] sm:$0xff]
    %v5098 = vld [vmem:[%s0 + $0x38] sm:$0xff]
    %v5099 = vld [vmem:[%s0 + $0x40] sm:$0xff]
    %v5100 = vld [vmem:[%s0 + $0x48] sm:$0xff]
    %v5101 = vld [vmem:[%s0 + $0x50] sm:$0xff]
    %v5102 = vld [vmem:[%s0 + $0x58] sm:$0xff]
    %v5103 = vld [vmem:[%s0 + $0x60] sm:$0xff]
    %v5104 = vld [vmem:[%s0 + $0x68] sm:$0xff]
    %v5105 = vld [vmem:[%s0 + $0x70] sm:$0xff]
    %v5106 = vld [vmem:[%s0 + $0x78] sm:$0xff]
    %v5107 = vld [vmem:[%s0 + $0x80] sm:$0xff]
    %v5108 = vld [vmem:[%s0 + $0x88] sm:$0xff]
    %v5109 = vld [vmem:[%s0 + $0x90] sm:$0xff]
    %v5110 = vld [vmem:[%s0 + $0x98] sm:$0xff]
    %v5111 = vld [vmem:[%s0 + $0xa0] sm:$0xff]
    %v5112 = vld [vmem:[%s0 + $0xa8] sm:$0xff]
    %v5113 = vld [vmem:[%s0 + $0xb0] sm:$0xff]
    %v5114 = vld [vmem:[%s0 + $0xb8] sm:$0xff]
    %v5115 = vld [vmem:[%s0 + $0xc0] sm:$0xff]
    %v5116 = vld [vmem:[%s0 + $0xc8] sm:$0xff]
    %v5117 = vld [vmem:[%s0 + $0xd0] sm:$0xff]
    %v5118 = vld [vmem:[%s0 + $0xd8] sm:$0xff]
    %v5119 = vld [vmem:[%s0 + $0xe0] sm:$0xff]
    %v5120 = vld [vmem:[%s0 + $0xe8] sm:$0xff]
    %v5121 = vld [vmem:[%s0 + $0xf0] sm:$0xff]
    %v5122 = vld [vmem:[%s0 + $0xf8] sm:$0xff]
    %v5123 = vld [vmem:[%s0 + $0x100] sm:$0xff]
    %v5124 = vld [vmem:[%s0 + $0x108] sm:$0xff]
    %v5125 = vld [vmem:[%s0 + $0x110] sm:$0xff]
    %v5126 = vld [vmem:[%s0 + $0x118] sm:$0xff]
    %v5127 = vld [vmem:[%s0 + $0x120] sm:$0xff]
    %v5128 = vld [vmem:[#allocation2 + $0x600] sm:$0xff]
    %v5129 = vld [vmem:[#allocation2 + $0x608] sm:$0xff]
    %v5130 = vld [vmem:[#allocation2 + $0x610] sm:$0xff]
    %v5131 = vld [vmem:[#allocation2 + $0x618] sm:$0xff]
    %v5132 = vld [vmem:[#allocation2 + $0x620] sm:$0xff]
    %v5133 = vld [vmem:[#allocation2 + $0x628] sm:$0xff]
    %v5134 = vld [vmem:[#allocation2 + $0x630] sm:$0xff]
    %v5135 = vld [vmem:[#allocation2 + $0x638] sm:$0xff]
    %v5136 = vld [vmem:[#allocation2 + $0x640] sm:$0xff]
    %v5137 = vld [vmem:[#allocation2 + $0x648] sm:$0xff]
    %v5138 = vld [vmem:[#allocation2 + $0x650] sm:$0xff]
    %v5139 = vld [vmem:[#allocation2 + $0x658] sm:$0xff]
    %v5140 = vld [vmem:[#allocation2 + $0x660] sm:$0xff]
    %v5141 = vld [vmem:[#allocation2 + $0x668] sm:$0xff]
    %v5142 = vld [vmem:[#allocation2 + $0x670] sm:$0xff]
    %v5143 = vld [vmem:[#allocation2 + $0x678] sm:$0xff]
    %v5144 = vld [vmem:[#allocation2 + $0x680] sm:$0xff]
    %v5145 = vld [vmem:[#allocation2 + $0x688] sm:$0xff]
    %v5146 = vld [vmem:[#allocation2 + $0x690] sm:$0xff]
    %v5147 = vld [vmem:[#allocation2 + $0x698] sm:$0xff]
    %v5148 = vld [vmem:[#allocation2 + $0x6a0] sm:$0xff]
    %v5149 = vld [vmem:[#allocation2 + $0x6a8] sm:$0xff]
    %v5150 = vld [vmem:[#allocation2 + $0x6b0] sm:$0xff]
    %v5151 = vld [vmem:[#allocation2 + $0x6b8] sm:$0xff]
    %v5152 = vld [vmem:[#allocation2 + $0x6c0] sm:$0xff]
    %v5153 = vld [vmem:[#allocation2 + $0x6c8] sm:$0xff]
    %v5154 = vld [vmem:[#allocation2 + $0x6d0] sm:$0xff]
    %v5155 = vld [vmem:[#allocation2 + $0x6d8] sm:$0xff]
    %v5156 = vld [vmem:[#allocation2 + $0x6e0] sm:$0xff]
    %v5157 = vld [vmem:[#allocation2 + $0x6e8] sm:$0xff]
    %v5158 = vld [vmem:[#allocation2 + $0x6f0] sm:$0xff]
    %v5159 = vld [vmem:[#allocation2 + $0x6f8] sm:$0xff]
    %v5193 = vunpack.c.l.b16 %v5095
    %v5194 = vunpack.c.h.b16 %v5095
    %v5195 = vunpack.c.l.b16 %v5096
    %v5196 = vunpack.c.h.b16 %v5096
    %v5197 = vunpack.c.l.b16 %v5097
    %v5198 = vunpack.c.h.b16 %v5097
    %v5199 = vunpack.c.l.b16 %v5098
    %v5200 = vunpack.c.h.b16 %v5098
    %v5201 = vunpack.c.l.b16 %v5099
    %v5202 = vunpack.c.h.b16 %v5099
    %v5203 = vunpack.c.l.b16 %v5100
    %v5204 = vunpack.c.h.b16 %v5100
    %v5205 = vunpack.c.l.b16 %v5101
    %v5206 = vunpack.c.h.b16 %v5101
    %v5207 = vunpack.c.l.b16 %v5102
    %v5208 = vunpack.c.h.b16 %v5102
    %v5209 = vunpack.c.l.b16 %v5103
    %v5210 = vunpack.c.h.b16 %v5103
    %v5211 = vunpack.c.l.b16 %v5104
    %v5212 = vunpack.c.h.b16 %v5104
    %v5213 = vunpack.c.l.b16 %v5105
    %v5214 = vunpack.c.h.b16 %v5105
    %v5215 = vunpack.c.l.b16 %v5106
    %v5216 = vunpack.c.h.b16 %v5106
    %v5217 = vunpack.c.l.b16 %v5107
    %v5218 = vunpack.c.h.b16 %v5107
    %v5219 = vunpack.c.l.b16 %v5108
    %v5220 = vunpack.c.h.b16 %v5108
    %v5221 = vunpack.c.l.b16 %v5109
    %v5222 = vunpack.c.h.b16 %v5109
    %v5223 = vunpack.c.l.b16 %v5110
    %v5224 = vunpack.c.h.b16 %v5110
    %v5225 = vunpack.c.l.b16 %v5111
    %v5226 = vunpack.c.h.b16 %v5111
    %v5227 = vunpack.c.l.b16 %v5112
    %v5228 = vunpack.c.h.b16 %v5112
    %v5229 = vunpack.c.l.b16 %v5113
    %v5230 = vunpack.c.h.b16 %v5113
    %v5231 = vunpack.c.l.b16 %v5114
    %v5232 = vunpack.c.h.b16 %v5114
    %v5233 = vunpack.c.l.b16 %v5115
    %v5234 = vunpack.c.h.b16 %v5115
    %v5235 = vunpack.c.l.b16 %v5116
    %v5236 = vunpack.c.h.b16 %v5116
    %v5237 = vunpack.c.l.b16 %v5117
    %v5238 = vunpack.c.h.b16 %v5117
    %v5239 = vunpack.c.l.b16 %v5118
    %v5240 = vunpack.c.h.b16 %v5118
    %v5241 = vunpack.c.l.b16 %v5119
    %v5242 = vunpack.c.h.b16 %v5119
    %v5243 = vunpack.c.l.b16 %v5120
    %v5244 = vunpack.c.h.b16 %v5120
    %v5245 = vunpack.c.l.b16 %v5121
    %v5246 = vunpack.c.h.b16 %v5121
    %v5247 = vunpack.c.l.b16 %v5122
    %v5248 = vunpack.c.h.b16 %v5122
    %v5249 = vunpack.c.l.b16 %v5123
    %v5250 = vunpack.c.h.b16 %v5123
    %v5251 = vunpack.c.l.b16 %v5124
    %v5252 = vunpack.c.h.b16 %v5124
    %v5253 = vunpack.c.l.b16 %v5125
    %v5254 = vunpack.c.h.b16 %v5125
    %v5255 = vunpack.c.l.b16 %v5126
    %v5256 = vunpack.c.h.b16 %v5126
    %v5257 = vunpack.c.l.b16 %v5127
    %v5258 = vunpack.c.h.b16 %v5127
    %v5259 = vpack.c.b16 %v5195, %v5193
    %v5260 = vpack.c.b16 %v5196, %v5194
    %v5261 = vpack.c.b16 %v5199, %v5197
    %v5262 = vpack.c.b16 %v5200, %v5198
    %v5263 = vpack.c.b16 %v5203, %v5201
    %v5264 = vpack.c.b16 %v5204, %v5202
    %v5265 = vpack.c.b16 %v5207, %v5205
    %v5266 = vpack.c.b16 %v5208, %v5206
    %v5267 = vpack.c.b16 %v5211, %v5209
    %v5268 = vpack.c.b16 %v5212, %v5210
    %v5269 = vpack.c.b16 %v5215, %v5213
    %v5270 = vpack.c.b16 %v5216, %v5214
    %v5271 = vpack.c.b16 %v5219, %v5217
    %v5272 = vpack.c.b16 %v5220, %v5218
    %v5273 = vpack.c.b16 %v5223, %v5221
    %v5274 = vpack.c.b16 %v5224, %v5222
    %v5275 = vpack.c.b16 %v5227, %v5225
    %v5276 = vpack.c.b16 %v5228, %v5226
    %v5277 = vpack.c.b16 %v5231, %v5229
    %v5278 = vpack.c.b16 %v5232, %v5230
    %v5279 = vpack.c.b16 %v5235, %v5233
    %v5280 = vpack.c.b16 %v5236, %v5234
    %v5281 = vpack.c.b16 %v5239, %v5237
    %v5282 = vpack.c.b16 %v5240, %v5238
    %v5283 = vpack.c.b16 %v5243, %v5241
    %v5284 = vpack.c.b16 %v5244, %v5242
    %v5285 = vpack.c.b16 %v5247, %v5245
    %v5286 = vpack.c.b16 %v5248, %v5246
    %v5287 = vpack.c.b16 %v5251, %v5249
    %v5288 = vpack.c.b16 %v5252, %v5250
    %v5289 = vpack.c.b16 %v5255, %v5253
    %v5290 = vpack.c.b16 %v5256, %v5254
    %v5291 = vpack.c.b16 %v5257, %v5257
    %v5292 = vpack.c.b16 %v5258, %v5258
    %v5294 = vshrl.u32 %v5259, 16
    %v5296 = vrot.slane %v5294, 3
    %v5297 = vshll.u32 %v5259, 16
    %v5299 = vrot.slane %v5297, 4
    %v5300 = vor.u32 %v5296, %v5299
    %v5302 = vshrl.u32 %v5261, 16
    %v5304 = vrot.slane %v5302, 3
    %v5305 = vshll.u32 %v5261, 16
    %v5307 = vrot.slane %v5305, 4
    %v5308 = vor.u32 %v5304, %v5307
    %v5309 = vsel %vm1118, %v5300, %v5308
    %v5311 = vshrl.u32 %v5260, 16
    %v5313 = vrot.slane %v5311, 3
    %v5314 = vshll.u32 %v5260, 16
    %v5316 = vrot.slane %v5314, 4
    %v5317 = vor.u32 %v5313, %v5316
    %v5319 = vshrl.u32 %v5262, 16
    %v5321 = vrot.slane %v5319, 3
    %v5322 = vshll.u32 %v5262, 16
    %v5324 = vrot.slane %v5322, 4
    %v5325 = vor.u32 %v5321, %v5324
    %v5326 = vsel %vm1118, %v5317, %v5325
    %v5328 = vshrl.u32 %v5263, 16
    %v5330 = vrot.slane %v5328, 3
    %v5331 = vshll.u32 %v5263, 16
    %v5333 = vrot.slane %v5331, 4
    %v5334 = vor.u32 %v5330, %v5333
    %v5335 = vsel %vm1118, %v5308, %v5334
    %v5337 = vshrl.u32 %v5264, 16
    %v5339 = vrot.slane %v5337, 3
    %v5340 = vshll.u32 %v5264, 16
    %v5342 = vrot.slane %v5340, 4
    %v5343 = vor.u32 %v5339, %v5342
    %v5344 = vsel %vm1118, %v5325, %v5343
    %v5346 = vshrl.u32 %v5265, 16
    %v5348 = vrot.slane %v5346, 3
    %v5349 = vshll.u32 %v5265, 16
    %v5351 = vrot.slane %v5349, 4
    %v5352 = vor.u32 %v5348, %v5351
    %v5353 = vsel %vm1118, %v5334, %v5352
    %v5355 = vshrl.u32 %v5266, 16
    %v5357 = vrot.slane %v5355, 3
    %v5358 = vshll.u32 %v5266, 16
    %v5360 = vrot.slane %v5358, 4
    %v5361 = vor.u32 %v5357, %v5360
    %v5362 = vsel %vm1118, %v5343, %v5361
    %v5364 = vshrl.u32 %v5267, 16
    %v5366 = vrot.slane %v5364, 3
    %v5367 = vshll.u32 %v5267, 16
    %v5369 = vrot.slane %v5367, 4
    %v5370 = vor.u32 %v5366, %v5369
    %v5371 = vsel %vm1118, %v5352, %v5370
    %v5373 = vshrl.u32 %v5268, 16
    %v5375 = vrot.slane %v5373, 3
    %v5376 = vshll.u32 %v5268, 16
    %v5378 = vrot.slane %v5376, 4
    %v5379 = vor.u32 %v5375, %v5378
    %v5380 = vsel %vm1118, %v5361, %v5379
    %v5382 = vshrl.u32 %v5269, 16
    %v5384 = vrot.slane %v5382, 3
    %v5385 = vshll.u32 %v5269, 16
    %v5387 = vrot.slane %v5385, 4
    %v5388 = vor.u32 %v5384, %v5387
    %v5389 = vsel %vm1118, %v5370, %v5388
    %v5391 = vshrl.u32 %v5270, 16
    %v5393 = vrot.slane %v5391, 3
    %v5394 = vshll.u32 %v5270, 16
    %v5396 = vrot.slane %v5394, 4
    %v5397 = vor.u32 %v5393, %v5396
    %v5398 = vsel %vm1118, %v5379, %v5397
    %v5400 = vshrl.u32 %v5271, 16
    %v5402 = vrot.slane %v5400, 3
    %v5403 = vshll.u32 %v5271, 16
    %v5405 = vrot.slane %v5403, 4
    %v5406 = vor.u32 %v5402, %v5405
    %v5407 = vsel %vm1118, %v5388, %v5406
    %v5409 = vshrl.u32 %v5272, 16
    %v5411 = vrot.slane %v5409, 3
    %v5412 = vshll.u32 %v5272, 16
    %v5414 = vrot.slane %v5412, 4
    %v5415 = vor.u32 %v5411, %v5414
    %v5416 = vsel %vm1118, %v5397, %v5415
    %v5418 = vshrl.u32 %v5273, 16
    %v5420 = vrot.slane %v5418, 3
    %v5421 = vshll.u32 %v5273, 16
    %v5423 = vrot.slane %v5421, 4
    %v5424 = vor.u32 %v5420, %v5423
    %v5425 = vsel %vm1118, %v5406, %v5424
    %v5427 = vshrl.u32 %v5274, 16
    %v5429 = vrot.slane %v5427, 3
    %v5430 = vshll.u32 %v5274, 16
    %v5432 = vrot.slane %v5430, 4
    %v5433 = vor.u32 %v5429, %v5432
    %v5434 = vsel %vm1118, %v5415, %v5433
    %v5436 = vshrl.u32 %v5275, 16
    %v5438 = vrot.slane %v5436, 3
    %v5439 = vshll.u32 %v5275, 16
    %v5441 = vrot.slane %v5439, 4
    %v5442 = vor.u32 %v5438, %v5441
    %v5443 = vsel %vm1118, %v5424, %v5442
    %v5445 = vshrl.u32 %v5276, 16
    %v5447 = vrot.slane %v5445, 3
    %v5448 = vshll.u32 %v5276, 16
    %v5450 = vrot.slane %v5448, 4
    %v5451 = vor.u32 %v5447, %v5450
    %v5452 = vsel %vm1118, %v5433, %v5451
    %v5454 = vshrl.u32 %v5277, 16
    %v5456 = vrot.slane %v5454, 3
    %v5457 = vshll.u32 %v5277, 16
    %v5459 = vrot.slane %v5457, 4
    %v5460 = vor.u32 %v5456, %v5459
    %v5461 = vsel %vm1118, %v5442, %v5460
    %v5463 = vshrl.u32 %v5278, 16
    %v5465 = vrot.slane %v5463, 3
    %v5466 = vshll.u32 %v5278, 16
    %v5468 = vrot.slane %v5466, 4
    %v5469 = vor.u32 %v5465, %v5468
    %v5470 = vsel %vm1118, %v5451, %v5469
    %v5472 = vshrl.u32 %v5279, 16
    %v5474 = vrot.slane %v5472, 3
    %v5475 = vshll.u32 %v5279, 16
    %v5477 = vrot.slane %v5475, 4
    %v5478 = vor.u32 %v5474, %v5477
    %v5479 = vsel %vm1118, %v5460, %v5478
    %v5481 = vshrl.u32 %v5280, 16
    %v5483 = vrot.slane %v5481, 3
    %v5484 = vshll.u32 %v5280, 16
    %v5486 = vrot.slane %v5484, 4
    %v5487 = vor.u32 %v5483, %v5486
    %v5488 = vsel %vm1118, %v5469, %v5487
    %v5490 = vshrl.u32 %v5281, 16
    %v5492 = vrot.slane %v5490, 3
    %v5493 = vshll.u32 %v5281, 16
    %v5495 = vrot.slane %v5493, 4
    %v5496 = vor.u32 %v5492, %v5495
    %v5497 = vsel %vm1118, %v5478, %v5496
    %v5499 = vshrl.u32 %v5282, 16
    %v5501 = vrot.slane %v5499, 3
    %v5502 = vshll.u32 %v5282, 16
    %v5504 = vrot.slane %v5502, 4
    %v5505 = vor.u32 %v5501, %v5504
    %v5506 = vsel %vm1118, %v5487, %v5505
    %v5508 = vshrl.u32 %v5283, 16
    %v5510 = vrot.slane %v5508, 3
    %v5511 = vshll.u32 %v5283, 16
    %v5513 = vrot.slane %v5511, 4
    %v5514 = vor.u32 %v5510, %v5513
    %v5515 = vsel %vm1118, %v5496, %v5514
    %v5517 = vshrl.u32 %v5284, 16
    %v5519 = vrot.slane %v5517, 3
    %v5520 = vshll.u32 %v5284, 16
    %v5522 = vrot.slane %v5520, 4
    %v5523 = vor.u32 %v5519, %v5522
    %v5524 = vsel %vm1118, %v5505, %v5523
    %v5526 = vshrl.u32 %v5285, 16
    %v5528 = vrot.slane %v5526, 3
    %v5529 = vshll.u32 %v5285, 16
    %v5531 = vrot.slane %v5529, 4
    %v5532 = vor.u32 %v5528, %v5531
    %v5533 = vsel %vm1118, %v5514, %v5532
    %v5535 = vshrl.u32 %v5286, 16
    %v5537 = vrot.slane %v5535, 3
    %v5538 = vshll.u32 %v5286, 16
    %v5540 = vrot.slane %v5538, 4
    %v5541 = vor.u32 %v5537, %v5540
    %v5542 = vsel %vm1118, %v5523, %v5541
    %v5544 = vshrl.u32 %v5287, 16
    %v5546 = vrot.slane %v5544, 3
    %v5547 = vshll.u32 %v5287, 16
    %v5549 = vrot.slane %v5547, 4
    %v5550 = vor.u32 %v5546, %v5549
    %v5551 = vsel %vm1118, %v5532, %v5550
    %v5553 = vshrl.u32 %v5288, 16
    %v5555 = vrot.slane %v5553, 3
    %v5556 = vshll.u32 %v5288, 16
    %v5558 = vrot.slane %v5556, 4
    %v5559 = vor.u32 %v5555, %v5558
    %v5560 = vsel %vm1118, %v5541, %v5559
    %v5562 = vshrl.u32 %v5289, 16
    %v5564 = vrot.slane %v5562, 3
    %v5565 = vshll.u32 %v5289, 16
    %v5567 = vrot.slane %v5565, 4
    %v5568 = vor.u32 %v5564, %v5567
    %v5569 = vsel %vm1118, %v5550, %v5568
    %v5571 = vshrl.u32 %v5290, 16
    %v5573 = vrot.slane %v5571, 3
    %v5574 = vshll.u32 %v5290, 16
    %v5576 = vrot.slane %v5574, 4
    %v5577 = vor.u32 %v5573, %v5576
    %v5578 = vsel %vm1118, %v5559, %v5577
    %v5580 = vshrl.u32 %v5291, 16
    %v5582 = vrot.slane %v5580, 3
    %v5583 = vshll.u32 %v5291, 16
    %v5585 = vrot.slane %v5583, 4
    %v5586 = vor.u32 %v5582, %v5585
    %v5587 = vsel %vm1118, %v5568, %v5586
    %v5589 = vshrl.u32 %v5292, 16
    %v5591 = vrot.slane %v5589, 3
    %v5592 = vshll.u32 %v5292, 16
    %v5594 = vrot.slane %v5592, 4
    %v5595 = vor.u32 %v5591, %v5594
    %v5596 = vsel %vm1118, %v5577, %v5595
    %v5661 = vunpack.c.l.b16 %v5128
    %v5662 = vunpack.c.h.b16 %v5128
    %v5663 = vunpack.c.l.b16 %v5129
    %v5664 = vunpack.c.h.b16 %v5129
    %v5665 = vunpack.c.l.b16 %v5130
    %v5666 = vunpack.c.h.b16 %v5130
    %v5667 = vunpack.c.l.b16 %v5131
    %v5668 = vunpack.c.h.b16 %v5131
    %v5669 = vunpack.c.l.b16 %v5132
    %v5670 = vunpack.c.h.b16 %v5132
    %v5671 = vunpack.c.l.b16 %v5133
    %v5672 = vunpack.c.h.b16 %v5133
    %v5673 = vunpack.c.l.b16 %v5134
    %v5674 = vunpack.c.h.b16 %v5134
    %v5675 = vunpack.c.l.b16 %v5135
    %v5676 = vunpack.c.h.b16 %v5135
    %v5677 = vunpack.c.l.b16 %v5136
    %v5678 = vunpack.c.h.b16 %v5136
    %v5679 = vunpack.c.l.b16 %v5137
    %v5680 = vunpack.c.h.b16 %v5137
    %v5681 = vunpack.c.l.b16 %v5138
    %v5682 = vunpack.c.h.b16 %v5138
    %v5683 = vunpack.c.l.b16 %v5139
    %v5684 = vunpack.c.h.b16 %v5139
    %v5685 = vunpack.c.l.b16 %v5140
    %v5686 = vunpack.c.h.b16 %v5140
    %v5687 = vunpack.c.l.b16 %v5141
    %v5688 = vunpack.c.h.b16 %v5141
    %v5689 = vunpack.c.l.b16 %v5142
    %v5690 = vunpack.c.h.b16 %v5142
    %v5691 = vunpack.c.l.b16 %v5143
    %v5692 = vunpack.c.h.b16 %v5143
    %v5693 = vunpack.c.l.b16 %v5144
    %v5694 = vunpack.c.h.b16 %v5144
    %v5695 = vunpack.c.l.b16 %v5145
    %v5696 = vunpack.c.h.b16 %v5145
    %v5697 = vunpack.c.l.b16 %v5146
    %v5698 = vunpack.c.h.b16 %v5146
    %v5699 = vunpack.c.l.b16 %v5147
    %v5700 = vunpack.c.h.b16 %v5147
    %v5701 = vunpack.c.l.b16 %v5148
    %v5702 = vunpack.c.h.b16 %v5148
    %v5703 = vunpack.c.l.b16 %v5149
    %v5704 = vunpack.c.h.b16 %v5149
    %v5705 = vunpack.c.l.b16 %v5150
    %v5706 = vunpack.c.h.b16 %v5150
    %v5707 = vunpack.c.l.b16 %v5151
    %v5708 = vunpack.c.h.b16 %v5151
    %v5709 = vunpack.c.l.b16 %v5152
    %v5710 = vunpack.c.h.b16 %v5152
    %v5711 = vunpack.c.l.b16 %v5153
    %v5712 = vunpack.c.h.b16 %v5153
    %v5713 = vunpack.c.l.b16 %v5154
    %v5714 = vunpack.c.h.b16 %v5154
    %v5715 = vunpack.c.l.b16 %v5155
    %v5716 = vunpack.c.h.b16 %v5155
    %v5717 = vunpack.c.l.b16 %v5156
    %v5718 = vunpack.c.h.b16 %v5156
    %v5719 = vunpack.c.l.b16 %v5157
    %v5720 = vunpack.c.h.b16 %v5157
    %v5721 = vunpack.c.l.b16 %v5158
    %v5722 = vunpack.c.h.b16 %v5158
    %v5723 = vunpack.c.l.b16 %v5159
    %v5724 = vunpack.c.h.b16 %v5159
    %v5725 = vpack.c.b16 %v5663, %v5661
    %v5726 = vpack.c.b16 %v5664, %v5662
    %v5727 = vpack.c.b16 %v5667, %v5665
    %v5728 = vpack.c.b16 %v5668, %v5666
    %v5729 = vpack.c.b16 %v5671, %v5669
    %v5730 = vpack.c.b16 %v5672, %v5670
    %v5731 = vpack.c.b16 %v5675, %v5673
    %v5732 = vpack.c.b16 %v5676, %v5674
    %v5733 = vpack.c.b16 %v5679, %v5677
    %v5734 = vpack.c.b16 %v5680, %v5678
    %v5735 = vpack.c.b16 %v5683, %v5681
    %v5736 = vpack.c.b16 %v5684, %v5682
    %v5737 = vpack.c.b16 %v5687, %v5685
    %v5738 = vpack.c.b16 %v5688, %v5686
    %v5739 = vpack.c.b16 %v5691, %v5689
    %v5740 = vpack.c.b16 %v5692, %v5690
    %v5741 = vpack.c.b16 %v5695, %v5693
    %v5742 = vpack.c.b16 %v5696, %v5694
    %v5743 = vpack.c.b16 %v5699, %v5697
    %v5744 = vpack.c.b16 %v5700, %v5698
    %v5745 = vpack.c.b16 %v5703, %v5701
    %v5746 = vpack.c.b16 %v5704, %v5702
    %v5747 = vpack.c.b16 %v5707, %v5705
    %v5748 = vpack.c.b16 %v5708, %v5706
    %v5749 = vpack.c.b16 %v5711, %v5709
    %v5750 = vpack.c.b16 %v5712, %v5710
    %v5751 = vpack.c.b16 %v5715, %v5713
    %v5752 = vpack.c.b16 %v5716, %v5714
    %v5753 = vpack.c.b16 %v5719, %v5717
    %v5754 = vpack.c.b16 %v5720, %v5718
    %v5755 = vpack.c.b16 %v5723, %v5721
    %v5756 = vpack.c.b16 %v5724, %v5722
    %5789 = vmatprep.subr.bf16.mxu0 %v5740
    %5790 = vmatpush1.bf16.msra.mxu0 %v5739
    %5791 = vmatprep.subr.bf16.mxu0 %v5738
    %5792 = vmatpush1.bf16.msra.mxu0 %v5737
    %5793 = vmatprep.subr.bf16.mxu0 %v5736
    %5794 = vmatpush1.bf16.msra.mxu0 %v5735
    %5795 = vmatprep.subr.bf16.mxu0 %v5734
    %5796 = vmatpush1.bf16.msra.mxu0 %v5733
    %5797 = vmatprep.subr.bf16.mxu0 %v5732
    %5798 = vmatpush1.bf16.msra.mxu0 %v5731
    %5799 = vmatprep.subr.bf16.mxu0 %v5730
    %5800 = vmatpush1.bf16.msra.mxu0 %v5729
    %5801 = vmatprep.subr.bf16.mxu0 %v5728
    %5802 = vmatpush1.bf16.msra.mxu0 %v5727
    %5803 = vmatprep.subr.bf16.mxu0 %v5726
    %5804 = vmatpush1.bf16.msra.mxu0 %v5725
    %5805 = vmatprep.subr.bf16.mxu0 %v5756
    %5806 = vmatpush2.bf16.msra.mxu0 %v5755
    %5807 = vmatprep.subr.bf16.mxu0 %v5754
    %5808 = vmatpush2.bf16.msra.mxu0 %v5753
    %5809 = vmatprep.subr.bf16.mxu0 %v5752
    %5810 = vmatpush2.bf16.msra.mxu0 %v5751
    %5811 = vmatprep.subr.bf16.mxu0 %v5750
    %5812 = vmatpush2.bf16.msra.mxu0 %v5749
    %5813 = vmatprep.subr.bf16.mxu0 %v5748
    %5814 = vmatpush2.bf16.msra.mxu0 %v5747
    %5815 = vmatprep.subr.bf16.mxu0 %v5746
    %5816 = vmatpush2.bf16.msra.mxu0 %v5745
    %5817 = vmatprep.subr.bf16.mxu0 %v5744
    %5818 = vmatpush2.bf16.msra.mxu0 %v5743
    %5819 = vmatprep.subr.bf16.mxu0 %v5742
    %5820 = vmatpush2.bf16.msra.mxu0 %v5741
    %5821 = vmatprep.mubr.bf16.mxu0 %v5326
    %5822 = vmatmul.mubr.bf16.gmra.mxu0 %v5309
    %v5823 = vpop.f32.mrf.mxu0
    %v5824 = vadd.f32 0.0, %v5823
    %v5825 = vpop.f32.mrf.mxu0
    %v5826 = vadd.f32 0.0, %v5825
    %v5827 = vpop.f32.mrf.mxu0
    %v5828 = vadd.f32 0.0, %v5827
    %v5829 = vpop.f32.mrf.mxu0
    %v5830 = vadd.f32 0.0, %v5829
    %5831 = vmatprep.mubr.bf16.mxu0 %v5344
    %5832 = vmatmul.mubr.bf16.gmra.mxu0 %v5335
    %v5833 = vpop.f32.mrf.mxu0
    %v5834 = vadd.f32 0.0, %v5833
    %v5835 = vpop.f32.mrf.mxu0
    %v5836 = vadd.f32 0.0, %v5835
    %v5837 = vpop.f32.mrf.mxu0
    %v5838 = vadd.f32 0.0, %v5837
    %v5839 = vpop.f32.mrf.mxu0
    %v5840 = vadd.f32 0.0, %v5839
    %5841 = vmatprep.mubr.bf16.mxu0 %v5362
    %5842 = vmatmul.mubr.bf16.gmra.mxu0 %v5353
    %v5843 = vpop.f32.mrf.mxu0
    %v5844 = vadd.f32 0.0, %v5843
    %v5845 = vpop.f32.mrf.mxu0
    %v5846 = vadd.f32 0.0, %v5845
    %v5847 = vpop.f32.mrf.mxu0
    %v5848 = vadd.f32 0.0, %v5847
    %v5849 = vpop.f32.mrf.mxu0
    %v5850 = vadd.f32 0.0, %v5849
    %5851 = vmatprep.mubr.bf16.mxu0 %v5380
    %5852 = vmatmul.mubr.bf16.gmra.mxu0 %v5371
    %v5853 = vpop.f32.mrf.mxu0
    %v5854 = vadd.f32 0.0, %v5853
    %v5855 = vpop.f32.mrf.mxu0
    %v5856 = vadd.f32 0.0, %v5855
    %v5857 = vpop.f32.mrf.mxu0
    %v5858 = vadd.f32 0.0, %v5857
    %v5859 = vpop.f32.mrf.mxu0
    %v5860 = vadd.f32 0.0, %v5859
    %5861 = vmatprep.mubr.bf16.mxu0 %v5398
    %5862 = vmatmul.mubr.bf16.gmra.mxu0 %v5389
    %v5863 = vpop.f32.mrf.mxu0
    %v5864 = vadd.f32 0.0, %v5863
    %v5865 = vpop.f32.mrf.mxu0
    %v5866 = vadd.f32 0.0, %v5865
    %v5867 = vpop.f32.mrf.mxu0
    %v5868 = vadd.f32 0.0, %v5867
    %v5869 = vpop.f32.mrf.mxu0
    %v5870 = vadd.f32 0.0, %v5869
    %5871 = vmatprep.mubr.bf16.mxu0 %v5416
    %5872 = vmatmul.mubr.bf16.gmra.mxu0 %v5407
    %v5873 = vpop.f32.mrf.mxu0
    %v5874 = vadd.f32 0.0, %v5873
    %v5875 = vpop.f32.mrf.mxu0
    %v5876 = vadd.f32 0.0, %v5875
    %v5877 = vpop.f32.mrf.mxu0
    %v5878 = vadd.f32 0.0, %v5877
    %v5879 = vpop.f32.mrf.mxu0
    %v5880 = vadd.f32 0.0, %v5879
    %5881 = vmatprep.mubr.bf16.mxu0 %v5434
    %5882 = vmatmul.mubr.bf16.gmra.mxu0 %v5425
    %v5883 = vpop.f32.mrf.mxu0
    %v5884 = vadd.f32 0.0, %v5883
    %v5885 = vpop.f32.mrf.mxu0
    %v5886 = vadd.f32 0.0, %v5885
    %v5887 = vpop.f32.mrf.mxu0
    %v5888 = vadd.f32 0.0, %v5887
    %v5889 = vpop.f32.mrf.mxu0
    %v5890 = vadd.f32 0.0, %v5889
    %5891 = vmatprep.mubr.bf16.mxu0 %v5452
    %5892 = vmatmul.mubr.bf16.gmra.mxu0 %v5443
    %v5893 = vpop.f32.mrf.mxu0
    %v5894 = vadd.f32 0.0, %v5893
    %v5895 = vpop.f32.mrf.mxu0
    %v5896 = vadd.f32 0.0, %v5895
    %v5897 = vpop.f32.mrf.mxu0
    %v5898 = vadd.f32 0.0, %v5897
    %v5899 = vpop.f32.mrf.mxu0
    %v5900 = vadd.f32 0.0, %v5899
    %5901 = vmatprep.mubr.bf16.mxu0 %v5470
    %5902 = vmatmul.mubr.bf16.gmra.mxu0 %v5461
    %v5903 = vpop.f32.mrf.mxu0
    %v5904 = vadd.f32 0.0, %v5903
    %v5905 = vpop.f32.mrf.mxu0
    %v5906 = vadd.f32 0.0, %v5905
    %v5907 = vpop.f32.mrf.mxu0
    %v5908 = vadd.f32 0.0, %v5907
    %v5909 = vpop.f32.mrf.mxu0
    %v5910 = vadd.f32 0.0, %v5909
    %5911 = vmatprep.mubr.bf16.mxu0 %v5488
    %5912 = vmatmul.mubr.bf16.gmra.mxu0 %v5479
    %v5913 = vpop.f32.mrf.mxu0
    %v5914 = vadd.f32 0.0, %v5913
    %v5915 = vpop.f32.mrf.mxu0
    %v5916 = vadd.f32 0.0, %v5915
    %v5917 = vpop.f32.mrf.mxu0
    %v5918 = vadd.f32 0.0, %v5917
    %v5919 = vpop.f32.mrf.mxu0
    %v5920 = vadd.f32 0.0, %v5919
    %5921 = vmatprep.mubr.bf16.mxu0 %v5506
    %5922 = vmatmul.mubr.bf16.gmra.mxu0 %v5497
    %v5923 = vpop.f32.mrf.mxu0
    %v5924 = vadd.f32 0.0, %v5923
    %v5925 = vpop.f32.mrf.mxu0
    %v5926 = vadd.f32 0.0, %v5925
    %v5927 = vpop.f32.mrf.mxu0
    %v5928 = vadd.f32 0.0, %v5927
    %v5929 = vpop.f32.mrf.mxu0
    %v5930 = vadd.f32 0.0, %v5929
    %5931 = vmatprep.mubr.bf16.mxu0 %v5524
    %5932 = vmatmul.mubr.bf16.gmra.mxu0 %v5515
    %v5933 = vpop.f32.mrf.mxu0
    %v5934 = vadd.f32 0.0, %v5933
    %v5935 = vpop.f32.mrf.mxu0
    %v5936 = vadd.f32 0.0, %v5935
    %v5937 = vpop.f32.mrf.mxu0
    %v5938 = vadd.f32 0.0, %v5937
    %v5939 = vpop.f32.mrf.mxu0
    %v5940 = vadd.f32 0.0, %v5939
    %5941 = vmatprep.mubr.bf16.mxu0 %v5542
    %5942 = vmatmul.mubr.bf16.gmra.mxu0 %v5533
    %v5943 = vpop.f32.mrf.mxu0
    %v5944 = vadd.f32 0.0, %v5943
    %v5945 = vpop.f32.mrf.mxu0
    %v5946 = vadd.f32 0.0, %v5945
    %v5947 = vpop.f32.mrf.mxu0
    %v5948 = vadd.f32 0.0, %v5947
    %v5949 = vpop.f32.mrf.mxu0
    %v5950 = vadd.f32 0.0, %v5949
    %5951 = vmatprep.mubr.bf16.mxu0 %v5560
    %5952 = vmatmul.mubr.bf16.gmra.mxu0 %v5551
    %v5953 = vpop.f32.mrf.mxu0
    %v5954 = vadd.f32 0.0, %v5953
    %v5955 = vpop.f32.mrf.mxu0
    %v5956 = vadd.f32 0.0, %v5955
    %v5957 = vpop.f32.mrf.mxu0
    %v5958 = vadd.f32 0.0, %v5957
    %v5959 = vpop.f32.mrf.mxu0
    %v5960 = vadd.f32 0.0, %v5959
    %5961 = vmatprep.mubr.bf16.mxu0 %v5578
    %5962 = vmatmul.mubr.bf16.gmra.mxu0 %v5569
    %v5963 = vpop.f32.mrf.mxu0
    %v5964 = vadd.f32 0.0, %v5963
    %v5965 = vpop.f32.mrf.mxu0
    %v5966 = vadd.f32 0.0, %v5965
    %v5967 = vpop.f32.mrf.mxu0
    %v5968 = vadd.f32 0.0, %v5967
    %v5969 = vpop.f32.mrf.mxu0
    %v5970 = vadd.f32 0.0, %v5969
    %5971 = vmatprep.mubr.bf16.mxu0 %v5596
    %5972 = vmatmul.mubr.bf16.gmra.mxu0 %v5587
    %v5973 = vpop.f32.mrf.mxu0
    %v5974 = vadd.f32 0.0, %v5973
    %v5975 = vpop.f32.mrf.mxu0
    %v5976 = vadd.f32 0.0, %v5975
    %v5977 = vpop.f32.mrf.mxu0
    %v5978 = vadd.f32 0.0, %v5977
    %v5979 = vpop.f32.mrf.mxu0
    %v5980 = vadd.f32 0.0, %v5979
    %5981 = vdwg.mxu0
    %v5982 = vadd.f32 %v5031, %v5824
    %v5983 = vadd.f32 %v5032, %v5826
    %v5984 = vadd.f32 %v5033, %v5828
    %v5985 = vadd.f32 %v5034, %v5830
    %v5986 = vadd.f32 %v5035, %v5834
    %v5987 = vadd.f32 %v5036, %v5836
    %v5988 = vadd.f32 %v5037, %v5838
    %v5989 = vadd.f32 %v5038, %v5840
    %v5990 = vadd.f32 %v5039, %v5844
    %v5991 = vadd.f32 %v5040, %v5846
    %v5992 = vadd.f32 %v5041, %v5848
    %v5993 = vadd.f32 %v5042, %v5850
    %v5994 = vadd.f32 %v5043, %v5854
    %v5995 = vadd.f32 %v5044, %v5856
    %v5996 = vadd.f32 %v5045, %v5858
    %v5997 = vadd.f32 %v5046, %v5860
    %v5998 = vadd.f32 %v5047, %v5864
    %v5999 = vadd.f32 %v5048, %v5866
    %v6000 = vadd.f32 %v5049, %v5868
    %v6001 = vadd.f32 %v5050, %v5870
    %v6002 = vadd.f32 %v5051, %v5874
    %v6003 = vadd.f32 %v5052, %v5876
    %v6004 = vadd.f32 %v5053, %v5878
    %v6005 = vadd.f32 %v5054, %v5880
    %v6006 = vadd.f32 %v5055, %v5884
    %v6007 = vadd.f32 %v5056, %v5886
    %v6008 = vadd.f32 %v5057, %v5888
    %v6009 = vadd.f32 %v5058, %v5890
    %v6010 = vadd.f32 %v5059, %v5894
    %v6011 = vadd.f32 %v5060, %v5896
    %v6012 = vadd.f32 %v5061, %v5898
    %v6013 = vadd.f32 %v5062, %v5900
    %v6014 = vadd.f32 %v5063, %v5904
    %v6015 = vadd.f32 %v5064, %v5906
    %v6016 = vadd.f32 %v5065, %v5908
    %v6017 = vadd.f32 %v5066, %v5910
    %v6018 = vadd.f32 %v5067, %v5914
    %v6019 = vadd.f32 %v5068, %v5916
    %v6020 = vadd.f32 %v5069, %v5918
    %v6021 = vadd.f32 %v5070, %v5920
    %v6022 = vadd.f32 %v5071, %v5924
    %v6023 = vadd.f32 %v5072, %v5926
    %v6024 = vadd.f32 %v5073, %v5928
    %v6025 = vadd.f32 %v5074, %v5930
    %v6026 = vadd.f32 %v5075, %v5934
    %v6027 = vadd.f32 %v5076, %v5936
    %v6028 = vadd.f32 %v5077, %v5938
    %v6029 = vadd.f32 %v5078, %v5940
    %v6030 = vadd.f32 %v5079, %v5944
    %v6031 = vadd.f32 %v5080, %v5946
    %v6032 = vadd.f32 %v5081, %v5948
    %v6033 = vadd.f32 %v5082, %v5950
    %v6034 = vadd.f32 %v5083, %v5954
    %v6035 = vadd.f32 %v5084, %v5956
    %v6036 = vadd.f32 %v5085, %v5958
    %v6037 = vadd.f32 %v5086, %v5960
    %v6038 = vadd.f32 %v5087, %v5964
    %v6039 = vadd.f32 %v5088, %v5966
    %v6040 = vadd.f32 %v5089, %v5968
    %v6041 = vadd.f32 %v5090, %v5970
    %v6042 = vadd.f32 %v5091, %v5974
    %v6043 = vadd.f32 %v5092, %v5976
    %v6044 = vadd.f32 %v5093, %v5978
    %v6045 = vadd.f32 %v5094, %v5980
    %v6046 = vld [vmem:[#allocation2 + $0x700] sm:$0xff]
    %v6047 = vld [vmem:[#allocation2 + $0x708] sm:$0xff]
    %v6048 = vld [vmem:[#allocation2 + $0x710] sm:$0xff]
    %v6049 = vld [vmem:[#allocation2 + $0x718] sm:$0xff]
    %v6050 = vld [vmem:[#allocation2 + $0x720] sm:$0xff]
    %v6051 = vld [vmem:[#allocation2 + $0x728] sm:$0xff]
    %v6052 = vld [vmem:[#allocation2 + $0x730] sm:$0xff]
    %v6053 = vld [vmem:[#allocation2 + $0x738] sm:$0xff]
    %v6054 = vld [vmem:[#allocation2 + $0x740] sm:$0xff]
    %v6055 = vld [vmem:[#allocation2 + $0x748] sm:$0xff]
    %v6056 = vld [vmem:[#allocation2 + $0x750] sm:$0xff]
    %v6057 = vld [vmem:[#allocation2 + $0x758] sm:$0xff]
    %v6058 = vld [vmem:[#allocation2 + $0x760] sm:$0xff]
    %v6059 = vld [vmem:[#allocation2 + $0x768] sm:$0xff]
    %v6060 = vld [vmem:[#allocation2 + $0x770] sm:$0xff]
    %v6061 = vld [vmem:[#allocation2 + $0x778] sm:$0xff]
    %v6062 = vld [vmem:[#allocation2 + $0x780] sm:$0xff]
    %v6063 = vld [vmem:[#allocation2 + $0x788] sm:$0xff]
    %v6064 = vld [vmem:[#allocation2 + $0x790] sm:$0xff]
    %v6065 = vld [vmem:[#allocation2 + $0x798] sm:$0xff]
    %v6066 = vld [vmem:[#allocation2 + $0x7a0] sm:$0xff]
    %v6067 = vld [vmem:[#allocation2 + $0x7a8] sm:$0xff]
    %v6068 = vld [vmem:[#allocation2 + $0x7b0] sm:$0xff]
    %v6069 = vld [vmem:[#allocation2 + $0x7b8] sm:$0xff]
    %v6070 = vld [vmem:[#allocation2 + $0x7c0] sm:$0xff]
    %v6071 = vld [vmem:[#allocation2 + $0x7c8] sm:$0xff]
    %v6072 = vld [vmem:[#allocation2 + $0x7d0] sm:$0xff]
    %v6073 = vld [vmem:[#allocation2 + $0x7d8] sm:$0xff]
    %v6074 = vld [vmem:[#allocation2 + $0x7e0] sm:$0xff]
    %v6075 = vld [vmem:[#allocation2 + $0x7e8] sm:$0xff]
    %v6076 = vld [vmem:[#allocation2 + $0x7f0] sm:$0xff]
    %v6077 = vld [vmem:[#allocation2 + $0x7f8] sm:$0xff]
    %v6078 = vpack.c.b16 %v5197, %v5195
    %v6079 = vpack.c.b16 %v5198, %v5196
    %v6080 = vpack.c.b16 %v5201, %v5199
    %v6081 = vpack.c.b16 %v5202, %v5200
    %v6082 = vpack.c.b16 %v5205, %v5203
    %v6083 = vpack.c.b16 %v5206, %v5204
    %v6084 = vpack.c.b16 %v5209, %v5207
    %v6085 = vpack.c.b16 %v5210, %v5208
    %v6086 = vpack.c.b16 %v5213, %v5211
    %v6087 = vpack.c.b16 %v5214, %v5212
    %v6088 = vpack.c.b16 %v5217, %v5215
    %v6089 = vpack.c.b16 %v5218, %v5216
    %v6090 = vpack.c.b16 %v5221, %v5219
    %v6091 = vpack.c.b16 %v5222, %v5220
    %v6092 = vpack.c.b16 %v5225, %v5223
    %v6093 = vpack.c.b16 %v5226, %v5224
    %v6094 = vpack.c.b16 %v5229, %v5227
    %v6095 = vpack.c.b16 %v5230, %v5228
    %v6096 = vpack.c.b16 %v5233, %v5231
    %v6097 = vpack.c.b16 %v5234, %v5232
    %v6098 = vpack.c.b16 %v5237, %v5235
    %v6099 = vpack.c.b16 %v5238, %v5236
    %v6100 = vpack.c.b16 %v5241, %v5239
    %v6101 = vpack.c.b16 %v5242, %v5240
    %v6102 = vpack.c.b16 %v5245, %v5243
    %v6103 = vpack.c.b16 %v5246, %v5244
    %v6104 = vpack.c.b16 %v5249, %v5247
    %v6105 = vpack.c.b16 %v5250, %v5248
    %v6106 = vpack.c.b16 %v5253, %v5251
    %v6107 = vpack.c.b16 %v5254, %v5252
    %v6108 = vpack.c.b16 %v5257, %v5255
    %v6109 = vpack.c.b16 %v5258, %v5256
    %v6174 = vunpack.c.l.b16 %v6046
    %v6175 = vunpack.c.h.b16 %v6046
    %v6176 = vunpack.c.l.b16 %v6047
    %v6177 = vunpack.c.h.b16 %v6047
    %v6178 = vunpack.c.l.b16 %v6048
    %v6179 = vunpack.c.h.b16 %v6048
    %v6180 = vunpack.c.l.b16 %v6049
    %v6181 = vunpack.c.h.b16 %v6049
    %v6182 = vunpack.c.l.b16 %v6050
    %v6183 = vunpack.c.h.b16 %v6050
    %v6184 = vunpack.c.l.b16 %v6051
    %v6185 = vunpack.c.h.b16 %v6051
    %v6186 = vunpack.c.l.b16 %v6052
    %v6187 = vunpack.c.h.b16 %v6052
    %v6188 = vunpack.c.l.b16 %v6053
    %v6189 = vunpack.c.h.b16 %v6053
    %v6190 = vunpack.c.l.b16 %v6054
    %v6191 = vunpack.c.h.b16 %v6054
    %v6192 = vunpack.c.l.b16 %v6055
    %v6193 = vunpack.c.h.b16 %v6055
    %v6194 = vunpack.c.l.b16 %v6056
    %v6195 = vunpack.c.h.b16 %v6056
    %v6196 = vunpack.c.l.b16 %v6057
    %v6197 = vunpack.c.h.b16 %v6057
    %v6198 = vunpack.c.l.b16 %v6058
    %v6199 = vunpack.c.h.b16 %v6058
    %v6200 = vunpack.c.l.b16 %v6059
    %v6201 = vunpack.c.h.b16 %v6059
    %v6202 = vunpack.c.l.b16 %v6060
    %v6203 = vunpack.c.h.b16 %v6060
    %v6204 = vunpack.c.l.b16 %v6061
    %v6205 = vunpack.c.h.b16 %v6061
    %v6206 = vunpack.c.l.b16 %v6062
    %v6207 = vunpack.c.h.b16 %v6062
    %v6208 = vunpack.c.l.b16 %v6063
    %v6209 = vunpack.c.h.b16 %v6063
    %v6210 = vunpack.c.l.b16 %v6064
    %v6211 = vunpack.c.h.b16 %v6064
    %v6212 = vunpack.c.l.b16 %v6065
    %v6213 = vunpack.c.h.b16 %v6065
    %v6214 = vunpack.c.l.b16 %v6066
    %v6215 = vunpack.c.h.b16 %v6066
    %v6216 = vunpack.c.l.b16 %v6067
    %v6217 = vunpack.c.h.b16 %v6067
    %v6218 = vunpack.c.l.b16 %v6068
    %v6219 = vunpack.c.h.b16 %v6068
    %v6220 = vunpack.c.l.b16 %v6069
    %v6221 = vunpack.c.h.b16 %v6069
    %v6222 = vunpack.c.l.b16 %v6070
    %v6223 = vunpack.c.h.b16 %v6070
    %v6224 = vunpack.c.l.b16 %v6071
    %v6225 = vunpack.c.h.b16 %v6071
    %v6226 = vunpack.c.l.b16 %v6072
    %v6227 = vunpack.c.h.b16 %v6072
    %v6228 = vunpack.c.l.b16 %v6073
    %v6229 = vunpack.c.h.b16 %v6073
    %v6230 = vunpack.c.l.b16 %v6074
    %v6231 = vunpack.c.h.b16 %v6074
    %v6232 = vunpack.c.l.b16 %v6075
    %v6233 = vunpack.c.h.b16 %v6075
    %v6234 = vunpack.c.l.b16 %v6076
    %v6235 = vunpack.c.h.b16 %v6076
    %v6236 = vunpack.c.l.b16 %v6077
    %v6237 = vunpack.c.h.b16 %v6077
    %v6238 = vpack.c.b16 %v6176, %v6174
    %v6239 = vpack.c.b16 %v6177, %v6175
    %v6240 = vpack.c.b16 %v6180, %v6178
    %v6241 = vpack.c.b16 %v6181, %v6179
    %v6242 = vpack.c.b16 %v6184, %v6182
    %v6243 = vpack.c.b16 %v6185, %v6183
    %v6244 = vpack.c.b16 %v6188, %v6186
    %v6245 = vpack.c.b16 %v6189, %v6187
    %v6246 = vpack.c.b16 %v6192, %v6190
    %v6247 = vpack.c.b16 %v6193, %v6191
    %v6248 = vpack.c.b16 %v6196, %v6194
    %v6249 = vpack.c.b16 %v6197, %v6195
    %v6250 = vpack.c.b16 %v6200, %v6198
    %v6251 = vpack.c.b16 %v6201, %v6199
    %v6252 = vpack.c.b16 %v6204, %v6202
    %v6253 = vpack.c.b16 %v6205, %v6203
    %v6254 = vpack.c.b16 %v6208, %v6206
    %v6255 = vpack.c.b16 %v6209, %v6207
    %v6256 = vpack.c.b16 %v6212, %v6210
    %v6257 = vpack.c.b16 %v6213, %v6211
    %v6258 = vpack.c.b16 %v6216, %v6214
    %v6259 = vpack.c.b16 %v6217, %v6215
    %v6260 = vpack.c.b16 %v6220, %v6218
    %v6261 = vpack.c.b16 %v6221, %v6219
    %v6262 = vpack.c.b16 %v6224, %v6222
    %v6263 = vpack.c.b16 %v6225, %v6223
    %v6264 = vpack.c.b16 %v6228, %v6226
    %v6265 = vpack.c.b16 %v6229, %v6227
    %v6266 = vpack.c.b16 %v6232, %v6230
    %v6267 = vpack.c.b16 %v6233, %v6231
    %v6268 = vpack.c.b16 %v6236, %v6234
    %v6269 = vpack.c.b16 %v6237, %v6235
    %6302 = vmatprep.subr.bf16.mxu0 %v6253
    %6303 = vmatpush1.bf16.msra.mxu0 %v6252
    %6304 = vmatprep.subr.bf16.mxu0 %v6251
    %6305 = vmatpush1.bf16.msra.mxu0 %v6250
    %6306 = vmatprep.subr.bf16.mxu0 %v6249
    %6307 = vmatpush1.bf16.msra.mxu0 %v6248
    %6308 = vmatprep.subr.bf16.mxu0 %v6247
    %6309 = vmatpush1.bf16.msra.mxu0 %v6246
    %6310 = vmatprep.subr.bf16.mxu0 %v6245
    %6311 = vmatpush1.bf16.msra.mxu0 %v6244
    %6312 = vmatprep.subr.bf16.mxu0 %v6243
    %6313 = vmatpush1.bf16.msra.mxu0 %v6242
    %6314 = vmatprep.subr.bf16.mxu0 %v6241
    %6315 = vmatpush1.bf16.msra.mxu0 %v6240
    %6316 = vmatprep.subr.bf16.mxu0 %v6239
    %6317 = vmatpush1.bf16.msra.mxu0 %v6238
    %6318 = vmatprep.subr.bf16.mxu0 %v6269
    %6319 = vmatpush2.bf16.msra.mxu0 %v6268
    %6320 = vmatprep.subr.bf16.mxu0 %v6267
    %6321 = vmatpush2.bf16.msra.mxu0 %v6266
    %6322 = vmatprep.subr.bf16.mxu0 %v6265
    %6323 = vmatpush2.bf16.msra.mxu0 %v6264
    %6324 = vmatprep.subr.bf16.mxu0 %v6263
    %6325 = vmatpush2.bf16.msra.mxu0 %v6262
    %6326 = vmatprep.subr.bf16.mxu0 %v6261
    %6327 = vmatpush2.bf16.msra.mxu0 %v6260
    %6328 = vmatprep.subr.bf16.mxu0 %v6259
    %6329 = vmatpush2.bf16.msra.mxu0 %v6258
    %6330 = vmatprep.subr.bf16.mxu0 %v6257
    %6331 = vmatpush2.bf16.msra.mxu0 %v6256
    %6332 = vmatprep.subr.bf16.mxu0 %v6255
    %6333 = vmatpush2.bf16.msra.mxu0 %v6254
    %6334 = vmatprep.mubr.bf16.mxu0 %v6079
    %6335 = vmatmul.mubr.bf16.gmra.mxu0 %v6078
    %v6336 = vpop.f32.mrf.mxu0
    %v6337 = vadd.f32 0.0, %v6336
    %v6338 = vpop.f32.mrf.mxu0
    %v6339 = vadd.f32 0.0, %v6338
    %v6340 = vpop.f32.mrf.mxu0
    %v6341 = vadd.f32 0.0, %v6340
    %v6342 = vpop.f32.mrf.mxu0
    %v6343 = vadd.f32 0.0, %v6342
    %6344 = vmatprep.mubr.bf16.mxu0 %v6081
    %6345 = vmatmul.mubr.bf16.gmra.mxu0 %v6080
    %v6346 = vpop.f32.mrf.mxu0
    %v6347 = vadd.f32 0.0, %v6346
    %v6348 = vpop.f32.mrf.mxu0
    %v6349 = vadd.f32 0.0, %v6348
    %v6350 = vpop.f32.mrf.mxu0
    %v6351 = vadd.f32 0.0, %v6350
    %v6352 = vpop.f32.mrf.mxu0
    %v6353 = vadd.f32 0.0, %v6352
    %6354 = vmatprep.mubr.bf16.mxu0 %v6083
    %6355 = vmatmul.mubr.bf16.gmra.mxu0 %v6082
    %v6356 = vpop.f32.mrf.mxu0
    %v6357 = vadd.f32 0.0, %v6356
    %v6358 = vpop.f32.mrf.mxu0
    %v6359 = vadd.f32 0.0, %v6358
    %v6360 = vpop.f32.mrf.mxu0
    %v6361 = vadd.f32 0.0, %v6360
    %v6362 = vpop.f32.mrf.mxu0
    %v6363 = vadd.f32 0.0, %v6362
    %6364 = vmatprep.mubr.bf16.mxu0 %v6085
    %6365 = vmatmul.mubr.bf16.gmra.mxu0 %v6084
    %v6366 = vpop.f32.mrf.mxu0
    %v6367 = vadd.f32 0.0, %v6366
    %v6368 = vpop.f32.mrf.mxu0
    %v6369 = vadd.f32 0.0, %v6368
    %v6370 = vpop.f32.mrf.mxu0
    %v6371 = vadd.f32 0.0, %v6370
    %v6372 = vpop.f32.mrf.mxu0
    %v6373 = vadd.f32 0.0, %v6372
    %6374 = vmatprep.mubr.bf16.mxu0 %v6087
    %6375 = vmatmul.mubr.bf16.gmra.mxu0 %v6086
    %v6376 = vpop.f32.mrf.mxu0
    %v6377 = vadd.f32 0.0, %v6376
    %v6378 = vpop.f32.mrf.mxu0
    %v6379 = vadd.f32 0.0, %v6378
    %v6380 = vpop.f32.mrf.mxu0
    %v6381 = vadd.f32 0.0, %v6380
    %v6382 = vpop.f32.mrf.mxu0
    %v6383 = vadd.f32 0.0, %v6382
    %6384 = vmatprep.mubr.bf16.mxu0 %v6089
    %6385 = vmatmul.mubr.bf16.gmra.mxu0 %v6088
    %v6386 = vpop.f32.mrf.mxu0
    %v6387 = vadd.f32 0.0, %v6386
    %v6388 = vpop.f32.mrf.mxu0
    %v6389 = vadd.f32 0.0, %v6388
    %v6390 = vpop.f32.mrf.mxu0
    %v6391 = vadd.f32 0.0, %v6390
    %v6392 = vpop.f32.mrf.mxu0
    %v6393 = vadd.f32 0.0, %v6392
    %6394 = vmatprep.mubr.bf16.mxu0 %v6091
    %6395 = vmatmul.mubr.bf16.gmra.mxu0 %v6090
    %v6396 = vpop.f32.mrf.mxu0
    %v6397 = vadd.f32 0.0, %v6396
    %v6398 = vpop.f32.mrf.mxu0
    %v6399 = vadd.f32 0.0, %v6398
    %v6400 = vpop.f32.mrf.mxu0
    %v6401 = vadd.f32 0.0, %v6400
    %v6402 = vpop.f32.mrf.mxu0
    %v6403 = vadd.f32 0.0, %v6402
    %6404 = vmatprep.mubr.bf16.mxu0 %v6093
    %6405 = vmatmul.mubr.bf16.gmra.mxu0 %v6092
    %v6406 = vpop.f32.mrf.mxu0
    %v6407 = vadd.f32 0.0, %v6406
    %v6408 = vpop.f32.mrf.mxu0
    %v6409 = vadd.f32 0.0, %v6408
    %v6410 = vpop.f32.mrf.mxu0
    %v6411 = vadd.f32 0.0, %v6410
    %v6412 = vpop.f32.mrf.mxu0
    %v6413 = vadd.f32 0.0, %v6412
    %6414 = vmatprep.mubr.bf16.mxu0 %v6095
    %6415 = vmatmul.mubr.bf16.gmra.mxu0 %v6094
    %v6416 = vpop.f32.mrf.mxu0
    %v6417 = vadd.f32 0.0, %v6416
    %v6418 = vpop.f32.mrf.mxu0
    %v6419 = vadd.f32 0.0, %v6418
    %v6420 = vpop.f32.mrf.mxu0
    %v6421 = vadd.f32 0.0, %v6420
    %v6422 = vpop.f32.mrf.mxu0
    %v6423 = vadd.f32 0.0, %v6422
    %6424 = vmatprep.mubr.bf16.mxu0 %v6097
    %6425 = vmatmul.mubr.bf16.gmra.mxu0 %v6096
    %v6426 = vpop.f32.mrf.mxu0
    %v6427 = vadd.f32 0.0, %v6426
    %v6428 = vpop.f32.mrf.mxu0
    %v6429 = vadd.f32 0.0, %v6428
    %v6430 = vpop.f32.mrf.mxu0
    %v6431 = vadd.f32 0.0, %v6430
    %v6432 = vpop.f32.mrf.mxu0
    %v6433 = vadd.f32 0.0, %v6432
    %6434 = vmatprep.mubr.bf16.mxu0 %v6099
    %6435 = vmatmul.mubr.bf16.gmra.mxu0 %v6098
    %v6436 = vpop.f32.mrf.mxu0
    %v6437 = vadd.f32 0.0, %v6436
    %v6438 = vpop.f32.mrf.mxu0
    %v6439 = vadd.f32 0.0, %v6438
    %v6440 = vpop.f32.mrf.mxu0
    %v6441 = vadd.f32 0.0, %v6440
    %v6442 = vpop.f32.mrf.mxu0
    %v6443 = vadd.f32 0.0, %v6442
    %6444 = vmatprep.mubr.bf16.mxu0 %v6101
    %6445 = vmatmul.mubr.bf16.gmra.mxu0 %v6100
    %v6446 = vpop.f32.mrf.mxu0
    %v6447 = vadd.f32 0.0, %v6446
    %v6448 = vpop.f32.mrf.mxu0
    %v6449 = vadd.f32 0.0, %v6448
    %v6450 = vpop.f32.mrf.mxu0
    %v6451 = vadd.f32 0.0, %v6450
    %v6452 = vpop.f32.mrf.mxu0
    %v6453 = vadd.f32 0.0, %v6452
    %6454 = vmatprep.mubr.bf16.mxu0 %v6103
    %6455 = vmatmul.mubr.bf16.gmra.mxu0 %v6102
    %v6456 = vpop.f32.mrf.mxu0
    %v6457 = vadd.f32 0.0, %v6456
    %v6458 = vpop.f32.mrf.mxu0
    %v6459 = vadd.f32 0.0, %v6458
    %v6460 = vpop.f32.mrf.mxu0
    %v6461 = vadd.f32 0.0, %v6460
    %v6462 = vpop.f32.mrf.mxu0
    %v6463 = vadd.f32 0.0, %v6462
    %6464 = vmatprep.mubr.bf16.mxu0 %v6105
    %6465 = vmatmul.mubr.bf16.gmra.mxu0 %v6104
    %v6466 = vpop.f32.mrf.mxu0
    %v6467 = vadd.f32 0.0, %v6466
    %v6468 = vpop.f32.mrf.mxu0
    %v6469 = vadd.f32 0.0, %v6468
    %v6470 = vpop.f32.mrf.mxu0
    %v6471 = vadd.f32 0.0, %v6470
    %v6472 = vpop.f32.mrf.mxu0
    %v6473 = vadd.f32 0.0, %v6472
    %6474 = vmatprep.mubr.bf16.mxu0 %v6107
    %6475 = vmatmul.mubr.bf16.gmra.mxu0 %v6106
    %v6476 = vpop.f32.mrf.mxu0
    %v6477 = vadd.f32 0.0, %v6476
    %v6478 = vpop.f32.mrf.mxu0
    %v6479 = vadd.f32 0.0, %v6478
    %v6480 = vpop.f32.mrf.mxu0
    %v6481 = vadd.f32 0.0, %v6480
    %v6482 = vpop.f32.mrf.mxu0
    %v6483 = vadd.f32 0.0, %v6482
    %6484 = vmatprep.mubr.bf16.mxu0 %v6109
    %6485 = vmatmul.mubr.bf16.gmra.mxu0 %v6108
    %v6486 = vpop.f32.mrf.mxu0
    %v6487 = vadd.f32 0.0, %v6486
    %v6488 = vpop.f32.mrf.mxu0
    %v6489 = vadd.f32 0.0, %v6488
    %v6490 = vpop.f32.mrf.mxu0
    %v6491 = vadd.f32 0.0, %v6490
    %v6492 = vpop.f32.mrf.mxu0
    %v6493 = vadd.f32 0.0, %v6492
    %6494 = vdwg.mxu0
    %v6495 = vadd.f32 %v5982, %v6337
    %v6496 = vadd.f32 %v5983, %v6339
    %v6497 = vadd.f32 %v5984, %v6341
    %v6498 = vadd.f32 %v5985, %v6343
    %v6499 = vadd.f32 %v5986, %v6347
    %v6500 = vadd.f32 %v5987, %v6349
    %v6501 = vadd.f32 %v5988, %v6351
    %v6502 = vadd.f32 %v5989, %v6353
    %v6503 = vadd.f32 %v5990, %v6357
    %v6504 = vadd.f32 %v5991, %v6359
    %v6505 = vadd.f32 %v5992, %v6361
    %v6506 = vadd.f32 %v5993, %v6363
    %v6507 = vadd.f32 %v5994, %v6367
    %v6508 = vadd.f32 %v5995, %v6369
    %v6509 = vadd.f32 %v5996, %v6371
    %v6510 = vadd.f32 %v5997, %v6373
    %v6511 = vadd.f32 %v5998, %v6377
    %v6512 = vadd.f32 %v5999, %v6379
    %v6513 = vadd.f32 %v6000, %v6381
    %v6514 = vadd.f32 %v6001, %v6383
    %v6515 = vadd.f32 %v6002, %v6387
    %v6516 = vadd.f32 %v6003, %v6389
    %v6517 = vadd.f32 %v6004, %v6391
    %v6518 = vadd.f32 %v6005, %v6393
    %v6519 = vadd.f32 %v6006, %v6397
    %v6520 = vadd.f32 %v6007, %v6399
    %v6521 = vadd.f32 %v6008, %v6401
    %v6522 = vadd.f32 %v6009, %v6403
    %v6523 = vadd.f32 %v6010, %v6407
    %v6524 = vadd.f32 %v6011, %v6409
    %v6525 = vadd.f32 %v6012, %v6411
    %v6526 = vadd.f32 %v6013, %v6413
    %v6527 = vadd.f32 %v6014, %v6417
    %v6528 = vadd.f32 %v6015, %v6419
    %v6529 = vadd.f32 %v6016, %v6421
    %v6530 = vadd.f32 %v6017, %v6423
    %v6531 = vadd.f32 %v6018, %v6427
    %v6532 = vadd.f32 %v6019, %v6429
    %v6533 = vadd.f32 %v6020, %v6431
    %v6534 = vadd.f32 %v6021, %v6433
    %v6535 = vadd.f32 %v6022, %v6437
    %v6536 = vadd.f32 %v6023, %v6439
    %v6537 = vadd.f32 %v6024, %v6441
    %v6538 = vadd.f32 %v6025, %v6443
    %v6539 = vadd.f32 %v6026, %v6447
    %v6540 = vadd.f32 %v6027, %v6449
    %v6541 = vadd.f32 %v6028, %v6451
    %v6542 = vadd.f32 %v6029, %v6453
    %v6543 = vadd.f32 %v6030, %v6457
    %v6544 = vadd.f32 %v6031, %v6459
    %v6545 = vadd.f32 %v6032, %v6461
    %v6546 = vadd.f32 %v6033, %v6463
    %v6547 = vadd.f32 %v6034, %v6467
    %v6548 = vadd.f32 %v6035, %v6469
    %v6549 = vadd.f32 %v6036, %v6471
    %v6550 = vadd.f32 %v6037, %v6473
    %v6551 = vadd.f32 %v6038, %v6477
    %v6552 = vadd.f32 %v6039, %v6479
    %v6553 = vadd.f32 %v6040, %v6481
    %v6554 = vadd.f32 %v6041, %v6483
    %v6555 = vadd.f32 %v6042, %v6487
    %v6556 = vadd.f32 %v6043, %v6489
    %v6557 = vadd.f32 %v6044, %v6491
    %v6558 = vadd.f32 %v6045, %v6493
    %v6559 = vld [vmem:[%s0 + $0x28] sm:$0xff]
    %v6560 = vld [vmem:[%s0 + $0x30] sm:$0xff]
    %v6561 = vld [vmem:[%s0 + $0x38] sm:$0xff]
    %v6562 = vld [vmem:[%s0 + $0x40] sm:$0xff]
    %v6563 = vld [vmem:[%s0 + $0x48] sm:$0xff]
    %v6564 = vld [vmem:[%s0 + $0x50] sm:$0xff]
    %v6565 = vld [vmem:[%s0 + $0x58] sm:$0xff]
    %v6566 = vld [vmem:[%s0 + $0x60] sm:$0xff]
    %v6567 = vld [vmem:[%s0 + $0x68] sm:$0xff]
    %v6568 = vld [vmem:[%s0 + $0x70] sm:$0xff]
    %v6569 = vld [vmem:[%s0 + $0x78] sm:$0xff]
    %v6570 = vld [vmem:[%s0 + $0x80] sm:$0xff]
    %v6571 = vld [vmem:[%s0 + $0x88] sm:$0xff]
    %v6572 = vld [vmem:[%s0 + $0x90] sm:$0xff]
    %v6573 = vld [vmem:[%s0 + $0x98] sm:$0xff]
    %v6574 = vld [vmem:[%s0 + $0xa0] sm:$0xff]
    %v6575 = vld [vmem:[%s0 + $0xa8] sm:$0xff]
    %v6576 = vld [vmem:[%s0 + $0xb0] sm:$0xff]
    %v6577 = vld [vmem:[%s0 + $0xb8] sm:$0xff]
    %v6578 = vld [vmem:[%s0 + $0xc0] sm:$0xff]
    %v6579 = vld [vmem:[%s0 + $0xc8] sm:$0xff]
    %v6580 = vld [vmem:[%s0 + $0xd0] sm:$0xff]
    %v6581 = vld [vmem:[%s0 + $0xd8] sm:$0xff]
    %v6582 = vld [vmem:[%s0 + $0xe0] sm:$0xff]
    %v6583 = vld [vmem:[%s0 + $0xe8] sm:$0xff]
    %v6584 = vld [vmem:[%s0 + $0xf0] sm:$0xff]
    %v6585 = vld [vmem:[%s0 + $0xf8] sm:$0xff]
    %v6586 = vld [vmem:[%s0 + $0x100] sm:$0xff]
    %v6587 = vld [vmem:[%s0 + $0x108] sm:$0xff]
    %v6588 = vld [vmem:[%s0 + $0x110] sm:$0xff]
    %v6589 = vld [vmem:[%s0 + $0x118] sm:$0xff]
    %v6590 = vld [vmem:[%s0 + $0x120] sm:$0xff]
    %v6591 = vld [vmem:[%s0 + $0x128] sm:$0x11]
    %v6592 = vld [vmem:[#allocation2 + $0x800] sm:$0xff]
    %v6593 = vld [vmem:[#allocation2 + $0x808] sm:$0xff]
    %v6594 = vld [vmem:[#allocation2 + $0x810] sm:$0xff]
    %v6595 = vld [vmem:[#allocation2 + $0x818] sm:$0xff]
    %v6596 = vld [vmem:[#allocation2 + $0x820] sm:$0xff]
    %v6597 = vld [vmem:[#allocation2 + $0x828] sm:$0xff]
    %v6598 = vld [vmem:[#allocation2 + $0x830] sm:$0xff]
    %v6599 = vld [vmem:[#allocation2 + $0x838] sm:$0xff]
    %v6600 = vld [vmem:[#allocation2 + $0x840] sm:$0xff]
    %v6601 = vld [vmem:[#allocation2 + $0x848] sm:$0xff]
    %v6602 = vld [vmem:[#allocation2 + $0x850] sm:$0xff]
    %v6603 = vld [vmem:[#allocation2 + $0x858] sm:$0xff]
    %v6604 = vld [vmem:[#allocation2 + $0x860] sm:$0xff]
    %v6605 = vld [vmem:[#allocation2 + $0x868] sm:$0xff]
    %v6606 = vld [vmem:[#allocation2 + $0x870] sm:$0xff]
    %v6607 = vld [vmem:[#allocation2 + $0x878] sm:$0xff]
    %v6608 = vld [vmem:[#allocation2 + $0x880] sm:$0xff]
    %v6609 = vld [vmem:[#allocation2 + $0x888] sm:$0xff]
    %v6610 = vld [vmem:[#allocation2 + $0x890] sm:$0xff]
    %v6611 = vld [vmem:[#allocation2 + $0x898] sm:$0xff]
    %v6612 = vld [vmem:[#allocation2 + $0x8a0] sm:$0xff]
    %v6613 = vld [vmem:[#allocation2 + $0x8a8] sm:$0xff]
    %v6614 = vld [vmem:[#allocation2 + $0x8b0] sm:$0xff]
    %v6615 = vld [vmem:[#allocation2 + $0x8b8] sm:$0xff]
    %v6616 = vld [vmem:[#allocation2 + $0x8c0] sm:$0xff]
    %v6617 = vld [vmem:[#allocation2 + $0x8c8] sm:$0xff]
    %v6618 = vld [vmem:[#allocation2 + $0x8d0] sm:$0xff]
    %v6619 = vld [vmem:[#allocation2 + $0x8d8] sm:$0xff]
    %v6620 = vld [vmem:[#allocation2 + $0x8e0] sm:$0xff]
    %v6621 = vld [vmem:[#allocation2 + $0x8e8] sm:$0xff]
    %v6622 = vld [vmem:[#allocation2 + $0x8f0] sm:$0xff]
    %v6623 = vld [vmem:[#allocation2 + $0x8f8] sm:$0xff]
    %v6657 = vunpack.c.l.b16 %v6559
    %v6658 = vunpack.c.h.b16 %v6559
    %v6659 = vunpack.c.l.b16 %v6560
    %v6660 = vunpack.c.h.b16 %v6560
    %v6661 = vunpack.c.l.b16 %v6561
    %v6662 = vunpack.c.h.b16 %v6561
    %v6663 = vunpack.c.l.b16 %v6562
    %v6664 = vunpack.c.h.b16 %v6562
    %v6665 = vunpack.c.l.b16 %v6563
    %v6666 = vunpack.c.h.b16 %v6563
    %v6667 = vunpack.c.l.b16 %v6564
    %v6668 = vunpack.c.h.b16 %v6564
    %v6669 = vunpack.c.l.b16 %v6565
    %v6670 = vunpack.c.h.b16 %v6565
    %v6671 = vunpack.c.l.b16 %v6566
    %v6672 = vunpack.c.h.b16 %v6566
    %v6673 = vunpack.c.l.b16 %v6567
    %v6674 = vunpack.c.h.b16 %v6567
    %v6675 = vunpack.c.l.b16 %v6568
    %v6676 = vunpack.c.h.b16 %v6568
    %v6677 = vunpack.c.l.b16 %v6569
    %v6678 = vunpack.c.h.b16 %v6569
    %v6679 = vunpack.c.l.b16 %v6570
    %v6680 = vunpack.c.h.b16 %v6570
    %v6681 = vunpack.c.l.b16 %v6571
    %v6682 = vunpack.c.h.b16 %v6571
    %v6683 = vunpack.c.l.b16 %v6572
    %v6684 = vunpack.c.h.b16 %v6572
    %v6685 = vunpack.c.l.b16 %v6573
    %v6686 = vunpack.c.h.b16 %v6573
    %v6687 = vunpack.c.l.b16 %v6574
    %v6688 = vunpack.c.h.b16 %v6574
    %v6689 = vunpack.c.l.b16 %v6575
    %v6690 = vunpack.c.h.b16 %v6575
    %v6691 = vunpack.c.l.b16 %v6576
    %v6692 = vunpack.c.h.b16 %v6576
    %v6693 = vunpack.c.l.b16 %v6577
    %v6694 = vunpack.c.h.b16 %v6577
    %v6695 = vunpack.c.l.b16 %v6578
    %v6696 = vunpack.c.h.b16 %v6578
    %v6697 = vunpack.c.l.b16 %v6579
    %v6698 = vunpack.c.h.b16 %v6579
    %v6699 = vunpack.c.l.b16 %v6580
    %v6700 = vunpack.c.h.b16 %v6580
    %v6701 = vunpack.c.l.b16 %v6581
    %v6702 = vunpack.c.h.b16 %v6581
    %v6703 = vunpack.c.l.b16 %v6582
    %v6704 = vunpack.c.h.b16 %v6582
    %v6705 = vunpack.c.l.b16 %v6583
    %v6706 = vunpack.c.h.b16 %v6583
    %v6707 = vunpack.c.l.b16 %v6584
    %v6708 = vunpack.c.h.b16 %v6584
    %v6709 = vunpack.c.l.b16 %v6585
    %v6710 = vunpack.c.h.b16 %v6585
    %v6711 = vunpack.c.l.b16 %v6586
    %v6712 = vunpack.c.h.b16 %v6586
    %v6713 = vunpack.c.l.b16 %v6587
    %v6714 = vunpack.c.h.b16 %v6587
    %v6715 = vunpack.c.l.b16 %v6588
    %v6716 = vunpack.c.h.b16 %v6588
    %v6717 = vunpack.c.l.b16 %v6589
    %v6718 = vunpack.c.h.b16 %v6589
    %v6719 = vunpack.c.l.b16 %v6590
    %v6720 = vunpack.c.h.b16 %v6590
    %v6721 = vunpack.c.l.b16 %v6591
    %v6722 = vunpack.c.h.b16 %v6591
    %v6723 = vpack.c.b16 %v6659, %v6657
    %v6724 = vpack.c.b16 %v6660, %v6658
    %v6725 = vpack.c.b16 %v6663, %v6661
    %v6726 = vpack.c.b16 %v6664, %v6662
    %v6727 = vpack.c.b16 %v6667, %v6665
    %v6728 = vpack.c.b16 %v6668, %v6666
    %v6729 = vpack.c.b16 %v6671, %v6669
    %v6730 = vpack.c.b16 %v6672, %v6670
    %v6731 = vpack.c.b16 %v6675, %v6673
    %v6732 = vpack.c.b16 %v6676, %v6674
    %v6733 = vpack.c.b16 %v6679, %v6677
    %v6734 = vpack.c.b16 %v6680, %v6678
    %v6735 = vpack.c.b16 %v6683, %v6681
    %v6736 = vpack.c.b16 %v6684, %v6682
    %v6737 = vpack.c.b16 %v6687, %v6685
    %v6738 = vpack.c.b16 %v6688, %v6686
    %v6739 = vpack.c.b16 %v6691, %v6689
    %v6740 = vpack.c.b16 %v6692, %v6690
    %v6741 = vpack.c.b16 %v6695, %v6693
    %v6742 = vpack.c.b16 %v6696, %v6694
    %v6743 = vpack.c.b16 %v6699, %v6697
    %v6744 = vpack.c.b16 %v6700, %v6698
    %v6745 = vpack.c.b16 %v6703, %v6701
    %v6746 = vpack.c.b16 %v6704, %v6702
    %v6747 = vpack.c.b16 %v6707, %v6705
    %v6748 = vpack.c.b16 %v6708, %v6706
    %v6749 = vpack.c.b16 %v6711, %v6709
    %v6750 = vpack.c.b16 %v6712, %v6710
    %v6751 = vpack.c.b16 %v6715, %v6713
    %v6752 = vpack.c.b16 %v6716, %v6714
    %v6753 = vpack.c.b16 %v6719, %v6717
    %v6754 = vpack.c.b16 %v6720, %v6718
    %v6755 = vpack.c.b16 %v6721, %v6721
    %v6756 = vpack.c.b16 %v6722, %v6722
    %v6758 = vshrl.u32 %v6723, 16
    %v6760 = vshll.u32 %v6723, 16
    %v6762 = vrot.slane %v6760, 1
    %v6763 = vor.u32 %v6758, %v6762
    %v6765 = vshll.u32 %v6725, 16
    %v6767 = vrot.slane %v6765, 1
    %v6768 = vsel %vm2006, %v6763, %v6767
    %v6770 = vshrl.u32 %v6724, 16
    %v6772 = vshll.u32 %v6724, 16
    %v6774 = vrot.slane %v6772, 1
    %v6775 = vor.u32 %v6770, %v6774
    %v6777 = vshll.u32 %v6726, 16
    %v6779 = vrot.slane %v6777, 1
    %v6780 = vsel %vm2006, %v6775, %v6779
    %v6781 = vshrl.u32 %v6725, 16
    %v6783 = vor.u32 %v6781, %v6767
    %v6785 = vshll.u32 %v6727, 16
    %v6787 = vrot.slane %v6785, 1
    %v6788 = vsel %vm2006, %v6783, %v6787
    %v6789 = vshrl.u32 %v6726, 16
    %v6791 = vor.u32 %v6789, %v6779
    %v6793 = vshll.u32 %v6728, 16
    %v6795 = vrot.slane %v6793, 1
    %v6796 = vsel %vm2006, %v6791, %v6795
    %v6797 = vshrl.u32 %v6727, 16
    %v6799 = vor.u32 %v6797, %v6787
    %v6801 = vshll.u32 %v6729, 16
    %v6803 = vrot.slane %v6801, 1
    %v6804 = vsel %vm2006, %v6799, %v6803
    %v6805 = vshrl.u32 %v6728, 16
    %v6807 = vor.u32 %v6805, %v6795
    %v6809 = vshll.u32 %v6730, 16
    %v6811 = vrot.slane %v6809, 1
    %v6812 = vsel %vm2006, %v6807, %v6811
    %v6813 = vshrl.u32 %v6729, 16
    %v6815 = vor.u32 %v6813, %v6803
    %v6817 = vshll.u32 %v6731, 16
    %v6819 = vrot.slane %v6817, 1
    %v6820 = vsel %vm2006, %v6815, %v6819
    %v6821 = vshrl.u32 %v6730, 16
    %v6823 = vor.u32 %v6821, %v6811
    %v6825 = vshll.u32 %v6732, 16
    %v6827 = vrot.slane %v6825, 1
    %v6828 = vsel %vm2006, %v6823, %v6827
    %v6829 = vshrl.u32 %v6731, 16
    %v6831 = vor.u32 %v6829, %v6819
    %v6833 = vshll.u32 %v6733, 16
    %v6835 = vrot.slane %v6833, 1
    %v6836 = vsel %vm2006, %v6831, %v6835
    %v6837 = vshrl.u32 %v6732, 16
    %v6839 = vor.u32 %v6837, %v6827
    %v6841 = vshll.u32 %v6734, 16
    %v6843 = vrot.slane %v6841, 1
    %v6844 = vsel %vm2006, %v6839, %v6843
    %v6845 = vshrl.u32 %v6733, 16
    %v6847 = vor.u32 %v6845, %v6835
    %v6849 = vshll.u32 %v6735, 16
    %v6851 = vrot.slane %v6849, 1
    %v6852 = vsel %vm2006, %v6847, %v6851
    %v6853 = vshrl.u32 %v6734, 16
    %v6855 = vor.u32 %v6853, %v6843
    %v6857 = vshll.u32 %v6736, 16
    %v6859 = vrot.slane %v6857, 1
    %v6860 = vsel %vm2006, %v6855, %v6859
    %v6861 = vshrl.u32 %v6735, 16
    %v6863 = vor.u32 %v6861, %v6851
    %v6865 = vshll.u32 %v6737, 16
    %v6867 = vrot.slane %v6865, 1
    %v6868 = vsel %vm2006, %v6863, %v6867
    %v6869 = vshrl.u32 %v6736, 16
    %v6871 = vor.u32 %v6869, %v6859
    %v6873 = vshll.u32 %v6738, 16
    %v6875 = vrot.slane %v6873, 1
    %v6876 = vsel %vm2006, %v6871, %v6875
    %v6877 = vshrl.u32 %v6737, 16
    %v6879 = vor.u32 %v6877, %v6867
    %v6881 = vshll.u32 %v6739, 16
    %v6883 = vrot.slane %v6881, 1
    %v6884 = vsel %vm2006, %v6879, %v6883
    %v6885 = vshrl.u32 %v6738, 16
    %v6887 = vor.u32 %v6885, %v6875
    %v6889 = vshll.u32 %v6740, 16
    %v6891 = vrot.slane %v6889, 1
    %v6892 = vsel %vm2006, %v6887, %v6891
    %v6893 = vshrl.u32 %v6739, 16
    %v6895 = vor.u32 %v6893, %v6883
    %v6897 = vshll.u32 %v6741, 16
    %v6899 = vrot.slane %v6897, 1
    %v6900 = vsel %vm2006, %v6895, %v6899
    %v6901 = vshrl.u32 %v6740, 16
    %v6903 = vor.u32 %v6901, %v6891
    %v6905 = vshll.u32 %v6742, 16
    %v6907 = vrot.slane %v6905, 1
    %v6908 = vsel %vm2006, %v6903, %v6907
    %v6909 = vshrl.u32 %v6741, 16
    %v6911 = vor.u32 %v6909, %v6899
    %v6913 = vshll.u32 %v6743, 16
    %v6915 = vrot.slane %v6913, 1
    %v6916 = vsel %vm2006, %v6911, %v6915
    %v6917 = vshrl.u32 %v6742, 16
    %v6919 = vor.u32 %v6917, %v6907
    %v6921 = vshll.u32 %v6744, 16
    %v6923 = vrot.slane %v6921, 1
    %v6924 = vsel %vm2006, %v6919, %v6923
    %v6925 = vshrl.u32 %v6743, 16
    %v6927 = vor.u32 %v6925, %v6915
    %v6929 = vshll.u32 %v6745, 16
    %v6931 = vrot.slane %v6929, 1
    %v6932 = vsel %vm2006, %v6927, %v6931
    %v6933 = vshrl.u32 %v6744, 16
    %v6935 = vor.u32 %v6933, %v6923
    %v6937 = vshll.u32 %v6746, 16
    %v6939 = vrot.slane %v6937, 1
    %v6940 = vsel %vm2006, %v6935, %v6939
    %v6941 = vshrl.u32 %v6745, 16
    %v6943 = vor.u32 %v6941, %v6931
    %v6945 = vshll.u32 %v6747, 16
    %v6947 = vrot.slane %v6945, 1
    %v6948 = vsel %vm2006, %v6943, %v6947
    %v6949 = vshrl.u32 %v6746, 16
    %v6951 = vor.u32 %v6949, %v6939
    %v6953 = vshll.u32 %v6748, 16
    %v6955 = vrot.slane %v6953, 1
    %v6956 = vsel %vm2006, %v6951, %v6955
    %v6957 = vshrl.u32 %v6747, 16
    %v6959 = vor.u32 %v6957, %v6947
    %v6961 = vshll.u32 %v6749, 16
    %v6963 = vrot.slane %v6961, 1
    %v6964 = vsel %vm2006, %v6959, %v6963
    %v6965 = vshrl.u32 %v6748, 16
    %v6967 = vor.u32 %v6965, %v6955
    %v6969 = vshll.u32 %v6750, 16
    %v6971 = vrot.slane %v6969, 1
    %v6972 = vsel %vm2006, %v6967, %v6971
    %v6973 = vshrl.u32 %v6749, 16
    %v6975 = vor.u32 %v6973, %v6963
    %v6977 = vshll.u32 %v6751, 16
    %v6979 = vrot.slane %v6977, 1
    %v6980 = vsel %vm2006, %v6975, %v6979
    %v6981 = vshrl.u32 %v6750, 16
    %v6983 = vor.u32 %v6981, %v6971
    %v6985 = vshll.u32 %v6752, 16
    %v6987 = vrot.slane %v6985, 1
    %v6988 = vsel %vm2006, %v6983, %v6987
    %v6989 = vshrl.u32 %v6751, 16
    %v6991 = vor.u32 %v6989, %v6979
    %v6993 = vshll.u32 %v6753, 16
    %v6995 = vrot.slane %v6993, 1
    %v6996 = vsel %vm2006, %v6991, %v6995
    %v6997 = vshrl.u32 %v6752, 16
    %v6999 = vor.u32 %v6997, %v6987
    %v7001 = vshll.u32 %v6754, 16
    %v7003 = vrot.slane %v7001, 1
    %v7004 = vsel %vm2006, %v6999, %v7003
    %v7005 = vshrl.u32 %v6753, 16
    %v7007 = vor.u32 %v7005, %v6995
    %v7009 = vshll.u32 %v6755, 16
    %v7011 = vrot.slane %v7009, 1
    %v7012 = vsel %vm2006, %v7007, %v7011
    %v7013 = vshrl.u32 %v6754, 16
    %v7015 = vor.u32 %v7013, %v7003
    %v7017 = vshll.u32 %v6756, 16
    %v7019 = vrot.slane %v7017, 1
    %v7020 = vsel %vm2006, %v7015, %v7019
    %v7085 = vunpack.c.l.b16 %v6592
    %v7086 = vunpack.c.h.b16 %v6592
    %v7087 = vunpack.c.l.b16 %v6593
    %v7088 = vunpack.c.h.b16 %v6593
    %v7089 = vunpack.c.l.b16 %v6594
    %v7090 = vunpack.c.h.b16 %v6594
    %v7091 = vunpack.c.l.b16 %v6595
    %v7092 = vunpack.c.h.b16 %v6595
    %v7093 = vunpack.c.l.b16 %v6596
    %v7094 = vunpack.c.h.b16 %v6596
    %v7095 = vunpack.c.l.b16 %v6597
    %v7096 = vunpack.c.h.b16 %v6597
    %v7097 = vunpack.c.l.b16 %v6598
    %v7098 = vunpack.c.h.b16 %v6598
    %v7099 = vunpack.c.l.b16 %v6599
    %v7100 = vunpack.c.h.b16 %v6599
    %v7101 = vunpack.c.l.b16 %v6600
    %v7102 = vunpack.c.h.b16 %v6600
    %v7103 = vunpack.c.l.b16 %v6601
    %v7104 = vunpack.c.h.b16 %v6601
    %v7105 = vunpack.c.l.b16 %v6602
    %v7106 = vunpack.c.h.b16 %v6602
    %v7107 = vunpack.c.l.b16 %v6603
    %v7108 = vunpack.c.h.b16 %v6603
    %v7109 = vunpack.c.l.b16 %v6604
    %v7110 = vunpack.c.h.b16 %v6604
    %v7111 = vunpack.c.l.b16 %v6605
    %v7112 = vunpack.c.h.b16 %v6605
    %v7113 = vunpack.c.l.b16 %v6606
    %v7114 = vunpack.c.h.b16 %v6606
    %v7115 = vunpack.c.l.b16 %v6607
    %v7116 = vunpack.c.h.b16 %v6607
    %v7117 = vunpack.c.l.b16 %v6608
    %v7118 = vunpack.c.h.b16 %v6608
    %v7119 = vunpack.c.l.b16 %v6609
    %v7120 = vunpack.c.h.b16 %v6609
    %v7121 = vunpack.c.l.b16 %v6610
    %v7122 = vunpack.c.h.b16 %v6610
    %v7123 = vunpack.c.l.b16 %v6611
    %v7124 = vunpack.c.h.b16 %v6611
    %v7125 = vunpack.c.l.b16 %v6612
    %v7126 = vunpack.c.h.b16 %v6612
    %v7127 = vunpack.c.l.b16 %v6613
    %v7128 = vunpack.c.h.b16 %v6613
    %v7129 = vunpack.c.l.b16 %v6614
    %v7130 = vunpack.c.h.b16 %v6614
    %v7131 = vunpack.c.l.b16 %v6615
    %v7132 = vunpack.c.h.b16 %v6615
    %v7133 = vunpack.c.l.b16 %v6616
    %v7134 = vunpack.c.h.b16 %v6616
    %v7135 = vunpack.c.l.b16 %v6617
    %v7136 = vunpack.c.h.b16 %v6617
    %v7137 = vunpack.c.l.b16 %v6618
    %v7138 = vunpack.c.h.b16 %v6618
    %v7139 = vunpack.c.l.b16 %v6619
    %v7140 = vunpack.c.h.b16 %v6619
    %v7141 = vunpack.c.l.b16 %v6620
    %v7142 = vunpack.c.h.b16 %v6620
    %v7143 = vunpack.c.l.b16 %v6621
    %v7144 = vunpack.c.h.b16 %v6621
    %v7145 = vunpack.c.l.b16 %v6622
    %v7146 = vunpack.c.h.b16 %v6622
    %v7147 = vunpack.c.l.b16 %v6623
    %v7148 = vunpack.c.h.b16 %v6623
    %v7149 = vpack.c.b16 %v7087, %v7085
    %v7150 = vpack.c.b16 %v7088, %v7086
    %v7151 = vpack.c.b16 %v7091, %v7089
    %v7152 = vpack.c.b16 %v7092, %v7090
    %v7153 = vpack.c.b16 %v7095, %v7093
    %v7154 = vpack.c.b16 %v7096, %v7094
    %v7155 = vpack.c.b16 %v7099, %v7097
    %v7156 = vpack.c.b16 %v7100, %v7098
    %v7157 = vpack.c.b16 %v7103, %v7101
    %v7158 = vpack.c.b16 %v7104, %v7102
    %v7159 = vpack.c.b16 %v7107, %v7105
    %v7160 = vpack.c.b16 %v7108, %v7106
    %v7161 = vpack.c.b16 %v7111, %v7109
    %v7162 = vpack.c.b16 %v7112, %v7110
    %v7163 = vpack.c.b16 %v7115, %v7113
    %v7164 = vpack.c.b16 %v7116, %v7114
    %v7165 = vpack.c.b16 %v7119, %v7117
    %v7166 = vpack.c.b16 %v7120, %v7118
    %v7167 = vpack.c.b16 %v7123, %v7121
    %v7168 = vpack.c.b16 %v7124, %v7122
    %v7169 = vpack.c.b16 %v7127, %v7125
    %v7170 = vpack.c.b16 %v7128, %v7126
    %v7171 = vpack.c.b16 %v7131, %v7129
    %v7172 = vpack.c.b16 %v7132, %v7130
    %v7173 = vpack.c.b16 %v7135, %v7133
    %v7174 = vpack.c.b16 %v7136, %v7134
    %v7175 = vpack.c.b16 %v7139, %v7137
    %v7176 = vpack.c.b16 %v7140, %v7138
    %v7177 = vpack.c.b16 %v7143, %v7141
    %v7178 = vpack.c.b16 %v7144, %v7142
    %v7179 = vpack.c.b16 %v7147, %v7145
    %v7180 = vpack.c.b16 %v7148, %v7146
    %7213 = vmatprep.subr.bf16.mxu0 %v7164
    %7214 = vmatpush1.bf16.msra.mxu0 %v7163
    %7215 = vmatprep.subr.bf16.mxu0 %v7162
    %7216 = vmatpush1.bf16.msra.mxu0 %v7161
    %7217 = vmatprep.subr.bf16.mxu0 %v7160
    %7218 = vmatpush1.bf16.msra.mxu0 %v7159
    %7219 = vmatprep.subr.bf16.mxu0 %v7158
    %7220 = vmatpush1.bf16.msra.mxu0 %v7157
    %7221 = vmatprep.subr.bf16.mxu0 %v7156
    %7222 = vmatpush1.bf16.msra.mxu0 %v7155
    %7223 = vmatprep.subr.bf16.mxu0 %v7154
    %7224 = vmatpush1.bf16.msra.mxu0 %v7153
    %7225 = vmatprep.subr.bf16.mxu0 %v7152
    %7226 = vmatpush1.bf16.msra.mxu0 %v7151
    %7227 = vmatprep.subr.bf16.mxu0 %v7150
    %7228 = vmatpush1.bf16.msra.mxu0 %v7149
    %7229 = vmatprep.subr.bf16.mxu0 %v7180
    %7230 = vmatpush2.bf16.msra.mxu0 %v7179
    %7231 = vmatprep.subr.bf16.mxu0 %v7178
    %7232 = vmatpush2.bf16.msra.mxu0 %v7177
    %7233 = vmatprep.subr.bf16.mxu0 %v7176
    %7234 = vmatpush2.bf16.msra.mxu0 %v7175
    %7235 = vmatprep.subr.bf16.mxu0 %v7174
    %7236 = vmatpush2.bf16.msra.mxu0 %v7173
    %7237 = vmatprep.subr.bf16.mxu0 %v7172
    %7238 = vmatpush2.bf16.msra.mxu0 %v7171
    %7239 = vmatprep.subr.bf16.mxu0 %v7170
    %7240 = vmatpush2.bf16.msra.mxu0 %v7169
    %7241 = vmatprep.subr.bf16.mxu0 %v7168
    %7242 = vmatpush2.bf16.msra.mxu0 %v7167
    %7243 = vmatprep.subr.bf16.mxu0 %v7166
    %7244 = vmatpush2.bf16.msra.mxu0 %v7165
    %7245 = vmatprep.mubr.bf16.mxu0 %v6780
    %7246 = vmatmul.mubr.bf16.gmra.mxu0 %v6768
    %v7247 = vpop.f32.mrf.mxu0
    %v7248 = vadd.f32 0.0, %v7247
    %v7249 = vpop.f32.mrf.mxu0
    %v7250 = vadd.f32 0.0, %v7249
    %v7251 = vpop.f32.mrf.mxu0
    %v7252 = vadd.f32 0.0, %v7251
    %v7253 = vpop.f32.mrf.mxu0
    %v7254 = vadd.f32 0.0, %v7253
    %7255 = vmatprep.mubr.bf16.mxu0 %v6796
    %7256 = vmatmul.mubr.bf16.gmra.mxu0 %v6788
    %v7257 = vpop.f32.mrf.mxu0
    %v7258 = vadd.f32 0.0, %v7257
    %v7259 = vpop.f32.mrf.mxu0
    %v7260 = vadd.f32 0.0, %v7259
    %v7261 = vpop.f32.mrf.mxu0
    %v7262 = vadd.f32 0.0, %v7261
    %v7263 = vpop.f32.mrf.mxu0
    %v7264 = vadd.f32 0.0, %v7263
    %7265 = vmatprep.mubr.bf16.mxu0 %v6812
    %7266 = vmatmul.mubr.bf16.gmra.mxu0 %v6804
    %v7267 = vpop.f32.mrf.mxu0
    %v7268 = vadd.f32 0.0, %v7267
    %v7269 = vpop.f32.mrf.mxu0
    %v7270 = vadd.f32 0.0, %v7269
    %v7271 = vpop.f32.mrf.mxu0
    %v7272 = vadd.f32 0.0, %v7271
    %v7273 = vpop.f32.mrf.mxu0
    %v7274 = vadd.f32 0.0, %v7273
    %7275 = vmatprep.mubr.bf16.mxu0 %v6828
    %7276 = vmatmul.mubr.bf16.gmra.mxu0 %v6820
    %v7277 = vpop.f32.mrf.mxu0
    %v7278 = vadd.f32 0.0, %v7277
    %v7279 = vpop.f32.mrf.mxu0
    %v7280 = vadd.f32 0.0, %v7279
    %v7281 = vpop.f32.mrf.mxu0
    %v7282 = vadd.f32 0.0, %v7281
    %v7283 = vpop.f32.mrf.mxu0
    %v7284 = vadd.f32 0.0, %v7283
    %7285 = vmatprep.mubr.bf16.mxu0 %v6844
    %7286 = vmatmul.mubr.bf16.gmra.mxu0 %v6836
    %v7287 = vpop.f32.mrf.mxu0
    %v7288 = vadd.f32 0.0, %v7287
    %v7289 = vpop.f32.mrf.mxu0
    %v7290 = vadd.f32 0.0, %v7289
    %v7291 = vpop.f32.mrf.mxu0
    %v7292 = vadd.f32 0.0, %v7291
    %v7293 = vpop.f32.mrf.mxu0
    %v7294 = vadd.f32 0.0, %v7293
    %7295 = vmatprep.mubr.bf16.mxu0 %v6860
    %7296 = vmatmul.mubr.bf16.gmra.mxu0 %v6852
    %v7297 = vpop.f32.mrf.mxu0
    %v7298 = vadd.f32 0.0, %v7297
    %v7299 = vpop.f32.mrf.mxu0
    %v7300 = vadd.f32 0.0, %v7299
    %v7301 = vpop.f32.mrf.mxu0
    %v7302 = vadd.f32 0.0, %v7301
    %v7303 = vpop.f32.mrf.mxu0
    %v7304 = vadd.f32 0.0, %v7303
    %7305 = vmatprep.mubr.bf16.mxu0 %v6876
    %7306 = vmatmul.mubr.bf16.gmra.mxu0 %v6868
    %v7307 = vpop.f32.mrf.mxu0
    %v7308 = vadd.f32 0.0, %v7307
    %v7309 = vpop.f32.mrf.mxu0
    %v7310 = vadd.f32 0.0, %v7309
    %v7311 = vpop.f32.mrf.mxu0
    %v7312 = vadd.f32 0.0, %v7311
    %v7313 = vpop.f32.mrf.mxu0
    %v7314 = vadd.f32 0.0, %v7313
    %7315 = vmatprep.mubr.bf16.mxu0 %v6892
    %7316 = vmatmul.mubr.bf16.gmra.mxu0 %v6884
    %v7317 = vpop.f32.mrf.mxu0
    %v7318 = vadd.f32 0.0, %v7317
    %v7319 = vpop.f32.mrf.mxu0
    %v7320 = vadd.f32 0.0, %v7319
    %v7321 = vpop.f32.mrf.mxu0
    %v7322 = vadd.f32 0.0, %v7321
    %v7323 = vpop.f32.mrf.mxu0
    %v7324 = vadd.f32 0.0, %v7323
    %7325 = vmatprep.mubr.bf16.mxu0 %v6908
    %7326 = vmatmul.mubr.bf16.gmra.mxu0 %v6900
    %v7327 = vpop.f32.mrf.mxu0
    %v7328 = vadd.f32 0.0, %v7327
    %v7329 = vpop.f32.mrf.mxu0
    %v7330 = vadd.f32 0.0, %v7329
    %v7331 = vpop.f32.mrf.mxu0
    %v7332 = vadd.f32 0.0, %v7331
    %v7333 = vpop.f32.mrf.mxu0
    %v7334 = vadd.f32 0.0, %v7333
    %7335 = vmatprep.mubr.bf16.mxu0 %v6924
    %7336 = vmatmul.mubr.bf16.gmra.mxu0 %v6916
    %v7337 = vpop.f32.mrf.mxu0
    %v7338 = vadd.f32 0.0, %v7337
    %v7339 = vpop.f32.mrf.mxu0
    %v7340 = vadd.f32 0.0, %v7339
    %v7341 = vpop.f32.mrf.mxu0
    %v7342 = vadd.f32 0.0, %v7341
    %v7343 = vpop.f32.mrf.mxu0
    %v7344 = vadd.f32 0.0, %v7343
    %7345 = vmatprep.mubr.bf16.mxu0 %v6940
    %7346 = vmatmul.mubr.bf16.gmra.mxu0 %v6932
    %v7347 = vpop.f32.mrf.mxu0
    %v7348 = vadd.f32 0.0, %v7347
    %v7349 = vpop.f32.mrf.mxu0
    %v7350 = vadd.f32 0.0, %v7349
    %v7351 = vpop.f32.mrf.mxu0
    %v7352 = vadd.f32 0.0, %v7351
    %v7353 = vpop.f32.mrf.mxu0
    %v7354 = vadd.f32 0.0, %v7353
    %7355 = vmatprep.mubr.bf16.mxu0 %v6956
    %7356 = vmatmul.mubr.bf16.gmra.mxu0 %v6948
    %v7357 = vpop.f32.mrf.mxu0
    %v7358 = vadd.f32 0.0, %v7357
    %v7359 = vpop.f32.mrf.mxu0
    %v7360 = vadd.f32 0.0, %v7359
    %v7361 = vpop.f32.mrf.mxu0
    %v7362 = vadd.f32 0.0, %v7361
    %v7363 = vpop.f32.mrf.mxu0
    %v7364 = vadd.f32 0.0, %v7363
    %7365 = vmatprep.mubr.bf16.mxu0 %v6972
    %7366 = vmatmul.mubr.bf16.gmra.mxu0 %v6964
    %v7367 = vpop.f32.mrf.mxu0
    %v7368 = vadd.f32 0.0, %v7367
    %v7369 = vpop.f32.mrf.mxu0
    %v7370 = vadd.f32 0.0, %v7369
    %v7371 = vpop.f32.mrf.mxu0
    %v7372 = vadd.f32 0.0, %v7371
    %v7373 = vpop.f32.mrf.mxu0
    %v7374 = vadd.f32 0.0, %v7373
    %7375 = vmatprep.mubr.bf16.mxu0 %v6988
    %7376 = vmatmul.mubr.bf16.gmra.mxu0 %v6980
    %v7377 = vpop.f32.mrf.mxu0
    %v7378 = vadd.f32 0.0, %v7377
    %v7379 = vpop.f32.mrf.mxu0
    %v7380 = vadd.f32 0.0, %v7379
    %v7381 = vpop.f32.mrf.mxu0
    %v7382 = vadd.f32 0.0, %v7381
    %v7383 = vpop.f32.mrf.mxu0
    %v7384 = vadd.f32 0.0, %v7383
    %7385 = vmatprep.mubr.bf16.mxu0 %v7004
    %7386 = vmatmul.mubr.bf16.gmra.mxu0 %v6996
    %v7387 = vpop.f32.mrf.mxu0
    %v7388 = vadd.f32 0.0, %v7387
    %v7389 = vpop.f32.mrf.mxu0
    %v7390 = vadd.f32 0.0, %v7389
    %v7391 = vpop.f32.mrf.mxu0
    %v7392 = vadd.f32 0.0, %v7391
    %v7393 = vpop.f32.mrf.mxu0
    %v7394 = vadd.f32 0.0, %v7393
    %7395 = vmatprep.mubr.bf16.mxu0 %v7020
    %7396 = vmatmul.mubr.bf16.gmra.mxu0 %v7012
    %v7397 = vpop.f32.mrf.mxu0
    %v7398 = vadd.f32 0.0, %v7397
    %v7399 = vpop.f32.mrf.mxu0
    %v7400 = vadd.f32 0.0, %v7399
    %v7401 = vpop.f32.mrf.mxu0
    %v7402 = vadd.f32 0.0, %v7401
    %v7403 = vpop.f32.mrf.mxu0
    %v7404 = vadd.f32 0.0, %v7403
    %7405 = vdwg.mxu0
    %v7406 = vadd.f32 %v6495, %v7248
    %v7407 = vadd.f32 %v6496, %v7250
    %v7408 = vadd.f32 %v6497, %v7252
    %v7409 = vadd.f32 %v6498, %v7254
    %v7410 = vadd.f32 %v6499, %v7258
    %v7411 = vadd.f32 %v6500, %v7260
    %v7412 = vadd.f32 %v6501, %v7262
    %v7413 = vadd.f32 %v6502, %v7264
    %v7414 = vadd.f32 %v6503, %v7268
    %v7415 = vadd.f32 %v6504, %v7270
    %v7416 = vadd.f32 %v6505, %v7272
    %v7417 = vadd.f32 %v6506, %v7274
    %v7418 = vadd.f32 %v6507, %v7278
    %v7419 = vadd.f32 %v6508, %v7280
    %v7420 = vadd.f32 %v6509, %v7282
    %v7421 = vadd.f32 %v6510, %v7284
    %v7422 = vadd.f32 %v6511, %v7288
    %v7423 = vadd.f32 %v6512, %v7290
    %v7424 = vadd.f32 %v6513, %v7292
    %v7425 = vadd.f32 %v6514, %v7294
    %v7426 = vadd.f32 %v6515, %v7298
    %v7427 = vadd.f32 %v6516, %v7300
    %v7428 = vadd.f32 %v6517, %v7302
    %v7429 = vadd.f32 %v6518, %v7304
    %v7430 = vadd.f32 %v6519, %v7308
    %v7431 = vadd.f32 %v6520, %v7310
    %v7432 = vadd.f32 %v6521, %v7312
    %v7433 = vadd.f32 %v6522, %v7314
    %v7434 = vadd.f32 %v6523, %v7318
    %v7435 = vadd.f32 %v6524, %v7320
    %v7436 = vadd.f32 %v6525, %v7322
    %v7437 = vadd.f32 %v6526, %v7324
    %v7438 = vadd.f32 %v6527, %v7328
    %v7439 = vadd.f32 %v6528, %v7330
    %v7440 = vadd.f32 %v6529, %v7332
    %v7441 = vadd.f32 %v6530, %v7334
    %v7442 = vadd.f32 %v6531, %v7338
    %v7443 = vadd.f32 %v6532, %v7340
    %v7444 = vadd.f32 %v6533, %v7342
    %v7445 = vadd.f32 %v6534, %v7344
    %v7446 = vadd.f32 %v6535, %v7348
    %v7447 = vadd.f32 %v6536, %v7350
    %v7448 = vadd.f32 %v6537, %v7352
    %v7449 = vadd.f32 %v6538, %v7354
    %v7450 = vadd.f32 %v6539, %v7358
    %v7451 = vadd.f32 %v6540, %v7360
    %v7452 = vadd.f32 %v6541, %v7362
    %v7453 = vadd.f32 %v6542, %v7364
    %v7454 = vadd.f32 %v6543, %v7368
    %v7455 = vadd.f32 %v6544, %v7370
    %v7456 = vadd.f32 %v6545, %v7372
    %v7457 = vadd.f32 %v6546, %v7374
    %v7458 = vadd.f32 %v6547, %v7378
    %v7459 = vadd.f32 %v6548, %v7380
    %v7460 = vadd.f32 %v6549, %v7382
    %v7461 = vadd.f32 %v6550, %v7384
    %v7462 = vadd.f32 %v6551, %v7388
    %v7463 = vadd.f32 %v6552, %v7390
    %v7464 = vadd.f32 %v6553, %v7392
    %v7465 = vadd.f32 %v6554, %v7394
    %v7466 = vadd.f32 %v6555, %v7398
    %v7467 = vadd.f32 %v6556, %v7400
    %v7468 = vadd.f32 %v6557, %v7402
    %v7469 = vadd.f32 %v6558, %v7404
    %v7470 = vmul.f32 %v7406, %v439
    %v7471 = vmul.f32 %v7407, %v439
    %v7472 = vmul.f32 %v7408, %v440
    %v7473 = vmul.f32 %v7409, %v440
    %v7474 = vmul.f32 %v7410, %v441
    %v7475 = vmul.f32 %v7411, %v441
    %v7476 = vmul.f32 %v7412, %v442
    %v7477 = vmul.f32 %v7413, %v442
    %v7478 = vmul.f32 %v7414, %v443
    %v7479 = vmul.f32 %v7415, %v443
    %v7480 = vmul.f32 %v7416, %v444
    %v7481 = vmul.f32 %v7417, %v444
    %v7482 = vmul.f32 %v7418, %v445
    %v7483 = vmul.f32 %v7419, %v445
    %v7484 = vmul.f32 %v7420, %v446
    %v7485 = vmul.f32 %v7421, %v446
    %v7486 = vmul.f32 %v7422, %v447
    %v7487 = vmul.f32 %v7423, %v447
    %v7488 = vmul.f32 %v7424, %v448
    %v7489 = vmul.f32 %v7425, %v448
    %v7490 = vmul.f32 %v7426, %v449
    %v7491 = vmul.f32 %v7427, %v449
    %v7492 = vmul.f32 %v7428, %v450
    %v7493 = vmul.f32 %v7429, %v450
    %v7494 = vmul.f32 %v7430, %v451
    %v7495 = vmul.f32 %v7431, %v451
    %v7496 = vmul.f32 %v7432, %v452
    %v7497 = vmul.f32 %v7433, %v452
    %v7498 = vmul.f32 %v7434, %v453
    %v7499 = vmul.f32 %v7435, %v453
    %v7500 = vmul.f32 %v7436, %v454
    %v7501 = vmul.f32 %v7437, %v454
    %v7502 = vmul.f32 %v7438, %v455
    %v7503 = vmul.f32 %v7439, %v455
    %v7504 = vmul.f32 %v7440, %v456
    %v7505 = vmul.f32 %v7441, %v456
    %v7506 = vmul.f32 %v7442, %v457
    %v7507 = vmul.f32 %v7443, %v457
    %v7508 = vmul.f32 %v7444, %v458
    %v7509 = vmul.f32 %v7445, %v458
    %v7510 = vmul.f32 %v7446, %v459
    %v7511 = vmul.f32 %v7447, %v459
    %v7512 = vmul.f32 %v7448, %v460
    %v7513 = vmul.f32 %v7449, %v460
    %v7514 = vmul.f32 %v7450, %v461
    %v7515 = vmul.f32 %v7451, %v461
    %v7516 = vmul.f32 %v7452, %v462
    %v7517 = vmul.f32 %v7453, %v462
    %v7518 = vmul.f32 %v7454, %v463
    %v7519 = vmul.f32 %v7455, %v463
    %v7520 = vmul.f32 %v7456, %v464
    %v7521 = vmul.f32 %v7457, %v464
    %v7522 = vmul.f32 %v7458, %v465
    %v7523 = vmul.f32 %v7459, %v465
    %v7524 = vmul.f32 %v7460, %v466
    %v7525 = vmul.f32 %v7461, %v466
    %v7526 = vmul.f32 %v7462, %v467
    %v7527 = vmul.f32 %v7463, %v467
    %v7528 = vmul.f32 %v7464, %v468
    %v7529 = vmul.f32 %v7465, %v468
    %v7530 = vmul.f32 %v7466, %v469
    %v7531 = vmul.f32 %v7467, %v469
    %v7532 = vmul.f32 %v7468, %v470
    %v7533 = vmul.f32 %v7469, %v470
    %v7534 = vadd.f32 %v7470, %v7472
    %v7535 = vadd.f32 %v7534, %v7474
    %v7536 = vadd.f32 %v7535, %v7476
    %v7537 = vadd.f32 %v7536, %v7478
    %v7538 = vadd.f32 %v7537, %v7480
    %v7539 = vadd.f32 %v7538, %v7482
    %v7540 = vadd.f32 %v7539, %v7484
    %v7541 = vadd.f32 %v7540, %v7486
    %v7542 = vadd.f32 %v7541, %v7488
    %v7543 = vadd.f32 %v7542, %v7490
    %v7544 = vadd.f32 %v7543, %v7492
    %v7545 = vadd.f32 %v7544, %v7494
    %v7546 = vadd.f32 %v7545, %v7496
    %v7547 = vadd.f32 %v7546, %v7498
    %v7548 = vadd.f32 %v7547, %v7500
    %v7549 = vadd.f32 %v7548, %v7502
    %v7550 = vadd.f32 %v7549, %v7504
    %v7551 = vadd.f32 %v7550, %v7506
    %v7552 = vadd.f32 %v7551, %v7508
    %v7553 = vadd.f32 %v7552, %v7510
    %v7554 = vadd.f32 %v7553, %v7512
    %v7555 = vadd.f32 %v7554, %v7514
    %v7556 = vadd.f32 %v7555, %v7516
    %v7557 = vadd.f32 %v7556, %v7518
    %v7558 = vadd.f32 %v7557, %v7520
    %v7559 = vadd.f32 %v7558, %v7522
    %v7560 = vadd.f32 %v7559, %v7524
    %v7561 = vadd.f32 %v7560, %v7526
    %v7562 = vadd.f32 %v7561, %v7528
    %v7563 = vadd.f32 %v7562, %v7530
    %v7564 = vadd.f32 %v7563, %v7532
    %v7565 = vrot.slane %v7564, 4
    %v7566 = vadd.f32 %v7564, %v7565
    %v7567 = vrot.slane %v7566, 2
    %v7568 = vadd.f32 %v7566, %v7567
    %v7569 = vrot.slane %v7568, 1
    %v7570 = vadd.f32 %v7568, %v7569
    %v7571 = vadd.f32 %v7471, %v7473
    %v7572 = vadd.f32 %v7571, %v7475
    %v7573 = vadd.f32 %v7572, %v7477
    %v7574 = vadd.f32 %v7573, %v7479
    %v7575 = vadd.f32 %v7574, %v7481
    %v7576 = vadd.f32 %v7575, %v7483
    %v7577 = vadd.f32 %v7576, %v7485
    %v7578 = vadd.f32 %v7577, %v7487
    %v7579 = vadd.f32 %v7578, %v7489
    %v7580 = vadd.f32 %v7579, %v7491
    %v7581 = vadd.f32 %v7580, %v7493
    %v7582 = vadd.f32 %v7581, %v7495
    %v7583 = vadd.f32 %v7582, %v7497
    %v7584 = vadd.f32 %v7583, %v7499
    %v7585 = vadd.f32 %v7584, %v7501
    %v7586 = vadd.f32 %v7585, %v7503
    %v7587 = vadd.f32 %v7586, %v7505
    %v7588 = vadd.f32 %v7587, %v7507
    %v7589 = vadd.f32 %v7588, %v7509
    %v7590 = vadd.f32 %v7589, %v7511
    %v7591 = vadd.f32 %v7590, %v7513
    %v7592 = vadd.f32 %v7591, %v7515
    %v7593 = vadd.f32 %v7592, %v7517
    %v7594 = vadd.f32 %v7593, %v7519
    %v7595 = vadd.f32 %v7594, %v7521
    %v7596 = vadd.f32 %v7595, %v7523
    %v7597 = vadd.f32 %v7596, %v7525
    %v7598 = vadd.f32 %v7597, %v7527
    %v7599 = vadd.f32 %v7598, %v7529
    %v7600 = vadd.f32 %v7599, %v7531
    %v7601 = vadd.f32 %v7600, %v7533
    %v7602 = vrot.slane %v7601, 4
    %v7603 = vadd.f32 %v7601, %v7602
    %v7604 = vrot.slane %v7603, 2
    %v7605 = vadd.f32 %v7603, %v7604
    %v7606 = vrot.slane %v7605, 1
    %v7607 = vadd.f32 %v7605, %v7606
    %v7608 = vmul.f32 %v7570, 0.0051020407
    %v7609 = vmul.f32 %v7607, 0.0051020407
    %v7610 = vsub.f32 %v7406, %v7608
    %v7611 = vsub.f32 %v7407, %v7609
    %v7612 = vsub.f32 %v7408, %v7608
    %v7613 = vsub.f32 %v7409, %v7609
    %v7614 = vsub.f32 %v7410, %v7608
    %v7615 = vsub.f32 %v7411, %v7609
    %v7616 = vsub.f32 %v7412, %v7608
    %v7617 = vsub.f32 %v7413, %v7609
    %v7618 = vsub.f32 %v7414, %v7608
    %v7619 = vsub.f32 %v7415, %v7609
    %v7620 = vsub.f32 %v7416, %v7608
    %v7621 = vsub.f32 %v7417, %v7609
    %v7622 = vsub.f32 %v7418, %v7608
    %v7623 = vsub.f32 %v7419, %v7609
    %v7624 = vsub.f32 %v7420, %v7608
    %v7625 = vsub.f32 %v7421, %v7609
    %v7626 = vsub.f32 %v7422, %v7608
    %v7627 = vsub.f32 %v7423, %v7609
    %v7628 = vsub.f32 %v7424, %v7608
    %v7629 = vsub.f32 %v7425, %v7609
    %v7630 = vsub.f32 %v7426, %v7608
    %v7631 = vsub.f32 %v7427, %v7609
    %v7632 = vsub.f32 %v7428, %v7608
    %v7633 = vsub.f32 %v7429, %v7609
    %v7634 = vsub.f32 %v7430, %v7608
    %v7635 = vsub.f32 %v7431, %v7609
    %v7636 = vsub.f32 %v7432, %v7608
    %v7637 = vsub.f32 %v7433, %v7609
    %v7638 = vsub.f32 %v7434, %v7608
    %v7639 = vsub.f32 %v7435, %v7609
    %v7640 = vsub.f32 %v7436, %v7608
    %v7641 = vsub.f32 %v7437, %v7609
    %v7642 = vsub.f32 %v7438, %v7608
    %v7643 = vsub.f32 %v7439, %v7609
    %v7644 = vsub.f32 %v7440, %v7608
    %v7645 = vsub.f32 %v7441, %v7609
    %v7646 = vsub.f32 %v7442, %v7608
    %v7647 = vsub.f32 %v7443, %v7609
    %v7648 = vsub.f32 %v7444, %v7608
    %v7649 = vsub.f32 %v7445, %v7609
    %v7650 = vsub.f32 %v7446, %v7608
    %v7651 = vsub.f32 %v7447, %v7609
    %v7652 = vsub.f32 %v7448, %v7608
    %v7653 = vsub.f32 %v7449, %v7609
    %v7654 = vsub.f32 %v7450, %v7608
    %v7655 = vsub.f32 %v7451, %v7609
    %v7656 = vsub.f32 %v7452, %v7608
    %v7657 = vsub.f32 %v7453, %v7609
    %v7658 = vsub.f32 %v7454, %v7608
    %v7659 = vsub.f32 %v7455, %v7609
    %v7660 = vsub.f32 %v7456, %v7608
    %v7661 = vsub.f32 %v7457, %v7609
    %v7662 = vsub.f32 %v7458, %v7608
    %v7663 = vsub.f32 %v7459, %v7609
    %v7664 = vsub.f32 %v7460, %v7608
    %v7665 = vsub.f32 %v7461, %v7609
    %v7666 = vsub.f32 %v7462, %v7608
    %v7667 = vsub.f32 %v7463, %v7609
    %v7668 = vsub.f32 %v7464, %v7608
    %v7669 = vsub.f32 %v7465, %v7609
    %v7670 = vsub.f32 %v7466, %v7608
    %v7671 = vsub.f32 %v7467, %v7609
    %v7672 = vsub.f32 %v7468, %v7608
    %v7673 = vsub.f32 %v7469, %v7609
    %v7674 = vmul.f32 %v7610, %v439
    %v7675 = vmul.f32 %v7611, %v439
    %v7676 = vmul.f32 %v7612, %v440
    %v7677 = vmul.f32 %v7613, %v440
    %v7678 = vmul.f32 %v7614, %v441
    %v7679 = vmul.f32 %v7615, %v441
    %v7680 = vmul.f32 %v7616, %v442
    %v7681 = vmul.f32 %v7617, %v442
    %v7682 = vmul.f32 %v7618, %v443
    %v7683 = vmul.f32 %v7619, %v443
    %v7684 = vmul.f32 %v7620, %v444
    %v7685 = vmul.f32 %v7621, %v444
    %v7686 = vmul.f32 %v7622, %v445
    %v7687 = vmul.f32 %v7623, %v445
    %v7688 = vmul.f32 %v7624, %v446
    %v7689 = vmul.f32 %v7625, %v446
    %v7690 = vmul.f32 %v7626, %v447
    %v7691 = vmul.f32 %v7627, %v447
    %v7692 = vmul.f32 %v7628, %v448
    %v7693 = vmul.f32 %v7629, %v448
    %v7694 = vmul.f32 %v7630, %v449
    %v7695 = vmul.f32 %v7631, %v449
    %v7696 = vmul.f32 %v7632, %v450
    %v7697 = vmul.f32 %v7633, %v450
    %v7698 = vmul.f32 %v7634, %v451
    %v7699 = vmul.f32 %v7635, %v451
    %v7700 = vmul.f32 %v7636, %v452
    %v7701 = vmul.f32 %v7637, %v452
    %v7702 = vmul.f32 %v7638, %v453
    %v7703 = vmul.f32 %v7639, %v453
    %v7704 = vmul.f32 %v7640, %v454
    %v7705 = vmul.f32 %v7641, %v454
    %v7706 = vmul.f32 %v7642, %v455
    %v7707 = vmul.f32 %v7643, %v455
    %v7708 = vmul.f32 %v7644, %v456
    %v7709 = vmul.f32 %v7645, %v456
    %v7710 = vmul.f32 %v7646, %v457
    %v7711 = vmul.f32 %v7647, %v457
    %v7712 = vmul.f32 %v7648, %v458
    %v7713 = vmul.f32 %v7649, %v458
    %v7714 = vmul.f32 %v7650, %v459
    %v7715 = vmul.f32 %v7651, %v459
    %v7716 = vmul.f32 %v7652, %v460
    %v7717 = vmul.f32 %v7653, %v460
    %v7718 = vmul.f32 %v7654, %v461
    %v7719 = vmul.f32 %v7655, %v461
    %v7720 = vmul.f32 %v7656, %v462
    %v7721 = vmul.f32 %v7657, %v462
    %v7722 = vmul.f32 %v7658, %v463
    %v7723 = vmul.f32 %v7659, %v463
    %v7724 = vmul.f32 %v7660, %v464
    %v7725 = vmul.f32 %v7661, %v464
    %v7726 = vmul.f32 %v7662, %v465
    %v7727 = vmul.f32 %v7663, %v465
    %v7728 = vmul.f32 %v7664, %v466
    %v7729 = vmul.f32 %v7665, %v466
    %v7730 = vmul.f32 %v7666, %v467
    %v7731 = vmul.f32 %v7667, %v467
    %v7732 = vmul.f32 %v7668, %v468
    %v7733 = vmul.f32 %v7669, %v468
    %v7734 = vmul.f32 %v7670, %v469
    %v7735 = vmul.f32 %v7671, %v469
    %v7736 = vmul.f32 %v7672, %v470
    %v7737 = vmul.f32 %v7673, %v470
    %v7738 = vmul.f32 %v7674, %v7674
    %v7739 = vmul.f32 %v7675, %v7675
    %v7740 = vmul.f32 %v7676, %v7676
    %v7741 = vmul.f32 %v7677, %v7677
    %v7742 = vmul.f32 %v7678, %v7678
    %v7743 = vmul.f32 %v7679, %v7679
    %v7744 = vmul.f32 %v7680, %v7680
    %v7745 = vmul.f32 %v7681, %v7681
    %v7746 = vmul.f32 %v7682, %v7682
    %v7747 = vmul.f32 %v7683, %v7683
    %v7748 = vmul.f32 %v7684, %v7684
    %v7749 = vmul.f32 %v7685, %v7685
    %v7750 = vmul.f32 %v7686, %v7686
    %v7751 = vmul.f32 %v7687, %v7687
    %v7752 = vmul.f32 %v7688, %v7688
    %v7753 = vmul.f32 %v7689, %v7689
    %v7754 = vmul.f32 %v7690, %v7690
    %v7755 = vmul.f32 %v7691, %v7691
    %v7756 = vmul.f32 %v7692, %v7692
    %v7757 = vmul.f32 %v7693, %v7693
    %v7758 = vmul.f32 %v7694, %v7694
    %v7759 = vmul.f32 %v7695, %v7695
    %v7760 = vmul.f32 %v7696, %v7696
    %v7761 = vmul.f32 %v7697, %v7697
    %v7762 = vmul.f32 %v7698, %v7698
    %v7763 = vmul.f32 %v7699, %v7699
    %v7764 = vmul.f32 %v7700, %v7700
    %v7765 = vmul.f32 %v7701, %v7701
    %v7766 = vmul.f32 %v7702, %v7702
    %v7767 = vmul.f32 %v7703, %v7703
    %v7768 = vmul.f32 %v7704, %v7704
    %v7769 = vmul.f32 %v7705, %v7705
    %v7770 = vmul.f32 %v7706, %v7706
    %v7771 = vmul.f32 %v7707, %v7707
    %v7772 = vmul.f32 %v7708, %v7708
    %v7773 = vmul.f32 %v7709, %v7709
    %v7774 = vmul.f32 %v7710, %v7710
    %v7775 = vmul.f32 %v7711, %v7711
    %v7776 = vmul.f32 %v7712, %v7712
    %v7777 = vmul.f32 %v7713, %v7713
    %v7778 = vmul.f32 %v7714, %v7714
    %v7779 = vmul.f32 %v7715, %v7715
    %v7780 = vmul.f32 %v7716, %v7716
    %v7781 = vmul.f32 %v7717, %v7717
    %v7782 = vmul.f32 %v7718, %v7718
    %v7783 = vmul.f32 %v7719, %v7719
    %v7784 = vmul.f32 %v7720, %v7720
    %v7785 = vmul.f32 %v7721, %v7721
    %v7786 = vmul.f32 %v7722, %v7722
    %v7787 = vmul.f32 %v7723, %v7723
    %v7788 = vmul.f32 %v7724, %v7724
    %v7789 = vmul.f32 %v7725, %v7725
    %v7790 = vmul.f32 %v7726, %v7726
    %v7791 = vmul.f32 %v7727, %v7727
    %v7792 = vmul.f32 %v7728, %v7728
    %v7793 = vmul.f32 %v7729, %v7729
    %v7794 = vmul.f32 %v7730, %v7730
    %v7795 = vmul.f32 %v7731, %v7731
    %v7796 = vmul.f32 %v7732, %v7732
    %v7797 = vmul.f32 %v7733, %v7733
    %v7798 = vmul.f32 %v7734, %v7734
    %v7799 = vmul.f32 %v7735, %v7735
    %v7800 = vmul.f32 %v7736, %v7736
    %v7801 = vmul.f32 %v7737, %v7737
    %v7802 = vadd.f32 %v7738, %v7740
    %v7803 = vadd.f32 %v7802, %v7742
    %v7804 = vadd.f32 %v7803, %v7744
    %v7805 = vadd.f32 %v7804, %v7746
    %v7806 = vadd.f32 %v7805, %v7748
    %v7807 = vadd.f32 %v7806, %v7750
    %v7808 = vadd.f32 %v7807, %v7752
    %v7809 = vadd.f32 %v7808, %v7754
    %v7810 = vadd.f32 %v7809, %v7756
    %v7811 = vadd.f32 %v7810, %v7758
    %v7812 = vadd.f32 %v7811, %v7760
    %v7813 = vadd.f32 %v7812, %v7762
    %v7814 = vadd.f32 %v7813, %v7764
    %v7815 = vadd.f32 %v7814, %v7766
    %v7816 = vadd.f32 %v7815, %v7768
    %v7817 = vadd.f32 %v7816, %v7770
    %v7818 = vadd.f32 %v7817, %v7772
    %v7819 = vadd.f32 %v7818, %v7774
    %v7820 = vadd.f32 %v7819, %v7776
    %v7821 = vadd.f32 %v7820, %v7778
    %v7822 = vadd.f32 %v7821, %v7780
    %v7823 = vadd.f32 %v7822, %v7782
    %v7824 = vadd.f32 %v7823, %v7784
    %v7825 = vadd.f32 %v7824, %v7786
    %v7826 = vadd.f32 %v7825, %v7788
    %v7827 = vadd.f32 %v7826, %v7790
    %v7828 = vadd.f32 %v7827, %v7792
    %v7829 = vadd.f32 %v7828, %v7794
    %v7830 = vadd.f32 %v7829, %v7796
    %v7831 = vadd.f32 %v7830, %v7798
    %v7832 = vadd.f32 %v7831, %v7800
    %v7833 = vrot.slane %v7832, 4
    %v7834 = vadd.f32 %v7832, %v7833
    %v7835 = vrot.slane %v7834, 2
    %v7836 = vadd.f32 %v7834, %v7835
    %v7837 = vrot.slane %v7836, 1
    %v7838 = vadd.f32 %v7836, %v7837
    %v7839 = vadd.f32 %v7739, %v7741
    %v7840 = vadd.f32 %v7839, %v7743
    %v7841 = vadd.f32 %v7840, %v7745
    %v7842 = vadd.f32 %v7841, %v7747
    %v7843 = vadd.f32 %v7842, %v7749
    %v7844 = vadd.f32 %v7843, %v7751
    %v7845 = vadd.f32 %v7844, %v7753
    %v7846 = vadd.f32 %v7845, %v7755
    %v7847 = vadd.f32 %v7846, %v7757
    %v7848 = vadd.f32 %v7847, %v7759
    %v7849 = vadd.f32 %v7848, %v7761
    %v7850 = vadd.f32 %v7849, %v7763
    %v7851 = vadd.f32 %v7850, %v7765
    %v7852 = vadd.f32 %v7851, %v7767
    %v7853 = vadd.f32 %v7852, %v7769
    %v7854 = vadd.f32 %v7853, %v7771
    %v7855 = vadd.f32 %v7854, %v7773
    %v7856 = vadd.f32 %v7855, %v7775
    %v7857 = vadd.f32 %v7856, %v7777
    %v7858 = vadd.f32 %v7857, %v7779
    %v7859 = vadd.f32 %v7858, %v7781
    %v7860 = vadd.f32 %v7859, %v7783
    %v7861 = vadd.f32 %v7860, %v7785
    %v7862 = vadd.f32 %v7861, %v7787
    %v7863 = vadd.f32 %v7862, %v7789
    %v7864 = vadd.f32 %v7863, %v7791
    %v7865 = vadd.f32 %v7864, %v7793
    %v7866 = vadd.f32 %v7865, %v7795
    %v7867 = vadd.f32 %v7866, %v7797
    %v7868 = vadd.f32 %v7867, %v7799
    %v7869 = vadd.f32 %v7868, %v7801
    %v7870 = vrot.slane %v7869, 4
    %v7871 = vadd.f32 %v7869, %v7870
    %v7872 = vrot.slane %v7871, 2
    %v7873 = vadd.f32 %v7871, %v7872
    %v7874 = vrot.slane %v7873, 1
    %v7875 = vadd.f32 %v7873, %v7874
    %v7876 = vmul.f32 %v7838, 0.0051020407
    %v7877 = vmul.f32 %v7875, 0.0051020407
    %v7878 = vld [vmem:[#allocation4] sm:$0x3]
    %v7879 = vadd.f32 %v7876, 1e-05
    %v7880 = vadd.f32 %v7877, 1e-05
    %v7881 = vrsqrt.pop %v7879
    %v7882 = vrsqrt.pop %v7880
    %v7885 = vcombine.low %v7881, %v7882
    %v7887 = vunpack.c.l.s4 1966171168
    %v7888 = vunpack.c.0.s8 %v7887
    %v7889 = vlaneseq
    %v7890 = vshrl.u32 %v7889, 7
    %v7891 = vsub.s32 %v7888, %v7890
    %v7892 = vrot.slane %v7885, %v7891
    %v7894 = vunpack.c.l.s4 1966171168
    %v7895 = vunpack.c.0.s8 %v7894
    %v7896 = vlaneseq
    %v7897 = vshrl.u32 %v7896, 7
    %v7898 = vsub.s32 %v7895, %v7897
    %v7899 = vrot.slane %v7892, %v7898
    %v7901 = vmul.f32 %v7878, %v7899
    %v7902 = vld [vmem:[#allocation6] sm:$0x3]
    %v7904 = vlaneseq
    %v7905 = vshrl.u32 %v7904, 7
    %v7906 = vsub.s32 0, %v7905
    %v7907 = vrot.slane %v7901, %v7906
    %v7908 = vlaneseq
    %v7909 = vshrl.u32 %v7908, 7
    %v7910 = vsub.s32 1, %v7909
    %v7911 = vrot.slane %v7901, %v7910
    %v7914 = vmul.f32 %v7608, %v7907
    %v7915 = vmul.f32 %v7609, %v7911
    %v7918 = vcombine.low %v7914, %v7915
    %v7920 = vunpack.c.l.s4 1966171168
    %v7921 = vunpack.c.0.s8 %v7920
    %v7922 = vlaneseq
    %v7923 = vshrl.u32 %v7922, 7
    %v7924 = vsub.s32 %v7921, %v7923
    %v7925 = vrot.slane %v7918, %v7924
    %v7927 = vunpack.c.l.s4 1966171168
    %v7928 = vunpack.c.0.s8 %v7927
    %v7929 = vlaneseq
    %v7930 = vshrl.u32 %v7929, 7
    %v7931 = vsub.s32 %v7928, %v7930
    %v7932 = vrot.slane %v7925, %v7931
    %v7934 = vsub.f32 %v7902, %v7932
    %v7935 = vmul.f32 %v7406, %v7907
    %v7936 = vmul.f32 %v7407, %v7911
    %v7937 = vmul.f32 %v7408, %v7907
    %v7938 = vmul.f32 %v7409, %v7911
    %v7939 = vmul.f32 %v7410, %v7907
    %v7940 = vmul.f32 %v7411, %v7911
    %v7941 = vmul.f32 %v7412, %v7907
    %v7942 = vmul.f32 %v7413, %v7911
    %v7943 = vmul.f32 %v7414, %v7907
    %v7944 = vmul.f32 %v7415, %v7911
    %v7945 = vmul.f32 %v7416, %v7907
    %v7946 = vmul.f32 %v7417, %v7911
    %v7947 = vmul.f32 %v7418, %v7907
    %v7948 = vmul.f32 %v7419, %v7911
    %v7949 = vmul.f32 %v7420, %v7907
    %v7950 = vmul.f32 %v7421, %v7911
    %v7951 = vmul.f32 %v7422, %v7907
    %v7952 = vmul.f32 %v7423, %v7911
    %v7953 = vmul.f32 %v7424, %v7907
    %v7954 = vmul.f32 %v7425, %v7911
    %v7955 = vmul.f32 %v7426, %v7907
    %v7956 = vmul.f32 %v7427, %v7911
    %v7957 = vmul.f32 %v7428, %v7907
    %v7958 = vmul.f32 %v7429, %v7911
    %v7959 = vmul.f32 %v7430, %v7907
    %v7960 = vmul.f32 %v7431, %v7911
    %v7961 = vmul.f32 %v7432, %v7907
    %v7962 = vmul.f32 %v7433, %v7911
    %v7963 = vmul.f32 %v7434, %v7907
    %v7964 = vmul.f32 %v7435, %v7911
    %v7965 = vmul.f32 %v7436, %v7907
    %v7966 = vmul.f32 %v7437, %v7911
    %v7967 = vmul.f32 %v7438, %v7907
    %v7968 = vmul.f32 %v7439, %v7911
    %v7969 = vmul.f32 %v7440, %v7907
    %v7970 = vmul.f32 %v7441, %v7911
    %v7971 = vmul.f32 %v7442, %v7907
    %v7972 = vmul.f32 %v7443, %v7911
    %v7973 = vmul.f32 %v7444, %v7907
    %v7974 = vmul.f32 %v7445, %v7911
    %v7975 = vmul.f32 %v7446, %v7907
    %v7976 = vmul.f32 %v7447, %v7911
    %v7977 = vmul.f32 %v7448, %v7907
    %v7978 = vmul.f32 %v7449, %v7911
    %v7979 = vmul.f32 %v7450, %v7907
    %v7980 = vmul.f32 %v7451, %v7911
    %v7981 = vmul.f32 %v7452, %v7907
    %v7982 = vmul.f32 %v7453, %v7911
    %v7983 = vmul.f32 %v7454, %v7907
    %v7984 = vmul.f32 %v7455, %v7911
    %v7985 = vmul.f32 %v7456, %v7907
    %v7986 = vmul.f32 %v7457, %v7911
    %v7987 = vmul.f32 %v7458, %v7907
    %v7988 = vmul.f32 %v7459, %v7911
    %v7989 = vmul.f32 %v7460, %v7907
    %v7990 = vmul.f32 %v7461, %v7911
    %v7991 = vmul.f32 %v7462, %v7907
    %v7992 = vmul.f32 %v7463, %v7911
    %v7993 = vmul.f32 %v7464, %v7907
    %v7994 = vmul.f32 %v7465, %v7911
    %v7995 = vmul.f32 %v7466, %v7907
    %v7996 = vmul.f32 %v7467, %v7911
    %v7997 = vmul.f32 %v7468, %v7907
    %v7998 = vmul.f32 %v7469, %v7911
    %v8000 = vlaneseq
    %v8001 = vshrl.u32 %v8000, 7
    %v8002 = vsub.s32 0, %v8001
    %v8003 = vrot.slane %v7934, %v8002
    %v8004 = vlaneseq
    %v8005 = vshrl.u32 %v8004, 7
    %v8006 = vsub.s32 1, %v8005
    %v8007 = vrot.slane %v7934, %v8006
    %v8010 = vadd.f32 %v7935, %v8003
    %v8011 = vadd.f32 %v7936, %v8007
    %v8012 = vadd.f32 %v7937, %v8003
    %v8013 = vadd.f32 %v7938, %v8007
    %v8014 = vadd.f32 %v7939, %v8003
    %v8015 = vadd.f32 %v7940, %v8007
    %v8016 = vadd.f32 %v7941, %v8003
    %v8017 = vadd.f32 %v7942, %v8007
    %v8018 = vadd.f32 %v7943, %v8003
    %v8019 = vadd.f32 %v7944, %v8007
    %v8020 = vadd.f32 %v7945, %v8003
    %v8021 = vadd.f32 %v7946, %v8007
    %v8022 = vadd.f32 %v7947, %v8003
    %v8023 = vadd.f32 %v7948, %v8007
    %v8024 = vadd.f32 %v7949, %v8003
    %v8025 = vadd.f32 %v7950, %v8007
    %v8026 = vadd.f32 %v7951, %v8003
    %v8027 = vadd.f32 %v7952, %v8007
    %v8028 = vadd.f32 %v7953, %v8003
    %v8029 = vadd.f32 %v7954, %v8007
    %v8030 = vadd.f32 %v7955, %v8003
    %v8031 = vadd.f32 %v7956, %v8007
    %v8032 = vadd.f32 %v7957, %v8003
    %v8033 = vadd.f32 %v7958, %v8007
    %v8034 = vadd.f32 %v7959, %v8003
    %v8035 = vadd.f32 %v7960, %v8007
    %v8036 = vadd.f32 %v7961, %v8003
    %v8037 = vadd.f32 %v7962, %v8007
    %v8038 = vadd.f32 %v7963, %v8003
    %v8039 = vadd.f32 %v7964, %v8007
    %v8040 = vadd.f32 %v7965, %v8003
    %v8041 = vadd.f32 %v7966, %v8007
    %v8042 = vadd.f32 %v7967, %v8003
    %v8043 = vadd.f32 %v7968, %v8007
    %v8044 = vadd.f32 %v7969, %v8003
    %v8045 = vadd.f32 %v7970, %v8007
    %v8046 = vadd.f32 %v7971, %v8003
    %v8047 = vadd.f32 %v7972, %v8007
    %v8048 = vadd.f32 %v7973, %v8003
    %v8049 = vadd.f32 %v7974, %v8007
    %v8050 = vadd.f32 %v7975, %v8003
    %v8051 = vadd.f32 %v7976, %v8007
    %v8052 = vadd.f32 %v7977, %v8003
    %v8053 = vadd.f32 %v7978, %v8007
    %v8054 = vadd.f32 %v7979, %v8003
    %v8055 = vadd.f32 %v7980, %v8007
    %v8056 = vadd.f32 %v7981, %v8003
    %v8057 = vadd.f32 %v7982, %v8007
    %v8058 = vadd.f32 %v7983, %v8003
    %v8059 = vadd.f32 %v7984, %v8007
    %v8060 = vadd.f32 %v7985, %v8003
    %v8061 = vadd.f32 %v7986, %v8007
    %v8062 = vadd.f32 %v7987, %v8003
    %v8063 = vadd.f32 %v7988, %v8007
    %v8064 = vadd.f32 %v7989, %v8003
    %v8065 = vadd.f32 %v7990, %v8007
    %v8066 = vadd.f32 %v7991, %v8003
    %v8067 = vadd.f32 %v7992, %v8007
    %v8068 = vadd.f32 %v7993, %v8003
    %v8069 = vadd.f32 %v7994, %v8007
    %v8070 = vadd.f32 %v7995, %v8003
    %v8071 = vadd.f32 %v7996, %v8007
    %v8072 = vadd.f32 %v7997, %v8003
    %v8073 = vadd.f32 %v7998, %v8007
    %v8074 = vmax.f32 %v8010, 0.0
    %v8075 = vmax.f32 %v8011, 0.0
    %v8076 = vmax.f32 %v8012, 0.0
    %v8077 = vmax.f32 %v8013, 0.0
    %v8078 = vmax.f32 %v8014, 0.0
    %v8079 = vmax.f32 %v8015, 0.0
    %v8080 = vmax.f32 %v8016, 0.0
    %v8081 = vmax.f32 %v8017, 0.0
    %v8082 = vmax.f32 %v8018, 0.0
    %v8083 = vmax.f32 %v8019, 0.0
    %v8084 = vmax.f32 %v8020, 0.0
    %v8085 = vmax.f32 %v8021, 0.0
    %v8086 = vmax.f32 %v8022, 0.0
    %v8087 = vmax.f32 %v8023, 0.0
    %v8088 = vmax.f32 %v8024, 0.0
    %v8089 = vmax.f32 %v8025, 0.0
    %v8090 = vmax.f32 %v8026, 0.0
    %v8091 = vmax.f32 %v8027, 0.0
    %v8092 = vmax.f32 %v8028, 0.0
    %v8093 = vmax.f32 %v8029, 0.0
    %v8094 = vmax.f32 %v8030, 0.0
    %v8095 = vmax.f32 %v8031, 0.0
    %v8096 = vmax.f32 %v8032, 0.0
    %v8097 = vmax.f32 %v8033, 0.0
    %v8098 = vmax.f32 %v8034, 0.0
    %v8099 = vmax.f32 %v8035, 0.0
    %v8100 = vmax.f32 %v8036, 0.0
    %v8101 = vmax.f32 %v8037, 0.0
    %v8102 = vmax.f32 %v8038, 0.0
    %v8103 = vmax.f32 %v8039, 0.0
    %v8104 = vmax.f32 %v8040, 0.0
    %v8105 = vmax.f32 %v8041, 0.0
    %v8106 = vmax.f32 %v8042, 0.0
    %v8107 = vmax.f32 %v8043, 0.0
    %v8108 = vmax.f32 %v8044, 0.0
    %v8109 = vmax.f32 %v8045, 0.0
    %v8110 = vmax.f32 %v8046, 0.0
    %v8111 = vmax.f32 %v8047, 0.0
    %v8112 = vmax.f32 %v8048, 0.0
    %v8113 = vmax.f32 %v8049, 0.0
    %v8114 = vmax.f32 %v8050, 0.0
    %v8115 = vmax.f32 %v8051, 0.0
    %v8116 = vmax.f32 %v8052, 0.0
    %v8117 = vmax.f32 %v8053, 0.0
    %v8118 = vmax.f32 %v8054, 0.0
    %v8119 = vmax.f32 %v8055, 0.0
    %v8120 = vmax.f32 %v8056, 0.0
    %v8121 = vmax.f32 %v8057, 0.0
    %v8122 = vmax.f32 %v8058, 0.0
    %v8123 = vmax.f32 %v8059, 0.0
    %v8124 = vmax.f32 %v8060, 0.0
    %v8125 = vmax.f32 %v8061, 0.0
    %v8126 = vmax.f32 %v8062, 0.0
    %v8127 = vmax.f32 %v8063, 0.0
    %v8128 = vmax.f32 %v8064, 0.0
    %v8129 = vmax.f32 %v8065, 0.0
    %v8130 = vmax.f32 %v8066, 0.0
    %v8131 = vmax.f32 %v8067, 0.0
    %v8132 = vmax.f32 %v8068, 0.0
    %v8133 = vmax.f32 %v8069, 0.0
    %v8134 = vmax.f32 %v8070, 0.0
    %v8135 = vmax.f32 %v8071, 0.0
    %v8136 = vmax.f32 %v8072, 0.0
    %v8137 = vmax.f32 %v8073, 0.0
    %v8138 = vmul.f32 %v8074, %v439
    %v8139 = vmul.f32 %v8075, %v439
    %v8140 = vmul.f32 %v8076, %v440
    %v8141 = vmul.f32 %v8077, %v440
    %v8142 = vmul.f32 %v8078, %v441
    %v8143 = vmul.f32 %v8079, %v441
    %v8144 = vmul.f32 %v8080, %v442
    %v8145 = vmul.f32 %v8081, %v442
    %v8146 = vmul.f32 %v8082, %v443
    %v8147 = vmul.f32 %v8083, %v443
    %v8148 = vmul.f32 %v8084, %v444
    %v8149 = vmul.f32 %v8085, %v444
    %v8150 = vmul.f32 %v8086, %v445
    %v8151 = vmul.f32 %v8087, %v445
    %v8152 = vmul.f32 %v8088, %v446
    %v8153 = vmul.f32 %v8089, %v446
    %v8154 = vmul.f32 %v8090, %v447
    %v8155 = vmul.f32 %v8091, %v447
    %v8156 = vmul.f32 %v8092, %v448
    %v8157 = vmul.f32 %v8093, %v448
    %v8158 = vmul.f32 %v8094, %v449
    %v8159 = vmul.f32 %v8095, %v449
    %v8160 = vmul.f32 %v8096, %v450
    %v8161 = vmul.f32 %v8097, %v450
    %v8162 = vmul.f32 %v8098, %v451
    %v8163 = vmul.f32 %v8099, %v451
    %v8164 = vmul.f32 %v8100, %v452
    %v8165 = vmul.f32 %v8101, %v452
    %v8166 = vmul.f32 %v8102, %v453
    %v8167 = vmul.f32 %v8103, %v453
    %v8168 = vmul.f32 %v8104, %v454
    %v8169 = vmul.f32 %v8105, %v454
    %v8170 = vmul.f32 %v8106, %v455
    %v8171 = vmul.f32 %v8107, %v455
    %v8172 = vmul.f32 %v8108, %v456
    %v8173 = vmul.f32 %v8109, %v456
    %v8174 = vmul.f32 %v8110, %v457
    %v8175 = vmul.f32 %v8111, %v457
    %v8176 = vmul.f32 %v8112, %v458
    %v8177 = vmul.f32 %v8113, %v458
    %v8178 = vmul.f32 %v8114, %v459
    %v8179 = vmul.f32 %v8115, %v459
    %v8180 = vmul.f32 %v8116, %v460
    %v8181 = vmul.f32 %v8117, %v460
    %v8182 = vmul.f32 %v8118, %v461
    %v8183 = vmul.f32 %v8119, %v461
    %v8184 = vmul.f32 %v8120, %v462
    %v8185 = vmul.f32 %v8121, %v462
    %v8186 = vmul.f32 %v8122, %v463
    %v8187 = vmul.f32 %v8123, %v463
    %v8188 = vmul.f32 %v8124, %v464
    %v8189 = vmul.f32 %v8125, %v464
    %v8190 = vmul.f32 %v8126, %v465
    %v8191 = vmul.f32 %v8127, %v465
    %v8192 = vmul.f32 %v8128, %v466
    %v8193 = vmul.f32 %v8129, %v466
    %v8194 = vmul.f32 %v8130, %v467
    %v8195 = vmul.f32 %v8131, %v467
    %v8196 = vmul.f32 %v8132, %v468
    %v8197 = vmul.f32 %v8133, %v468
    %v8198 = vmul.f32 %v8134, %v469
    %v8199 = vmul.f32 %v8135, %v469
    %v8200 = vmul.f32 %v8136, %v470
    %v8201 = vmul.f32 %v8137, %v470
    %v8202 = vpack.c.bf16 %v8140, %v8138
    %v8203 = vpack.c.bf16 %v8141, %v8139
    %v8204 = vpack.c.bf16 %v8144, %v8142
    %v8205 = vpack.c.bf16 %v8145, %v8143
    %v8206 = vpack.c.bf16 %v8148, %v8146
    %v8207 = vpack.c.bf16 %v8149, %v8147
    %v8208 = vpack.c.bf16 %v8152, %v8150
    %v8209 = vpack.c.bf16 %v8153, %v8151
    %v8210 = vpack.c.bf16 %v8156, %v8154
    %v8211 = vpack.c.bf16 %v8157, %v8155
    %v8212 = vpack.c.bf16 %v8160, %v8158
    %v8213 = vpack.c.bf16 %v8161, %v8159
    %v8214 = vpack.c.bf16 %v8164, %v8162
    %v8215 = vpack.c.bf16 %v8165, %v8163
    %v8216 = vpack.c.bf16 %v8168, %v8166
    %v8217 = vpack.c.bf16 %v8169, %v8167
    %v8218 = vpack.c.bf16 %v8172, %v8170
    %v8219 = vpack.c.bf16 %v8173, %v8171
    %v8220 = vpack.c.bf16 %v8176, %v8174
    %v8221 = vpack.c.bf16 %v8177, %v8175
    %v8222 = vpack.c.bf16 %v8180, %v8178
    %v8223 = vpack.c.bf16 %v8181, %v8179
    %v8224 = vpack.c.bf16 %v8184, %v8182
    %v8225 = vpack.c.bf16 %v8185, %v8183
    %v8226 = vpack.c.bf16 %v8188, %v8186
    %v8227 = vpack.c.bf16 %v8189, %v8187
    %v8228 = vpack.c.bf16 %v8192, %v8190
    %v8229 = vpack.c.bf16 %v8193, %v8191
    %v8230 = vpack.c.bf16 %v8196, %v8194
    %v8231 = vpack.c.bf16 %v8197, %v8195
    %v8232 = vpack.c.bf16 %v8200, %v8198
    %v8233 = vpack.c.bf16 %v8201, %v8199
    %v8234 = vld [vmem:[%s4] sm:$0xff]
    %v8235 = vld [vmem:[%s4 + $0x8] sm:$0xff]
    %v8236 = vld [vmem:[%s4 + $0x10] sm:$0xff]
    %v8237 = vld [vmem:[%s4 + $0x18] sm:$0xff]
    %v8238 = vld [vmem:[%s4 + $0x20] sm:$0xff]
    %v8239 = vld [vmem:[%s4 + $0x28] sm:$0xff]
    %v8240 = vld [vmem:[%s4 + $0x30] sm:$0xff]
    %v8241 = vld [vmem:[%s4 + $0x38] sm:$0xff]
    %v8242 = vld [vmem:[%s4 + $0x40] sm:$0xff]
    %v8243 = vld [vmem:[%s4 + $0x48] sm:$0xff]
    %v8244 = vld [vmem:[%s4 + $0x50] sm:$0xff]
    %v8245 = vld [vmem:[%s4 + $0x58] sm:$0xff]
    %v8246 = vld [vmem:[%s4 + $0x60] sm:$0xff]
    %v8247 = vld [vmem:[%s4 + $0x68] sm:$0xff]
    %v8248 = vld [vmem:[%s4 + $0x70] sm:$0xff]
    %v8249 = vld [vmem:[%s4 + $0x78] sm:$0xff]
    %v8250 = vld [vmem:[%s4 + $0x80] sm:$0xff]
    %v8251 = vld [vmem:[%s4 + $0x88] sm:$0xff]
    %v8252 = vld [vmem:[%s4 + $0x90] sm:$0xff]
    %v8253 = vld [vmem:[%s4 + $0x98] sm:$0xff]
    %v8254 = vld [vmem:[%s4 + $0xa0] sm:$0xff]
    %v8255 = vld [vmem:[%s4 + $0xa8] sm:$0xff]
    %v8256 = vld [vmem:[%s4 + $0xb0] sm:$0xff]
    %v8257 = vld [vmem:[%s4 + $0xb8] sm:$0xff]
    %v8258 = vld [vmem:[%s4 + $0xc0] sm:$0xff]
    %v8259 = vld [vmem:[%s4 + $0xc8] sm:$0xff]
    %v8260 = vld [vmem:[%s4 + $0xd0] sm:$0xff]
    %v8261 = vld [vmem:[%s4 + $0xd8] sm:$0xff]
    %v8262 = vld [vmem:[%s4 + $0xe0] sm:$0xff]
    %v8263 = vld [vmem:[%s4 + $0xe8] sm:$0xff]
    %v8264 = vld [vmem:[%s4 + $0xf0] sm:$0xff]
    %v8265 = vld [vmem:[%s4 + $0xf8] sm:$0xff]
    %v8266 = vld [vmem:[%s4 + $0x100] sm:$0xff]
    %v8267 = vld [vmem:[%s4 + $0x108] sm:$0xff]
    %v8268 = vld [vmem:[%s4 + $0x110] sm:$0xff]
    %v8269 = vld [vmem:[%s4 + $0x118] sm:$0xff]
    %v8270 = vld [vmem:[%s4 + $0x120] sm:$0xff]
    %v8271 = vld [vmem:[%s4 + $0x128] sm:$0xff]
    %v8272 = vld [vmem:[%s4 + $0x130] sm:$0xff]
    %v8273 = vld [vmem:[%s4 + $0x138] sm:$0xff]
    %v8274 = vld [vmem:[%s4 + $0x140] sm:$0xff]
    %v8275 = vld [vmem:[%s4 + $0x148] sm:$0xff]
    %v8276 = vld [vmem:[%s4 + $0x150] sm:$0xff]
    %v8277 = vld [vmem:[%s4 + $0x158] sm:$0xff]
    %v8278 = vld [vmem:[%s4 + $0x160] sm:$0xff]
    %v8279 = vld [vmem:[%s4 + $0x168] sm:$0xff]
    %v8280 = vld [vmem:[%s4 + $0x170] sm:$0xff]
    %v8281 = vld [vmem:[%s4 + $0x178] sm:$0xff]
    %v8282 = vld [vmem:[%s4 + $0x180] sm:$0xff]
    %v8283 = vld [vmem:[%s4 + $0x188] sm:$0xff]
    %v8284 = vld [vmem:[%s4 + $0x190] sm:$0xff]
    %v8285 = vld [vmem:[%s4 + $0x198] sm:$0xff]
    %v8286 = vld [vmem:[%s4 + $0x1a0] sm:$0xff]
    %v8287 = vld [vmem:[%s4 + $0x1a8] sm:$0xff]
    %v8288 = vld [vmem:[%s4 + $0x1b0] sm:$0xff]
    %v8289 = vld [vmem:[%s4 + $0x1b8] sm:$0xff]
    %v8290 = vld [vmem:[%s4 + $0x1c0] sm:$0xff]
    %v8291 = vld [vmem:[%s4 + $0x1c8] sm:$0xff]
    %v8292 = vld [vmem:[%s4 + $0x1d0] sm:$0xff]
    %v8293 = vld [vmem:[%s4 + $0x1d8] sm:$0xff]
    %v8294 = vld [vmem:[%s4 + $0x1e0] sm:$0xff]
    %v8295 = vld [vmem:[%s4 + $0x1e8] sm:$0xff]
    %v8296 = vld [vmem:[%s4 + $0x1f0] sm:$0xff]
    %v8297 = vld [vmem:[%s4 + $0x1f8] sm:$0xff]
    %v8298 = vld [vmem:[%s4 + $0x200] sm:$0xff]
    %v8299 = vld [vmem:[%s4 + $0x208] sm:$0xff]
    %v8300 = vld [vmem:[%s4 + $0x210] sm:$0xff]
    %v8301 = vld [vmem:[%s4 + $0x218] sm:$0xff]
    %v8302 = vld [vmem:[%s4 + $0x220] sm:$0xff]
    %v8303 = vld [vmem:[%s4 + $0x228] sm:$0xff]
    %v8304 = vld [vmem:[%s4 + $0x230] sm:$0xff]
    %v8305 = vld [vmem:[%s4 + $0x238] sm:$0xff]
    %v8306 = vld [vmem:[%s4 + $0x240] sm:$0xff]
    %v8307 = vld [vmem:[%s4 + $0x248] sm:$0xff]
    %v8308 = vld [vmem:[%s4 + $0x250] sm:$0xff]
    %v8309 = vld [vmem:[%s4 + $0x258] sm:$0xff]
    %v8310 = vld [vmem:[%s4 + $0x260] sm:$0xff]
    %v8311 = vld [vmem:[%s4 + $0x268] sm:$0xff]
    %v8312 = vld [vmem:[%s4 + $0x270] sm:$0xff]
    %v8313 = vld [vmem:[%s4 + $0x278] sm:$0xff]
    %v8314 = vld [vmem:[%s4 + $0x280] sm:$0xff]
    %v8315 = vld [vmem:[%s4 + $0x288] sm:$0xff]
    %v8316 = vld [vmem:[%s4 + $0x290] sm:$0xff]
    %v8317 = vld [vmem:[%s4 + $0x298] sm:$0xff]
    %v8318 = vld [vmem:[%s4 + $0x2a0] sm:$0xff]
    %v8319 = vld [vmem:[%s4 + $0x2a8] sm:$0xff]
    %v8320 = vld [vmem:[%s4 + $0x2b0] sm:$0xff]
    %v8321 = vld [vmem:[%s4 + $0x2b8] sm:$0xff]
    %v8322 = vld [vmem:[%s4 + $0x2c0] sm:$0xff]
    %v8323 = vld [vmem:[%s4 + $0x2c8] sm:$0xff]
    %v8324 = vld [vmem:[%s4 + $0x2d0] sm:$0xff]
    %v8325 = vld [vmem:[%s4 + $0x2d8] sm:$0xff]
    %v8326 = vld [vmem:[%s4 + $0x2e0] sm:$0xff]
    %v8327 = vld [vmem:[%s4 + $0x2e8] sm:$0xff]
    %v8328 = vld [vmem:[%s4 + $0x2f0] sm:$0xff]
    %v8329 = vld [vmem:[%s4 + $0x2f8] sm:$0xff]
    %v8330 = vld [vmem:[%s4 + $0x300] sm:$0xff]
    %v8331 = vld [vmem:[%s4 + $0x308] sm:$0xff]
    %v8332 = vld [vmem:[%s4 + $0x310] sm:$0xff]
    %v8333 = vld [vmem:[%s4 + $0x318] sm:$0xff]
    %v8334 = vld [vmem:[%s4 + $0x320] sm:$0xff]
    %v8335 = vld [vmem:[%s4 + $0x328] sm:$0xff]
    %v8336 = vld [vmem:[%s4 + $0x330] sm:$0xff]
    %v8337 = vld [vmem:[%s4 + $0x338] sm:$0xff]
    %v8338 = vld [vmem:[%s4 + $0x340] sm:$0xff]
    %v8339 = vld [vmem:[%s4 + $0x348] sm:$0xff]
    %v8340 = vld [vmem:[%s4 + $0x350] sm:$0xff]
    %v8341 = vld [vmem:[%s4 + $0x358] sm:$0xff]
    %v8342 = vld [vmem:[%s4 + $0x360] sm:$0xff]
    %v8343 = vld [vmem:[%s4 + $0x368] sm:$0xff]
    %v8344 = vld [vmem:[%s4 + $0x370] sm:$0xff]
    %v8345 = vld [vmem:[%s4 + $0x378] sm:$0xff]
    %v8346 = vld [vmem:[%s4 + $0x380] sm:$0xff]
    %v8347 = vld [vmem:[%s4 + $0x388] sm:$0xff]
    %v8348 = vld [vmem:[%s4 + $0x390] sm:$0xff]
    %v8349 = vld [vmem:[%s4 + $0x398] sm:$0xff]
    %v8350 = vld [vmem:[%s4 + $0x3a0] sm:$0xff]
    %v8351 = vld [vmem:[%s4 + $0x3a8] sm:$0xff]
    %v8352 = vld [vmem:[%s4 + $0x3b0] sm:$0xff]
    %v8353 = vld [vmem:[%s4 + $0x3b8] sm:$0xff]
    %v8354 = vld [vmem:[%s4 + $0x3c0] sm:$0xff]
    %v8355 = vld [vmem:[%s4 + $0x3c8] sm:$0xff]
    %v8356 = vld [vmem:[%s4 + $0x3d0] sm:$0xff]
    %v8357 = vld [vmem:[%s4 + $0x3d8] sm:$0xff]
    %v8358 = vld [vmem:[%s4 + $0x3e0] sm:$0xff]
    %v8359 = vld [vmem:[%s4 + $0x3e8] sm:$0xff]
    %v8360 = vld [vmem:[%s4 + $0x3f0] sm:$0xff]
    %v8361 = vld [vmem:[%s4 + $0x3f8] sm:$0xff]
    %v8490 = vunpack.c.l.b16 %v8234
    %v8491 = vunpack.c.h.b16 %v8234
    %v8492 = vunpack.c.l.b16 %v8235
    %v8493 = vunpack.c.h.b16 %v8235
    %v8494 = vunpack.c.l.b16 %v8236
    %v8495 = vunpack.c.h.b16 %v8236
    %v8496 = vunpack.c.l.b16 %v8237
    %v8497 = vunpack.c.h.b16 %v8237
    %v8498 = vunpack.c.l.b16 %v8238
    %v8499 = vunpack.c.h.b16 %v8238
    %v8500 = vunpack.c.l.b16 %v8239
    %v8501 = vunpack.c.h.b16 %v8239
    %v8502 = vunpack.c.l.b16 %v8240
    %v8503 = vunpack.c.h.b16 %v8240
    %v8504 = vunpack.c.l.b16 %v8241
    %v8505 = vunpack.c.h.b16 %v8241
    %v8506 = vunpack.c.l.b16 %v8242
    %v8507 = vunpack.c.h.b16 %v8242
    %v8508 = vunpack.c.l.b16 %v8243
    %v8509 = vunpack.c.h.b16 %v8243
    %v8510 = vunpack.c.l.b16 %v8244
    %v8511 = vunpack.c.h.b16 %v8244
    %v8512 = vunpack.c.l.b16 %v8245
    %v8513 = vunpack.c.h.b16 %v8245
    %v8514 = vunpack.c.l.b16 %v8246
    %v8515 = vunpack.c.h.b16 %v8246
    %v8516 = vunpack.c.l.b16 %v8247
    %v8517 = vunpack.c.h.b16 %v8247
    %v8518 = vunpack.c.l.b16 %v8248
    %v8519 = vunpack.c.h.b16 %v8248
    %v8520 = vunpack.c.l.b16 %v8249
    %v8521 = vunpack.c.h.b16 %v8249
    %v8522 = vunpack.c.l.b16 %v8250
    %v8523 = vunpack.c.h.b16 %v8250
    %v8524 = vunpack.c.l.b16 %v8251
    %v8525 = vunpack.c.h.b16 %v8251
    %v8526 = vunpack.c.l.b16 %v8252
    %v8527 = vunpack.c.h.b16 %v8252
    %v8528 = vunpack.c.l.b16 %v8253
    %v8529 = vunpack.c.h.b16 %v8253
    %v8530 = vunpack.c.l.b16 %v8254
    %v8531 = vunpack.c.h.b16 %v8254
    %v8532 = vunpack.c.l.b16 %v8255
    %v8533 = vunpack.c.h.b16 %v8255
    %v8534 = vunpack.c.l.b16 %v8256
    %v8535 = vunpack.c.h.b16 %v8256
    %v8536 = vunpack.c.l.b16 %v8257
    %v8537 = vunpack.c.h.b16 %v8257
    %v8538 = vunpack.c.l.b16 %v8258
    %v8539 = vunpack.c.h.b16 %v8258
    %v8540 = vunpack.c.l.b16 %v8259
    %v8541 = vunpack.c.h.b16 %v8259
    %v8542 = vunpack.c.l.b16 %v8260
    %v8543 = vunpack.c.h.b16 %v8260
    %v8544 = vunpack.c.l.b16 %v8261
    %v8545 = vunpack.c.h.b16 %v8261
    %v8546 = vunpack.c.l.b16 %v8262
    %v8547 = vunpack.c.h.b16 %v8262
    %v8548 = vunpack.c.l.b16 %v8263
    %v8549 = vunpack.c.h.b16 %v8263
    %v8550 = vunpack.c.l.b16 %v8264
    %v8551 = vunpack.c.h.b16 %v8264
    %v8552 = vunpack.c.l.b16 %v8265
    %v8553 = vunpack.c.h.b16 %v8265
    %v8554 = vunpack.c.l.b16 %v8266
    %v8555 = vunpack.c.h.b16 %v8266
    %v8556 = vunpack.c.l.b16 %v8267
    %v8557 = vunpack.c.h.b16 %v8267
    %v8558 = vunpack.c.l.b16 %v8268
    %v8559 = vunpack.c.h.b16 %v8268
    %v8560 = vunpack.c.l.b16 %v8269
    %v8561 = vunpack.c.h.b16 %v8269
    %v8562 = vunpack.c.l.b16 %v8270
    %v8563 = vunpack.c.h.b16 %v8270
    %v8564 = vunpack.c.l.b16 %v8271
    %v8565 = vunpack.c.h.b16 %v8271
    %v8566 = vunpack.c.l.b16 %v8272
    %v8567 = vunpack.c.h.b16 %v8272
    %v8568 = vunpack.c.l.b16 %v8273
    %v8569 = vunpack.c.h.b16 %v8273
    %v8570 = vunpack.c.l.b16 %v8274
    %v8571 = vunpack.c.h.b16 %v8274
    %v8572 = vunpack.c.l.b16 %v8275
    %v8573 = vunpack.c.h.b16 %v8275
    %v8574 = vunpack.c.l.b16 %v8276
    %v8575 = vunpack.c.h.b16 %v8276
    %v8576 = vunpack.c.l.b16 %v8277
    %v8577 = vunpack.c.h.b16 %v8277
    %v8578 = vunpack.c.l.b16 %v8278
    %v8579 = vunpack.c.h.b16 %v8278
    %v8580 = vunpack.c.l.b16 %v8279
    %v8581 = vunpack.c.h.b16 %v8279
    %v8582 = vunpack.c.l.b16 %v8280
    %v8583 = vunpack.c.h.b16 %v8280
    %v8584 = vunpack.c.l.b16 %v8281
    %v8585 = vunpack.c.h.b16 %v8281
    %v8586 = vunpack.c.l.b16 %v8282
    %v8587 = vunpack.c.h.b16 %v8282
    %v8588 = vunpack.c.l.b16 %v8283
    %v8589 = vunpack.c.h.b16 %v8283
    %v8590 = vunpack.c.l.b16 %v8284
    %v8591 = vunpack.c.h.b16 %v8284
    %v8592 = vunpack.c.l.b16 %v8285
    %v8593 = vunpack.c.h.b16 %v8285
    %v8594 = vunpack.c.l.b16 %v8286
    %v8595 = vunpack.c.h.b16 %v8286
    %v8596 = vunpack.c.l.b16 %v8287
    %v8597 = vunpack.c.h.b16 %v8287
    %v8598 = vunpack.c.l.b16 %v8288
    %v8599 = vunpack.c.h.b16 %v8288
    %v8600 = vunpack.c.l.b16 %v8289
    %v8601 = vunpack.c.h.b16 %v8289
    %v8602 = vunpack.c.l.b16 %v8290
    %v8603 = vunpack.c.h.b16 %v8290
    %v8604 = vunpack.c.l.b16 %v8291
    %v8605 = vunpack.c.h.b16 %v8291
    %v8606 = vunpack.c.l.b16 %v8292
    %v8607 = vunpack.c.h.b16 %v8292
    %v8608 = vunpack.c.l.b16 %v8293
    %v8609 = vunpack.c.h.b16 %v8293
    %v8610 = vunpack.c.l.b16 %v8294
    %v8611 = vunpack.c.h.b16 %v8294
    %v8612 = vunpack.c.l.b16 %v8295
    %v8613 = vunpack.c.h.b16 %v8295
    %v8614 = vunpack.c.l.b16 %v8296
    %v8615 = vunpack.c.h.b16 %v8296
    %v8616 = vunpack.c.l.b16 %v8297
    %v8617 = vunpack.c.h.b16 %v8297
    %v8618 = vunpack.c.l.b16 %v8298
    %v8619 = vunpack.c.h.b16 %v8298
    %v8620 = vunpack.c.l.b16 %v8299
    %v8621 = vunpack.c.h.b16 %v8299
    %v8622 = vunpack.c.l.b16 %v8300
    %v8623 = vunpack.c.h.b16 %v8300
    %v8624 = vunpack.c.l.b16 %v8301
    %v8625 = vunpack.c.h.b16 %v8301
    %v8626 = vunpack.c.l.b16 %v8302
    %v8627 = vunpack.c.h.b16 %v8302
    %v8628 = vunpack.c.l.b16 %v8303
    %v8629 = vunpack.c.h.b16 %v8303
    %v8630 = vunpack.c.l.b16 %v8304
    %v8631 = vunpack.c.h.b16 %v8304
    %v8632 = vunpack.c.l.b16 %v8305
    %v8633 = vunpack.c.h.b16 %v8305
    %v8634 = vunpack.c.l.b16 %v8306
    %v8635 = vunpack.c.h.b16 %v8306
    %v8636 = vunpack.c.l.b16 %v8307
    %v8637 = vunpack.c.h.b16 %v8307
    %v8638 = vunpack.c.l.b16 %v8308
    %v8639 = vunpack.c.h.b16 %v8308
    %v8640 = vunpack.c.l.b16 %v8309
    %v8641 = vunpack.c.h.b16 %v8309
    %v8642 = vunpack.c.l.b16 %v8310
    %v8643 = vunpack.c.h.b16 %v8310
    %v8644 = vunpack.c.l.b16 %v8311
    %v8645 = vunpack.c.h.b16 %v8311
    %v8646 = vunpack.c.l.b16 %v8312
    %v8647 = vunpack.c.h.b16 %v8312
    %v8648 = vunpack.c.l.b16 %v8313
    %v8649 = vunpack.c.h.b16 %v8313
    %v8650 = vunpack.c.l.b16 %v8314
    %v8651 = vunpack.c.h.b16 %v8314
    %v8652 = vunpack.c.l.b16 %v8315
    %v8653 = vunpack.c.h.b16 %v8315
    %v8654 = vunpack.c.l.b16 %v8316
    %v8655 = vunpack.c.h.b16 %v8316
    %v8656 = vunpack.c.l.b16 %v8317
    %v8657 = vunpack.c.h.b16 %v8317
    %v8658 = vunpack.c.l.b16 %v8318
    %v8659 = vunpack.c.h.b16 %v8318
    %v8660 = vunpack.c.l.b16 %v8319
    %v8661 = vunpack.c.h.b16 %v8319
    %v8662 = vunpack.c.l.b16 %v8320
    %v8663 = vunpack.c.h.b16 %v8320
    %v8664 = vunpack.c.l.b16 %v8321
    %v8665 = vunpack.c.h.b16 %v8321
    %v8666 = vunpack.c.l.b16 %v8322
    %v8667 = vunpack.c.h.b16 %v8322
    %v8668 = vunpack.c.l.b16 %v8323
    %v8669 = vunpack.c.h.b16 %v8323
    %v8670 = vunpack.c.l.b16 %v8324
    %v8671 = vunpack.c.h.b16 %v8324
    %v8672 = vunpack.c.l.b16 %v8325
    %v8673 = vunpack.c.h.b16 %v8325
    %v8674 = vunpack.c.l.b16 %v8326
    %v8675 = vunpack.c.h.b16 %v8326
    %v8676 = vunpack.c.l.b16 %v8327
    %v8677 = vunpack.c.h.b16 %v8327
    %v8678 = vunpack.c.l.b16 %v8328
    %v8679 = vunpack.c.h.b16 %v8328
    %v8680 = vunpack.c.l.b16 %v8329
    %v8681 = vunpack.c.h.b16 %v8329
    %v8682 = vunpack.c.l.b16 %v8330
    %v8683 = vunpack.c.h.b16 %v8330
    %v8684 = vunpack.c.l.b16 %v8331
    %v8685 = vunpack.c.h.b16 %v8331
    %v8686 = vunpack.c.l.b16 %v8332
    %v8687 = vunpack.c.h.b16 %v8332
    %v8688 = vunpack.c.l.b16 %v8333
    %v8689 = vunpack.c.h.b16 %v8333
    %v8690 = vunpack.c.l.b16 %v8334
    %v8691 = vunpack.c.h.b16 %v8334
    %v8692 = vunpack.c.l.b16 %v8335
    %v8693 = vunpack.c.h.b16 %v8335
    %v8694 = vunpack.c.l.b16 %v8336
    %v8695 = vunpack.c.h.b16 %v8336
    %v8696 = vunpack.c.l.b16 %v8337
    %v8697 = vunpack.c.h.b16 %v8337
    %v8698 = vunpack.c.l.b16 %v8338
    %v8699 = vunpack.c.h.b16 %v8338
    %v8700 = vunpack.c.l.b16 %v8339
    %v8701 = vunpack.c.h.b16 %v8339
    %v8702 = vunpack.c.l.b16 %v8340
    %v8703 = vunpack.c.h.b16 %v8340
    %v8704 = vunpack.c.l.b16 %v8341
    %v8705 = vunpack.c.h.b16 %v8341
    %v8706 = vunpack.c.l.b16 %v8342
    %v8707 = vunpack.c.h.b16 %v8342
    %v8708 = vunpack.c.l.b16 %v8343
    %v8709 = vunpack.c.h.b16 %v8343
    %v8710 = vunpack.c.l.b16 %v8344
    %v8711 = vunpack.c.h.b16 %v8344
    %v8712 = vunpack.c.l.b16 %v8345
    %v8713 = vunpack.c.h.b16 %v8345
    %v8714 = vunpack.c.l.b16 %v8346
    %v8715 = vunpack.c.h.b16 %v8346
    %v8716 = vunpack.c.l.b16 %v8347
    %v8717 = vunpack.c.h.b16 %v8347
    %v8718 = vunpack.c.l.b16 %v8348
    %v8719 = vunpack.c.h.b16 %v8348
    %v8720 = vunpack.c.l.b16 %v8349
    %v8721 = vunpack.c.h.b16 %v8349
    %v8722 = vunpack.c.l.b16 %v8350
    %v8723 = vunpack.c.h.b16 %v8350
    %v8724 = vunpack.c.l.b16 %v8351
    %v8725 = vunpack.c.h.b16 %v8351
    %v8726 = vunpack.c.l.b16 %v8352
    %v8727 = vunpack.c.h.b16 %v8352
    %v8728 = vunpack.c.l.b16 %v8353
    %v8729 = vunpack.c.h.b16 %v8353
    %v8730 = vunpack.c.l.b16 %v8354
    %v8731 = vunpack.c.h.b16 %v8354
    %v8732 = vunpack.c.l.b16 %v8355
    %v8733 = vunpack.c.h.b16 %v8355
    %v8734 = vunpack.c.l.b16 %v8356
    %v8735 = vunpack.c.h.b16 %v8356
    %v8736 = vunpack.c.l.b16 %v8357
    %v8737 = vunpack.c.h.b16 %v8357
    %v8738 = vunpack.c.l.b16 %v8358
    %v8739 = vunpack.c.h.b16 %v8358
    %v8740 = vunpack.c.l.b16 %v8359
    %v8741 = vunpack.c.h.b16 %v8359
    %v8742 = vunpack.c.l.b16 %v8360
    %v8743 = vunpack.c.h.b16 %v8360
    %v8744 = vunpack.c.l.b16 %v8361
    %v8745 = vunpack.c.h.b16 %v8361
    %v8746 = vpack.c.b16 %v8498, %v8490
    %v8747 = vpack.c.b16 %v8499, %v8491
    %v8748 = vpack.c.b16 %v8500, %v8492
    %v8749 = vpack.c.b16 %v8501, %v8493
    %v8750 = vpack.c.b16 %v8502, %v8494
    %v8751 = vpack.c.b16 %v8503, %v8495
    %v8752 = vpack.c.b16 %v8504, %v8496
    %v8753 = vpack.c.b16 %v8505, %v8497
    %v8754 = vpack.c.b16 %v8514, %v8506
    %v8755 = vpack.c.b16 %v8515, %v8507
    %v8756 = vpack.c.b16 %v8516, %v8508
    %v8757 = vpack.c.b16 %v8517, %v8509
    %v8758 = vpack.c.b16 %v8518, %v8510
    %v8759 = vpack.c.b16 %v8519, %v8511
    %v8760 = vpack.c.b16 %v8520, %v8512
    %v8761 = vpack.c.b16 %v8521, %v8513
    %v8762 = vpack.c.b16 %v8530, %v8522
    %v8763 = vpack.c.b16 %v8531, %v8523
    %v8764 = vpack.c.b16 %v8532, %v8524
    %v8765 = vpack.c.b16 %v8533, %v8525
    %v8766 = vpack.c.b16 %v8534, %v8526
    %v8767 = vpack.c.b16 %v8535, %v8527
    %v8768 = vpack.c.b16 %v8536, %v8528
    %v8769 = vpack.c.b16 %v8537, %v8529
    %v8770 = vpack.c.b16 %v8546, %v8538
    %v8771 = vpack.c.b16 %v8547, %v8539
    %v8772 = vpack.c.b16 %v8548, %v8540
    %v8773 = vpack.c.b16 %v8549, %v8541
    %v8774 = vpack.c.b16 %v8550, %v8542
    %v8775 = vpack.c.b16 %v8551, %v8543
    %v8776 = vpack.c.b16 %v8552, %v8544
    %v8777 = vpack.c.b16 %v8553, %v8545
    %v8778 = vpack.c.b16 %v8562, %v8554
    %v8779 = vpack.c.b16 %v8563, %v8555
    %v8780 = vpack.c.b16 %v8564, %v8556
    %v8781 = vpack.c.b16 %v8565, %v8557
    %v8782 = vpack.c.b16 %v8566, %v8558
    %v8783 = vpack.c.b16 %v8567, %v8559
    %v8784 = vpack.c.b16 %v8568, %v8560
    %v8785 = vpack.c.b16 %v8569, %v8561
    %v8786 = vpack.c.b16 %v8578, %v8570
    %v8787 = vpack.c.b16 %v8579, %v8571
    %v8788 = vpack.c.b16 %v8580, %v8572
    %v8789 = vpack.c.b16 %v8581, %v8573
    %v8790 = vpack.c.b16 %v8582, %v8574
    %v8791 = vpack.c.b16 %v8583, %v8575
    %v8792 = vpack.c.b16 %v8584, %v8576
    %v8793 = vpack.c.b16 %v8585, %v8577
    %v8794 = vpack.c.b16 %v8594, %v8586
    %v8795 = vpack.c.b16 %v8595, %v8587
    %v8796 = vpack.c.b16 %v8596, %v8588
    %v8797 = vpack.c.b16 %v8597, %v8589
    %v8798 = vpack.c.b16 %v8598, %v8590
    %v8799 = vpack.c.b16 %v8599, %v8591
    %v8800 = vpack.c.b16 %v8600, %v8592
    %v8801 = vpack.c.b16 %v8601, %v8593
    %v8802 = vpack.c.b16 %v8610, %v8602
    %v8803 = vpack.c.b16 %v8611, %v8603
    %v8804 = vpack.c.b16 %v8612, %v8604
    %v8805 = vpack.c.b16 %v8613, %v8605
    %v8806 = vpack.c.b16 %v8614, %v8606
    %v8807 = vpack.c.b16 %v8615, %v8607
    %v8808 = vpack.c.b16 %v8616, %v8608
    %v8809 = vpack.c.b16 %v8617, %v8609
    %v8810 = vpack.c.b16 %v8626, %v8618
    %v8811 = vpack.c.b16 %v8627, %v8619
    %v8812 = vpack.c.b16 %v8628, %v8620
    %v8813 = vpack.c.b16 %v8629, %v8621
    %v8814 = vpack.c.b16 %v8630, %v8622
    %v8815 = vpack.c.b16 %v8631, %v8623
    %v8816 = vpack.c.b16 %v8632, %v8624
    %v8817 = vpack.c.b16 %v8633, %v8625
    %v8818 = vpack.c.b16 %v8642, %v8634
    %v8819 = vpack.c.b16 %v8643, %v8635
    %v8820 = vpack.c.b16 %v8644, %v8636
    %v8821 = vpack.c.b16 %v8645, %v8637
    %v8822 = vpack.c.b16 %v8646, %v8638
    %v8823 = vpack.c.b16 %v8647, %v8639
    %v8824 = vpack.c.b16 %v8648, %v8640
    %v8825 = vpack.c.b16 %v8649, %v8641
    %v8826 = vpack.c.b16 %v8658, %v8650
    %v8827 = vpack.c.b16 %v8659, %v8651
    %v8828 = vpack.c.b16 %v8660, %v8652
    %v8829 = vpack.c.b16 %v8661, %v8653
    %v8830 = vpack.c.b16 %v8662, %v8654
    %v8831 = vpack.c.b16 %v8663, %v8655
    %v8832 = vpack.c.b16 %v8664, %v8656
    %v8833 = vpack.c.b16 %v8665, %v8657
    %v8834 = vpack.c.b16 %v8674, %v8666
    %v8835 = vpack.c.b16 %v8675, %v8667
    %v8836 = vpack.c.b16 %v8676, %v8668
    %v8837 = vpack.c.b16 %v8677, %v8669
    %v8838 = vpack.c.b16 %v8678, %v8670
    %v8839 = vpack.c.b16 %v8679, %v8671
    %v8840 = vpack.c.b16 %v8680, %v8672
    %v8841 = vpack.c.b16 %v8681, %v8673
    %v8842 = vpack.c.b16 %v8690, %v8682
    %v8843 = vpack.c.b16 %v8691, %v8683
    %v8844 = vpack.c.b16 %v8692, %v8684
    %v8845 = vpack.c.b16 %v8693, %v8685
    %v8846 = vpack.c.b16 %v8694, %v8686
    %v8847 = vpack.c.b16 %v8695, %v8687
    %v8848 = vpack.c.b16 %v8696, %v8688
    %v8849 = vpack.c.b16 %v8697, %v8689
    %v8850 = vpack.c.b16 %v8706, %v8698
    %v8851 = vpack.c.b16 %v8707, %v8699
    %v8852 = vpack.c.b16 %v8708, %v8700
    %v8853 = vpack.c.b16 %v8709, %v8701
    %v8854 = vpack.c.b16 %v8710, %v8702
    %v8855 = vpack.c.b16 %v8711, %v8703
    %v8856 = vpack.c.b16 %v8712, %v8704
    %v8857 = vpack.c.b16 %v8713, %v8705
    %v8858 = vpack.c.b16 %v8722, %v8714
    %v8859 = vpack.c.b16 %v8723, %v8715
    %v8860 = vpack.c.b16 %v8724, %v8716
    %v8861 = vpack.c.b16 %v8725, %v8717
    %v8862 = vpack.c.b16 %v8726, %v8718
    %v8863 = vpack.c.b16 %v8727, %v8719
    %v8864 = vpack.c.b16 %v8728, %v8720
    %v8865 = vpack.c.b16 %v8729, %v8721
    %v8866 = vpack.c.b16 %v8738, %v8730
    %v8867 = vpack.c.b16 %v8739, %v8731
    %v8868 = vpack.c.b16 %v8740, %v8732
    %v8869 = vpack.c.b16 %v8741, %v8733
    %v8870 = vpack.c.b16 %v8742, %v8734
    %v8871 = vpack.c.b16 %v8743, %v8735
    %v8872 = vpack.c.b16 %v8744, %v8736
    %v8873 = vpack.c.b16 %v8745, %v8737
    %9002 = vmatprep.subr.bf16.mxu0 %v8803
    %9003 = vmatpush1.bf16.msra.mxu0 %v8802
    %9004 = vmatprep.subr.bf16.mxu0 %v8795
    %9005 = vmatpush1.bf16.msra.mxu0 %v8794
    %9006 = vmatprep.subr.bf16.mxu0 %v8787
    %9007 = vmatpush1.bf16.msra.mxu0 %v8786
    %9008 = vmatprep.subr.bf16.mxu0 %v8779
    %9009 = vmatpush1.bf16.msra.mxu0 %v8778
    %9010 = vmatprep.subr.bf16.mxu0 %v8771
    %9011 = vmatpush1.bf16.msra.mxu0 %v8770
    %9012 = vmatprep.subr.bf16.mxu0 %v8763
    %9013 = vmatpush1.bf16.msra.mxu0 %v8762
    %9014 = vmatprep.subr.bf16.mxu0 %v8755
    %9015 = vmatpush1.bf16.msra.mxu0 %v8754
    %9016 = vmatprep.subr.bf16.mxu0 %v8747
    %9017 = vmatpush1.bf16.msra.mxu0 %v8746
    %9018 = vmatprep.subr.bf16.mxu0 %v8867
    %9019 = vmatpush2.bf16.msra.mxu0 %v8866
    %9020 = vmatprep.subr.bf16.mxu0 %v8859
    %9021 = vmatpush2.bf16.msra.mxu0 %v8858
    %9022 = vmatprep.subr.bf16.mxu0 %v8851
    %9023 = vmatpush2.bf16.msra.mxu0 %v8850
    %9024 = vmatprep.subr.bf16.mxu0 %v8843
    %9025 = vmatpush2.bf16.msra.mxu0 %v8842
    %9026 = vmatprep.subr.bf16.mxu0 %v8835
    %9027 = vmatpush2.bf16.msra.mxu0 %v8834
    %9028 = vmatprep.subr.bf16.mxu0 %v8827
    %9029 = vmatpush2.bf16.msra.mxu0 %v8826
    %9030 = vmatprep.subr.bf16.mxu0 %v8819
    %9031 = vmatpush2.bf16.msra.mxu0 %v8818
    %9032 = vmatprep.subr.bf16.mxu0 %v8811
    %9033 = vmatpush2.bf16.msra.mxu0 %v8810
    %9034 = vmatprep.mubr.bf16.mxu0 %v8203
    %9035 = vmatmul.mubr.bf16.gmra.mxu0 %v8202
    %v9036 = vpop.f32.mrf.mxu0
    %v9037 = vadd.f32 0.0, %v9036
    %v9038 = vpop.f32.mrf.mxu0
    %v9039 = vadd.f32 0.0, %v9038
    %v9040 = vpop.f32.mrf.mxu0
    %v9041 = vadd.f32 0.0, %v9040
    %v9042 = vpop.f32.mrf.mxu0
    %v9043 = vadd.f32 0.0, %v9042
    %9044 = vmatprep.mubr.bf16.mxu0 %v8205
    %9045 = vmatmul.mubr.bf16.gmra.mxu0 %v8204
    %v9046 = vpop.f32.mrf.mxu0
    %v9047 = vadd.f32 0.0, %v9046
    %v9048 = vpop.f32.mrf.mxu0
    %v9049 = vadd.f32 0.0, %v9048
    %v9050 = vpop.f32.mrf.mxu0
    %v9051 = vadd.f32 0.0, %v9050
    %v9052 = vpop.f32.mrf.mxu0
    %v9053 = vadd.f32 0.0, %v9052
    %9054 = vmatprep.mubr.bf16.mxu0 %v8207
    %9055 = vmatmul.mubr.bf16.gmra.mxu0 %v8206
    %v9056 = vpop.f32.mrf.mxu0
    %v9057 = vadd.f32 0.0, %v9056
    %v9058 = vpop.f32.mrf.mxu0
    %v9059 = vadd.f32 0.0, %v9058
    %v9060 = vpop.f32.mrf.mxu0
    %v9061 = vadd.f32 0.0, %v9060
    %v9062 = vpop.f32.mrf.mxu0
    %v9063 = vadd.f32 0.0, %v9062
    %9064 = vmatprep.mubr.bf16.mxu0 %v8209
    %9065 = vmatmul.mubr.bf16.gmra.mxu0 %v8208
    %v9066 = vpop.f32.mrf.mxu0
    %v9067 = vadd.f32 0.0, %v9066
    %v9068 = vpop.f32.mrf.mxu0
    %v9069 = vadd.f32 0.0, %v9068
    %v9070 = vpop.f32.mrf.mxu0
    %v9071 = vadd.f32 0.0, %v9070
    %v9072 = vpop.f32.mrf.mxu0
    %v9073 = vadd.f32 0.0, %v9072
    %9074 = vmatprep.mubr.bf16.mxu0 %v8211
    %9075 = vmatmul.mubr.bf16.gmra.mxu0 %v8210
    %v9076 = vpop.f32.mrf.mxu0
    %v9077 = vadd.f32 0.0, %v9076
    %v9078 = vpop.f32.mrf.mxu0
    %v9079 = vadd.f32 0.0, %v9078
    %v9080 = vpop.f32.mrf.mxu0
    %v9081 = vadd.f32 0.0, %v9080
    %v9082 = vpop.f32.mrf.mxu0
    %v9083 = vadd.f32 0.0, %v9082
    %9084 = vmatprep.mubr.bf16.mxu0 %v8213
    %9085 = vmatmul.mubr.bf16.gmra.mxu0 %v8212
    %v9086 = vpop.f32.mrf.mxu0
    %v9087 = vadd.f32 0.0, %v9086
    %v9088 = vpop.f32.mrf.mxu0
    %v9089 = vadd.f32 0.0, %v9088
    %v9090 = vpop.f32.mrf.mxu0
    %v9091 = vadd.f32 0.0, %v9090
    %v9092 = vpop.f32.mrf.mxu0
    %v9093 = vadd.f32 0.0, %v9092
    %9094 = vmatprep.mubr.bf16.mxu0 %v8215
    %9095 = vmatmul.mubr.bf16.gmra.mxu0 %v8214
    %v9096 = vpop.f32.mrf.mxu0
    %v9097 = vadd.f32 0.0, %v9096
    %v9098 = vpop.f32.mrf.mxu0
    %v9099 = vadd.f32 0.0, %v9098
    %v9100 = vpop.f32.mrf.mxu0
    %v9101 = vadd.f32 0.0, %v9100
    %v9102 = vpop.f32.mrf.mxu0
    %v9103 = vadd.f32 0.0, %v9102
    %9104 = vmatprep.mubr.bf16.mxu0 %v8217
    %9105 = vmatmul.mubr.bf16.gmra.mxu0 %v8216
    %v9106 = vpop.f32.mrf.mxu0
    %v9107 = vadd.f32 0.0, %v9106
    %v9108 = vpop.f32.mrf.mxu0
    %v9109 = vadd.f32 0.0, %v9108
    %v9110 = vpop.f32.mrf.mxu0
    %v9111 = vadd.f32 0.0, %v9110
    %v9112 = vpop.f32.mrf.mxu0
    %v9113 = vadd.f32 0.0, %v9112
    %9114 = vmatprep.mubr.bf16.mxu0 %v8219
    %9115 = vmatmul.mubr.bf16.gmra.mxu0 %v8218
    %v9116 = vpop.f32.mrf.mxu0
    %v9117 = vadd.f32 0.0, %v9116
    %v9118 = vpop.f32.mrf.mxu0
    %v9119 = vadd.f32 0.0, %v9118
    %v9120 = vpop.f32.mrf.mxu0
    %v9121 = vadd.f32 0.0, %v9120
    %v9122 = vpop.f32.mrf.mxu0
    %v9123 = vadd.f32 0.0, %v9122
    %9124 = vmatprep.mubr.bf16.mxu0 %v8221
    %9125 = vmatmul.mubr.bf16.gmra.mxu0 %v8220
    %v9126 = vpop.f32.mrf.mxu0
    %v9127 = vadd.f32 0.0, %v9126
    %v9128 = vpop.f32.mrf.mxu0
    %v9129 = vadd.f32 0.0, %v9128
    %v9130 = vpop.f32.mrf.mxu0
    %v9131 = vadd.f32 0.0, %v9130
    %v9132 = vpop.f32.mrf.mxu0
    %v9133 = vadd.f32 0.0, %v9132
    %9134 = vmatprep.mubr.bf16.mxu0 %v8223
    %9135 = vmatmul.mubr.bf16.gmra.mxu0 %v8222
    %v9136 = vpop.f32.mrf.mxu0
    %v9137 = vadd.f32 0.0, %v9136
    %v9138 = vpop.f32.mrf.mxu0
    %v9139 = vadd.f32 0.0, %v9138
    %v9140 = vpop.f32.mrf.mxu0
    %v9141 = vadd.f32 0.0, %v9140
    %v9142 = vpop.f32.mrf.mxu0
    %v9143 = vadd.f32 0.0, %v9142
    %9144 = vmatprep.mubr.bf16.mxu0 %v8225
    %9145 = vmatmul.mubr.bf16.gmra.mxu0 %v8224
    %v9146 = vpop.f32.mrf.mxu0
    %v9147 = vadd.f32 0.0, %v9146
    %v9148 = vpop.f32.mrf.mxu0
    %v9149 = vadd.f32 0.0, %v9148
    %v9150 = vpop.f32.mrf.mxu0
    %v9151 = vadd.f32 0.0, %v9150
    %v9152 = vpop.f32.mrf.mxu0
    %v9153 = vadd.f32 0.0, %v9152
    %9154 = vmatprep.mubr.bf16.mxu0 %v8227
    %9155 = vmatmul.mubr.bf16.gmra.mxu0 %v8226
    %v9156 = vpop.f32.mrf.mxu0
    %v9157 = vadd.f32 0.0, %v9156
    %v9158 = vpop.f32.mrf.mxu0
    %v9159 = vadd.f32 0.0, %v9158
    %v9160 = vpop.f32.mrf.mxu0
    %v9161 = vadd.f32 0.0, %v9160
    %v9162 = vpop.f32.mrf.mxu0
    %v9163 = vadd.f32 0.0, %v9162
    %9164 = vmatprep.mubr.bf16.mxu0 %v8229
    %9165 = vmatmul.mubr.bf16.gmra.mxu0 %v8228
    %v9166 = vpop.f32.mrf.mxu0
    %v9167 = vadd.f32 0.0, %v9166
    %v9168 = vpop.f32.mrf.mxu0
    %v9169 = vadd.f32 0.0, %v9168
    %v9170 = vpop.f32.mrf.mxu0
    %v9171 = vadd.f32 0.0, %v9170
    %v9172 = vpop.f32.mrf.mxu0
    %v9173 = vadd.f32 0.0, %v9172
    %9174 = vmatprep.mubr.bf16.mxu0 %v8231
    %9175 = vmatmul.mubr.bf16.gmra.mxu0 %v8230
    %v9176 = vpop.f32.mrf.mxu0
    %v9177 = vadd.f32 0.0, %v9176
    %v9178 = vpop.f32.mrf.mxu0
    %v9179 = vadd.f32 0.0, %v9178
    %v9180 = vpop.f32.mrf.mxu0
    %v9181 = vadd.f32 0.0, %v9180
    %v9182 = vpop.f32.mrf.mxu0
    %v9183 = vadd.f32 0.0, %v9182
    %9184 = vmatprep.mubr.bf16.mxu0 %v8233
    %9185 = vmatmul.mubr.bf16.gmra.mxu0 %v8232
    %v9186 = vpop.f32.mrf.mxu0
    %v9187 = vadd.f32 0.0, %v9186
    %v9188 = vpop.f32.mrf.mxu0
    %v9189 = vadd.f32 0.0, %v9188
    %v9190 = vpop.f32.mrf.mxu0
    %v9191 = vadd.f32 0.0, %v9190
    %v9192 = vpop.f32.mrf.mxu0
    %v9193 = vadd.f32 0.0, %v9192
    %9194 = vdwg.mxu0
    %9195 = vmatprep.subr.bf16.mxu0 %v8805
    %9196 = vmatpush1.bf16.msra.mxu0 %v8804
    %9197 = vmatprep.subr.bf16.mxu0 %v8797
    %9198 = vmatpush1.bf16.msra.mxu0 %v8796
    %9199 = vmatprep.subr.bf16.mxu0 %v8789
    %9200 = vmatpush1.bf16.msra.mxu0 %v8788
    %9201 = vmatprep.subr.bf16.mxu0 %v8781
    %9202 = vmatpush1.bf16.msra.mxu0 %v8780
    %9203 = vmatprep.subr.bf16.mxu0 %v8773
    %9204 = vmatpush1.bf16.msra.mxu0 %v8772
    %9205 = vmatprep.subr.bf16.mxu0 %v8765
    %9206 = vmatpush1.bf16.msra.mxu0 %v8764
    %9207 = vmatprep.subr.bf16.mxu0 %v8757
    %9208 = vmatpush1.bf16.msra.mxu0 %v8756
    %9209 = vmatprep.subr.bf16.mxu0 %v8749
    %9210 = vmatpush1.bf16.msra.mxu0 %v8748
    %9211 = vmatprep.subr.bf16.mxu0 %v8869
    %9212 = vmatpush2.bf16.msra.mxu0 %v8868
    %9213 = vmatprep.subr.bf16.mxu0 %v8861
    %9214 = vmatpush2.bf16.msra.mxu0 %v8860
    %9215 = vmatprep.subr.bf16.mxu0 %v8853
    %9216 = vmatpush2.bf16.msra.mxu0 %v8852
    %9217 = vmatprep.subr.bf16.mxu0 %v8845
    %9218 = vmatpush2.bf16.msra.mxu0 %v8844
    %9219 = vmatprep.subr.bf16.mxu0 %v8837
    %9220 = vmatpush2.bf16.msra.mxu0 %v8836
    %9221 = vmatprep.subr.bf16.mxu0 %v8829
    %9222 = vmatpush2.bf16.msra.mxu0 %v8828
    %9223 = vmatprep.subr.bf16.mxu0 %v8821
    %9224 = vmatpush2.bf16.msra.mxu0 %v8820
    %9225 = vmatprep.subr.bf16.mxu0 %v8813
    %9226 = vmatpush2.bf16.msra.mxu0 %v8812
    %9227 = vmatprep.mubr.bf16.mxu0 %v8203
    %9228 = vmatmul.mubr.bf16.gmra.mxu0 %v8202
    %v9229 = vpop.f32.mrf.mxu0
    %v9230 = vadd.f32 0.0, %v9229
    %v9231 = vpop.f32.mrf.mxu0
    %v9232 = vadd.f32 0.0, %v9231
    %v9233 = vpop.f32.mrf.mxu0
    %v9234 = vadd.f32 0.0, %v9233
    %v9235 = vpop.f32.mrf.mxu0
    %v9236 = vadd.f32 0.0, %v9235
    %9237 = vmatprep.mubr.bf16.mxu0 %v8205
    %9238 = vmatmul.mubr.bf16.gmra.mxu0 %v8204
    %v9239 = vpop.f32.mrf.mxu0
    %v9240 = vadd.f32 0.0, %v9239
    %v9241 = vpop.f32.mrf.mxu0
    %v9242 = vadd.f32 0.0, %v9241
    %v9243 = vpop.f32.mrf.mxu0
    %v9244 = vadd.f32 0.0, %v9243
    %v9245 = vpop.f32.mrf.mxu0
    %v9246 = vadd.f32 0.0, %v9245
    %9247 = vmatprep.mubr.bf16.mxu0 %v8207
    %9248 = vmatmul.mubr.bf16.gmra.mxu0 %v8206
    %v9249 = vpop.f32.mrf.mxu0
    %v9250 = vadd.f32 0.0, %v9249
    %v9251 = vpop.f32.mrf.mxu0
    %v9252 = vadd.f32 0.0, %v9251
    %v9253 = vpop.f32.mrf.mxu0
    %v9254 = vadd.f32 0.0, %v9253
    %v9255 = vpop.f32.mrf.mxu0
    %v9256 = vadd.f32 0.0, %v9255
    %9257 = vmatprep.mubr.bf16.mxu0 %v8209
    %9258 = vmatmul.mubr.bf16.gmra.mxu0 %v8208
    %v9259 = vpop.f32.mrf.mxu0
    %v9260 = vadd.f32 0.0, %v9259
    %v9261 = vpop.f32.mrf.mxu0
    %v9262 = vadd.f32 0.0, %v9261
    %v9263 = vpop.f32.mrf.mxu0
    %v9264 = vadd.f32 0.0, %v9263
    %v9265 = vpop.f32.mrf.mxu0
    %v9266 = vadd.f32 0.0, %v9265
    %9267 = vmatprep.mubr.bf16.mxu0 %v8211
    %9268 = vmatmul.mubr.bf16.gmra.mxu0 %v8210
    %v9269 = vpop.f32.mrf.mxu0
    %v9270 = vadd.f32 0.0, %v9269
    %v9271 = vpop.f32.mrf.mxu0
    %v9272 = vadd.f32 0.0, %v9271
    %v9273 = vpop.f32.mrf.mxu0
    %v9274 = vadd.f32 0.0, %v9273
    %v9275 = vpop.f32.mrf.mxu0
    %v9276 = vadd.f32 0.0, %v9275
    %9277 = vmatprep.mubr.bf16.mxu0 %v8213
    %9278 = vmatmul.mubr.bf16.gmra.mxu0 %v8212
    %v9279 = vpop.f32.mrf.mxu0
    %v9280 = vadd.f32 0.0, %v9279
    %v9281 = vpop.f32.mrf.mxu0
    %v9282 = vadd.f32 0.0, %v9281
    %v9283 = vpop.f32.mrf.mxu0
    %v9284 = vadd.f32 0.0, %v9283
    %v9285 = vpop.f32.mrf.mxu0
    %v9286 = vadd.f32 0.0, %v9285
    %9287 = vmatprep.mubr.bf16.mxu0 %v8215
    %9288 = vmatmul.mubr.bf16.gmra.mxu0 %v8214
    %v9289 = vpop.f32.mrf.mxu0
    %v9290 = vadd.f32 0.0, %v9289
    %v9291 = vpop.f32.mrf.mxu0
    %v9292 = vadd.f32 0.0, %v9291
    %v9293 = vpop.f32.mrf.mxu0
    %v9294 = vadd.f32 0.0, %v9293
    %v9295 = vpop.f32.mrf.mxu0
    %v9296 = vadd.f32 0.0, %v9295
    %9297 = vmatprep.mubr.bf16.mxu0 %v8217
    %9298 = vmatmul.mubr.bf16.gmra.mxu0 %v8216
    %v9299 = vpop.f32.mrf.mxu0
    %v9300 = vadd.f32 0.0, %v9299
    %v9301 = vpop.f32.mrf.mxu0
    %v9302 = vadd.f32 0.0, %v9301
    %v9303 = vpop.f32.mrf.mxu0
    %v9304 = vadd.f32 0.0, %v9303
    %v9305 = vpop.f32.mrf.mxu0
    %v9306 = vadd.f32 0.0, %v9305
    %9307 = vmatprep.mubr.bf16.mxu0 %v8219
    %9308 = vmatmul.mubr.bf16.gmra.mxu0 %v8218
    %v9309 = vpop.f32.mrf.mxu0
    %v9310 = vadd.f32 0.0, %v9309
    %v9311 = vpop.f32.mrf.mxu0
    %v9312 = vadd.f32 0.0, %v9311
    %v9313 = vpop.f32.mrf.mxu0
    %v9314 = vadd.f32 0.0, %v9313
    %v9315 = vpop.f32.mrf.mxu0
    %v9316 = vadd.f32 0.0, %v9315
    %9317 = vmatprep.mubr.bf16.mxu0 %v8221
    %9318 = vmatmul.mubr.bf16.gmra.mxu0 %v8220
    %v9319 = vpop.f32.mrf.mxu0
    %v9320 = vadd.f32 0.0, %v9319
    %v9321 = vpop.f32.mrf.mxu0
    %v9322 = vadd.f32 0.0, %v9321
    %v9323 = vpop.f32.mrf.mxu0
    %v9324 = vadd.f32 0.0, %v9323
    %v9325 = vpop.f32.mrf.mxu0
    %v9326 = vadd.f32 0.0, %v9325
    %9327 = vmatprep.mubr.bf16.mxu0 %v8223
    %9328 = vmatmul.mubr.bf16.gmra.mxu0 %v8222
    %v9329 = vpop.f32.mrf.mxu0
    %v9330 = vadd.f32 0.0, %v9329
    %v9331 = vpop.f32.mrf.mxu0
    %v9332 = vadd.f32 0.0, %v9331
    %v9333 = vpop.f32.mrf.mxu0
    %v9334 = vadd.f32 0.0, %v9333
    %v9335 = vpop.f32.mrf.mxu0
    %v9336 = vadd.f32 0.0, %v9335
    %9337 = vmatprep.mubr.bf16.mxu0 %v8225
    %9338 = vmatmul.mubr.bf16.gmra.mxu0 %v8224
    %v9339 = vpop.f32.mrf.mxu0
    %v9340 = vadd.f32 0.0, %v9339
    %v9341 = vpop.f32.mrf.mxu0
    %v9342 = vadd.f32 0.0, %v9341
    %v9343 = vpop.f32.mrf.mxu0
    %v9344 = vadd.f32 0.0, %v9343
    %v9345 = vpop.f32.mrf.mxu0
    %v9346 = vadd.f32 0.0, %v9345
    %9347 = vmatprep.mubr.bf16.mxu0 %v8227
    %9348 = vmatmul.mubr.bf16.gmra.mxu0 %v8226
    %v9349 = vpop.f32.mrf.mxu0
    %v9350 = vadd.f32 0.0, %v9349
    %v9351 = vpop.f32.mrf.mxu0
    %v9352 = vadd.f32 0.0, %v9351
    %v9353 = vpop.f32.mrf.mxu0
    %v9354 = vadd.f32 0.0, %v9353
    %v9355 = vpop.f32.mrf.mxu0
    %v9356 = vadd.f32 0.0, %v9355
    %9357 = vmatprep.mubr.bf16.mxu0 %v8229
    %9358 = vmatmul.mubr.bf16.gmra.mxu0 %v8228
    %v9359 = vpop.f32.mrf.mxu0
    %v9360 = vadd.f32 0.0, %v9359
    %v9361 = vpop.f32.mrf.mxu0
    %v9362 = vadd.f32 0.0, %v9361
    %v9363 = vpop.f32.mrf.mxu0
    %v9364 = vadd.f32 0.0, %v9363
    %v9365 = vpop.f32.mrf.mxu0
    %v9366 = vadd.f32 0.0, %v9365
    %9367 = vmatprep.mubr.bf16.mxu0 %v8231
    %9368 = vmatmul.mubr.bf16.gmra.mxu0 %v8230
    %v9369 = vpop.f32.mrf.mxu0
    %v9370 = vadd.f32 0.0, %v9369
    %v9371 = vpop.f32.mrf.mxu0
    %v9372 = vadd.f32 0.0, %v9371
    %v9373 = vpop.f32.mrf.mxu0
    %v9374 = vadd.f32 0.0, %v9373
    %v9375 = vpop.f32.mrf.mxu0
    %v9376 = vadd.f32 0.0, %v9375
    %9377 = vmatprep.mubr.bf16.mxu0 %v8233
    %9378 = vmatmul.mubr.bf16.gmra.mxu0 %v8232
    %v9379 = vpop.f32.mrf.mxu0
    %v9380 = vadd.f32 0.0, %v9379
    %v9381 = vpop.f32.mrf.mxu0
    %v9382 = vadd.f32 0.0, %v9381
    %v9383 = vpop.f32.mrf.mxu0
    %v9384 = vadd.f32 0.0, %v9383
    %v9385 = vpop.f32.mrf.mxu0
    %v9386 = vadd.f32 0.0, %v9385
    %9387 = vdwg.mxu0
    %9388 = vmatprep.subr.bf16.mxu0 %v8807
    %9389 = vmatpush1.bf16.msra.mxu0 %v8806
    %9390 = vmatprep.subr.bf16.mxu0 %v8799
    %9391 = vmatpush1.bf16.msra.mxu0 %v8798
    %9392 = vmatprep.subr.bf16.mxu0 %v8791
    %9393 = vmatpush1.bf16.msra.mxu0 %v8790
    %9394 = vmatprep.subr.bf16.mxu0 %v8783
    %9395 = vmatpush1.bf16.msra.mxu0 %v8782
    %9396 = vmatprep.subr.bf16.mxu0 %v8775
    %9397 = vmatpush1.bf16.msra.mxu0 %v8774
    %9398 = vmatprep.subr.bf16.mxu0 %v8767
    %9399 = vmatpush1.bf16.msra.mxu0 %v8766
    %9400 = vmatprep.subr.bf16.mxu0 %v8759
    %9401 = vmatpush1.bf16.msra.mxu0 %v8758
    %9402 = vmatprep.subr.bf16.mxu0 %v8751
    %9403 = vmatpush1.bf16.msra.mxu0 %v8750
    %9404 = vmatprep.subr.bf16.mxu0 %v8871
    %9405 = vmatpush2.bf16.msra.mxu0 %v8870
    %9406 = vmatprep.subr.bf16.mxu0 %v8863
    %9407 = vmatpush2.bf16.msra.mxu0 %v8862
    %9408 = vmatprep.subr.bf16.mxu0 %v8855
    %9409 = vmatpush2.bf16.msra.mxu0 %v8854
    %9410 = vmatprep.subr.bf16.mxu0 %v8847
    %9411 = vmatpush2.bf16.msra.mxu0 %v8846
    %9412 = vmatprep.subr.bf16.mxu0 %v8839
    %9413 = vmatpush2.bf16.msra.mxu0 %v8838
    %9414 = vmatprep.subr.bf16.mxu0 %v8831
    %9415 = vmatpush2.bf16.msra.mxu0 %v8830
    %9416 = vmatprep.subr.bf16.mxu0 %v8823
    %9417 = vmatpush2.bf16.msra.mxu0 %v8822
    %9418 = vmatprep.subr.bf16.mxu0 %v8815
    %9419 = vmatpush2.bf16.msra.mxu0 %v8814
    %9420 = vmatprep.mubr.bf16.mxu0 %v8203
    %9421 = vmatmul.mubr.bf16.gmra.mxu0 %v8202
    %v9422 = vpop.f32.mrf.mxu0
    %v9423 = vadd.f32 0.0, %v9422
    %v9424 = vpop.f32.mrf.mxu0
    %v9425 = vadd.f32 0.0, %v9424
    %v9426 = vpop.f32.mrf.mxu0
    %v9427 = vadd.f32 0.0, %v9426
    %v9428 = vpop.f32.mrf.mxu0
    %v9429 = vadd.f32 0.0, %v9428
    %9430 = vmatprep.mubr.bf16.mxu0 %v8205
    %9431 = vmatmul.mubr.bf16.gmra.mxu0 %v8204
    %v9432 = vpop.f32.mrf.mxu0
    %v9433 = vadd.f32 0.0, %v9432
    %v9434 = vpop.f32.mrf.mxu0
    %v9435 = vadd.f32 0.0, %v9434
    %v9436 = vpop.f32.mrf.mxu0
    %v9437 = vadd.f32 0.0, %v9436
    %v9438 = vpop.f32.mrf.mxu0
    %v9439 = vadd.f32 0.0, %v9438
    %9440 = vmatprep.mubr.bf16.mxu0 %v8207
    %9441 = vmatmul.mubr.bf16.gmra.mxu0 %v8206
    %v9442 = vpop.f32.mrf.mxu0
    %v9443 = vadd.f32 0.0, %v9442
    %v9444 = vpop.f32.mrf.mxu0
    %v9445 = vadd.f32 0.0, %v9444
    %v9446 = vpop.f32.mrf.mxu0
    %v9447 = vadd.f32 0.0, %v9446
    %v9448 = vpop.f32.mrf.mxu0
    %v9449 = vadd.f32 0.0, %v9448
    %9450 = vmatprep.mubr.bf16.mxu0 %v8209
    %9451 = vmatmul.mubr.bf16.gmra.mxu0 %v8208
    %v9452 = vpop.f32.mrf.mxu0
    %v9453 = vadd.f32 0.0, %v9452
    %v9454 = vpop.f32.mrf.mxu0
    %v9455 = vadd.f32 0.0, %v9454
    %v9456 = vpop.f32.mrf.mxu0
    %v9457 = vadd.f32 0.0, %v9456
    %v9458 = vpop.f32.mrf.mxu0
    %v9459 = vadd.f32 0.0, %v9458
    %9460 = vmatprep.mubr.bf16.mxu0 %v8211
    %9461 = vmatmul.mubr.bf16.gmra.mxu0 %v8210
    %v9462 = vpop.f32.mrf.mxu0
    %v9463 = vadd.f32 0.0, %v9462
    %v9464 = vpop.f32.mrf.mxu0
    %v9465 = vadd.f32 0.0, %v9464
    %v9466 = vpop.f32.mrf.mxu0
    %v9467 = vadd.f32 0.0, %v9466
    %v9468 = vpop.f32.mrf.mxu0
    %v9469 = vadd.f32 0.0, %v9468
    %9470 = vmatprep.mubr.bf16.mxu0 %v8213
    %9471 = vmatmul.mubr.bf16.gmra.mxu0 %v8212
    %v9472 = vpop.f32.mrf.mxu0
    %v9473 = vadd.f32 0.0, %v9472
    %v9474 = vpop.f32.mrf.mxu0
    %v9475 = vadd.f32 0.0, %v9474
    %v9476 = vpop.f32.mrf.mxu0
    %v9477 = vadd.f32 0.0, %v9476
    %v9478 = vpop.f32.mrf.mxu0
    %v9479 = vadd.f32 0.0, %v9478
    %9480 = vmatprep.mubr.bf16.mxu0 %v8215
    %9481 = vmatmul.mubr.bf16.gmra.mxu0 %v8214
    %v9482 = vpop.f32.mrf.mxu0
    %v9483 = vadd.f32 0.0, %v9482
    %v9484 = vpop.f32.mrf.mxu0
    %v9485 = vadd.f32 0.0, %v9484
    %v9486 = vpop.f32.mrf.mxu0
    %v9487 = vadd.f32 0.0, %v9486
    %v9488 = vpop.f32.mrf.mxu0
    %v9489 = vadd.f32 0.0, %v9488
    %9490 = vmatprep.mubr.bf16.mxu0 %v8217
    %9491 = vmatmul.mubr.bf16.gmra.mxu0 %v8216
    %v9492 = vpop.f32.mrf.mxu0
    %v9493 = vadd.f32 0.0, %v9492
    %v9494 = vpop.f32.mrf.mxu0
    %v9495 = vadd.f32 0.0, %v9494
    %v9496 = vpop.f32.mrf.mxu0
    %v9497 = vadd.f32 0.0, %v9496
    %v9498 = vpop.f32.mrf.mxu0
    %v9499 = vadd.f32 0.0, %v9498
    %9500 = vmatprep.mubr.bf16.mxu0 %v8219
    %9501 = vmatmul.mubr.bf16.gmra.mxu0 %v8218
    %v9502 = vpop.f32.mrf.mxu0
    %v9503 = vadd.f32 0.0, %v9502
    %v9504 = vpop.f32.mrf.mxu0
    %v9505 = vadd.f32 0.0, %v9504
    %v9506 = vpop.f32.mrf.mxu0
    %v9507 = vadd.f32 0.0, %v9506
    %v9508 = vpop.f32.mrf.mxu0
    %v9509 = vadd.f32 0.0, %v9508
    %9510 = vmatprep.mubr.bf16.mxu0 %v8221
    %9511 = vmatmul.mubr.bf16.gmra.mxu0 %v8220
    %v9512 = vpop.f32.mrf.mxu0
    %v9513 = vadd.f32 0.0, %v9512
    %v9514 = vpop.f32.mrf.mxu0
    %v9515 = vadd.f32 0.0, %v9514
    %v9516 = vpop.f32.mrf.mxu0
    %v9517 = vadd.f32 0.0, %v9516
    %v9518 = vpop.f32.mrf.mxu0
    %v9519 = vadd.f32 0.0, %v9518
    %9520 = vmatprep.mubr.bf16.mxu0 %v8223
    %9521 = vmatmul.mubr.bf16.gmra.mxu0 %v8222
    %v9522 = vpop.f32.mrf.mxu0
    %v9523 = vadd.f32 0.0, %v9522
    %v9524 = vpop.f32.mrf.mxu0
    %v9525 = vadd.f32 0.0, %v9524
    %v9526 = vpop.f32.mrf.mxu0
    %v9527 = vadd.f32 0.0, %v9526
    %v9528 = vpop.f32.mrf.mxu0
    %v9529 = vadd.f32 0.0, %v9528
    %9530 = vmatprep.mubr.bf16.mxu0 %v8225
    %9531 = vmatmul.mubr.bf16.gmra.mxu0 %v8224
    %v9532 = vpop.f32.mrf.mxu0
    %v9533 = vadd.f32 0.0, %v9532
    %v9534 = vpop.f32.mrf.mxu0
    %v9535 = vadd.f32 0.0, %v9534
    %v9536 = vpop.f32.mrf.mxu0
    %v9537 = vadd.f32 0.0, %v9536
    %v9538 = vpop.f32.mrf.mxu0
    %v9539 = vadd.f32 0.0, %v9538
    %9540 = vmatprep.mubr.bf16.mxu0 %v8227
    %9541 = vmatmul.mubr.bf16.gmra.mxu0 %v8226
    %v9542 = vpop.f32.mrf.mxu0
    %v9543 = vadd.f32 0.0, %v9542
    %v9544 = vpop.f32.mrf.mxu0
    %v9545 = vadd.f32 0.0, %v9544
    %v9546 = vpop.f32.mrf.mxu0
    %v9547 = vadd.f32 0.0, %v9546
    %v9548 = vpop.f32.mrf.mxu0
    %v9549 = vadd.f32 0.0, %v9548
    %9550 = vmatprep.mubr.bf16.mxu0 %v8229
    %9551 = vmatmul.mubr.bf16.gmra.mxu0 %v8228
    %v9552 = vpop.f32.mrf.mxu0
    %v9553 = vadd.f32 0.0, %v9552
    %v9554 = vpop.f32.mrf.mxu0
    %v9555 = vadd.f32 0.0, %v9554
    %v9556 = vpop.f32.mrf.mxu0
    %v9557 = vadd.f32 0.0, %v9556
    %v9558 = vpop.f32.mrf.mxu0
    %v9559 = vadd.f32 0.0, %v9558
    %9560 = vmatprep.mubr.bf16.mxu0 %v8231
    %9561 = vmatmul.mubr.bf16.gmra.mxu0 %v8230
    %v9562 = vpop.f32.mrf.mxu0
    %v9563 = vadd.f32 0.0, %v9562
    %v9564 = vpop.f32.mrf.mxu0
    %v9565 = vadd.f32 0.0, %v9564
    %v9566 = vpop.f32.mrf.mxu0
    %v9567 = vadd.f32 0.0, %v9566
    %v9568 = vpop.f32.mrf.mxu0
    %v9569 = vadd.f32 0.0, %v9568
    %9570 = vmatprep.mubr.bf16.mxu0 %v8233
    %9571 = vmatmul.mubr.bf16.gmra.mxu0 %v8232
    %v9572 = vpop.f32.mrf.mxu0
    %v9573 = vadd.f32 0.0, %v9572
    %v9574 = vpop.f32.mrf.mxu0
    %v9575 = vadd.f32 0.0, %v9574
    %v9576 = vpop.f32.mrf.mxu0
    %v9577 = vadd.f32 0.0, %v9576
    %v9578 = vpop.f32.mrf.mxu0
    %v9579 = vadd.f32 0.0, %v9578
    %9580 = vdwg.mxu0
    %9581 = vmatprep.subr.bf16.mxu0 %v8809
    %9582 = vmatpush1.bf16.msra.mxu0 %v8808
    %9583 = vmatprep.subr.bf16.mxu0 %v8801
    %9584 = vmatpush1.bf16.msra.mxu0 %v8800
    %9585 = vmatprep.subr.bf16.mxu0 %v8793
    %9586 = vmatpush1.bf16.msra.mxu0 %v8792
    %9587 = vmatprep.subr.bf16.mxu0 %v8785
    %9588 = vmatpush1.bf16.msra.mxu0 %v8784
    %9589 = vmatprep.subr.bf16.mxu0 %v8777
    %9590 = vmatpush1.bf16.msra.mxu0 %v8776
    %9591 = vmatprep.subr.bf16.mxu0 %v8769
    %9592 = vmatpush1.bf16.msra.mxu0 %v8768
    %9593 = vmatprep.subr.bf16.mxu0 %v8761
    %9594 = vmatpush1.bf16.msra.mxu0 %v8760
    %9595 = vmatprep.subr.bf16.mxu0 %v8753
    %9596 = vmatpush1.bf16.msra.mxu0 %v8752
    %9597 = vmatprep.subr.bf16.mxu0 %v8873
    %9598 = vmatpush2.bf16.msra.mxu0 %v8872
    %9599 = vmatprep.subr.bf16.mxu0 %v8865
    %9600 = vmatpush2.bf16.msra.mxu0 %v8864
    %9601 = vmatprep.subr.bf16.mxu0 %v8857
    %9602 = vmatpush2.bf16.msra.mxu0 %v8856
    %9603 = vmatprep.subr.bf16.mxu0 %v8849
    %9604 = vmatpush2.bf16.msra.mxu0 %v8848
    %9605 = vmatprep.subr.bf16.mxu0 %v8841
    %9606 = vmatpush2.bf16.msra.mxu0 %v8840
    %9607 = vmatprep.subr.bf16.mxu0 %v8833
    %9608 = vmatpush2.bf16.msra.mxu0 %v8832
    %9609 = vmatprep.subr.bf16.mxu0 %v8825
    %9610 = vmatpush2.bf16.msra.mxu0 %v8824
    %9611 = vmatprep.subr.bf16.mxu0 %v8817
    %9612 = vmatpush2.bf16.msra.mxu0 %v8816
    %9613 = vmatprep.mubr.bf16.mxu0 %v8203
    %9614 = vmatmul.mubr.bf16.gmra.mxu0 %v8202
    %v9615 = vpop.f32.mrf.mxu0
    %v9616 = vadd.f32 0.0, %v9615
    %v9617 = vpop.f32.mrf.mxu0
    %v9618 = vadd.f32 0.0, %v9617
    %v9619 = vpop.f32.mrf.mxu0
    %v9620 = vadd.f32 0.0, %v9619
    %v9621 = vpop.f32.mrf.mxu0
    %v9622 = vadd.f32 0.0, %v9621
    %9623 = vmatprep.mubr.bf16.mxu0 %v8205
    %9624 = vmatmul.mubr.bf16.gmra.mxu0 %v8204
    %v9625 = vpop.f32.mrf.mxu0
    %v9626 = vadd.f32 0.0, %v9625
    %v9627 = vpop.f32.mrf.mxu0
    %v9628 = vadd.f32 0.0, %v9627
    %v9629 = vpop.f32.mrf.mxu0
    %v9630 = vadd.f32 0.0, %v9629
    %v9631 = vpop.f32.mrf.mxu0
    %v9632 = vadd.f32 0.0, %v9631
    %9633 = vmatprep.mubr.bf16.mxu0 %v8207
    %9634 = vmatmul.mubr.bf16.gmra.mxu0 %v8206
    %v9635 = vpop.f32.mrf.mxu0
    %v9636 = vadd.f32 0.0, %v9635
    %v9637 = vpop.f32.mrf.mxu0
    %v9638 = vadd.f32 0.0, %v9637
    %v9639 = vpop.f32.mrf.mxu0
    %v9640 = vadd.f32 0.0, %v9639
    %v9641 = vpop.f32.mrf.mxu0
    %v9642 = vadd.f32 0.0, %v9641
    %9643 = vmatprep.mubr.bf16.mxu0 %v8209
    %9644 = vmatmul.mubr.bf16.gmra.mxu0 %v8208
    %v9645 = vpop.f32.mrf.mxu0
    %v9646 = vadd.f32 0.0, %v9645
    %v9647 = vpop.f32.mrf.mxu0
    %v9648 = vadd.f32 0.0, %v9647
    %v9649 = vpop.f32.mrf.mxu0
    %v9650 = vadd.f32 0.0, %v9649
    %v9651 = vpop.f32.mrf.mxu0
    %v9652 = vadd.f32 0.0, %v9651
    %9653 = vmatprep.mubr.bf16.mxu0 %v8211
    %9654 = vmatmul.mubr.bf16.gmra.mxu0 %v8210
    %v9655 = vpop.f32.mrf.mxu0
    %v9656 = vadd.f32 0.0, %v9655
    %v9657 = vpop.f32.mrf.mxu0
    %v9658 = vadd.f32 0.0, %v9657
    %v9659 = vpop.f32.mrf.mxu0
    %v9660 = vadd.f32 0.0, %v9659
    %v9661 = vpop.f32.mrf.mxu0
    %v9662 = vadd.f32 0.0, %v9661
    %9663 = vmatprep.mubr.bf16.mxu0 %v8213
    %9664 = vmatmul.mubr.bf16.gmra.mxu0 %v8212
    %v9665 = vpop.f32.mrf.mxu0
    %v9666 = vadd.f32 0.0, %v9665
    %v9667 = vpop.f32.mrf.mxu0
    %v9668 = vadd.f32 0.0, %v9667
    %v9669 = vpop.f32.mrf.mxu0
    %v9670 = vadd.f32 0.0, %v9669
    %v9671 = vpop.f32.mrf.mxu0
    %v9672 = vadd.f32 0.0, %v9671
    %9673 = vmatprep.mubr.bf16.mxu0 %v8215
    %9674 = vmatmul.mubr.bf16.gmra.mxu0 %v8214
    %v9675 = vpop.f32.mrf.mxu0
    %v9676 = vadd.f32 0.0, %v9675
    %v9677 = vpop.f32.mrf.mxu0
    %v9678 = vadd.f32 0.0, %v9677
    %v9679 = vpop.f32.mrf.mxu0
    %v9680 = vadd.f32 0.0, %v9679
    %v9681 = vpop.f32.mrf.mxu0
    %v9682 = vadd.f32 0.0, %v9681
    %9683 = vmatprep.mubr.bf16.mxu0 %v8217
    %9684 = vmatmul.mubr.bf16.gmra.mxu0 %v8216
    %v9685 = vpop.f32.mrf.mxu0
    %v9686 = vadd.f32 0.0, %v9685
    %v9687 = vpop.f32.mrf.mxu0
    %v9688 = vadd.f32 0.0, %v9687
    %v9689 = vpop.f32.mrf.mxu0
    %v9690 = vadd.f32 0.0, %v9689
    %v9691 = vpop.f32.mrf.mxu0
    %v9692 = vadd.f32 0.0, %v9691
    %9693 = vmatprep.mubr.bf16.mxu0 %v8219
    %9694 = vmatmul.mubr.bf16.gmra.mxu0 %v8218
    %v9695 = vpop.f32.mrf.mxu0
    %v9696 = vadd.f32 0.0, %v9695
    %v9697 = vpop.f32.mrf.mxu0
    %v9698 = vadd.f32 0.0, %v9697
    %v9699 = vpop.f32.mrf.mxu0
    %v9700 = vadd.f32 0.0, %v9699
    %v9701 = vpop.f32.mrf.mxu0
    %v9702 = vadd.f32 0.0, %v9701
    %9703 = vmatprep.mubr.bf16.mxu0 %v8221
    %9704 = vmatmul.mubr.bf16.gmra.mxu0 %v8220
    %v9705 = vpop.f32.mrf.mxu0
    %v9706 = vadd.f32 0.0, %v9705
    %v9707 = vpop.f32.mrf.mxu0
    %v9708 = vadd.f32 0.0, %v9707
    %v9709 = vpop.f32.mrf.mxu0
    %v9710 = vadd.f32 0.0, %v9709
    %v9711 = vpop.f32.mrf.mxu0
    %v9712 = vadd.f32 0.0, %v9711
    %9713 = vmatprep.mubr.bf16.mxu0 %v8223
    %9714 = vmatmul.mubr.bf16.gmra.mxu0 %v8222
    %v9715 = vpop.f32.mrf.mxu0
    %v9716 = vadd.f32 0.0, %v9715
    %v9717 = vpop.f32.mrf.mxu0
    %v9718 = vadd.f32 0.0, %v9717
    %v9719 = vpop.f32.mrf.mxu0
    %v9720 = vadd.f32 0.0, %v9719
    %v9721 = vpop.f32.mrf.mxu0
    %v9722 = vadd.f32 0.0, %v9721
    %9723 = vmatprep.mubr.bf16.mxu0 %v8225
    %9724 = vmatmul.mubr.bf16.gmra.mxu0 %v8224
    %v9725 = vpop.f32.mrf.mxu0
    %v9726 = vadd.f32 0.0, %v9725
    %v9727 = vpop.f32.mrf.mxu0
    %v9728 = vadd.f32 0.0, %v9727
    %v9729 = vpop.f32.mrf.mxu0
    %v9730 = vadd.f32 0.0, %v9729
    %v9731 = vpop.f32.mrf.mxu0
    %v9732 = vadd.f32 0.0, %v9731
    %9733 = vmatprep.mubr.bf16.mxu0 %v8227
    %9734 = vmatmul.mubr.bf16.gmra.mxu0 %v8226
    %v9735 = vpop.f32.mrf.mxu0
    %v9736 = vadd.f32 0.0, %v9735
    %v9737 = vpop.f32.mrf.mxu0
    %v9738 = vadd.f32 0.0, %v9737
    %v9739 = vpop.f32.mrf.mxu0
    %v9740 = vadd.f32 0.0, %v9739
    %v9741 = vpop.f32.mrf.mxu0
    %v9742 = vadd.f32 0.0, %v9741
    %9743 = vmatprep.mubr.bf16.mxu0 %v8229
    %9744 = vmatmul.mubr.bf16.gmra.mxu0 %v8228
    %v9745 = vpop.f32.mrf.mxu0
    %v9746 = vadd.f32 0.0, %v9745
    %v9747 = vpop.f32.mrf.mxu0
    %v9748 = vadd.f32 0.0, %v9747
    %v9749 = vpop.f32.mrf.mxu0
    %v9750 = vadd.f32 0.0, %v9749
    %v9751 = vpop.f32.mrf.mxu0
    %v9752 = vadd.f32 0.0, %v9751
    %9753 = vmatprep.mubr.bf16.mxu0 %v8231
    %9754 = vmatmul.mubr.bf16.gmra.mxu0 %v8230
    %v9755 = vpop.f32.mrf.mxu0
    %v9756 = vadd.f32 0.0, %v9755
    %v9757 = vpop.f32.mrf.mxu0
    %v9758 = vadd.f32 0.0, %v9757
    %v9759 = vpop.f32.mrf.mxu0
    %v9760 = vadd.f32 0.0, %v9759
    %v9761 = vpop.f32.mrf.mxu0
    %v9762 = vadd.f32 0.0, %v9761
    %9763 = vmatprep.mubr.bf16.mxu0 %v8233
    %9764 = vmatmul.mubr.bf16.gmra.mxu0 %v8232
    %v9765 = vpop.f32.mrf.mxu0
    %v9766 = vadd.f32 0.0, %v9765
    %v9767 = vpop.f32.mrf.mxu0
    %v9768 = vadd.f32 0.0, %v9767
    %v9769 = vpop.f32.mrf.mxu0
    %v9770 = vadd.f32 0.0, %v9769
    %v9771 = vpop.f32.mrf.mxu0
    %v9772 = vadd.f32 0.0, %v9771
    %9773 = vdwg.mxu0
    %v9774 = vadd.f32 %v9037, %v9041
    %v9775 = vadd.f32 %v9774, %v9047
    %v9776 = vadd.f32 %v9775, %v9051
    %v9777 = vadd.f32 %v9776, %v9057
    %v9778 = vadd.f32 %v9777, %v9061
    %v9779 = vadd.f32 %v9778, %v9067
    %v9780 = vadd.f32 %v9779, %v9071
    %v9781 = vadd.f32 %v9780, %v9077
    %v9782 = vadd.f32 %v9781, %v9081
    %v9783 = vadd.f32 %v9782, %v9087
    %v9784 = vadd.f32 %v9783, %v9091
    %v9785 = vadd.f32 %v9784, %v9097
    %v9786 = vadd.f32 %v9785, %v9101
    %v9787 = vadd.f32 %v9786, %v9107
    %v9788 = vadd.f32 %v9787, %v9111
    %v9789 = vadd.f32 %v9788, %v9117
    %v9790 = vadd.f32 %v9789, %v9121
    %v9791 = vadd.f32 %v9790, %v9127
    %v9792 = vadd.f32 %v9791, %v9131
    %v9793 = vadd.f32 %v9792, %v9137
    %v9794 = vadd.f32 %v9793, %v9141
    %v9795 = vadd.f32 %v9794, %v9147
    %v9796 = vadd.f32 %v9795, %v9151
    %v9797 = vadd.f32 %v9796, %v9157
    %v9798 = vadd.f32 %v9797, %v9161
    %v9799 = vadd.f32 %v9798, %v9167
    %v9800 = vadd.f32 %v9799, %v9171
    %v9801 = vadd.f32 %v9800, %v9177
    %v9802 = vadd.f32 %v9801, %v9181
    %v9803 = vadd.f32 %v9802, %v9187
    %v9804 = vadd.f32 %v9803, %v9191
    %v9805 = vrot.slane %v9804, 4
    %v9806 = vadd.f32 %v9804, %v9805
    %v9807 = vrot.slane %v9806, 2
    %v9808 = vadd.f32 %v9806, %v9807
    %v9809 = vrot.slane %v9808, 1
    %v9810 = vadd.f32 %v9808, %v9809
    %v9811 = vadd.f32 %v9039, %v9043
    %v9812 = vadd.f32 %v9811, %v9049
    %v9813 = vadd.f32 %v9812, %v9053
    %v9814 = vadd.f32 %v9813, %v9059
    %v9815 = vadd.f32 %v9814, %v9063
    %v9816 = vadd.f32 %v9815, %v9069
    %v9817 = vadd.f32 %v9816, %v9073
    %v9818 = vadd.f32 %v9817, %v9079
    %v9819 = vadd.f32 %v9818, %v9083
    %v9820 = vadd.f32 %v9819, %v9089
    %v9821 = vadd.f32 %v9820, %v9093
    %v9822 = vadd.f32 %v9821, %v9099
    %v9823 = vadd.f32 %v9822, %v9103
    %v9824 = vadd.f32 %v9823, %v9109
    %v9825 = vadd.f32 %v9824, %v9113
    %v9826 = vadd.f32 %v9825, %v9119
    %v9827 = vadd.f32 %v9826, %v9123
    %v9828 = vadd.f32 %v9827, %v9129
    %v9829 = vadd.f32 %v9828, %v9133
    %v9830 = vadd.f32 %v9829, %v9139
    %v9831 = vadd.f32 %v9830, %v9143
    %v9832 = vadd.f32 %v9831, %v9149
    %v9833 = vadd.f32 %v9832, %v9153
    %v9834 = vadd.f32 %v9833, %v9159
    %v9835 = vadd.f32 %v9834, %v9163
    %v9836 = vadd.f32 %v9835, %v9169
    %v9837 = vadd.f32 %v9836, %v9173
    %v9838 = vadd.f32 %v9837, %v9179
    %v9839 = vadd.f32 %v9838, %v9183
    %v9840 = vadd.f32 %v9839, %v9189
    %v9841 = vadd.f32 %v9840, %v9193
    %v9842 = vrot.slane %v9841, 4
    %v9843 = vadd.f32 %v9841, %v9842
    %v9844 = vrot.slane %v9843, 2
    %v9845 = vadd.f32 %v9843, %v9844
    %v9846 = vrot.slane %v9845, 1
    %v9847 = vadd.f32 %v9845, %v9846
    %v9848 = vadd.f32 %v9230, %v9234
    %v9849 = vadd.f32 %v9848, %v9240
    %v9850 = vadd.f32 %v9849, %v9244
    %v9851 = vadd.f32 %v9850, %v9250
    %v9852 = vadd.f32 %v9851, %v9254
    %v9853 = vadd.f32 %v9852, %v9260
    %v9854 = vadd.f32 %v9853, %v9264
    %v9855 = vadd.f32 %v9854, %v9270
    %v9856 = vadd.f32 %v9855, %v9274
    %v9857 = vadd.f32 %v9856, %v9280
    %v9858 = vadd.f32 %v9857, %v9284
    %v9859 = vadd.f32 %v9858, %v9290
    %v9860 = vadd.f32 %v9859, %v9294
    %v9861 = vadd.f32 %v9860, %v9300
    %v9862 = vadd.f32 %v9861, %v9304
    %v9863 = vadd.f32 %v9862, %v9310
    %v9864 = vadd.f32 %v9863, %v9314
    %v9865 = vadd.f32 %v9864, %v9320
    %v9866 = vadd.f32 %v9865, %v9324
    %v9867 = vadd.f32 %v9866, %v9330
    %v9868 = vadd.f32 %v9867, %v9334
    %v9869 = vadd.f32 %v9868, %v9340
    %v9870 = vadd.f32 %v9869, %v9344
    %v9871 = vadd.f32 %v9870, %v9350
    %v9872 = vadd.f32 %v9871, %v9354
    %v9873 = vadd.f32 %v9872, %v9360
    %v9874 = vadd.f32 %v9873, %v9364
    %v9875 = vadd.f32 %v9874, %v9370
    %v9876 = vadd.f32 %v9875, %v9374
    %v9877 = vadd.f32 %v9876, %v9380
    %v9878 = vadd.f32 %v9877, %v9384
    %v9879 = vrot.slane %v9878, 4
    %v9880 = vadd.f32 %v9878, %v9879
    %v9881 = vrot.slane %v9880, 2
    %v9882 = vadd.f32 %v9880, %v9881
    %v9883 = vrot.slane %v9882, 1
    %v9884 = vadd.f32 %v9882, %v9883
    %v9885 = vadd.f32 %v9232, %v9236
    %v9886 = vadd.f32 %v9885, %v9242
    %v9887 = vadd.f32 %v9886, %v9246
    %v9888 = vadd.f32 %v9887, %v9252
    %v9889 = vadd.f32 %v9888, %v9256
    %v9890 = vadd.f32 %v9889, %v9262
    %v9891 = vadd.f32 %v9890, %v9266
    %v9892 = vadd.f32 %v9891, %v9272
    %v9893 = vadd.f32 %v9892, %v9276
    %v9894 = vadd.f32 %v9893, %v9282
    %v9895 = vadd.f32 %v9894, %v9286
    %v9896 = vadd.f32 %v9895, %v9292
    %v9897 = vadd.f32 %v9896, %v9296
    %v9898 = vadd.f32 %v9897, %v9302
    %v9899 = vadd.f32 %v9898, %v9306
    %v9900 = vadd.f32 %v9899, %v9312
    %v9901 = vadd.f32 %v9900, %v9316
    %v9902 = vadd.f32 %v9901, %v9322
    %v9903 = vadd.f32 %v9902, %v9326
    %v9904 = vadd.f32 %v9903, %v9332
    %v9905 = vadd.f32 %v9904, %v9336
    %v9906 = vadd.f32 %v9905, %v9342
    %v9907 = vadd.f32 %v9906, %v9346
    %v9908 = vadd.f32 %v9907, %v9352
    %v9909 = vadd.f32 %v9908, %v9356
    %v9910 = vadd.f32 %v9909, %v9362
    %v9911 = vadd.f32 %v9910, %v9366
    %v9912 = vadd.f32 %v9911, %v9372
    %v9913 = vadd.f32 %v9912, %v9376
    %v9914 = vadd.f32 %v9913, %v9382
    %v9915 = vadd.f32 %v9914, %v9386
    %v9916 = vrot.slane %v9915, 4
    %v9917 = vadd.f32 %v9915, %v9916
    %v9918 = vrot.slane %v9917, 2
    %v9919 = vadd.f32 %v9917, %v9918
    %v9920 = vrot.slane %v9919, 1
    %v9921 = vadd.f32 %v9919, %v9920
    %v9922 = vadd.f32 %v9423, %v9427
    %v9923 = vadd.f32 %v9922, %v9433
    %v9924 = vadd.f32 %v9923, %v9437
    %v9925 = vadd.f32 %v9924, %v9443
    %v9926 = vadd.f32 %v9925, %v9447
    %v9927 = vadd.f32 %v9926, %v9453
    %v9928 = vadd.f32 %v9927, %v9457
    %v9929 = vadd.f32 %v9928, %v9463
    %v9930 = vadd.f32 %v9929, %v9467
    %v9931 = vadd.f32 %v9930, %v9473
    %v9932 = vadd.f32 %v9931, %v9477
    %v9933 = vadd.f32 %v9932, %v9483
    %v9934 = vadd.f32 %v9933, %v9487
    %v9935 = vadd.f32 %v9934, %v9493
    %v9936 = vadd.f32 %v9935, %v9497
    %v9937 = vadd.f32 %v9936, %v9503
    %v9938 = vadd.f32 %v9937, %v9507
    %v9939 = vadd.f32 %v9938, %v9513
    %v9940 = vadd.f32 %v9939, %v9517
    %v9941 = vadd.f32 %v9940, %v9523
    %v9942 = vadd.f32 %v9941, %v9527
    %v9943 = vadd.f32 %v9942, %v9533
    %v9944 = vadd.f32 %v9943, %v9537
    %v9945 = vadd.f32 %v9944, %v9543
    %v9946 = vadd.f32 %v9945, %v9547
    %v9947 = vadd.f32 %v9946, %v9553
    %v9948 = vadd.f32 %v9947, %v9557
    %v9949 = vadd.f32 %v9948, %v9563
    %v9950 = vadd.f32 %v9949, %v9567
    %v9951 = vadd.f32 %v9950, %v9573
    %v9952 = vadd.f32 %v9951, %v9577
    %v9953 = vrot.slane %v9952, 4
    %v9954 = vadd.f32 %v9952, %v9953
    %v9955 = vrot.slane %v9954, 2
    %v9956 = vadd.f32 %v9954, %v9955
    %v9957 = vrot.slane %v9956, 1
    %v9958 = vadd.f32 %v9956, %v9957
    %v9959 = vadd.f32 %v9425, %v9429
    %v9960 = vadd.f32 %v9959, %v9435
    %v9961 = vadd.f32 %v9960, %v9439
    %v9962 = vadd.f32 %v9961, %v9445
    %v9963 = vadd.f32 %v9962, %v9449
    %v9964 = vadd.f32 %v9963, %v9455
    %v9965 = vadd.f32 %v9964, %v9459
    %v9966 = vadd.f32 %v9965, %v9465
    %v9967 = vadd.f32 %v9966, %v9469
    %v9968 = vadd.f32 %v9967, %v9475
    %v9969 = vadd.f32 %v9968, %v9479
    %v9970 = vadd.f32 %v9969, %v9485
    %v9971 = vadd.f32 %v9970, %v9489
    %v9972 = vadd.f32 %v9971, %v9495
    %v9973 = vadd.f32 %v9972, %v9499
    %v9974 = vadd.f32 %v9973, %v9505
    %v9975 = vadd.f32 %v9974, %v9509
    %v9976 = vadd.f32 %v9975, %v9515
    %v9977 = vadd.f32 %v9976, %v9519
    %v9978 = vadd.f32 %v9977, %v9525
    %v9979 = vadd.f32 %v9978, %v9529
    %v9980 = vadd.f32 %v9979, %v9535
    %v9981 = vadd.f32 %v9980, %v9539
    %v9982 = vadd.f32 %v9981, %v9545
    %v9983 = vadd.f32 %v9982, %v9549
    %v9984 = vadd.f32 %v9983, %v9555
    %v9985 = vadd.f32 %v9984, %v9559
    %v9986 = vadd.f32 %v9985, %v9565
    %v9987 = vadd.f32 %v9986, %v9569
    %v9988 = vadd.f32 %v9987, %v9575
    %v9989 = vadd.f32 %v9988, %v9579
    %v9990 = vrot.slane %v9989, 4
    %v9991 = vadd.f32 %v9989, %v9990
    %v9992 = vrot.slane %v9991, 2
    %v9993 = vadd.f32 %v9991, %v9992
    %v9994 = vrot.slane %v9993, 1
    %v9995 = vadd.f32 %v9993, %v9994
    %v9996 = vadd.f32 %v9616, %v9620
    %v9997 = vadd.f32 %v9996, %v9626
    %v9998 = vadd.f32 %v9997, %v9630
    %v9999 = vadd.f32 %v9998, %v9636
    %v10000 = vadd.f32 %v9999, %v9640
    %v10001 = vadd.f32 %v10000, %v9646
    %v10002 = vadd.f32 %v10001, %v9650
    %v10003 = vadd.f32 %v10002, %v9656
    %v10004 = vadd.f32 %v10003, %v9660
    %v10005 = vadd.f32 %v10004, %v9666
    %v10006 = vadd.f32 %v10005, %v9670
    %v10007 = vadd.f32 %v10006, %v9676
    %v10008 = vadd.f32 %v10007, %v9680
    %v10009 = vadd.f32 %v10008, %v9686
    %v10010 = vadd.f32 %v10009, %v9690
    %v10011 = vadd.f32 %v10010, %v9696
    %v10012 = vadd.f32 %v10011, %v9700
    %v10013 = vadd.f32 %v10012, %v9706
    %v10014 = vadd.f32 %v10013, %v9710
    %v10015 = vadd.f32 %v10014, %v9716
    %v10016 = vadd.f32 %v10015, %v9720
    %v10017 = vadd.f32 %v10016, %v9726
    %v10018 = vadd.f32 %v10017, %v9730
    %v10019 = vadd.f32 %v10018, %v9736
    %v10020 = vadd.f32 %v10019, %v9740
    %v10021 = vadd.f32 %v10020, %v9746
    %v10022 = vadd.f32 %v10021, %v9750
    %v10023 = vadd.f32 %v10022, %v9756
    %v10024 = vadd.f32 %v10023, %v9760
    %v10025 = vadd.f32 %v10024, %v9766
    %v10026 = vadd.f32 %v10025, %v9770
    %v10027 = vrot.slane %v10026, 4
    %v10028 = vadd.f32 %v10026, %v10027
    %v10029 = vrot.slane %v10028, 2
    %v10030 = vadd.f32 %v10028, %v10029
    %v10031 = vrot.slane %v10030, 1
    %v10032 = vadd.f32 %v10030, %v10031
    %v10033 = vadd.f32 %v9618, %v9622
    %v10034 = vadd.f32 %v10033, %v9628
    %v10035 = vadd.f32 %v10034, %v9632
    %v10036 = vadd.f32 %v10035, %v9638
    %v10037 = vadd.f32 %v10036, %v9642
    %v10038 = vadd.f32 %v10037, %v9648
    %v10039 = vadd.f32 %v10038, %v9652
    %v10040 = vadd.f32 %v10039, %v9658
    %v10041 = vadd.f32 %v10040, %v9662
    %v10042 = vadd.f32 %v10041, %v9668
    %v10043 = vadd.f32 %v10042, %v9672
    %v10044 = vadd.f32 %v10043, %v9678
    %v10045 = vadd.f32 %v10044, %v9682
    %v10046 = vadd.f32 %v10045, %v9688
    %v10047 = vadd.f32 %v10046, %v9692
    %v10048 = vadd.f32 %v10047, %v9698
    %v10049 = vadd.f32 %v10048, %v9702
    %v10050 = vadd.f32 %v10049, %v9708
    %v10051 = vadd.f32 %v10050, %v9712
    %v10052 = vadd.f32 %v10051, %v9718
    %v10053 = vadd.f32 %v10052, %v9722
    %v10054 = vadd.f32 %v10053, %v9728
    %v10055 = vadd.f32 %v10054, %v9732
    %v10056 = vadd.f32 %v10055, %v9738
    %v10057 = vadd.f32 %v10056, %v9742
    %v10058 = vadd.f32 %v10057, %v9748
    %v10059 = vadd.f32 %v10058, %v9752
    %v10060 = vadd.f32 %v10059, %v9758
    %v10061 = vadd.f32 %v10060, %v9762
    %v10062 = vadd.f32 %v10061, %v9768
    %v10063 = vadd.f32 %v10062, %v9772
    %v10064 = vrot.slane %v10063, 4
    %v10065 = vadd.f32 %v10063, %v10064
    %v10066 = vrot.slane %v10065, 2
    %v10067 = vadd.f32 %v10065, %v10066
    %v10068 = vrot.slane %v10067, 1
    %v10069 = vadd.f32 %v10067, %v10068
    %v10070 = vmul.f32 %v9810, 0.0051020407
    %v10071 = vmul.f32 %v9847, 0.0051020407
    %v10072 = vmul.f32 %v9884, 0.0051020407
    %v10073 = vmul.f32 %v9921, 0.0051020407
    %v10074 = vmul.f32 %v9958, 0.0051020407
    %v10075 = vmul.f32 %v9995, 0.0051020407
    %v10076 = vmul.f32 %v10032, 0.0051020407
    %v10077 = vmul.f32 %v10069, 0.0051020407
    %v10078 = vsub.f32 %v9037, %v10070
    %v10079 = vsub.f32 %v9039, %v10071
    %v10080 = vsub.f32 %v9230, %v10072
    %v10081 = vsub.f32 %v9232, %v10073
    %v10082 = vsub.f32 %v9423, %v10074
    %v10083 = vsub.f32 %v9425, %v10075
    %v10084 = vsub.f32 %v9616, %v10076
    %v10085 = vsub.f32 %v9618, %v10077
    %v10086 = vsub.f32 %v9041, %v10070
    %v10087 = vsub.f32 %v9043, %v10071
    %v10088 = vsub.f32 %v9234, %v10072
    %v10089 = vsub.f32 %v9236, %v10073
    %v10090 = vsub.f32 %v9427, %v10074
    %v10091 = vsub.f32 %v9429, %v10075
    %v10092 = vsub.f32 %v9620, %v10076
    %v10093 = vsub.f32 %v9622, %v10077
    %v10094 = vsub.f32 %v9047, %v10070
    %v10095 = vsub.f32 %v9049, %v10071
    %v10096 = vsub.f32 %v9240, %v10072
    %v10097 = vsub.f32 %v9242, %v10073
    %v10098 = vsub.f32 %v9433, %v10074
    %v10099 = vsub.f32 %v9435, %v10075
    %v10100 = vsub.f32 %v9626, %v10076
    %v10101 = vsub.f32 %v9628, %v10077
    %v10102 = vsub.f32 %v9051, %v10070
    %v10103 = vsub.f32 %v9053, %v10071
    %v10104 = vsub.f32 %v9244, %v10072
    %v10105 = vsub.f32 %v9246, %v10073
    %v10106 = vsub.f32 %v9437, %v10074
    %v10107 = vsub.f32 %v9439, %v10075
    %v10108 = vsub.f32 %v9630, %v10076
    %v10109 = vsub.f32 %v9632, %v10077
    %v10110 = vsub.f32 %v9057, %v10070
    %v10111 = vsub.f32 %v9059, %v10071
    %v10112 = vsub.f32 %v9250, %v10072
    %v10113 = vsub.f32 %v9252, %v10073
    %v10114 = vsub.f32 %v9443, %v10074
    %v10115 = vsub.f32 %v9445, %v10075
    %v10116 = vsub.f32 %v9636, %v10076
    %v10117 = vsub.f32 %v9638, %v10077
    %v10118 = vsub.f32 %v9061, %v10070
    %v10119 = vsub.f32 %v9063, %v10071
    %v10120 = vsub.f32 %v9254, %v10072
    %v10121 = vsub.f32 %v9256, %v10073
    %v10122 = vsub.f32 %v9447, %v10074
    %v10123 = vsub.f32 %v9449, %v10075
    %v10124 = vsub.f32 %v9640, %v10076
    %v10125 = vsub.f32 %v9642, %v10077
    %v10126 = vsub.f32 %v9067, %v10070
    %v10127 = vsub.f32 %v9069, %v10071
    %v10128 = vsub.f32 %v9260, %v10072
    %v10129 = vsub.f32 %v9262, %v10073
    %v10130 = vsub.f32 %v9453, %v10074
    %v10131 = vsub.f32 %v9455, %v10075
    %v10132 = vsub.f32 %v9646, %v10076
    %v10133 = vsub.f32 %v9648, %v10077
    %v10134 = vsub.f32 %v9071, %v10070
    %v10135 = vsub.f32 %v9073, %v10071
    %v10136 = vsub.f32 %v9264, %v10072
    %v10137 = vsub.f32 %v9266, %v10073
    %v10138 = vsub.f32 %v9457, %v10074
    %v10139 = vsub.f32 %v9459, %v10075
    %v10140 = vsub.f32 %v9650, %v10076
    %v10141 = vsub.f32 %v9652, %v10077
    %v10142 = vsub.f32 %v9077, %v10070
    %v10143 = vsub.f32 %v9079, %v10071
    %v10144 = vsub.f32 %v9270, %v10072
    %v10145 = vsub.f32 %v9272, %v10073
    %v10146 = vsub.f32 %v9463, %v10074
    %v10147 = vsub.f32 %v9465, %v10075
    %v10148 = vsub.f32 %v9656, %v10076
    %v10149 = vsub.f32 %v9658, %v10077
    %v10150 = vsub.f32 %v9081, %v10070
    %v10151 = vsub.f32 %v9083, %v10071
    %v10152 = vsub.f32 %v9274, %v10072
    %v10153 = vsub.f32 %v9276, %v10073
    %v10154 = vsub.f32 %v9467, %v10074
    %v10155 = vsub.f32 %v9469, %v10075
    %v10156 = vsub.f32 %v9660, %v10076
    %v10157 = vsub.f32 %v9662, %v10077
    %v10158 = vsub.f32 %v9087, %v10070
    %v10159 = vsub.f32 %v9089, %v10071
    %v10160 = vsub.f32 %v9280, %v10072
    %v10161 = vsub.f32 %v9282, %v10073
    %v10162 = vsub.f32 %v9473, %v10074
    %v10163 = vsub.f32 %v9475, %v10075
    %v10164 = vsub.f32 %v9666, %v10076
    %v10165 = vsub.f32 %v9668, %v10077
    %v10166 = vsub.f32 %v9091, %v10070
    %v10167 = vsub.f32 %v9093, %v10071
    %v10168 = vsub.f32 %v9284, %v10072
    %v10169 = vsub.f32 %v9286, %v10073
    %v10170 = vsub.f32 %v9477, %v10074
    %v10171 = vsub.f32 %v9479, %v10075
    %v10172 = vsub.f32 %v9670, %v10076
    %v10173 = vsub.f32 %v9672, %v10077
    %v10174 = vsub.f32 %v9097, %v10070
    %v10175 = vsub.f32 %v9099, %v10071
    %v10176 = vsub.f32 %v9290, %v10072
    %v10177 = vsub.f32 %v9292, %v10073
    %v10178 = vsub.f32 %v9483, %v10074
    %v10179 = vsub.f32 %v9485, %v10075
    %v10180 = vsub.f32 %v9676, %v10076
    %v10181 = vsub.f32 %v9678, %v10077
    %v10182 = vsub.f32 %v9101, %v10070
    %v10183 = vsub.f32 %v9103, %v10071
    %v10184 = vsub.f32 %v9294, %v10072
    %v10185 = vsub.f32 %v9296, %v10073
    %v10186 = vsub.f32 %v9487, %v10074
    %v10187 = vsub.f32 %v9489, %v10075
    %v10188 = vsub.f32 %v9680, %v10076
    %v10189 = vsub.f32 %v9682, %v10077
    %v10190 = vsub.f32 %v9107, %v10070
    %v10191 = vsub.f32 %v9109, %v10071
    %v10192 = vsub.f32 %v9300, %v10072
    %v10193 = vsub.f32 %v9302, %v10073
    %v10194 = vsub.f32 %v9493, %v10074
    %v10195 = vsub.f32 %v9495, %v10075
    %v10196 = vsub.f32 %v9686, %v10076
    %v10197 = vsub.f32 %v9688, %v10077
    %v10198 = vsub.f32 %v9111, %v10070
    %v10199 = vsub.f32 %v9113, %v10071
    %v10200 = vsub.f32 %v9304, %v10072
    %v10201 = vsub.f32 %v9306, %v10073
    %v10202 = vsub.f32 %v9497, %v10074
    %v10203 = vsub.f32 %v9499, %v10075
    %v10204 = vsub.f32 %v9690, %v10076
    %v10205 = vsub.f32 %v9692, %v10077
    %v10206 = vsub.f32 %v9117, %v10070
    %v10207 = vsub.f32 %v9119, %v10071
    %v10208 = vsub.f32 %v9310, %v10072
    %v10209 = vsub.f32 %v9312, %v10073
    %v10210 = vsub.f32 %v9503, %v10074
    %v10211 = vsub.f32 %v9505, %v10075
    %v10212 = vsub.f32 %v9696, %v10076
    %v10213 = vsub.f32 %v9698, %v10077
    %v10214 = vsub.f32 %v9121, %v10070
    %v10215 = vsub.f32 %v9123, %v10071
    %v10216 = vsub.f32 %v9314, %v10072
    %v10217 = vsub.f32 %v9316, %v10073
    %v10218 = vsub.f32 %v9507, %v10074
    %v10219 = vsub.f32 %v9509, %v10075
    %v10220 = vsub.f32 %v9700, %v10076
    %v10221 = vsub.f32 %v9702, %v10077
    %v10222 = vsub.f32 %v9127, %v10070
    %v10223 = vsub.f32 %v9129, %v10071
    %v10224 = vsub.f32 %v9320, %v10072
    %v10225 = vsub.f32 %v9322, %v10073
    %v10226 = vsub.f32 %v9513, %v10074
    %v10227 = vsub.f32 %v9515, %v10075
    %v10228 = vsub.f32 %v9706, %v10076
    %v10229 = vsub.f32 %v9708, %v10077
    %v10230 = vsub.f32 %v9131, %v10070
    %v10231 = vsub.f32 %v9133, %v10071
    %v10232 = vsub.f32 %v9324, %v10072
    %v10233 = vsub.f32 %v9326, %v10073
    %v10234 = vsub.f32 %v9517, %v10074
    %v10235 = vsub.f32 %v9519, %v10075
    %v10236 = vsub.f32 %v9710, %v10076
    %v10237 = vsub.f32 %v9712, %v10077
    %v10238 = vsub.f32 %v9137, %v10070
    %v10239 = vsub.f32 %v9139, %v10071
    %v10240 = vsub.f32 %v9330, %v10072
    %v10241 = vsub.f32 %v9332, %v10073
    %v10242 = vsub.f32 %v9523, %v10074
    %v10243 = vsub.f32 %v9525, %v10075
    %v10244 = vsub.f32 %v9716, %v10076
    %v10245 = vsub.f32 %v9718, %v10077
    %v10246 = vsub.f32 %v9141, %v10070
    %v10247 = vsub.f32 %v9143, %v10071
    %v10248 = vsub.f32 %v9334, %v10072
    %v10249 = vsub.f32 %v9336, %v10073
    %v10250 = vsub.f32 %v9527, %v10074
    %v10251 = vsub.f32 %v9529, %v10075
    %v10252 = vsub.f32 %v9720, %v10076
    %v10253 = vsub.f32 %v9722, %v10077
    %v10254 = vsub.f32 %v9147, %v10070
    %v10255 = vsub.f32 %v9149, %v10071
    %v10256 = vsub.f32 %v9340, %v10072
    %v10257 = vsub.f32 %v9342, %v10073
    %v10258 = vsub.f32 %v9533, %v10074
    %v10259 = vsub.f32 %v9535, %v10075
    %v10260 = vsub.f32 %v9726, %v10076
    %v10261 = vsub.f32 %v9728, %v10077
    %v10262 = vsub.f32 %v9151, %v10070
    %v10263 = vsub.f32 %v9153, %v10071
    %v10264 = vsub.f32 %v9344, %v10072
    %v10265 = vsub.f32 %v9346, %v10073
    %v10266 = vsub.f32 %v9537, %v10074
    %v10267 = vsub.f32 %v9539, %v10075
    %v10268 = vsub.f32 %v9730, %v10076
    %v10269 = vsub.f32 %v9732, %v10077
    %v10270 = vsub.f32 %v9157, %v10070
    %v10271 = vsub.f32 %v9159, %v10071
    %v10272 = vsub.f32 %v9350, %v10072
    %v10273 = vsub.f32 %v9352, %v10073
    %v10274 = vsub.f32 %v9543, %v10074
    %v10275 = vsub.f32 %v9545, %v10075
    %v10276 = vsub.f32 %v9736, %v10076
    %v10277 = vsub.f32 %v9738, %v10077
    %v10278 = vsub.f32 %v9161, %v10070
    %v10279 = vsub.f32 %v9163, %v10071
    %v10280 = vsub.f32 %v9354, %v10072
    %v10281 = vsub.f32 %v9356, %v10073
    %v10282 = vsub.f32 %v9547, %v10074
    %v10283 = vsub.f32 %v9549, %v10075
    %v10284 = vsub.f32 %v9740, %v10076
    %v10285 = vsub.f32 %v9742, %v10077
    %v10286 = vsub.f32 %v9167, %v10070
    %v10287 = vsub.f32 %v9169, %v10071
    %v10288 = vsub.f32 %v9360, %v10072
    %v10289 = vsub.f32 %v9362, %v10073
    %v10290 = vsub.f32 %v9553, %v10074
    %v10291 = vsub.f32 %v9555, %v10075
    %v10292 = vsub.f32 %v9746, %v10076
    %v10293 = vsub.f32 %v9748, %v10077
    %v10294 = vsub.f32 %v9171, %v10070
    %v10295 = vsub.f32 %v9173, %v10071
    %v10296 = vsub.f32 %v9364, %v10072
    %v10297 = vsub.f32 %v9366, %v10073
    %v10298 = vsub.f32 %v9557, %v10074
    %v10299 = vsub.f32 %v9559, %v10075
    %v10300 = vsub.f32 %v9750, %v10076
    %v10301 = vsub.f32 %v9752, %v10077
    %v10302 = vsub.f32 %v9177, %v10070
    %v10303 = vsub.f32 %v9179, %v10071
    %v10304 = vsub.f32 %v9370, %v10072
    %v10305 = vsub.f32 %v9372, %v10073
    %v10306 = vsub.f32 %v9563, %v10074
    %v10307 = vsub.f32 %v9565, %v10075
    %v10308 = vsub.f32 %v9756, %v10076
    %v10309 = vsub.f32 %v9758, %v10077
    %v10310 = vsub.f32 %v9181, %v10070
    %v10311 = vsub.f32 %v9183, %v10071
    %v10312 = vsub.f32 %v9374, %v10072
    %v10313 = vsub.f32 %v9376, %v10073
    %v10314 = vsub.f32 %v9567, %v10074
    %v10315 = vsub.f32 %v9569, %v10075
    %v10316 = vsub.f32 %v9760, %v10076
    %v10317 = vsub.f32 %v9762, %v10077
    %v10318 = vsub.f32 %v9187, %v10070
    %v10319 = vsub.f32 %v9189, %v10071
    %v10320 = vsub.f32 %v9380, %v10072
    %v10321 = vsub.f32 %v9382, %v10073
    %v10322 = vsub.f32 %v9573, %v10074
    %v10323 = vsub.f32 %v9575, %v10075
    %v10324 = vsub.f32 %v9766, %v10076
    %v10325 = vsub.f32 %v9768, %v10077
    %v10326 = vsub.f32 %v9191, %v10070
    %v10327 = vsub.f32 %v9193, %v10071
    %v10328 = vsub.f32 %v9384, %v10072
    %v10329 = vsub.f32 %v9386, %v10073
    %v10330 = vsub.f32 %v9577, %v10074
    %v10331 = vsub.f32 %v9579, %v10075
    %v10332 = vsub.f32 %v9770, %v10076
    %v10333 = vsub.f32 %v9772, %v10077
    %v10334 = vmul.f32 %v10078, %v439
    %v10335 = vmul.f32 %v10079, %v439
    %v10336 = vmul.f32 %v10080, %v439
    %v10337 = vmul.f32 %v10081, %v439
    %v10338 = vmul.f32 %v10082, %v439
    %v10339 = vmul.f32 %v10083, %v439
    %v10340 = vmul.f32 %v10084, %v439
    %v10341 = vmul.f32 %v10085, %v439
    %v10342 = vmul.f32 %v10086, %v440
    %v10343 = vmul.f32 %v10087, %v440
    %v10344 = vmul.f32 %v10088, %v440
    %v10345 = vmul.f32 %v10089, %v440
    %v10346 = vmul.f32 %v10090, %v440
    %v10347 = vmul.f32 %v10091, %v440
    %v10348 = vmul.f32 %v10092, %v440
    %v10349 = vmul.f32 %v10093, %v440
    %v10350 = vmul.f32 %v10094, %v441
    %v10351 = vmul.f32 %v10095, %v441
    %v10352 = vmul.f32 %v10096, %v441
    %v10353 = vmul.f32 %v10097, %v441
    %v10354 = vmul.f32 %v10098, %v441
    %v10355 = vmul.f32 %v10099, %v441
    %v10356 = vmul.f32 %v10100, %v441
    %v10357 = vmul.f32 %v10101, %v441
    %v10358 = vmul.f32 %v10102, %v442
    %v10359 = vmul.f32 %v10103, %v442
    %v10360 = vmul.f32 %v10104, %v442
    %v10361 = vmul.f32 %v10105, %v442
    %v10362 = vmul.f32 %v10106, %v442
    %v10363 = vmul.f32 %v10107, %v442
    %v10364 = vmul.f32 %v10108, %v442
    %v10365 = vmul.f32 %v10109, %v442
    %v10366 = vmul.f32 %v10110, %v443
    %v10367 = vmul.f32 %v10111, %v443
    %v10368 = vmul.f32 %v10112, %v443
    %v10369 = vmul.f32 %v10113, %v443
    %v10370 = vmul.f32 %v10114, %v443
    %v10371 = vmul.f32 %v10115, %v443
    %v10372 = vmul.f32 %v10116, %v443
    %v10373 = vmul.f32 %v10117, %v443
    %v10374 = vmul.f32 %v10118, %v444
    %v10375 = vmul.f32 %v10119, %v444
    %v10376 = vmul.f32 %v10120, %v444
    %v10377 = vmul.f32 %v10121, %v444
    %v10378 = vmul.f32 %v10122, %v444
    %v10379 = vmul.f32 %v10123, %v444
    %v10380 = vmul.f32 %v10124, %v444
    %v10381 = vmul.f32 %v10125, %v444
    %v10382 = vmul.f32 %v10126, %v445
    %v10383 = vmul.f32 %v10127, %v445
    %v10384 = vmul.f32 %v10128, %v445
    %v10385 = vmul.f32 %v10129, %v445
    %v10386 = vmul.f32 %v10130, %v445
    %v10387 = vmul.f32 %v10131, %v445
    %v10388 = vmul.f32 %v10132, %v445
    %v10389 = vmul.f32 %v10133, %v445
    %v10390 = vmul.f32 %v10134, %v446
    %v10391 = vmul.f32 %v10135, %v446
    %v10392 = vmul.f32 %v10136, %v446
    %v10393 = vmul.f32 %v10137, %v446
    %v10394 = vmul.f32 %v10138, %v446
    %v10395 = vmul.f32 %v10139, %v446
    %v10396 = vmul.f32 %v10140, %v446
    %v10397 = vmul.f32 %v10141, %v446
    %v10398 = vmul.f32 %v10142, %v447
    %v10399 = vmul.f32 %v10143, %v447
    %v10400 = vmul.f32 %v10144, %v447
    %v10401 = vmul.f32 %v10145, %v447
    %v10402 = vmul.f32 %v10146, %v447
    %v10403 = vmul.f32 %v10147, %v447
    %v10404 = vmul.f32 %v10148, %v447
    %v10405 = vmul.f32 %v10149, %v447
    %v10406 = vmul.f32 %v10150, %v448
    %v10407 = vmul.f32 %v10151, %v448
    %v10408 = vmul.f32 %v10152, %v448
    %v10409 = vmul.f32 %v10153, %v448
    %v10410 = vmul.f32 %v10154, %v448
    %v10411 = vmul.f32 %v10155, %v448
    %v10412 = vmul.f32 %v10156, %v448
    %v10413 = vmul.f32 %v10157, %v448
    %v10414 = vmul.f32 %v10158, %v449
    %v10415 = vmul.f32 %v10159, %v449
    %v10416 = vmul.f32 %v10160, %v449
    %v10417 = vmul.f32 %v10161, %v449
    %v10418 = vmul.f32 %v10162, %v449
    %v10419 = vmul.f32 %v10163, %v449
    %v10420 = vmul.f32 %v10164, %v449
    %v10421 = vmul.f32 %v10165, %v449
    %v10422 = vmul.f32 %v10166, %v450
    %v10423 = vmul.f32 %v10167, %v450
    %v10424 = vmul.f32 %v10168, %v450
    %v10425 = vmul.f32 %v10169, %v450
    %v10426 = vmul.f32 %v10170, %v450
    %v10427 = vmul.f32 %v10171, %v450
    %v10428 = vmul.f32 %v10172, %v450
    %v10429 = vmul.f32 %v10173, %v450
    %v10430 = vmul.f32 %v10174, %v451
    %v10431 = vmul.f32 %v10175, %v451
    %v10432 = vmul.f32 %v10176, %v451
    %v10433 = vmul.f32 %v10177, %v451
    %v10434 = vmul.f32 %v10178, %v451
    %v10435 = vmul.f32 %v10179, %v451
    %v10436 = vmul.f32 %v10180, %v451
    %v10437 = vmul.f32 %v10181, %v451
    %v10438 = vmul.f32 %v10182, %v452
    %v10439 = vmul.f32 %v10183, %v452
    %v10440 = vmul.f32 %v10184, %v452
    %v10441 = vmul.f32 %v10185, %v452
    %v10442 = vmul.f32 %v10186, %v452
    %v10443 = vmul.f32 %v10187, %v452
    %v10444 = vmul.f32 %v10188, %v452
    %v10445 = vmul.f32 %v10189, %v452
    %v10446 = vmul.f32 %v10190, %v453
    %v10447 = vmul.f32 %v10191, %v453
    %v10448 = vmul.f32 %v10192, %v453
    %v10449 = vmul.f32 %v10193, %v453
    %v10450 = vmul.f32 %v10194, %v453
    %v10451 = vmul.f32 %v10195, %v453
    %v10452 = vmul.f32 %v10196, %v453
    %v10453 = vmul.f32 %v10197, %v453
    %v10454 = vmul.f32 %v10198, %v454
    %v10455 = vmul.f32 %v10199, %v454
    %v10456 = vmul.f32 %v10200, %v454
    %v10457 = vmul.f32 %v10201, %v454
    %v10458 = vmul.f32 %v10202, %v454
    %v10459 = vmul.f32 %v10203, %v454
    %v10460 = vmul.f32 %v10204, %v454
    %v10461 = vmul.f32 %v10205, %v454
    %v10462 = vmul.f32 %v10206, %v455
    %v10463 = vmul.f32 %v10207, %v455
    %v10464 = vmul.f32 %v10208, %v455
    %v10465 = vmul.f32 %v10209, %v455
    %v10466 = vmul.f32 %v10210, %v455
    %v10467 = vmul.f32 %v10211, %v455
    %v10468 = vmul.f32 %v10212, %v455
    %v10469 = vmul.f32 %v10213, %v455
    %v10470 = vmul.f32 %v10214, %v456
    %v10471 = vmul.f32 %v10215, %v456
    %v10472 = vmul.f32 %v10216, %v456
    %v10473 = vmul.f32 %v10217, %v456
    %v10474 = vmul.f32 %v10218, %v456
    %v10475 = vmul.f32 %v10219, %v456
    %v10476 = vmul.f32 %v10220, %v456
    %v10477 = vmul.f32 %v10221, %v456
    %v10478 = vmul.f32 %v10222, %v457
    %v10479 = vmul.f32 %v10223, %v457
    %v10480 = vmul.f32 %v10224, %v457
    %v10481 = vmul.f32 %v10225, %v457
    %v10482 = vmul.f32 %v10226, %v457
    %v10483 = vmul.f32 %v10227, %v457
    %v10484 = vmul.f32 %v10228, %v457
    %v10485 = vmul.f32 %v10229, %v457
    %v10486 = vmul.f32 %v10230, %v458
    %v10487 = vmul.f32 %v10231, %v458
    %v10488 = vmul.f32 %v10232, %v458
    %v10489 = vmul.f32 %v10233, %v458
    %v10490 = vmul.f32 %v10234, %v458
    %v10491 = vmul.f32 %v10235, %v458
    %v10492 = vmul.f32 %v10236, %v458
    %v10493 = vmul.f32 %v10237, %v458
    %v10494 = vmul.f32 %v10238, %v459
    %v10495 = vmul.f32 %v10239, %v459
    %v10496 = vmul.f32 %v10240, %v459
    %v10497 = vmul.f32 %v10241, %v459
    %v10498 = vmul.f32 %v10242, %v459
    %v10499 = vmul.f32 %v10243, %v459
    %v10500 = vmul.f32 %v10244, %v459
    %v10501 = vmul.f32 %v10245, %v459
    %v10502 = vmul.f32 %v10246, %v460
    %v10503 = vmul.f32 %v10247, %v460
    %v10504 = vmul.f32 %v10248, %v460
    %v10505 = vmul.f32 %v10249, %v460
    %v10506 = vmul.f32 %v10250, %v460
    %v10507 = vmul.f32 %v10251, %v460
    %v10508 = vmul.f32 %v10252, %v460
    %v10509 = vmul.f32 %v10253, %v460
    %v10510 = vmul.f32 %v10254, %v461
    %v10511 = vmul.f32 %v10255, %v461
    %v10512 = vmul.f32 %v10256, %v461
    %v10513 = vmul.f32 %v10257, %v461
    %v10514 = vmul.f32 %v10258, %v461
    %v10515 = vmul.f32 %v10259, %v461
    %v10516 = vmul.f32 %v10260, %v461
    %v10517 = vmul.f32 %v10261, %v461
    %v10518 = vmul.f32 %v10262, %v462
    %v10519 = vmul.f32 %v10263, %v462
    %v10520 = vmul.f32 %v10264, %v462
    %v10521 = vmul.f32 %v10265, %v462
    %v10522 = vmul.f32 %v10266, %v462
    %v10523 = vmul.f32 %v10267, %v462
    %v10524 = vmul.f32 %v10268, %v462
    %v10525 = vmul.f32 %v10269, %v462
    %v10526 = vmul.f32 %v10270, %v463
    %v10527 = vmul.f32 %v10271, %v463
    %v10528 = vmul.f32 %v10272, %v463
    %v10529 = vmul.f32 %v10273, %v463
    %v10530 = vmul.f32 %v10274, %v463
    %v10531 = vmul.f32 %v10275, %v463
    %v10532 = vmul.f32 %v10276, %v463
    %v10533 = vmul.f32 %v10277, %v463
    %v10534 = vmul.f32 %v10278, %v464
    %v10535 = vmul.f32 %v10279, %v464
    %v10536 = vmul.f32 %v10280, %v464
    %v10537 = vmul.f32 %v10281, %v464
    %v10538 = vmul.f32 %v10282, %v464
    %v10539 = vmul.f32 %v10283, %v464
    %v10540 = vmul.f32 %v10284, %v464
    %v10541 = vmul.f32 %v10285, %v464
    %v10542 = vmul.f32 %v10286, %v465
    %v10543 = vmul.f32 %v10287, %v465
    %v10544 = vmul.f32 %v10288, %v465
    %v10545 = vmul.f32 %v10289, %v465
    %v10546 = vmul.f32 %v10290, %v465
    %v10547 = vmul.f32 %v10291, %v465
    %v10548 = vmul.f32 %v10292, %v465
    %v10549 = vmul.f32 %v10293, %v465
    %v10550 = vmul.f32 %v10294, %v466
    %v10551 = vmul.f32 %v10295, %v466
    %v10552 = vmul.f32 %v10296, %v466
    %v10553 = vmul.f32 %v10297, %v466
    %v10554 = vmul.f32 %v10298, %v466
    %v10555 = vmul.f32 %v10299, %v466
    %v10556 = vmul.f32 %v10300, %v466
    %v10557 = vmul.f32 %v10301, %v466
    %v10558 = vmul.f32 %v10302, %v467
    %v10559 = vmul.f32 %v10303, %v467
    %v10560 = vmul.f32 %v10304, %v467
    %v10561 = vmul.f32 %v10305, %v467
    %v10562 = vmul.f32 %v10306, %v467
    %v10563 = vmul.f32 %v10307, %v467
    %v10564 = vmul.f32 %v10308, %v467
    %v10565 = vmul.f32 %v10309, %v467
    %v10566 = vmul.f32 %v10310, %v468
    %v10567 = vmul.f32 %v10311, %v468
    %v10568 = vmul.f32 %v10312, %v468
    %v10569 = vmul.f32 %v10313, %v468
    %v10570 = vmul.f32 %v10314, %v468
    %v10571 = vmul.f32 %v10315, %v468
    %v10572 = vmul.f32 %v10316, %v468
    %v10573 = vmul.f32 %v10317, %v468
    %v10574 = vmul.f32 %v10318, %v469
    %v10575 = vmul.f32 %v10319, %v469
    %v10576 = vmul.f32 %v10320, %v469
    %v10577 = vmul.f32 %v10321, %v469
    %v10578 = vmul.f32 %v10322, %v469
    %v10579 = vmul.f32 %v10323, %v469
    %v10580 = vmul.f32 %v10324, %v469
    %v10581 = vmul.f32 %v10325, %v469
    %v10582 = vmul.f32 %v10326, %v470
    %v10583 = vmul.f32 %v10327, %v470
    %v10584 = vmul.f32 %v10328, %v470
    %v10585 = vmul.f32 %v10329, %v470
    %v10586 = vmul.f32 %v10330, %v470
    %v10587 = vmul.f32 %v10331, %v470
    %v10588 = vmul.f32 %v10332, %v470
    %v10589 = vmul.f32 %v10333, %v470
    %v10590 = vmul.f32 %v10334, %v10334
    %v10591 = vmul.f32 %v10335, %v10335
    %v10592 = vmul.f32 %v10336, %v10336
    %v10593 = vmul.f32 %v10337, %v10337
    %v10594 = vmul.f32 %v10338, %v10338
    %v10595 = vmul.f32 %v10339, %v10339
    %v10596 = vmul.f32 %v10340, %v10340
    %v10597 = vmul.f32 %v10341, %v10341
    %v10598 = vmul.f32 %v10342, %v10342
    %v10599 = vmul.f32 %v10343, %v10343
    %v10600 = vmul.f32 %v10344, %v10344
    %v10601 = vmul.f32 %v10345, %v10345
    %v10602 = vmul.f32 %v10346, %v10346
    %v10603 = vmul.f32 %v10347, %v10347
    %v10604 = vmul.f32 %v10348, %v10348
    %v10605 = vmul.f32 %v10349, %v10349
    %v10606 = vmul.f32 %v10350, %v10350
    %v10607 = vmul.f32 %v10351, %v10351
    %v10608 = vmul.f32 %v10352, %v10352
    %v10609 = vmul.f32 %v10353, %v10353
    %v10610 = vmul.f32 %v10354, %v10354
    %v10611 = vmul.f32 %v10355, %v10355
    %v10612 = vmul.f32 %v10356, %v10356
    %v10613 = vmul.f32 %v10357, %v10357
    %v10614 = vmul.f32 %v10358, %v10358
    %v10615 = vmul.f32 %v10359, %v10359
    %v10616 = vmul.f32 %v10360, %v10360
    %v10617 = vmul.f32 %v10361, %v10361
    %v10618 = vmul.f32 %v10362, %v10362
    %v10619 = vmul.f32 %v10363, %v10363
    %v10620 = vmul.f32 %v10364, %v10364
    %v10621 = vmul.f32 %v10365, %v10365
    %v10622 = vmul.f32 %v10366, %v10366
    %v10623 = vmul.f32 %v10367, %v10367
    %v10624 = vmul.f32 %v10368, %v10368
    %v10625 = vmul.f32 %v10369, %v10369
    %v10626 = vmul.f32 %v10370, %v10370
    %v10627 = vmul.f32 %v10371, %v10371
    %v10628 = vmul.f32 %v10372, %v10372
    %v10629 = vmul.f32 %v10373, %v10373
    %v10630 = vmul.f32 %v10374, %v10374
    %v10631 = vmul.f32 %v10375, %v10375
    %v10632 = vmul.f32 %v10376, %v10376
    %v10633 = vmul.f32 %v10377, %v10377
    %v10634 = vmul.f32 %v10378, %v10378
    %v10635 = vmul.f32 %v10379, %v10379
    %v10636 = vmul.f32 %v10380, %v10380
    %v10637 = vmul.f32 %v10381, %v10381
    %v10638 = vmul.f32 %v10382, %v10382
    %v10639 = vmul.f32 %v10383, %v10383
    %v10640 = vmul.f32 %v10384, %v10384
    %v10641 = vmul.f32 %v10385, %v10385
    %v10642 = vmul.f32 %v10386, %v10386
    %v10643 = vmul.f32 %v10387, %v10387
    %v10644 = vmul.f32 %v10388, %v10388
    %v10645 = vmul.f32 %v10389, %v10389
    %v10646 = vmul.f32 %v10390, %v10390
    %v10647 = vmul.f32 %v10391, %v10391
    %v10648 = vmul.f32 %v10392, %v10392
    %v10649 = vmul.f32 %v10393, %v10393
    %v10650 = vmul.f32 %v10394, %v10394
    %v10651 = vmul.f32 %v10395, %v10395
    %v10652 = vmul.f32 %v10396, %v10396
    %v10653 = vmul.f32 %v10397, %v10397
    %v10654 = vmul.f32 %v10398, %v10398
    %v10655 = vmul.f32 %v10399, %v10399
    %v10656 = vmul.f32 %v10400, %v10400
    %v10657 = vmul.f32 %v10401, %v10401
    %v10658 = vmul.f32 %v10402, %v10402
    %v10659 = vmul.f32 %v10403, %v10403
    %v10660 = vmul.f32 %v10404, %v10404
    %v10661 = vmul.f32 %v10405, %v10405
    %v10662 = vmul.f32 %v10406, %v10406
    %v10663 = vmul.f32 %v10407, %v10407
    %v10664 = vmul.f32 %v10408, %v10408
    %v10665 = vmul.f32 %v10409, %v10409
    %v10666 = vmul.f32 %v10410, %v10410
    %v10667 = vmul.f32 %v10411, %v10411
    %v10668 = vmul.f32 %v10412, %v10412
    %v10669 = vmul.f32 %v10413, %v10413
    %v10670 = vmul.f32 %v10414, %v10414
    %v10671 = vmul.f32 %v10415, %v10415
    %v10672 = vmul.f32 %v10416, %v10416
    %v10673 = vmul.f32 %v10417, %v10417
    %v10674 = vmul.f32 %v10418, %v10418
    %v10675 = vmul.f32 %v10419, %v10419
    %v10676 = vmul.f32 %v10420, %v10420
    %v10677 = vmul.f32 %v10421, %v10421
    %v10678 = vmul.f32 %v10422, %v10422
    %v10679 = vmul.f32 %v10423, %v10423
    %v10680 = vmul.f32 %v10424, %v10424
    %v10681 = vmul.f32 %v10425, %v10425
    %v10682 = vmul.f32 %v10426, %v10426
    %v10683 = vmul.f32 %v10427, %v10427
    %v10684 = vmul.f32 %v10428, %v10428
    %v10685 = vmul.f32 %v10429, %v10429
    %v10686 = vmul.f32 %v10430, %v10430
    %v10687 = vmul.f32 %v10431, %v10431
    %v10688 = vmul.f32 %v10432, %v10432
    %v10689 = vmul.f32 %v10433, %v10433
    %v10690 = vmul.f32 %v10434, %v10434
    %v10691 = vmul.f32 %v10435, %v10435
    %v10692 = vmul.f32 %v10436, %v10436
    %v10693 = vmul.f32 %v10437, %v10437
    %v10694 = vmul.f32 %v10438, %v10438
    %v10695 = vmul.f32 %v10439, %v10439
    %v10696 = vmul.f32 %v10440, %v10440
    %v10697 = vmul.f32 %v10441, %v10441
    %v10698 = vmul.f32 %v10442, %v10442
    %v10699 = vmul.f32 %v10443, %v10443
    %v10700 = vmul.f32 %v10444, %v10444
    %v10701 = vmul.f32 %v10445, %v10445
    %v10702 = vmul.f32 %v10446, %v10446
    %v10703 = vmul.f32 %v10447, %v10447
    %v10704 = vmul.f32 %v10448, %v10448
    %v10705 = vmul.f32 %v10449, %v10449
    %v10706 = vmul.f32 %v10450, %v10450
    %v10707 = vmul.f32 %v10451, %v10451
    %v10708 = vmul.f32 %v10452, %v10452
    %v10709 = vmul.f32 %v10453, %v10453
    %v10710 = vmul.f32 %v10454, %v10454
    %v10711 = vmul.f32 %v10455, %v10455
    %v10712 = vmul.f32 %v10456, %v10456
    %v10713 = vmul.f32 %v10457, %v10457
    %v10714 = vmul.f32 %v10458, %v10458
    %v10715 = vmul.f32 %v10459, %v10459
    %v10716 = vmul.f32 %v10460, %v10460
    %v10717 = vmul.f32 %v10461, %v10461
    %v10718 = vmul.f32 %v10462, %v10462
    %v10719 = vmul.f32 %v10463, %v10463
    %v10720 = vmul.f32 %v10464, %v10464
    %v10721 = vmul.f32 %v10465, %v10465
    %v10722 = vmul.f32 %v10466, %v10466
    %v10723 = vmul.f32 %v10467, %v10467
    %v10724 = vmul.f32 %v10468, %v10468
    %v10725 = vmul.f32 %v10469, %v10469
    %v10726 = vmul.f32 %v10470, %v10470
    %v10727 = vmul.f32 %v10471, %v10471
    %v10728 = vmul.f32 %v10472, %v10472
    %v10729 = vmul.f32 %v10473, %v10473
    %v10730 = vmul.f32 %v10474, %v10474
    %v10731 = vmul.f32 %v10475, %v10475
    %v10732 = vmul.f32 %v10476, %v10476
    %v10733 = vmul.f32 %v10477, %v10477
    %v10734 = vmul.f32 %v10478, %v10478
    %v10735 = vmul.f32 %v10479, %v10479
    %v10736 = vmul.f32 %v10480, %v10480
    %v10737 = vmul.f32 %v10481, %v10481
    %v10738 = vmul.f32 %v10482, %v10482
    %v10739 = vmul.f32 %v10483, %v10483
    %v10740 = vmul.f32 %v10484, %v10484
    %v10741 = vmul.f32 %v10485, %v10485
    %v10742 = vmul.f32 %v10486, %v10486
    %v10743 = vmul.f32 %v10487, %v10487
    %v10744 = vmul.f32 %v10488, %v10488
    %v10745 = vmul.f32 %v10489, %v10489
    %v10746 = vmul.f32 %v10490, %v10490
    %v10747 = vmul.f32 %v10491, %v10491
    %v10748 = vmul.f32 %v10492, %v10492
    %v10749 = vmul.f32 %v10493, %v10493
    %v10750 = vmul.f32 %v10494, %v10494
    %v10751 = vmul.f32 %v10495, %v10495
    %v10752 = vmul.f32 %v10496, %v10496
    %v10753 = vmul.f32 %v10497, %v10497
    %v10754 = vmul.f32 %v10498, %v10498
    %v10755 = vmul.f32 %v10499, %v10499
    %v10756 = vmul.f32 %v10500, %v10500
    %v10757 = vmul.f32 %v10501, %v10501
    %v10758 = vmul.f32 %v10502, %v10502
    %v10759 = vmul.f32 %v10503, %v10503
    %v10760 = vmul.f32 %v10504, %v10504
    %v10761 = vmul.f32 %v10505, %v10505
    %v10762 = vmul.f32 %v10506, %v10506
    %v10763 = vmul.f32 %v10507, %v10507
    %v10764 = vmul.f32 %v10508, %v10508
    %v10765 = vmul.f32 %v10509, %v10509
    %v10766 = vmul.f32 %v10510, %v10510
    %v10767 = vmul.f32 %v10511, %v10511
    %v10768 = vmul.f32 %v10512, %v10512
    %v10769 = vmul.f32 %v10513, %v10513
    %v10770 = vmul.f32 %v10514, %v10514
    %v10771 = vmul.f32 %v10515, %v10515
    %v10772 = vmul.f32 %v10516, %v10516
    %v10773 = vmul.f32 %v10517, %v10517
    %v10774 = vmul.f32 %v10518, %v10518
    %v10775 = vmul.f32 %v10519, %v10519
    %v10776 = vmul.f32 %v10520, %v10520
    %v10777 = vmul.f32 %v10521, %v10521
    %v10778 = vmul.f32 %v10522, %v10522
    %v10779 = vmul.f32 %v10523, %v10523
    %v10780 = vmul.f32 %v10524, %v10524
    %v10781 = vmul.f32 %v10525, %v10525
    %v10782 = vmul.f32 %v10526, %v10526
    %v10783 = vmul.f32 %v10527, %v10527
    %v10784 = vmul.f32 %v10528, %v10528
    %v10785 = vmul.f32 %v10529, %v10529
    %v10786 = vmul.f32 %v10530, %v10530
    %v10787 = vmul.f32 %v10531, %v10531
    %v10788 = vmul.f32 %v10532, %v10532
    %v10789 = vmul.f32 %v10533, %v10533
    %v10790 = vmul.f32 %v10534, %v10534
    %v10791 = vmul.f32 %v10535, %v10535
    %v10792 = vmul.f32 %v10536, %v10536
    %v10793 = vmul.f32 %v10537, %v10537
    %v10794 = vmul.f32 %v10538, %v10538
    %v10795 = vmul.f32 %v10539, %v10539
    %v10796 = vmul.f32 %v10540, %v10540
    %v10797 = vmul.f32 %v10541, %v10541
    %v10798 = vmul.f32 %v10542, %v10542
    %v10799 = vmul.f32 %v10543, %v10543
    %v10800 = vmul.f32 %v10544, %v10544
    %v10801 = vmul.f32 %v10545, %v10545
    %v10802 = vmul.f32 %v10546, %v10546
    %v10803 = vmul.f32 %v10547, %v10547
    %v10804 = vmul.f32 %v10548, %v10548
    %v10805 = vmul.f32 %v10549, %v10549
    %v10806 = vmul.f32 %v10550, %v10550
    %v10807 = vmul.f32 %v10551, %v10551
    %v10808 = vmul.f32 %v10552, %v10552
    %v10809 = vmul.f32 %v10553, %v10553
    %v10810 = vmul.f32 %v10554, %v10554
    %v10811 = vmul.f32 %v10555, %v10555
    %v10812 = vmul.f32 %v10556, %v10556
    %v10813 = vmul.f32 %v10557, %v10557
    %v10814 = vmul.f32 %v10558, %v10558
    %v10815 = vmul.f32 %v10559, %v10559
    %v10816 = vmul.f32 %v10560, %v10560
    %v10817 = vmul.f32 %v10561, %v10561
    %v10818 = vmul.f32 %v10562, %v10562
    %v10819 = vmul.f32 %v10563, %v10563
    %v10820 = vmul.f32 %v10564, %v10564
    %v10821 = vmul.f32 %v10565, %v10565
    %v10822 = vmul.f32 %v10566, %v10566
    %v10823 = vmul.f32 %v10567, %v10567
    %v10824 = vmul.f32 %v10568, %v10568
    %v10825 = vmul.f32 %v10569, %v10569
    %v10826 = vmul.f32 %v10570, %v10570
    %v10827 = vmul.f32 %v10571, %v10571
    %v10828 = vmul.f32 %v10572, %v10572
    %v10829 = vmul.f32 %v10573, %v10573
    %v10830 = vmul.f32 %v10574, %v10574
    %v10831 = vmul.f32 %v10575, %v10575
    %v10832 = vmul.f32 %v10576, %v10576
    %v10833 = vmul.f32 %v10577, %v10577
    %v10834 = vmul.f32 %v10578, %v10578
    %v10835 = vmul.f32 %v10579, %v10579
    %v10836 = vmul.f32 %v10580, %v10580
    %v10837 = vmul.f32 %v10581, %v10581
    %v10838 = vmul.f32 %v10582, %v10582
    %v10839 = vmul.f32 %v10583, %v10583
    %v10840 = vmul.f32 %v10584, %v10584
    %v10841 = vmul.f32 %v10585, %v10585
    %v10842 = vmul.f32 %v10586, %v10586
    %v10843 = vmul.f32 %v10587, %v10587
    %v10844 = vmul.f32 %v10588, %v10588
    %v10845 = vmul.f32 %v10589, %v10589
    %v10846 = vadd.f32 %v10590, %v10598
    %v10847 = vadd.f32 %v10846, %v10606
    %v10848 = vadd.f32 %v10847, %v10614
    %v10849 = vadd.f32 %v10848, %v10622
    %v10850 = vadd.f32 %v10849, %v10630
    %v10851 = vadd.f32 %v10850, %v10638
    %v10852 = vadd.f32 %v10851, %v10646
    %v10853 = vadd.f32 %v10852, %v10654
    %v10854 = vadd.f32 %v10853, %v10662
    %v10855 = vadd.f32 %v10854, %v10670
    %v10856 = vadd.f32 %v10855, %v10678
    %v10857 = vadd.f32 %v10856, %v10686
    %v10858 = vadd.f32 %v10857, %v10694
    %v10859 = vadd.f32 %v10858, %v10702
    %v10860 = vadd.f32 %v10859, %v10710
    %v10861 = vadd.f32 %v10860, %v10718
    %v10862 = vadd.f32 %v10861, %v10726
    %v10863 = vadd.f32 %v10862, %v10734
    %v10864 = vadd.f32 %v10863, %v10742
    %v10865 = vadd.f32 %v10864, %v10750
    %v10866 = vadd.f32 %v10865, %v10758
    %v10867 = vadd.f32 %v10866, %v10766
    %v10868 = vadd.f32 %v10867, %v10774
    %v10869 = vadd.f32 %v10868, %v10782
    %v10870 = vadd.f32 %v10869, %v10790
    %v10871 = vadd.f32 %v10870, %v10798
    %v10872 = vadd.f32 %v10871, %v10806
    %v10873 = vadd.f32 %v10872, %v10814
    %v10874 = vadd.f32 %v10873, %v10822
    %v10875 = vadd.f32 %v10874, %v10830
    %v10876 = vadd.f32 %v10875, %v10838
    %v10877 = vrot.slane %v10876, 4
    %v10878 = vadd.f32 %v10876, %v10877
    %v10879 = vrot.slane %v10878, 2
    %v10880 = vadd.f32 %v10878, %v10879
    %v10881 = vrot.slane %v10880, 1
    %v10882 = vadd.f32 %v10880, %v10881
    %v10883 = vadd.f32 %v10591, %v10599
    %v10884 = vadd.f32 %v10883, %v10607
    %v10885 = vadd.f32 %v10884, %v10615
    %v10886 = vadd.f32 %v10885, %v10623
    %v10887 = vadd.f32 %v10886, %v10631
    %v10888 = vadd.f32 %v10887, %v10639
    %v10889 = vadd.f32 %v10888, %v10647
    %v10890 = vadd.f32 %v10889, %v10655
    %v10891 = vadd.f32 %v10890, %v10663
    %v10892 = vadd.f32 %v10891, %v10671
    %v10893 = vadd.f32 %v10892, %v10679
    %v10894 = vadd.f32 %v10893, %v10687
    %v10895 = vadd.f32 %v10894, %v10695
    %v10896 = vadd.f32 %v10895, %v10703
    %v10897 = vadd.f32 %v10896, %v10711
    %v10898 = vadd.f32 %v10897, %v10719
    %v10899 = vadd.f32 %v10898, %v10727
    %v10900 = vadd.f32 %v10899, %v10735
    %v10901 = vadd.f32 %v10900, %v10743
    %v10902 = vadd.f32 %v10901, %v10751
    %v10903 = vadd.f32 %v10902, %v10759
    %v10904 = vadd.f32 %v10903, %v10767
    %v10905 = vadd.f32 %v10904, %v10775
    %v10906 = vadd.f32 %v10905, %v10783
    %v10907 = vadd.f32 %v10906, %v10791
    %v10908 = vadd.f32 %v10907, %v10799
    %v10909 = vadd.f32 %v10908, %v10807
    %v10910 = vadd.f32 %v10909, %v10815
    %v10911 = vadd.f32 %v10910, %v10823
    %v10912 = vadd.f32 %v10911, %v10831
    %v10913 = vadd.f32 %v10912, %v10839
    %v10914 = vrot.slane %v10913, 4
    %v10915 = vadd.f32 %v10913, %v10914
    %v10916 = vrot.slane %v10915, 2
    %v10917 = vadd.f32 %v10915, %v10916
    %v10918 = vrot.slane %v10917, 1
    %v10919 = vadd.f32 %v10917, %v10918
    %v10920 = vadd.f32 %v10592, %v10600
    %v10921 = vadd.f32 %v10920, %v10608
    %v10922 = vadd.f32 %v10921, %v10616
    %v10923 = vadd.f32 %v10922, %v10624
    %v10924 = vadd.f32 %v10923, %v10632
    %v10925 = vadd.f32 %v10924, %v10640
    %v10926 = vadd.f32 %v10925, %v10648
    %v10927 = vadd.f32 %v10926, %v10656
    %v10928 = vadd.f32 %v10927, %v10664
    %v10929 = vadd.f32 %v10928, %v10672
    %v10930 = vadd.f32 %v10929, %v10680
    %v10931 = vadd.f32 %v10930, %v10688
    %v10932 = vadd.f32 %v10931, %v10696
    %v10933 = vadd.f32 %v10932, %v10704
    %v10934 = vadd.f32 %v10933, %v10712
    %v10935 = vadd.f32 %v10934, %v10720
    %v10936 = vadd.f32 %v10935, %v10728
    %v10937 = vadd.f32 %v10936, %v10736
    %v10938 = vadd.f32 %v10937, %v10744
    %v10939 = vadd.f32 %v10938, %v10752
    %v10940 = vadd.f32 %v10939, %v10760
    %v10941 = vadd.f32 %v10940, %v10768
    %v10942 = vadd.f32 %v10941, %v10776
    %v10943 = vadd.f32 %v10942, %v10784
    %v10944 = vadd.f32 %v10943, %v10792
    %v10945 = vadd.f32 %v10944, %v10800
    %v10946 = vadd.f32 %v10945, %v10808
    %v10947 = vadd.f32 %v10946, %v10816
    %v10948 = vadd.f32 %v10947, %v10824
    %v10949 = vadd.f32 %v10948, %v10832
    %v10950 = vadd.f32 %v10949, %v10840
    %v10951 = vrot.slane %v10950, 4
    %v10952 = vadd.f32 %v10950, %v10951
    %v10953 = vrot.slane %v10952, 2
    %v10954 = vadd.f32 %v10952, %v10953
    %v10955 = vrot.slane %v10954, 1
    %v10956 = vadd.f32 %v10954, %v10955
    %v10957 = vadd.f32 %v10593, %v10601
    %v10958 = vadd.f32 %v10957, %v10609
    %v10959 = vadd.f32 %v10958, %v10617
    %v10960 = vadd.f32 %v10959, %v10625
    %v10961 = vadd.f32 %v10960, %v10633
    %v10962 = vadd.f32 %v10961, %v10641
    %v10963 = vadd.f32 %v10962, %v10649
    %v10964 = vadd.f32 %v10963, %v10657
    %v10965 = vadd.f32 %v10964, %v10665
    %v10966 = vadd.f32 %v10965, %v10673
    %v10967 = vadd.f32 %v10966, %v10681
    %v10968 = vadd.f32 %v10967, %v10689
    %v10969 = vadd.f32 %v10968, %v10697
    %v10970 = vadd.f32 %v10969, %v10705
    %v10971 = vadd.f32 %v10970, %v10713
    %v10972 = vadd.f32 %v10971, %v10721
    %v10973 = vadd.f32 %v10972, %v10729
    %v10974 = vadd.f32 %v10973, %v10737
    %v10975 = vadd.f32 %v10974, %v10745
    %v10976 = vadd.f32 %v10975, %v10753
    %v10977 = vadd.f32 %v10976, %v10761
    %v10978 = vadd.f32 %v10977, %v10769
    %v10979 = vadd.f32 %v10978, %v10777
    %v10980 = vadd.f32 %v10979, %v10785
    %v10981 = vadd.f32 %v10980, %v10793
    %v10982 = vadd.f32 %v10981, %v10801
    %v10983 = vadd.f32 %v10982, %v10809
    %v10984 = vadd.f32 %v10983, %v10817
    %v10985 = vadd.f32 %v10984, %v10825
    %v10986 = vadd.f32 %v10985, %v10833
    %v10987 = vadd.f32 %v10986, %v10841
    %v10988 = vrot.slane %v10987, 4
    %v10989 = vadd.f32 %v10987, %v10988
    %v10990 = vrot.slane %v10989, 2
    %v10991 = vadd.f32 %v10989, %v10990
    %v10992 = vrot.slane %v10991, 1
    %v10993 = vadd.f32 %v10991, %v10992
    %v10994 = vadd.f32 %v10594, %v10602
    %v10995 = vadd.f32 %v10994, %v10610
    %v10996 = vadd.f32 %v10995, %v10618
    %v10997 = vadd.f32 %v10996, %v10626
    %v10998 = vadd.f32 %v10997, %v10634
    %v10999 = vadd.f32 %v10998, %v10642
    %v11000 = vadd.f32 %v10999, %v10650
    %v11001 = vadd.f32 %v11000, %v10658
    %v11002 = vadd.f32 %v11001, %v10666
    %v11003 = vadd.f32 %v11002, %v10674
    %v11004 = vadd.f32 %v11003, %v10682
    %v11005 = vadd.f32 %v11004, %v10690
    %v11006 = vadd.f32 %v11005, %v10698
    %v11007 = vadd.f32 %v11006, %v10706
    %v11008 = vadd.f32 %v11007, %v10714
    %v11009 = vadd.f32 %v11008, %v10722
    %v11010 = vadd.f32 %v11009, %v10730
    %v11011 = vadd.f32 %v11010, %v10738
    %v11012 = vadd.f32 %v11011, %v10746
    %v11013 = vadd.f32 %v11012, %v10754
    %v11014 = vadd.f32 %v11013, %v10762
    %v11015 = vadd.f32 %v11014, %v10770
    %v11016 = vadd.f32 %v11015, %v10778
    %v11017 = vadd.f32 %v11016, %v10786
    %v11018 = vadd.f32 %v11017, %v10794
    %v11019 = vadd.f32 %v11018, %v10802
    %v11020 = vadd.f32 %v11019, %v10810
    %v11021 = vadd.f32 %v11020, %v10818
    %v11022 = vadd.f32 %v11021, %v10826
    %v11023 = vadd.f32 %v11022, %v10834
    %v11024 = vadd.f32 %v11023, %v10842
    %v11025 = vrot.slane %v11024, 4
    %v11026 = vadd.f32 %v11024, %v11025
    %v11027 = vrot.slane %v11026, 2
    %v11028 = vadd.f32 %v11026, %v11027
    %v11029 = vrot.slane %v11028, 1
    %v11030 = vadd.f32 %v11028, %v11029
    %v11031 = vadd.f32 %v10595, %v10603
    %v11032 = vadd.f32 %v11031, %v10611
    %v11033 = vadd.f32 %v11032, %v10619
    %v11034 = vadd.f32 %v11033, %v10627
    %v11035 = vadd.f32 %v11034, %v10635
    %v11036 = vadd.f32 %v11035, %v10643
    %v11037 = vadd.f32 %v11036, %v10651
    %v11038 = vadd.f32 %v11037, %v10659
    %v11039 = vadd.f32 %v11038, %v10667
    %v11040 = vadd.f32 %v11039, %v10675
    %v11041 = vadd.f32 %v11040, %v10683
    %v11042 = vadd.f32 %v11041, %v10691
    %v11043 = vadd.f32 %v11042, %v10699
    %v11044 = vadd.f32 %v11043, %v10707
    %v11045 = vadd.f32 %v11044, %v10715
    %v11046 = vadd.f32 %v11045, %v10723
    %v11047 = vadd.f32 %v11046, %v10731
    %v11048 = vadd.f32 %v11047, %v10739
    %v11049 = vadd.f32 %v11048, %v10747
    %v11050 = vadd.f32 %v11049, %v10755
    %v11051 = vadd.f32 %v11050, %v10763
    %v11052 = vadd.f32 %v11051, %v10771
    %v11053 = vadd.f32 %v11052, %v10779
    %v11054 = vadd.f32 %v11053, %v10787
    %v11055 = vadd.f32 %v11054, %v10795
    %v11056 = vadd.f32 %v11055, %v10803
    %v11057 = vadd.f32 %v11056, %v10811
    %v11058 = vadd.f32 %v11057, %v10819
    %v11059 = vadd.f32 %v11058, %v10827
    %v11060 = vadd.f32 %v11059, %v10835
    %v11061 = vadd.f32 %v11060, %v10843
    %v11062 = vrot.slane %v11061, 4
    %v11063 = vadd.f32 %v11061, %v11062
    %v11064 = vrot.slane %v11063, 2
    %v11065 = vadd.f32 %v11063, %v11064
    %v11066 = vrot.slane %v11065, 1
    %v11067 = vadd.f32 %v11065, %v11066
    %v11068 = vadd.f32 %v10596, %v10604
    %v11069 = vadd.f32 %v11068, %v10612
    %v11070 = vadd.f32 %v11069, %v10620
    %v11071 = vadd.f32 %v11070, %v10628
    %v11072 = vadd.f32 %v11071, %v10636
    %v11073 = vadd.f32 %v11072, %v10644
    %v11074 = vadd.f32 %v11073, %v10652
    %v11075 = vadd.f32 %v11074, %v10660
    %v11076 = vadd.f32 %v11075, %v10668
    %v11077 = vadd.f32 %v11076, %v10676
    %v11078 = vadd.f32 %v11077, %v10684
    %v11079 = vadd.f32 %v11078, %v10692
    %v11080 = vadd.f32 %v11079, %v10700
    %v11081 = vadd.f32 %v11080, %v10708
    %v11082 = vadd.f32 %v11081, %v10716
    %v11083 = vadd.f32 %v11082, %v10724
    %v11084 = vadd.f32 %v11083, %v10732
    %v11085 = vadd.f32 %v11084, %v10740
    %v11086 = vadd.f32 %v11085, %v10748
    %v11087 = vadd.f32 %v11086, %v10756
    %v11088 = vadd.f32 %v11087, %v10764
    %v11089 = vadd.f32 %v11088, %v10772
    %v11090 = vadd.f32 %v11089, %v10780
    %v11091 = vadd.f32 %v11090, %v10788
    %v11092 = vadd.f32 %v11091, %v10796
    %v11093 = vadd.f32 %v11092, %v10804
    %v11094 = vadd.f32 %v11093, %v10812
    %v11095 = vadd.f32 %v11094, %v10820
    %v11096 = vadd.f32 %v11095, %v10828
    %v11097 = vadd.f32 %v11096, %v10836
    %v11098 = vadd.f32 %v11097, %v10844
    %v11099 = vrot.slane %v11098, 4
    %v11100 = vadd.f32 %v11098, %v11099
    %v11101 = vrot.slane %v11100, 2
    %v11102 = vadd.f32 %v11100, %v11101
    %v11103 = vrot.slane %v11102, 1
    %v11104 = vadd.f32 %v11102, %v11103
    %v11105 = vadd.f32 %v10597, %v10605
    %v11106 = vadd.f32 %v11105, %v10613
    %v11107 = vadd.f32 %v11106, %v10621
    %v11108 = vadd.f32 %v11107, %v10629
    %v11109 = vadd.f32 %v11108, %v10637
    %v11110 = vadd.f32 %v11109, %v10645
    %v11111 = vadd.f32 %v11110, %v10653
    %v11112 = vadd.f32 %v11111, %v10661
    %v11113 = vadd.f32 %v11112, %v10669
    %v11114 = vadd.f32 %v11113, %v10677
    %v11115 = vadd.f32 %v11114, %v10685
    %v11116 = vadd.f32 %v11115, %v10693
    %v11117 = vadd.f32 %v11116, %v10701
    %v11118 = vadd.f32 %v11117, %v10709
    %v11119 = vadd.f32 %v11118, %v10717
    %v11120 = vadd.f32 %v11119, %v10725
    %v11121 = vadd.f32 %v11120, %v10733
    %v11122 = vadd.f32 %v11121, %v10741
    %v11123 = vadd.f32 %v11122, %v10749
    %v11124 = vadd.f32 %v11123, %v10757
    %v11125 = vadd.f32 %v11124, %v10765
    %v11126 = vadd.f32 %v11125, %v10773
    %v11127 = vadd.f32 %v11126, %v10781
    %v11128 = vadd.f32 %v11127, %v10789
    %v11129 = vadd.f32 %v11128, %v10797
    %v11130 = vadd.f32 %v11129, %v10805
    %v11131 = vadd.f32 %v11130, %v10813
    %v11132 = vadd.f32 %v11131, %v10821
    %v11133 = vadd.f32 %v11132, %v10829
    %v11134 = vadd.f32 %v11133, %v10837
    %v11135 = vadd.f32 %v11134, %v10845
    %v11136 = vrot.slane %v11135, 4
    %v11137 = vadd.f32 %v11135, %v11136
    %v11138 = vrot.slane %v11137, 2
    %v11139 = vadd.f32 %v11137, %v11138
    %v11140 = vrot.slane %v11139, 1
    %v11141 = vadd.f32 %v11139, %v11140
    %v11142 = vmul.f32 %v10882, 0.0051020407
    %v11143 = vmul.f32 %v10919, 0.0051020407
    %v11144 = vmul.f32 %v10956, 0.0051020407
    %v11145 = vmul.f32 %v10993, 0.0051020407
    %v11146 = vmul.f32 %v11030, 0.0051020407
    %v11147 = vmul.f32 %v11067, 0.0051020407
    %v11148 = vmul.f32 %v11104, 0.0051020407
    %v11149 = vmul.f32 %v11141, 0.0051020407
    %v11150 = vld [vmem:[#allocation7] sm:$0xff]
    %v11151 = vadd.f32 %v11142, 1e-05
    %v11152 = vadd.f32 %v11143, 1e-05
    %v11153 = vadd.f32 %v11144, 1e-05
    %v11154 = vadd.f32 %v11145, 1e-05
    %v11155 = vadd.f32 %v11146, 1e-05
    %v11156 = vadd.f32 %v11147, 1e-05
    %v11157 = vadd.f32 %v11148, 1e-05
    %v11158 = vadd.f32 %v11149, 1e-05
    %v11159 = vrsqrt.pop %v11151
    %v11160 = vrsqrt.pop %v11152
    %v11161 = vrsqrt.pop %v11153
    %v11162 = vrsqrt.pop %v11154
    %v11163 = vrsqrt.pop %v11155
    %v11164 = vrsqrt.pop %v11156
    %v11165 = vrsqrt.pop %v11157
    %v11166 = vrsqrt.pop %v11158
    %v11175 = vcombine.low %v11159, %v11160
    %v11176 = vcombine.low %v11161, %v11162
    %v11177 = vcombine.low %v11163, %v11164
    %v11178 = vcombine.low %v11165, %v11166
    %v11180 = vunpack.c.l.s4 1966171168
    %v11181 = vunpack.c.0.s8 %v11180
    %v11182 = vlaneseq
    %v11183 = vshrl.u32 %v11182, 7
    %v11184 = vsub.s32 %v11181, %v11183
    %v11185 = vrot.slane %v11175, %v11184
    %v11187 = vunpack.c.l.s4 1966171168
    %v11188 = vunpack.c.0.s8 %v11187
    %v11189 = vlaneseq
    %v11190 = vshrl.u32 %v11189, 7
    %v11191 = vsub.s32 %v11188, %v11190
    %v11192 = vrot.slane %v11176, %v11191
    %v11194 = vunpack.c.l.s4 1966171168
    %v11195 = vunpack.c.0.s8 %v11194
    %v11196 = vlaneseq
    %v11197 = vshrl.u32 %v11196, 7
    %v11198 = vsub.s32 %v11195, %v11197
    %v11199 = vrot.slane %v11177, %v11198
    %v11201 = vunpack.c.l.s4 1966171168
    %v11202 = vunpack.c.0.s8 %v11201
    %v11203 = vlaneseq
    %v11204 = vshrl.u32 %v11203, 7
    %v11205 = vsub.s32 %v11202, %v11204
    %v11206 = vrot.slane %v11178, %v11205
    %v11207 = vcombine.low %v11185, %v11192
    %v11208 = vcombine.low %v11199, %v11206
    %v11210 = vunpack.c.l.s4 1966171168
    %v11211 = vunpack.c.0.s8 %v11210
    %v11212 = vlaneseq
    %v11213 = vshrl.u32 %v11212, 7
    %v11214 = vsub.s32 %v11211, %v11213
    %v11215 = vrot.slane %v11207, %v11214
    %v11217 = vunpack.c.l.s4 1966171168
    %v11218 = vunpack.c.0.s8 %v11217
    %v11219 = vlaneseq
    %v11220 = vshrl.u32 %v11219, 7
    %v11221 = vsub.s32 %v11218, %v11220
    %v11222 = vrot.slane %v11208, %v11221
    %v11223 = vcombine.low %v11215, %v11222
    %v11225 = vmul.f32 %v11150, %v11223
    %v11226 = vld [vmem:[#allocation9] sm:$0xff]
    %v11228 = vlaneseq
    %v11229 = vshrl.u32 %v11228, 7
    %v11230 = vsub.s32 0, %v11229
    %v11231 = vrot.slane %v11225, %v11230
    %v11232 = vlaneseq
    %v11233 = vshrl.u32 %v11232, 7
    %v11234 = vsub.s32 1, %v11233
    %v11235 = vrot.slane %v11225, %v11234
    %v11236 = vlaneseq
    %v11237 = vshrl.u32 %v11236, 7
    %v11238 = vsub.s32 2, %v11237
    %v11239 = vrot.slane %v11225, %v11238
    %v11240 = vlaneseq
    %v11241 = vshrl.u32 %v11240, 7
    %v11242 = vsub.s32 3, %v11241
    %v11243 = vrot.slane %v11225, %v11242
    %v11244 = vlaneseq
    %v11245 = vshrl.u32 %v11244, 7
    %v11246 = vsub.s32 4, %v11245
    %v11247 = vrot.slane %v11225, %v11246
    %v11248 = vlaneseq
    %v11249 = vshrl.u32 %v11248, 7
    %v11250 = vsub.s32 5, %v11249
    %v11251 = vrot.slane %v11225, %v11250
    %v11252 = vlaneseq
    %v11253 = vshrl.u32 %v11252, 7
    %v11254 = vsub.s32 6, %v11253
    %v11255 = vrot.slane %v11225, %v11254
    %v11256 = vlaneseq
    %v11257 = vshrl.u32 %v11256, 7
    %v11258 = vsub.s32 7, %v11257
    %v11259 = vrot.slane %v11225, %v11258
    %v11268 = vmul.f32 %v10070, %v11231
    %v11269 = vmul.f32 %v10071, %v11235
    %v11270 = vmul.f32 %v10072, %v11239
    %v11271 = vmul.f32 %v10073, %v11243
    %v11272 = vmul.f32 %v10074, %v11247
    %v11273 = vmul.f32 %v10075, %v11251
    %v11274 = vmul.f32 %v10076, %v11255
    %v11275 = vmul.f32 %v10077, %v11259
    %v11284 = vcombine.low %v11268, %v11269
    %v11285 = vcombine.low %v11270, %v11271
    %v11286 = vcombine.low %v11272, %v11273
    %v11287 = vcombine.low %v11274, %v11275
    %v11289 = vunpack.c.l.s4 1966171168
    %v11290 = vunpack.c.0.s8 %v11289
    %v11291 = vlaneseq
    %v11292 = vshrl.u32 %v11291, 7
    %v11293 = vsub.s32 %v11290, %v11292
    %v11294 = vrot.slane %v11284, %v11293
    %v11296 = vunpack.c.l.s4 1966171168
    %v11297 = vunpack.c.0.s8 %v11296
    %v11298 = vlaneseq
    %v11299 = vshrl.u32 %v11298, 7
    %v11300 = vsub.s32 %v11297, %v11299
    %v11301 = vrot.slane %v11285, %v11300
    %v11303 = vunpack.c.l.s4 1966171168
    %v11304 = vunpack.c.0.s8 %v11303
    %v11305 = vlaneseq
    %v11306 = vshrl.u32 %v11305, 7
    %v11307 = vsub.s32 %v11304, %v11306
    %v11308 = vrot.slane %v11286, %v11307
    %v11310 = vunpack.c.l.s4 1966171168
    %v11311 = vunpack.c.0.s8 %v11310
    %v11312 = vlaneseq
    %v11313 = vshrl.u32 %v11312, 7
    %v11314 = vsub.s32 %v11311, %v11313
    %v11315 = vrot.slane %v11287, %v11314
    %v11316 = vcombine.low %v11294, %v11301
    %v11317 = vcombine.low %v11308, %v11315
    %v11319 = vunpack.c.l.s4 1966171168
    %v11320 = vunpack.c.0.s8 %v11319
    %v11321 = vlaneseq
    %v11322 = vshrl.u32 %v11321, 7
    %v11323 = vsub.s32 %v11320, %v11322
    %v11324 = vrot.slane %v11316, %v11323
    %v11326 = vunpack.c.l.s4 1966171168
    %v11327 = vunpack.c.0.s8 %v11326
    %v11328 = vlaneseq
    %v11329 = vshrl.u32 %v11328, 7
    %v11330 = vsub.s32 %v11327, %v11329
    %v11331 = vrot.slane %v11317, %v11330
    %v11332 = vcombine.low %v11324, %v11331
    %v11334 = vsub.f32 %v11226, %v11332
    %v11335 = vmul.f32 %v9037, %v11231
    %v11336 = vmul.f32 %v9039, %v11235
    %v11337 = vmul.f32 %v9230, %v11239
    %v11338 = vmul.f32 %v9232, %v11243
    %v11339 = vmul.f32 %v9423, %v11247
    %v11340 = vmul.f32 %v9425, %v11251
    %v11341 = vmul.f32 %v9616, %v11255
    %v11342 = vmul.f32 %v9618, %v11259
    %v11343 = vmul.f32 %v9041, %v11231
    %v11344 = vmul.f32 %v9043, %v11235
    %v11345 = vmul.f32 %v9234, %v11239
    %v11346 = vmul.f32 %v9236, %v11243
    %v11347 = vmul.f32 %v9427, %v11247
    %v11348 = vmul.f32 %v9429, %v11251
    %v11349 = vmul.f32 %v9620, %v11255
    %v11350 = vmul.f32 %v9622, %v11259
    %v11351 = vmul.f32 %v9047, %v11231
    %v11352 = vmul.f32 %v9049, %v11235
    %v11353 = vmul.f32 %v9240, %v11239
    %v11354 = vmul.f32 %v9242, %v11243
    %v11355 = vmul.f32 %v9433, %v11247
    %v11356 = vmul.f32 %v9435, %v11251
    %v11357 = vmul.f32 %v9626, %v11255
    %v11358 = vmul.f32 %v9628, %v11259
    %v11359 = vmul.f32 %v9051, %v11231
    %v11360 = vmul.f32 %v9053, %v11235
    %v11361 = vmul.f32 %v9244, %v11239
    %v11362 = vmul.f32 %v9246, %v11243
    %v11363 = vmul.f32 %v9437, %v11247
    %v11364 = vmul.f32 %v9439, %v11251
    %v11365 = vmul.f32 %v9630, %v11255
    %v11366 = vmul.f32 %v9632, %v11259
    %v11367 = vmul.f32 %v9057, %v11231
    %v11368 = vmul.f32 %v9059, %v11235
    %v11369 = vmul.f32 %v9250, %v11239
    %v11370 = vmul.f32 %v9252, %v11243
    %v11371 = vmul.f32 %v9443, %v11247
    %v11372 = vmul.f32 %v9445, %v11251
    %v11373 = vmul.f32 %v9636, %v11255
    %v11374 = vmul.f32 %v9638, %v11259
    %v11375 = vmul.f32 %v9061, %v11231
    %v11376 = vmul.f32 %v9063, %v11235
    %v11377 = vmul.f32 %v9254, %v11239
    %v11378 = vmul.f32 %v9256, %v11243
    %v11379 = vmul.f32 %v9447, %v11247
    %v11380 = vmul.f32 %v9449, %v11251
    %v11381 = vmul.f32 %v9640, %v11255
    %v11382 = vmul.f32 %v9642, %v11259
    %v11383 = vmul.f32 %v9067, %v11231
    %v11384 = vmul.f32 %v9069, %v11235
    %v11385 = vmul.f32 %v9260, %v11239
    %v11386 = vmul.f32 %v9262, %v11243
    %v11387 = vmul.f32 %v9453, %v11247
    %v11388 = vmul.f32 %v9455, %v11251
    %v11389 = vmul.f32 %v9646, %v11255
    %v11390 = vmul.f32 %v9648, %v11259
    %v11391 = vmul.f32 %v9071, %v11231
    %v11392 = vmul.f32 %v9073, %v11235
    %v11393 = vmul.f32 %v9264, %v11239
    %v11394 = vmul.f32 %v9266, %v11243
    %v11395 = vmul.f32 %v9457, %v11247
    %v11396 = vmul.f32 %v9459, %v11251
    %v11397 = vmul.f32 %v9650, %v11255
    %v11398 = vmul.f32 %v9652, %v11259
    %v11399 = vmul.f32 %v9077, %v11231
    %v11400 = vmul.f32 %v9079, %v11235
    %v11401 = vmul.f32 %v9270, %v11239
    %v11402 = vmul.f32 %v9272, %v11243
    %v11403 = vmul.f32 %v9463, %v11247
    %v11404 = vmul.f32 %v9465, %v11251
    %v11405 = vmul.f32 %v9656, %v11255
    %v11406 = vmul.f32 %v9658, %v11259
    %v11407 = vmul.f32 %v9081, %v11231
    %v11408 = vmul.f32 %v9083, %v11235
    %v11409 = vmul.f32 %v9274, %v11239
    %v11410 = vmul.f32 %v9276, %v11243
    %v11411 = vmul.f32 %v9467, %v11247
    %v11412 = vmul.f32 %v9469, %v11251
    %v11413 = vmul.f32 %v9660, %v11255
    %v11414 = vmul.f32 %v9662, %v11259
    %v11415 = vmul.f32 %v9087, %v11231
    %v11416 = vmul.f32 %v9089, %v11235
    %v11417 = vmul.f32 %v9280, %v11239
    %v11418 = vmul.f32 %v9282, %v11243
    %v11419 = vmul.f32 %v9473, %v11247
    %v11420 = vmul.f32 %v9475, %v11251
    %v11421 = vmul.f32 %v9666, %v11255
    %v11422 = vmul.f32 %v9668, %v11259
    %v11423 = vmul.f32 %v9091, %v11231
    %v11424 = vmul.f32 %v9093, %v11235
    %v11425 = vmul.f32 %v9284, %v11239
    %v11426 = vmul.f32 %v9286, %v11243
    %v11427 = vmul.f32 %v9477, %v11247
    %v11428 = vmul.f32 %v9479, %v11251
    %v11429 = vmul.f32 %v9670, %v11255
    %v11430 = vmul.f32 %v9672, %v11259
    %v11431 = vmul.f32 %v9097, %v11231
    %v11432 = vmul.f32 %v9099, %v11235
    %v11433 = vmul.f32 %v9290, %v11239
    %v11434 = vmul.f32 %v9292, %v11243
    %v11435 = vmul.f32 %v9483, %v11247
    %v11436 = vmul.f32 %v9485, %v11251
    %v11437 = vmul.f32 %v9676, %v11255
    %v11438 = vmul.f32 %v9678, %v11259
    %v11439 = vmul.f32 %v9101, %v11231
    %v11440 = vmul.f32 %v9103, %v11235
    %v11441 = vmul.f32 %v9294, %v11239
    %v11442 = vmul.f32 %v9296, %v11243
    %v11443 = vmul.f32 %v9487, %v11247
    %v11444 = vmul.f32 %v9489, %v11251
    %v11445 = vmul.f32 %v9680, %v11255
    %v11446 = vmul.f32 %v9682, %v11259
    %v11447 = vmul.f32 %v9107, %v11231
    %v11448 = vmul.f32 %v9109, %v11235
    %v11449 = vmul.f32 %v9300, %v11239
    %v11450 = vmul.f32 %v9302, %v11243
    %v11451 = vmul.f32 %v9493, %v11247
    %v11452 = vmul.f32 %v9495, %v11251
    %v11453 = vmul.f32 %v9686, %v11255
    %v11454 = vmul.f32 %v9688, %v11259
    %v11455 = vmul.f32 %v9111, %v11231
    %v11456 = vmul.f32 %v9113, %v11235
    %v11457 = vmul.f32 %v9304, %v11239
    %v11458 = vmul.f32 %v9306, %v11243
    %v11459 = vmul.f32 %v9497, %v11247
    %v11460 = vmul.f32 %v9499, %v11251
    %v11461 = vmul.f32 %v9690, %v11255
    %v11462 = vmul.f32 %v9692, %v11259
    %v11463 = vmul.f32 %v9117, %v11231
    %v11464 = vmul.f32 %v9119, %v11235
    %v11465 = vmul.f32 %v9310, %v11239
    %v11466 = vmul.f32 %v9312, %v11243
    %v11467 = vmul.f32 %v9503, %v11247
    %v11468 = vmul.f32 %v9505, %v11251
    %v11469 = vmul.f32 %v9696, %v11255
    %v11470 = vmul.f32 %v9698, %v11259
    %v11471 = vmul.f32 %v9121, %v11231
    %v11472 = vmul.f32 %v9123, %v11235
    %v11473 = vmul.f32 %v9314, %v11239
    %v11474 = vmul.f32 %v9316, %v11243
    %v11475 = vmul.f32 %v9507, %v11247
    %v11476 = vmul.f32 %v9509, %v11251
    %v11477 = vmul.f32 %v9700, %v11255
    %v11478 = vmul.f32 %v9702, %v11259
    %v11479 = vmul.f32 %v9127, %v11231
    %v11480 = vmul.f32 %v9129, %v11235
    %v11481 = vmul.f32 %v9320, %v11239
    %v11482 = vmul.f32 %v9322, %v11243
    %v11483 = vmul.f32 %v9513, %v11247
    %v11484 = vmul.f32 %v9515, %v11251
    %v11485 = vmul.f32 %v9706, %v11255
    %v11486 = vmul.f32 %v9708, %v11259
    %v11487 = vmul.f32 %v9131, %v11231
    %v11488 = vmul.f32 %v9133, %v11235
    %v11489 = vmul.f32 %v9324, %v11239
    %v11490 = vmul.f32 %v9326, %v11243
    %v11491 = vmul.f32 %v9517, %v11247
    %v11492 = vmul.f32 %v9519, %v11251
    %v11493 = vmul.f32 %v9710, %v11255
    %v11494 = vmul.f32 %v9712, %v11259
    %v11495 = vmul.f32 %v9137, %v11231
    %v11496 = vmul.f32 %v9139, %v11235
    %v11497 = vmul.f32 %v9330, %v11239
    %v11498 = vmul.f32 %v9332, %v11243
    %v11499 = vmul.f32 %v9523, %v11247
    %v11500 = vmul.f32 %v9525, %v11251
    %v11501 = vmul.f32 %v9716, %v11255
    %v11502 = vmul.f32 %v9718, %v11259
    %v11503 = vmul.f32 %v9141, %v11231
    %v11504 = vmul.f32 %v9143, %v11235
    %v11505 = vmul.f32 %v9334, %v11239
    %v11506 = vmul.f32 %v9336, %v11243
    %v11507 = vmul.f32 %v9527, %v11247
    %v11508 = vmul.f32 %v9529, %v11251
    %v11509 = vmul.f32 %v9720, %v11255
    %v11510 = vmul.f32 %v9722, %v11259
    %v11511 = vmul.f32 %v9147, %v11231
    %v11512 = vmul.f32 %v9149, %v11235
    %v11513 = vmul.f32 %v9340, %v11239
    %v11514 = vmul.f32 %v9342, %v11243
    %v11515 = vmul.f32 %v9533, %v11247
    %v11516 = vmul.f32 %v9535, %v11251
    %v11517 = vmul.f32 %v9726, %v11255
    %v11518 = vmul.f32 %v9728, %v11259
    %v11519 = vmul.f32 %v9151, %v11231
    %v11520 = vmul.f32 %v9153, %v11235
    %v11521 = vmul.f32 %v9344, %v11239
    %v11522 = vmul.f32 %v9346, %v11243
    %v11523 = vmul.f32 %v9537, %v11247
    %v11524 = vmul.f32 %v9539, %v11251
    %v11525 = vmul.f32 %v9730, %v11255
    %v11526 = vmul.f32 %v9732, %v11259
    %v11527 = vmul.f32 %v9157, %v11231
    %v11528 = vmul.f32 %v9159, %v11235
    %v11529 = vmul.f32 %v9350, %v11239
    %v11530 = vmul.f32 %v9352, %v11243
    %v11531 = vmul.f32 %v9543, %v11247
    %v11532 = vmul.f32 %v9545, %v11251
    %v11533 = vmul.f32 %v9736, %v11255
    %v11534 = vmul.f32 %v9738, %v11259
    %v11535 = vmul.f32 %v9161, %v11231
    %v11536 = vmul.f32 %v9163, %v11235
    %v11537 = vmul.f32 %v9354, %v11239
    %v11538 = vmul.f32 %v9356, %v11243
    %v11539 = vmul.f32 %v9547, %v11247
    %v11540 = vmul.f32 %v9549, %v11251
    %v11541 = vmul.f32 %v9740, %v11255
    %v11542 = vmul.f32 %v9742, %v11259
    %v11543 = vmul.f32 %v9167, %v11231
    %v11544 = vmul.f32 %v9169, %v11235
    %v11545 = vmul.f32 %v9360, %v11239
    %v11546 = vmul.f32 %v9362, %v11243
    %v11547 = vmul.f32 %v9553, %v11247
    %v11548 = vmul.f32 %v9555, %v11251
    %v11549 = vmul.f32 %v9746, %v11255
    %v11550 = vmul.f32 %v9748, %v11259
    %v11551 = vmul.f32 %v9171, %v11231
    %v11552 = vmul.f32 %v9173, %v11235
    %v11553 = vmul.f32 %v9364, %v11239
    %v11554 = vmul.f32 %v9366, %v11243
    %v11555 = vmul.f32 %v9557, %v11247
    %v11556 = vmul.f32 %v9559, %v11251
    %v11557 = vmul.f32 %v9750, %v11255
    %v11558 = vmul.f32 %v9752, %v11259
    %v11559 = vmul.f32 %v9177, %v11231
    %v11560 = vmul.f32 %v9179, %v11235
    %v11561 = vmul.f32 %v9370, %v11239
    %v11562 = vmul.f32 %v9372, %v11243
    %v11563 = vmul.f32 %v9563, %v11247
    %v11564 = vmul.f32 %v9565, %v11251
    %v11565 = vmul.f32 %v9756, %v11255
    %v11566 = vmul.f32 %v9758, %v11259
    %v11567 = vmul.f32 %v9181, %v11231
    %v11568 = vmul.f32 %v9183, %v11235
    %v11569 = vmul.f32 %v9374, %v11239
    %v11570 = vmul.f32 %v9376, %v11243
    %v11571 = vmul.f32 %v9567, %v11247
    %v11572 = vmul.f32 %v9569, %v11251
    %v11573 = vmul.f32 %v9760, %v11255
    %v11574 = vmul.f32 %v9762, %v11259
    %v11575 = vmul.f32 %v9187, %v11231
    %v11576 = vmul.f32 %v9189, %v11235
    %v11577 = vmul.f32 %v9380, %v11239
    %v11578 = vmul.f32 %v9382, %v11243
    %v11579 = vmul.f32 %v9573, %v11247
    %v11580 = vmul.f32 %v9575, %v11251
    %v11581 = vmul.f32 %v9766, %v11255
    %v11582 = vmul.f32 %v9768, %v11259
    %v11583 = vmul.f32 %v9191, %v11231
    %v11584 = vmul.f32 %v9193, %v11235
    %v11585 = vmul.f32 %v9384, %v11239
    %v11586 = vmul.f32 %v9386, %v11243
    %v11587 = vmul.f32 %v9577, %v11247
    %v11588 = vmul.f32 %v9579, %v11251
    %v11589 = vmul.f32 %v9770, %v11255
    %v11590 = vmul.f32 %v9772, %v11259
    %v11592 = vlaneseq
    %v11593 = vshrl.u32 %v11592, 7
    %v11594 = vsub.s32 0, %v11593
    %v11595 = vrot.slane %v11334, %v11594
    %v11596 = vlaneseq
    %v11597 = vshrl.u32 %v11596, 7
    %v11598 = vsub.s32 1, %v11597
    %v11599 = vrot.slane %v11334, %v11598
    %v11600 = vlaneseq
    %v11601 = vshrl.u32 %v11600, 7
    %v11602 = vsub.s32 2, %v11601
    %v11603 = vrot.slane %v11334, %v11602
    %v11604 = vlaneseq
    %v11605 = vshrl.u32 %v11604, 7
    %v11606 = vsub.s32 3, %v11605
    %v11607 = vrot.slane %v11334, %v11606
    %v11608 = vlaneseq
    %v11609 = vshrl.u32 %v11608, 7
    %v11610 = vsub.s32 4, %v11609
    %v11611 = vrot.slane %v11334, %v11610
    %v11612 = vlaneseq
    %v11613 = vshrl.u32 %v11612, 7
    %v11614 = vsub.s32 5, %v11613
    %v11615 = vrot.slane %v11334, %v11614
    %v11616 = vlaneseq
    %v11617 = vshrl.u32 %v11616, 7
    %v11618 = vsub.s32 6, %v11617
    %v11619 = vrot.slane %v11334, %v11618
    %v11620 = vlaneseq
    %v11621 = vshrl.u32 %v11620, 7
    %v11622 = vsub.s32 7, %v11621
    %v11623 = vrot.slane %v11334, %v11622
    %v11632 = vadd.f32 %v11335, %v11595
    %v11633 = vadd.f32 %v11336, %v11599
    %v11634 = vadd.f32 %v11337, %v11603
    %v11635 = vadd.f32 %v11338, %v11607
    %v11636 = vadd.f32 %v11339, %v11611
    %v11637 = vadd.f32 %v11340, %v11615
    %v11638 = vadd.f32 %v11341, %v11619
    %v11639 = vadd.f32 %v11342, %v11623
    %v11640 = vadd.f32 %v11343, %v11595
    %v11641 = vadd.f32 %v11344, %v11599
    %v11642 = vadd.f32 %v11345, %v11603
    %v11643 = vadd.f32 %v11346, %v11607
    %v11644 = vadd.f32 %v11347, %v11611
    %v11645 = vadd.f32 %v11348, %v11615
    %v11646 = vadd.f32 %v11349, %v11619
    %v11647 = vadd.f32 %v11350, %v11623
    %v11648 = vadd.f32 %v11351, %v11595
    %v11649 = vadd.f32 %v11352, %v11599
    %v11650 = vadd.f32 %v11353, %v11603
    %v11651 = vadd.f32 %v11354, %v11607
    %v11652 = vadd.f32 %v11355, %v11611
    %v11653 = vadd.f32 %v11356, %v11615
    %v11654 = vadd.f32 %v11357, %v11619
    %v11655 = vadd.f32 %v11358, %v11623
    %v11656 = vadd.f32 %v11359, %v11595
    %v11657 = vadd.f32 %v11360, %v11599
    %v11658 = vadd.f32 %v11361, %v11603
    %v11659 = vadd.f32 %v11362, %v11607
    %v11660 = vadd.f32 %v11363, %v11611
    %v11661 = vadd.f32 %v11364, %v11615
    %v11662 = vadd.f32 %v11365, %v11619
    %v11663 = vadd.f32 %v11366, %v11623
    %v11664 = vadd.f32 %v11367, %v11595
    %v11665 = vadd.f32 %v11368, %v11599
    %v11666 = vadd.f32 %v11369, %v11603
    %v11667 = vadd.f32 %v11370, %v11607
    %v11668 = vadd.f32 %v11371, %v11611
    %v11669 = vadd.f32 %v11372, %v11615
    %v11670 = vadd.f32 %v11373, %v11619
    %v11671 = vadd.f32 %v11374, %v11623
    %v11672 = vadd.f32 %v11375, %v11595
    %v11673 = vadd.f32 %v11376, %v11599
    %v11674 = vadd.f32 %v11377, %v11603
    %v11675 = vadd.f32 %v11378, %v11607
    %v11676 = vadd.f32 %v11379, %v11611
    %v11677 = vadd.f32 %v11380, %v11615
    %v11678 = vadd.f32 %v11381, %v11619
    %v11679 = vadd.f32 %v11382, %v11623
    %v11680 = vadd.f32 %v11383, %v11595
    %v11681 = vadd.f32 %v11384, %v11599
    %v11682 = vadd.f32 %v11385, %v11603
    %v11683 = vadd.f32 %v11386, %v11607
    %v11684 = vadd.f32 %v11387, %v11611
    %v11685 = vadd.f32 %v11388, %v11615
    %v11686 = vadd.f32 %v11389, %v11619
    %v11687 = vadd.f32 %v11390, %v11623
    %v11688 = vadd.f32 %v11391, %v11595
    %v11689 = vadd.f32 %v11392, %v11599
    %v11690 = vadd.f32 %v11393, %v11603
    %v11691 = vadd.f32 %v11394, %v11607
    %v11692 = vadd.f32 %v11395, %v11611
    %v11693 = vadd.f32 %v11396, %v11615
    %v11694 = vadd.f32 %v11397, %v11619
    %v11695 = vadd.f32 %v11398, %v11623
    %v11696 = vadd.f32 %v11399, %v11595
    %v11697 = vadd.f32 %v11400, %v11599
    %v11698 = vadd.f32 %v11401, %v11603
    %v11699 = vadd.f32 %v11402, %v11607
    %v11700 = vadd.f32 %v11403, %v11611
    %v11701 = vadd.f32 %v11404, %v11615
    %v11702 = vadd.f32 %v11405, %v11619
    %v11703 = vadd.f32 %v11406, %v11623
    %v11704 = vadd.f32 %v11407, %v11595
    %v11705 = vadd.f32 %v11408, %v11599
    %v11706 = vadd.f32 %v11409, %v11603
    %v11707 = vadd.f32 %v11410, %v11607
    %v11708 = vadd.f32 %v11411, %v11611
    %v11709 = vadd.f32 %v11412, %v11615
    %v11710 = vadd.f32 %v11413, %v11619
    %v11711 = vadd.f32 %v11414, %v11623
    %v11712 = vadd.f32 %v11415, %v11595
    %v11713 = vadd.f32 %v11416, %v11599
    %v11714 = vadd.f32 %v11417, %v11603
    %v11715 = vadd.f32 %v11418, %v11607
    %v11716 = vadd.f32 %v11419, %v11611
    %v11717 = vadd.f32 %v11420, %v11615
    %v11718 = vadd.f32 %v11421, %v11619
    %v11719 = vadd.f32 %v11422, %v11623
    %v11720 = vadd.f32 %v11423, %v11595
    %v11721 = vadd.f32 %v11424, %v11599
    %v11722 = vadd.f32 %v11425, %v11603
    %v11723 = vadd.f32 %v11426, %v11607
    %v11724 = vadd.f32 %v11427, %v11611
    %v11725 = vadd.f32 %v11428, %v11615
    %v11726 = vadd.f32 %v11429, %v11619
    %v11727 = vadd.f32 %v11430, %v11623
    %v11728 = vadd.f32 %v11431, %v11595
    %v11729 = vadd.f32 %v11432, %v11599
    %v11730 = vadd.f32 %v11433, %v11603
    %v11731 = vadd.f32 %v11434, %v11607
    %v11732 = vadd.f32 %v11435, %v11611
    %v11733 = vadd.f32 %v11436, %v11615
    %v11734 = vadd.f32 %v11437, %v11619
    %v11735 = vadd.f32 %v11438, %v11623
    %v11736 = vadd.f32 %v11439, %v11595
    %v11737 = vadd.f32 %v11440, %v11599
    %v11738 = vadd.f32 %v11441, %v11603
    %v11739 = vadd.f32 %v11442, %v11607
    %v11740 = vadd.f32 %v11443, %v11611
    %v11741 = vadd.f32 %v11444, %v11615
    %v11742 = vadd.f32 %v11445, %v11619
    %v11743 = vadd.f32 %v11446, %v11623
    %v11744 = vadd.f32 %v11447, %v11595
    %v11745 = vadd.f32 %v11448, %v11599
    %v11746 = vadd.f32 %v11449, %v11603
    %v11747 = vadd.f32 %v11450, %v11607
    %v11748 = vadd.f32 %v11451, %v11611
    %v11749 = vadd.f32 %v11452, %v11615
    %v11750 = vadd.f32 %v11453, %v11619
    %v11751 = vadd.f32 %v11454, %v11623
    %v11752 = vadd.f32 %v11455, %v11595
    %v11753 = vadd.f32 %v11456, %v11599
    %v11754 = vadd.f32 %v11457, %v11603
    %v11755 = vadd.f32 %v11458, %v11607
    %v11756 = vadd.f32 %v11459, %v11611
    %v11757 = vadd.f32 %v11460, %v11615
    %v11758 = vadd.f32 %v11461, %v11619
    %v11759 = vadd.f32 %v11462, %v11623
    %v11760 = vadd.f32 %v11463, %v11595
    %v11761 = vadd.f32 %v11464, %v11599
    %v11762 = vadd.f32 %v11465, %v11603
    %v11763 = vadd.f32 %v11466, %v11607
    %v11764 = vadd.f32 %v11467, %v11611
    %v11765 = vadd.f32 %v11468, %v11615
    %v11766 = vadd.f32 %v11469, %v11619
    %v11767 = vadd.f32 %v11470, %v11623
    %v11768 = vadd.f32 %v11471, %v11595
    %v11769 = vadd.f32 %v11472, %v11599
    %v11770 = vadd.f32 %v11473, %v11603
    %v11771 = vadd.f32 %v11474, %v11607
    %v11772 = vadd.f32 %v11475, %v11611
    %v11773 = vadd.f32 %v11476, %v11615
    %v11774 = vadd.f32 %v11477, %v11619
    %v11775 = vadd.f32 %v11478, %v11623
    %v11776 = vadd.f32 %v11479, %v11595
    %v11777 = vadd.f32 %v11480, %v11599
    %v11778 = vadd.f32 %v11481, %v11603
    %v11779 = vadd.f32 %v11482, %v11607
    %v11780 = vadd.f32 %v11483, %v11611
    %v11781 = vadd.f32 %v11484, %v11615
    %v11782 = vadd.f32 %v11485, %v11619
    %v11783 = vadd.f32 %v11486, %v11623
    %v11784 = vadd.f32 %v11487, %v11595
    %v11785 = vadd.f32 %v11488, %v11599
    %v11786 = vadd.f32 %v11489, %v11603
    %v11787 = vadd.f32 %v11490, %v11607
    %v11788 = vadd.f32 %v11491, %v11611
    %v11789 = vadd.f32 %v11492, %v11615
    %v11790 = vadd.f32 %v11493, %v11619
    %v11791 = vadd.f32 %v11494, %v11623
    %v11792 = vadd.f32 %v11495, %v11595
    %v11793 = vadd.f32 %v11496, %v11599
    %v11794 = vadd.f32 %v11497, %v11603
    %v11795 = vadd.f32 %v11498, %v11607
    %v11796 = vadd.f32 %v11499, %v11611
    %v11797 = vadd.f32 %v11500, %v11615
    %v11798 = vadd.f32 %v11501, %v11619
    %v11799 = vadd.f32 %v11502, %v11623
    %v11800 = vadd.f32 %v11503, %v11595
    %v11801 = vadd.f32 %v11504, %v11599
    %v11802 = vadd.f32 %v11505, %v11603
    %v11803 = vadd.f32 %v11506, %v11607
    %v11804 = vadd.f32 %v11507, %v11611
    %v11805 = vadd.f32 %v11508, %v11615
    %v11806 = vadd.f32 %v11509, %v11619
    %v11807 = vadd.f32 %v11510, %v11623
    %v11808 = vadd.f32 %v11511, %v11595
    %v11809 = vadd.f32 %v11512, %v11599
    %v11810 = vadd.f32 %v11513, %v11603
    %v11811 = vadd.f32 %v11514, %v11607
    %v11812 = vadd.f32 %v11515, %v11611
    %v11813 = vadd.f32 %v11516, %v11615
    %v11814 = vadd.f32 %v11517, %v11619
    %v11815 = vadd.f32 %v11518, %v11623
    %v11816 = vadd.f32 %v11519, %v11595
    %v11817 = vadd.f32 %v11520, %v11599
    %v11818 = vadd.f32 %v11521, %v11603
    %v11819 = vadd.f32 %v11522, %v11607
    %v11820 = vadd.f32 %v11523, %v11611
    %v11821 = vadd.f32 %v11524, %v11615
    %v11822 = vadd.f32 %v11525, %v11619
    %v11823 = vadd.f32 %v11526, %v11623
    %v11824 = vadd.f32 %v11527, %v11595
    %v11825 = vadd.f32 %v11528, %v11599
    %v11826 = vadd.f32 %v11529, %v11603
    %v11827 = vadd.f32 %v11530, %v11607
    %v11828 = vadd.f32 %v11531, %v11611
    %v11829 = vadd.f32 %v11532, %v11615
    %v11830 = vadd.f32 %v11533, %v11619
    %v11831 = vadd.f32 %v11534, %v11623
    %v11832 = vadd.f32 %v11535, %v11595
    %v11833 = vadd.f32 %v11536, %v11599
    %v11834 = vadd.f32 %v11537, %v11603
    %v11835 = vadd.f32 %v11538, %v11607
    %v11836 = vadd.f32 %v11539, %v11611
    %v11837 = vadd.f32 %v11540, %v11615
    %v11838 = vadd.f32 %v11541, %v11619
    %v11839 = vadd.f32 %v11542, %v11623
    %v11840 = vadd.f32 %v11543, %v11595
    %v11841 = vadd.f32 %v11544, %v11599
    %v11842 = vadd.f32 %v11545, %v11603
    %v11843 = vadd.f32 %v11546, %v11607
    %v11844 = vadd.f32 %v11547, %v11611
    %v11845 = vadd.f32 %v11548, %v11615
    %v11846 = vadd.f32 %v11549, %v11619
    %v11847 = vadd.f32 %v11550, %v11623
    %v11848 = vadd.f32 %v11551, %v11595
    %v11849 = vadd.f32 %v11552, %v11599
    %v11850 = vadd.f32 %v11553, %v11603
    %v11851 = vadd.f32 %v11554, %v11607
    %v11852 = vadd.f32 %v11555, %v11611
    %v11853 = vadd.f32 %v11556, %v11615
    %v11854 = vadd.f32 %v11557, %v11619
    %v11855 = vadd.f32 %v11558, %v11623
    %v11856 = vadd.f32 %v11559, %v11595
    %v11857 = vadd.f32 %v11560, %v11599
    %v11858 = vadd.f32 %v11561, %v11603
    %v11859 = vadd.f32 %v11562, %v11607
    %v11860 = vadd.f32 %v11563, %v11611
    %v11861 = vadd.f32 %v11564, %v11615
    %v11862 = vadd.f32 %v11565, %v11619
    %v11863 = vadd.f32 %v11566, %v11623
    %v11864 = vadd.f32 %v11567, %v11595
    %v11865 = vadd.f32 %v11568, %v11599
    %v11866 = vadd.f32 %v11569, %v11603
    %v11867 = vadd.f32 %v11570, %v11607
    %v11868 = vadd.f32 %v11571, %v11611
    %v11869 = vadd.f32 %v11572, %v11615
    %v11870 = vadd.f32 %v11573, %v11619
    %v11871 = vadd.f32 %v11574, %v11623
    %v11872 = vadd.f32 %v11575, %v11595
    %v11873 = vadd.f32 %v11576, %v11599
    %v11874 = vadd.f32 %v11577, %v11603
    %v11875 = vadd.f32 %v11578, %v11607
    %v11876 = vadd.f32 %v11579, %v11611
    %v11877 = vadd.f32 %v11580, %v11615
    %v11878 = vadd.f32 %v11581, %v11619
    %v11879 = vadd.f32 %v11582, %v11623
    %v11880 = vadd.f32 %v11583, %v11595
    %v11881 = vadd.f32 %v11584, %v11599
    %v11882 = vadd.f32 %v11585, %v11603
    %v11883 = vadd.f32 %v11586, %v11607
    %v11884 = vadd.f32 %v11587, %v11611
    %v11885 = vadd.f32 %v11588, %v11615
    %v11886 = vadd.f32 %v11589, %v11619
    %v11887 = vadd.f32 %v11590, %v11623
    %11888 = vst [vmem:[%s7] sm:$0xff] %v11632
    %11889 = vst [vmem:[%s7 + $0x8] sm:$0xff] %v11633
    %11890 = vst [vmem:[%s7 + $0x10] sm:$0xff] %v11634
    %11891 = vst [vmem:[%s7 + $0x18] sm:$0xff] %v11635
    %11892 = vst [vmem:[%s7 + $0x20] sm:$0xff] %v11636
    %11893 = vst [vmem:[%s7 + $0x28] sm:$0xff] %v11637
    %11894 = vst [vmem:[%s7 + $0x30] sm:$0xff] %v11638
    %11895 = vst [vmem:[%s7 + $0x38] sm:$0xff] %v11639
    %11896 = vst [vmem:[%s7 + $0x40] sm:$0xff] %v11640
    %11897 = vst [vmem:[%s7 + $0x48] sm:$0xff] %v11641
    %11898 = vst [vmem:[%s7 + $0x50] sm:$0xff] %v11642
    %11899 = vst [vmem:[%s7 + $0x58] sm:$0xff] %v11643
    %11900 = vst [vmem:[%s7 + $0x60] sm:$0xff] %v11644
    %11901 = vst [vmem:[%s7 + $0x68] sm:$0xff] %v11645
    %11902 = vst [vmem:[%s7 + $0x70] sm:$0xff] %v11646
    %11903 = vst [vmem:[%s7 + $0x78] sm:$0xff] %v11647
    %11904 = vst [vmem:[%s7 + $0x80] sm:$0xff] %v11648
    %11905 = vst [vmem:[%s7 + $0x88] sm:$0xff] %v11649
    %11906 = vst [vmem:[%s7 + $0x90] sm:$0xff] %v11650
    %11907 = vst [vmem:[%s7 + $0x98] sm:$0xff] %v11651
    %11908 = vst [vmem:[%s7 + $0xa0] sm:$0xff] %v11652
    %11909 = vst [vmem:[%s7 + $0xa8] sm:$0xff] %v11653
    %11910 = vst [vmem:[%s7 + $0xb0] sm:$0xff] %v11654
    %11911 = vst [vmem:[%s7 + $0xb8] sm:$0xff] %v11655
    %11912 = vst [vmem:[%s7 + $0xc0] sm:$0xff] %v11656
    %11913 = vst [vmem:[%s7 + $0xc8] sm:$0xff] %v11657
    %11914 = vst [vmem:[%s7 + $0xd0] sm:$0xff] %v11658
    %11915 = vst [vmem:[%s7 + $0xd8] sm:$0xff] %v11659
    %11916 = vst [vmem:[%s7 + $0xe0] sm:$0xff] %v11660
    %11917 = vst [vmem:[%s7 + $0xe8] sm:$0xff] %v11661
    %11918 = vst [vmem:[%s7 + $0xf0] sm:$0xff] %v11662
    %11919 = vst [vmem:[%s7 + $0xf8] sm:$0xff] %v11663
    %11920 = vst [vmem:[%s7 + $0x100] sm:$0xff] %v11664
    %11921 = vst [vmem:[%s7 + $0x108] sm:$0xff] %v11665
    %11922 = vst [vmem:[%s7 + $0x110] sm:$0xff] %v11666
    %11923 = vst [vmem:[%s7 + $0x118] sm:$0xff] %v11667
    %11924 = vst [vmem:[%s7 + $0x120] sm:$0xff] %v11668
    %11925 = vst [vmem:[%s7 + $0x128] sm:$0xff] %v11669
    %11926 = vst [vmem:[%s7 + $0x130] sm:$0xff] %v11670
    %11927 = vst [vmem:[%s7 + $0x138] sm:$0xff] %v11671
    %11928 = vst [vmem:[%s7 + $0x140] sm:$0xff] %v11672
    %11929 = vst [vmem:[%s7 + $0x148] sm:$0xff] %v11673
    %11930 = vst [vmem:[%s7 + $0x150] sm:$0xff] %v11674
    %11931 = vst [vmem:[%s7 + $0x158] sm:$0xff] %v11675
    %11932 = vst [vmem:[%s7 + $0x160] sm:$0xff] %v11676
    %11933 = vst [vmem:[%s7 + $0x168] sm:$0xff] %v11677
    %11934 = vst [vmem:[%s7 + $0x170] sm:$0xff] %v11678
    %11935 = vst [vmem:[%s7 + $0x178] sm:$0xff] %v11679
    %11936 = vst [vmem:[%s7 + $0x180] sm:$0xff] %v11680
    %11937 = vst [vmem:[%s7 + $0x188] sm:$0xff] %v11681
    %11938 = vst [vmem:[%s7 + $0x190] sm:$0xff] %v11682
    %11939 = vst [vmem:[%s7 + $0x198] sm:$0xff] %v11683
    %11940 = vst [vmem:[%s7 + $0x1a0] sm:$0xff] %v11684
    %11941 = vst [vmem:[%s7 + $0x1a8] sm:$0xff] %v11685
    %11942 = vst [vmem:[%s7 + $0x1b0] sm:$0xff] %v11686
    %11943 = vst [vmem:[%s7 + $0x1b8] sm:$0xff] %v11687
    %11944 = vst [vmem:[%s7 + $0x1c0] sm:$0xff] %v11688
    %11945 = vst [vmem:[%s7 + $0x1c8] sm:$0xff] %v11689
    %11946 = vst [vmem:[%s7 + $0x1d0] sm:$0xff] %v11690
    %11947 = vst [vmem:[%s7 + $0x1d8] sm:$0xff] %v11691
    %11948 = vst [vmem:[%s7 + $0x1e0] sm:$0xff] %v11692
    %11949 = vst [vmem:[%s7 + $0x1e8] sm:$0xff] %v11693
    %11950 = vst [vmem:[%s7 + $0x1f0] sm:$0xff] %v11694
    %11951 = vst [vmem:[%s7 + $0x1f8] sm:$0xff] %v11695
    %11952 = vst [vmem:[%s7 + $0x200] sm:$0xff] %v11696
    %11953 = vst [vmem:[%s7 + $0x208] sm:$0xff] %v11697
    %11954 = vst [vmem:[%s7 + $0x210] sm:$0xff] %v11698
    %11955 = vst [vmem:[%s7 + $0x218] sm:$0xff] %v11699
    %11956 = vst [vmem:[%s7 + $0x220] sm:$0xff] %v11700
    %11957 = vst [vmem:[%s7 + $0x228] sm:$0xff] %v11701
    %11958 = vst [vmem:[%s7 + $0x230] sm:$0xff] %v11702
    %11959 = vst [vmem:[%s7 + $0x238] sm:$0xff] %v11703
    %11960 = vst [vmem:[%s7 + $0x240] sm:$0xff] %v11704
    %11961 = vst [vmem:[%s7 + $0x248] sm:$0xff] %v11705
    %11962 = vst [vmem:[%s7 + $0x250] sm:$0xff] %v11706
    %11963 = vst [vmem:[%s7 + $0x258] sm:$0xff] %v11707
    %11964 = vst [vmem:[%s7 + $0x260] sm:$0xff] %v11708
    %11965 = vst [vmem:[%s7 + $0x268] sm:$0xff] %v11709
    %11966 = vst [vmem:[%s7 + $0x270] sm:$0xff] %v11710
    %11967 = vst [vmem:[%s7 + $0x278] sm:$0xff] %v11711
    %11968 = vst [vmem:[%s7 + $0x280] sm:$0xff] %v11712
    %11969 = vst [vmem:[%s7 + $0x288] sm:$0xff] %v11713
    %11970 = vst [vmem:[%s7 + $0x290] sm:$0xff] %v11714
    %11971 = vst [vmem:[%s7 + $0x298] sm:$0xff] %v11715
    %11972 = vst [vmem:[%s7 + $0x2a0] sm:$0xff] %v11716
    %11973 = vst [vmem:[%s7 + $0x2a8] sm:$0xff] %v11717
    %11974 = vst [vmem:[%s7 + $0x2b0] sm:$0xff] %v11718
    %11975 = vst [vmem:[%s7 + $0x2b8] sm:$0xff] %v11719
    %11976 = vst [vmem:[%s7 + $0x2c0] sm:$0xff] %v11720
    %11977 = vst [vmem:[%s7 + $0x2c8] sm:$0xff] %v11721
    %11978 = vst [vmem:[%s7 + $0x2d0] sm:$0xff] %v11722
    %11979 = vst [vmem:[%s7 + $0x2d8] sm:$0xff] %v11723
    %11980 = vst [vmem:[%s7 + $0x2e0] sm:$0xff] %v11724
    %11981 = vst [vmem:[%s7 + $0x2e8] sm:$0xff] %v11725
    %11982 = vst [vmem:[%s7 + $0x2f0] sm:$0xff] %v11726
    %11983 = vst [vmem:[%s7 + $0x2f8] sm:$0xff] %v11727
    %11984 = vst [vmem:[%s7 + $0x300] sm:$0xff] %v11728
    %11985 = vst [vmem:[%s7 + $0x308] sm:$0xff] %v11729
    %11986 = vst [vmem:[%s7 + $0x310] sm:$0xff] %v11730
    %11987 = vst [vmem:[%s7 + $0x318] sm:$0xff] %v11731
    %11988 = vst [vmem:[%s7 + $0x320] sm:$0xff] %v11732
    %11989 = vst [vmem:[%s7 + $0x328] sm:$0xff] %v11733
    %11990 = vst [vmem:[%s7 + $0x330] sm:$0xff] %v11734
    %11991 = vst [vmem:[%s7 + $0x338] sm:$0xff] %v11735
    %11992 = vst [vmem:[%s7 + $0x340] sm:$0xff] %v11736
    %11993 = vst [vmem:[%s7 + $0x348] sm:$0xff] %v11737
    %11994 = vst [vmem:[%s7 + $0x350] sm:$0xff] %v11738
    %11995 = vst [vmem:[%s7 + $0x358] sm:$0xff] %v11739
    %11996 = vst [vmem:[%s7 + $0x360] sm:$0xff] %v11740
    %11997 = vst [vmem:[%s7 + $0x368] sm:$0xff] %v11741
    %11998 = vst [vmem:[%s7 + $0x370] sm:$0xff] %v11742
    %11999 = vst [vmem:[%s7 + $0x378] sm:$0xff] %v11743
    %12000 = vst [vmem:[%s7 + $0x380] sm:$0xff] %v11744
    %12001 = vst [vmem:[%s7 + $0x388] sm:$0xff] %v11745
    %12002 = vst [vmem:[%s7 + $0x390] sm:$0xff] %v11746
    %12003 = vst [vmem:[%s7 + $0x398] sm:$0xff] %v11747
    %12004 = vst [vmem:[%s7 + $0x3a0] sm:$0xff] %v11748
    %12005 = vst [vmem:[%s7 + $0x3a8] sm:$0xff] %v11749
    %12006 = vst [vmem:[%s7 + $0x3b0] sm:$0xff] %v11750
    %12007 = vst [vmem:[%s7 + $0x3b8] sm:$0xff] %v11751
    %12008 = vst [vmem:[%s7 + $0x3c0] sm:$0xff] %v11752
    %12009 = vst [vmem:[%s7 + $0x3c8] sm:$0xff] %v11753
    %12010 = vst [vmem:[%s7 + $0x3d0] sm:$0xff] %v11754
    %12011 = vst [vmem:[%s7 + $0x3d8] sm:$0xff] %v11755
    %12012 = vst [vmem:[%s7 + $0x3e0] sm:$0xff] %v11756
    %12013 = vst [vmem:[%s7 + $0x3e8] sm:$0xff] %v11757
    %12014 = vst [vmem:[%s7 + $0x3f0] sm:$0xff] %v11758
    %12015 = vst [vmem:[%s7 + $0x3f8] sm:$0xff] %v11759
    %12016 = vst [vmem:[%s7 + $0x400] sm:$0xff] %v11760
    %12017 = vst [vmem:[%s7 + $0x408] sm:$0xff] %v11761
    %12018 = vst [vmem:[%s7 + $0x410] sm:$0xff] %v11762
    %12019 = vst [vmem:[%s7 + $0x418] sm:$0xff] %v11763
    %12020 = vst [vmem:[%s7 + $0x420] sm:$0xff] %v11764
    %12021 = vst [vmem:[%s7 + $0x428] sm:$0xff] %v11765
    %12022 = vst [vmem:[%s7 + $0x430] sm:$0xff] %v11766
    %12023 = vst [vmem:[%s7 + $0x438] sm:$0xff] %v11767
    %12024 = vst [vmem:[%s7 + $0x440] sm:$0xff] %v11768
    %12025 = vst [vmem:[%s7 + $0x448] sm:$0xff] %v11769
    %12026 = vst [vmem:[%s7 + $0x450] sm:$0xff] %v11770
    %12027 = vst [vmem:[%s7 + $0x458] sm:$0xff] %v11771
    %12028 = vst [vmem:[%s7 + $0x460] sm:$0xff] %v11772
    %12029 = vst [vmem:[%s7 + $0x468] sm:$0xff] %v11773
    %12030 = vst [vmem:[%s7 + $0x470] sm:$0xff] %v11774
    %12031 = vst [vmem:[%s7 + $0x478] sm:$0xff] %v11775
    %12032 = vst [vmem:[%s7 + $0x480] sm:$0xff] %v11776
    %12033 = vst [vmem:[%s7 + $0x488] sm:$0xff] %v11777
    %12034 = vst [vmem:[%s7 + $0x490] sm:$0xff] %v11778
    %12035 = vst [vmem:[%s7 + $0x498] sm:$0xff] %v11779
    %12036 = vst [vmem:[%s7 + $0x4a0] sm:$0xff] %v11780
    %12037 = vst [vmem:[%s7 + $0x4a8] sm:$0xff] %v11781
    %12038 = vst [vmem:[%s7 + $0x4b0] sm:$0xff] %v11782
    %12039 = vst [vmem:[%s7 + $0x4b8] sm:$0xff] %v11783
    %12040 = vst [vmem:[%s7 + $0x4c0] sm:$0xff] %v11784
    %12041 = vst [vmem:[%s7 + $0x4c8] sm:$0xff] %v11785
    %12042 = vst [vmem:[%s7 + $0x4d0] sm:$0xff] %v11786
    %12043 = vst [vmem:[%s7 + $0x4d8] sm:$0xff] %v11787
    %12044 = vst [vmem:[%s7 + $0x4e0] sm:$0xff] %v11788
    %12045 = vst [vmem:[%s7 + $0x4e8] sm:$0xff] %v11789
    %12046 = vst [vmem:[%s7 + $0x4f0] sm:$0xff] %v11790
    %12047 = vst [vmem:[%s7 + $0x4f8] sm:$0xff] %v11791
    %12048 = vst [vmem:[%s7 + $0x500] sm:$0xff] %v11792
    %12049 = vst [vmem:[%s7 + $0x508] sm:$0xff] %v11793
    %12050 = vst [vmem:[%s7 + $0x510] sm:$0xff] %v11794
    %12051 = vst [vmem:[%s7 + $0x518] sm:$0xff] %v11795
    %12052 = vst [vmem:[%s7 + $0x520] sm:$0xff] %v11796
    %12053 = vst [vmem:[%s7 + $0x528] sm:$0xff] %v11797
    %12054 = vst [vmem:[%s7 + $0x530] sm:$0xff] %v11798
    %12055 = vst [vmem:[%s7 + $0x538] sm:$0xff] %v11799
    %12056 = vst [vmem:[%s7 + $0x540] sm:$0xff] %v11800
    %12057 = vst [vmem:[%s7 + $0x548] sm:$0xff] %v11801
    %12058 = vst [vmem:[%s7 + $0x550] sm:$0xff] %v11802
    %12059 = vst [vmem:[%s7 + $0x558] sm:$0xff] %v11803
    %12060 = vst [vmem:[%s7 + $0x560] sm:$0xff] %v11804
    %12061 = vst [vmem:[%s7 + $0x568] sm:$0xff] %v11805
    %12062 = vst [vmem:[%s7 + $0x570] sm:$0xff] %v11806
    %12063 = vst [vmem:[%s7 + $0x578] sm:$0xff] %v11807
    %12064 = vst [vmem:[%s7 + $0x580] sm:$0xff] %v11808
    %12065 = vst [vmem:[%s7 + $0x588] sm:$0xff] %v11809
    %12066 = vst [vmem:[%s7 + $0x590] sm:$0xff] %v11810
    %12067 = vst [vmem:[%s7 + $0x598] sm:$0xff] %v11811
    %12068 = vst [vmem:[%s7 + $0x5a0] sm:$0xff] %v11812
    %12069 = vst [vmem:[%s7 + $0x5a8] sm:$0xff] %v11813
    %12070 = vst [vmem:[%s7 + $0x5b0] sm:$0xff] %v11814
    %12071 = vst [vmem:[%s7 + $0x5b8] sm:$0xff] %v11815
    %12072 = vst [vmem:[%s7 + $0x5c0] sm:$0xff] %v11816
    %12073 = vst [vmem:[%s7 + $0x5c8] sm:$0xff] %v11817
    %12074 = vst [vmem:[%s7 + $0x5d0] sm:$0xff] %v11818
    %12075 = vst [vmem:[%s7 + $0x5d8] sm:$0xff] %v11819
    %12076 = vst [vmem:[%s7 + $0x5e0] sm:$0xff] %v11820
    %12077 = vst [vmem:[%s7 + $0x5e8] sm:$0xff] %v11821
    %12078 = vst [vmem:[%s7 + $0x5f0] sm:$0xff] %v11822
    %12079 = vst [vmem:[%s7 + $0x5f8] sm:$0xff] %v11823
    %12080 = vst [vmem:[%s7 + $0x600] sm:$0xff] %v11824
    %12081 = vst [vmem:[%s7 + $0x608] sm:$0xff] %v11825
    %12082 = vst [vmem:[%s7 + $0x610] sm:$0xff] %v11826
    %12083 = vst [vmem:[%s7 + $0x618] sm:$0xff] %v11827
    %12084 = vst [vmem:[%s7 + $0x620] sm:$0xff] %v11828
    %12085 = vst [vmem:[%s7 + $0x628] sm:$0xff] %v11829
    %12086 = vst [vmem:[%s7 + $0x630] sm:$0xff] %v11830
    %12087 = vst [vmem:[%s7 + $0x638] sm:$0xff] %v11831
    %12088 = vst [vmem:[%s7 + $0x640] sm:$0xff] %v11832
    %12089 = vst [vmem:[%s7 + $0x648] sm:$0xff] %v11833
    %12090 = vst [vmem:[%s7 + $0x650] sm:$0xff] %v11834
    %12091 = vst [vmem:[%s7 + $0x658] sm:$0xff] %v11835
    %12092 = vst [vmem:[%s7 + $0x660] sm:$0xff] %v11836
    %12093 = vst [vmem:[%s7 + $0x668] sm:$0xff] %v11837
    %12094 = vst [vmem:[%s7 + $0x670] sm:$0xff] %v11838
    %12095 = vst [vmem:[%s7 + $0x678] sm:$0xff] %v11839
    %12096 = vst [vmem:[%s7 + $0x680] sm:$0xff] %v11840
    %12097 = vst [vmem:[%s7 + $0x688] sm:$0xff] %v11841
    %12098 = vst [vmem:[%s7 + $0x690] sm:$0xff] %v11842
    %12099 = vst [vmem:[%s7 + $0x698] sm:$0xff] %v11843
    %12100 = vst [vmem:[%s7 + $0x6a0] sm:$0xff] %v11844
    %12101 = vst [vmem:[%s7 + $0x6a8] sm:$0xff] %v11845
    %12102 = vst [vmem:[%s7 + $0x6b0] sm:$0xff] %v11846
    %12103 = vst [vmem:[%s7 + $0x6b8] sm:$0xff] %v11847
    %12104 = vst [vmem:[%s7 + $0x6c0] sm:$0xff] %v11848
    %12105 = vst [vmem:[%s7 + $0x6c8] sm:$0xff] %v11849
    %12106 = vst [vmem:[%s7 + $0x6d0] sm:$0xff] %v11850
    %12107 = vst [vmem:[%s7 + $0x6d8] sm:$0xff] %v11851
    %12108 = vst [vmem:[%s7 + $0x6e0] sm:$0xff] %v11852
    %12109 = vst [vmem:[%s7 + $0x6e8] sm:$0xff] %v11853
    %12110 = vst [vmem:[%s7 + $0x6f0] sm:$0xff] %v11854
    %12111 = vst [vmem:[%s7 + $0x6f8] sm:$0xff] %v11855
    %12112 = vst [vmem:[%s7 + $0x700] sm:$0xff] %v11856
    %12113 = vst [vmem:[%s7 + $0x708] sm:$0xff] %v11857
    %12114 = vst [vmem:[%s7 + $0x710] sm:$0xff] %v11858
    %12115 = vst [vmem:[%s7 + $0x718] sm:$0xff] %v11859
    %12116 = vst [vmem:[%s7 + $0x720] sm:$0xff] %v11860
    %12117 = vst [vmem:[%s7 + $0x728] sm:$0xff] %v11861
    %12118 = vst [vmem:[%s7 + $0x730] sm:$0xff] %v11862
    %12119 = vst [vmem:[%s7 + $0x738] sm:$0xff] %v11863
    %12120 = vst [vmem:[%s7 + $0x740] sm:$0xff] %v11864
    %12121 = vst [vmem:[%s7 + $0x748] sm:$0xff] %v11865
    %12122 = vst [vmem:[%s7 + $0x750] sm:$0xff] %v11866
    %12123 = vst [vmem:[%s7 + $0x758] sm:$0xff] %v11867
    %12124 = vst [vmem:[%s7 + $0x760] sm:$0xff] %v11868
    %12125 = vst [vmem:[%s7 + $0x768] sm:$0xff] %v11869
    %12126 = vst [vmem:[%s7 + $0x770] sm:$0xff] %v11870
    %12127 = vst [vmem:[%s7 + $0x778] sm:$0xff] %v11871
    %12128 = vst [vmem:[%s7 + $0x780] sm:$0xff] %v11872
    %12129 = vst [vmem:[%s7 + $0x788] sm:$0xff] %v11873
    %12130 = vst [vmem:[%s7 + $0x790] sm:$0xff] %v11874
    %12131 = vst [vmem:[%s7 + $0x798] sm:$0xff] %v11875
    %12132 = vst [vmem:[%s7 + $0x7a0] sm:$0xff] %v11876
    %12133 = vst [vmem:[%s7 + $0x7a8] sm:$0xff] %v11877
    %12134 = vst [vmem:[%s7 + $0x7b0] sm:$0xff] %v11878
    %12135 = vst [vmem:[%s7 + $0x7b8] sm:$0xff] %v11879
    %12136 = vst [vmem:[%s7 + $0x7c0] sm:$0xff] %v11880
    %12137 = vst [vmem:[%s7 + $0x7c8] sm:$0xff] %v11881
    %12138 = vst [vmem:[%s7 + $0x7d0] sm:$0xff] %v11882
    %12139 = vst [vmem:[%s7 + $0x7d8] sm:$0xff] %v11883
    %12140 = vst [vmem:[%s7 + $0x7e0] sm:$0xff] %v11884
    %12141 = vst [vmem:[%s7 + $0x7e8] sm:$0xff] %v11885
    %12142 = vst [vmem:[%s7 + $0x7f0] sm:$0xff] %v11886
    %12143 = vst [vmem:[%s7 + $0x7f8] sm:$0xff] %v11887
    // Predicated region
    $region50: #{fused_forward.1} parent=1 // pred_check
      _
    $region51: #{fused_forward.1} parent=1 // pred_check_branch
      %12145 = sbr.rel (0) target = $region53
    $region52: #{fused_forward.1} parent=1 // pred_region
      _
    $region53: #{fused_forward.1} parent=1 // pred_fallthru
      _
    // Predicated region
    $region54: #{fused_forward.1} parent=1 // pred_check
      _
    $region55: #{fused_forward.1} parent=1 // pred_check_branch
      %12147 = sbr.rel (0) target = $region57
    $region56: #{fused_forward.1} parent=1 // pred_region
      _
    $region57: #{fused_forward.1} parent=1 // pred_fallthru
      _
    %12148 = vsyncpa [#allocation3], 1
    %12149 = vsyncpa [#allocation5], 1
    %12150 = vsyncpa [#allocation8], 1

</llo_original>
